<compile_context>
chip_gen: v6e
topology: v6e:2x2x1
jax: 0.10.0
libtpu: 0.0.40
codegen_flags: <defaults>
</compile_context>

<pallas_src>
import functools

import jax
import jax.numpy as jnp
import numpy as np
from jax import lax
from jax.experimental import pallas as pl
from jax.experimental.pallas import tpu as pltpu

_LANE = 128
_SUBLANE_BF16 = 16


# ----------------------------------------------------------------------------
# Pallas kernel: batched branch head
#   sigmoid(1x1 part conv) -> part keep-mask -> per-part weighted global max
#   pool -> folded (p_linear . test_linear) projection
# ----------------------------------------------------------------------------
def _branch_head_kernel(cov_b_ref, feat_ref, cov_w_ref, w_fold_ref, out_ref, *,
                        threshold, hw_valid, bf16_vpu):
    """One grid step processes a [Bt, HWp, C] block of bf16 features.

    cov_b_ref  : SMEM f32[P]            1x1 conv bias (scalars)
    feat_ref   : VMEM bf16[Bt, HWp, C]  branch features, spatial flattened,
                                         HWp = HW zero-padded to a multiple of 16
    cov_w_ref  : VMEM bf16[C, P]        1x1 conv weight (transposed)
    w_fold_ref : VMEM bf16[P*C, Npad]   folded p_linear@test_linear weight,
                                         class dim zero-padded to 128 lanes
    out_ref    : VMEM f32[Bt, Npad]     classification scores (lane-dense)
    """
    Bt, HWp, C = feat_ref.shape
    P = cov_w_ref.shape[1]

    # Keep the feature block in bf16 — never materialize a full f32 copy.
    feat = feat_ref[...]                                              # bf16 [Bt,HWp,C]

    # 1x1 part conv for all Bt*HWp pixels in one bf16 MXU pass (f32 accum).
    logits = jnp.dot(feat.reshape(Bt * HWp, C), cov_w_ref[...],
                     preferred_element_type=jnp.float32)
    logits = logits.reshape(Bt, HWp, P)                               # f32

    # Rows past the true HW are zero padding; their sigmoid(bias) must not
    # leak into the local/global max used for the part keep-mask.
    if hw_valid < HWp:
        row_valid = lax.broadcasted_iota(jnp.int32, (1, HWp, 1), 1) < hw_valid
    else:
        row_valid = None

    w_parts = []
    local_max_parts = []
    for k in range(P):                                                # P small & static
        wk = jax.nn.sigmoid(logits[:, :, k:k + 1] + cov_b_ref[k])     # f32 [Bt,HWp,1]
        if row_valid is not None:
            wk = jnp.where(row_valid, wk, 0.0)
        w_parts.append(wk)
        local_max_parts.append(jnp.max(wk, axis=1))                   # [Bt,1]

    local_max = jnp.concatenate(local_max_parts, axis=1)              # [Bt,P]
    global_max = jnp.max(local_max, axis=1, keepdims=True)            # [Bt,1]
    # torch: local_max.ge(threshold * global_max)
    mask = (local_max >= threshold * global_max).astype(jnp.float32)  # [Bt,P]

    # Per-part weighted global max pool.  The keep-mask is applied AFTER the
    # pool: feat >= 0 (post-ReLU) and w >= 0, so the masked result is exactly
    # 0 in both orders (matches the PyTorch order).  Pooled parts are
    # concatenated part-major (torch.cat(blocks, dim=1)) and hit the MXU once
    # with K = P*C against the folded projection weight.
    mul_dtype = jnp.bfloat16 if bf16_vpu else jnp.float32
    pooled_parts = []
    for k in range(P):
        wk = w_parts[k].astype(mul_dtype)                             # [Bt,HWp,1]
        prod = feat * wk                      # bf16*bf16 (v6e/v7x) or bf16*f32->f32 (v5e)
        pk = jnp.max(prod, axis=1).astype(jnp.float32) * mask[:, k:k + 1]   # [Bt,C]
        pooled_parts.append(pk.astype(jnp.bfloat16))
    pooled = jnp.concatenate(pooled_parts, axis=1)                    # bf16 [Bt,P*C]

    out_ref[...] = jnp.dot(pooled, w_fold_ref[...],
                           preferred_element_type=jnp.float32)        # f32 [Bt,Npad]


# ----------------------------------------------------------------------------
# Wrapper helpers: tiling / padding / weight prep
# ----------------------------------------------------------------------------
def _round_up(x, m):
    return ((x + m - 1) // m) * m


def _vmem_limit_bytes():
    """~75% of physical VMEM (≈48 MiB on v7x, ≈96 MiB on v5e/v6e)."""
    cap = 64 * 1024 * 1024
    try:
        cap = int(pltpu.get_tpu_info().vmem_capacity_bytes)
    except Exception:
        pass
    return min((cap * 3) // 4, 112 * 1024 * 1024)


def _vpu_has_bf16():
    """True on v6e / v7x (bf16 VALU); False on v5e and older (f32-only VPU)."""
    try:
        kind = jax.devices()[0].device_kind.lower()
    except Exception:
        return False
    return not any(t in kind for t in ("v2", "v3", "v4", "v5"))


def _pick_block_b(B, HWp, C, vmem_limit_bytes):
    """Batch-block size: multiple of 8, Bt*HW >= ~512 MXU rows, double-buffered
    bf16 feature block within ~40% of the VMEM budget, and >= 2 grid blocks
    when the batch allows it (so v7x can shard across its two TensorCores)."""
    bt = max(32, 8 * pl.cdiv(pl.cdiv(512, HWp), 8))
    bt = min(bt, 8 * pl.cdiv(B, 8))                 # never pad by more than 7 samples
    feat_budget = (2 * vmem_limit_bytes) // 5
    while bt > 8 and 2 * (2 * bt * HWp * C) > feat_budget:
        bt -= 8
    if B >= 16:
        bt = min(bt, 8 * pl.cdiv(pl.cdiv(B, 2), 8))
    return max(bt, 8)


def prepare_head_params(cov_w, cov_b, p_w, attr_w, *, parts):
    """One-time eval prep: fold p_linear @ test_linear (no nonlinearity between
    them in eval mode; dropout is identity), pad the class dim to a lane-dense
    multiple of 128, and cast streamed weights to bf16 (MXU accumulates f32)."""
    C, P = cov_w.shape
    PC, _ = p_w.shape
    n_cls = attr_w.shape[1]
    assert P == parts and PC == P * C
    n_pad = _round_up(n_cls, _LANE)
    w_fold = jnp.dot(p_w.astype(jnp.float32), attr_w.astype(jnp.float32))  # [P*C, n_cls]
    w_fold = jnp.pad(w_fold, ((0, 0), (0, n_pad - n_cls))).astype(jnp.bfloat16)
    return dict(
        cov_w=cov_w.astype(jnp.bfloat16),              # [C, P]
        cov_b=cov_b.reshape(-1).astype(jnp.float32),   # [P]  (SMEM scalars)
        w_fold=w_fold,                                 # [P*C, n_pad]
        n_cls=n_cls, n_pad=n_pad, parts=P, channels=C,
    )


def branch_head(feat, head, *, threshold, block_b=None):
    """feat: [B, HW, C] bf16 features -> scores [B, n_cls] f32."""
    B, HW, C = feat.shape
    P, n_cls, n_pad = head['parts'], head['n_cls'], head['n_pad']
    assert C == head['channels']

    vmem_limit = _vmem_limit_bytes()

    # Pad the spatial dim to the bf16 sublane packing so the (Bt,HW)->(Bt*HW)
    # merge inside the kernel is layout-free (padded rows are masked in-kernel).
    HWp = _round_up(HW, _SUBLANE_BF16)

    bt = block_b if block_b is not None else _pick_block_b(B, HWp, C, vmem_limit)
    bt = max(8, _round_up(bt, 8))
    n_blocks = pl.cdiv(B, bt)
    b_pad = n_blocks * bt

    if b_pad != B or HWp != HW:
        feat = jnp.pad(feat, ((0, b_pad - B), (0, HWp - HW), (0, 0)))

    cost = pl.CostEstimate(
        flops=(2 * b_pad * HWp * C * P            # 1x1 part conv
               + 3 * b_pad * HWp * C * P          # per-part weighted multiply + max pool
               + 2 * b_pad * P * C * n_pad),      # folded projection
        transcendentals=b_pad * HWp * P,          # sigmoid
        bytes_accessed=(b_pad * HWp * C * 2       # bf16 features
                        + C * P * 2 + P * 4       # cov weight + bias
                        + P * C * n_pad * 2       # folded bf16 weight
                        + b_pad * n_pad * 4),     # f32 scores
    )

    kernel = functools.partial(_branch_head_kernel,
                               threshold=float(threshold),
                               hw_valid=HW,
                               bf16_vpu=_vpu_has_bf16())

    def make_specs(single_buffer_weights):
        wkw = dict(pipeline_mode=pl.Buffered(1)) if single_buffer_weights else {}
        in_specs = [
            pl.BlockSpec(memory_space=pltpu.MemorySpace.SMEM),            # cov_b
            pl.BlockSpec((bt, HWp, C), lambda b: (b, 0, 0)),              # feat
            pl.BlockSpec((C, P), lambda b: (0, 0), **wkw),                # cov_w
            pl.BlockSpec((P * C, n_pad), lambda b: (0, 0), **wkw),        # w_fold
        ]
        out_specs = pl.BlockSpec((bt, n_pad), lambda b: (b, 0))
        return in_specs, out_specs

    # Grid-invariant weights are single-buffered (pl.Buffered(1)) to halve
    # their VMEM footprint; fall back to default double-buffering if this
    # jax/libtpu build rejects a buffer count of 1.
    out, last_err = None, None
    for single_buffer_weights in (True, False):
        in_specs, out_specs = make_specs(single_buffer_weights)
        try:
            out = pl.pallas_call(
                kernel,
                out_shape=jax.ShapeDtypeStruct((b_pad, n_pad), jnp.float32),
                grid=(n_blocks,),
                in_specs=in_specs,
                out_specs=out_specs,
                compiler_params=pltpu.CompilerParams(
                    dimension_semantics=("parallel",),
                    vmem_limit_bytes=vmem_limit),
                cost_estimate=cost,
            )(head['cov_b'], feat, head['cov_w'], head['w_fold'])
            break
        except Exception as e:  # retry without Buffered(1)
            last_err = e
    if out is None:
        raise last_err

    return out[:B, :n_cls]


# ----------------------------------------------------------------------------
# Stand-in backbone + full eval-mode forward
# ----------------------------------------------------------------------------
def _stand_in_backbone(x_nchw, proj_w, out_hw):
    """Deterministic stand-in for the pretrained ResNet feature stages (glue).

    x_nchw: [B, Cin, H, W] -> bf16 [B, out_hw*out_hw, C_out].
    """
    B, Cin, H, W = x_nchw.shape
    stride = H // out_hw
    x = x_nchw.reshape(B, Cin, out_hw, stride, out_hw, stride).mean(axis=(3, 5))
    x = jnp.transpose(x, (0, 2, 3, 1))                                 # NHWC
    feat = jax.nn.relu(jnp.einsum('bhwc,cd->bhwd', x, proj_w))
    # bf16 halves HBM/VMEM traffic into the head kernel; head math stays f32.
    return feat.reshape(B, out_hw * out_hw, proj_w.shape[1]).astype(jnp.bfloat16)


def prepare_eval_params(params, *, parts):
    """Fold / cast all per-branch head weights once (eval-time prep)."""
    return {name: prepare_head_params(
                params[f'{name}_cov_w'], params[f'{name}_cov_b'],
                params[f'{name}_p_w'], params[f'{name}_attr_w'], parts=parts)
            for name in ('main', 'father', 'top')}


def gzsl_three_layer_hfln_forward(x, params, heads, *, threshold):
    """Eval-mode forward.  Returns (p_out, father_p_out, top_p_out)."""
    father_feat = _stand_in_backbone(x, params['father_proj'], params['father_hw'])
    father_p_out = branch_head(father_feat, heads['father'], threshold=threshold)

    top_feat = _stand_in_backbone(x, params['top_proj'], params['top_hw'])
    top_p_out = branch_head(top_feat, heads['top'], threshold=threshold)

    feat = _stand_in_backbone(x, params['main_proj'], params['main_hw'])
    p_out = branch_head(feat, heads['main'], threshold=threshold)

    return p_out, father_p_out, top_p_out


if __name__ == "__main__":
    key = jax.random.PRNGKey(0)
    ks = jax.random.split(key, 16)

    # --- small-shape configuration (scaled-down analogue of the module) ---
    B, Cin, H, W = 2, 4, 16, 16            # input image x (NCHW like PyTorch)
    parts = 2                              # cfg.parts
    threshold = 0.5                        # cfg.threshold
    d = 16                                 # attribute dim

    # branch channel / spatial sizes (stand-ins for 2048x7, 1024x14, 512x28)
    main_C, main_hw = 128, 4
    father_C, father_hw = 64, 8
    top_C, top_hw = 32, 16

    # class counts for the "all" (eval/test) attribute matrices
    n_cls, f_cls, t_cls = 6, 5, 4

    def rnd(k, shape, scale=0.1):
        return (scale * jax.random.normal(k, shape)).astype(jnp.float32)

    params = dict(
        # stand-in backbone projections (glue)
        main_proj=rnd(ks[0], (Cin, main_C)),
        father_proj=rnd(ks[1], (Cin, father_C)),
        top_proj=rnd(ks[2], (Cin, top_C)),
        main_hw=main_hw, father_hw=father_hw, top_hw=top_hw,
        # 1x1 part convs ([C, P] = transposed [P, C, 1, 1]) + bias
        main_cov_w=rnd(ks[3], (main_C, parts)), main_cov_b=rnd(ks[4], (1, parts)),
        father_cov_w=rnd(ks[5], (father_C, parts)), father_cov_b=rnd(ks[6], (1, parts)),
        top_cov_w=rnd(ks[7], (top_C, parts)), top_cov_b=rnd(ks[8], (1, parts)),
        # p_linear weights ([P*C, d] = transposed nn.Linear weight [d, P*C])
        main_p_w=rnd(ks[9], (parts * main_C, d)),
        father_p_w=rnd(ks[10], (parts * father_C, d)),
        top_p_w=rnd(ks[11], (parts * top_C, d)),
        # attribute (test_linear) matrices ([d, n_cls] = transposed attr [n_cls, d])
        main_attr_w=rnd(ks[12], (d, n_cls)),
        father_attr_w=rnd(ks[13], (d, f_cls)),
        top_attr_w=rnd(ks[14], (d, t_cls)),
    )

    x = rnd(ks[15], (B, Cin, H, W), scale=1.0)

    heads = prepare_eval_params(params, parts=parts)
    p_out, father_p_out, top_p_out = gzsl_three_layer_hfln_forward(
        x, params, heads, threshold=threshold)
    jax.block_until_ready((p_out, father_p_out, top_p_out))

    assert p_out.shape == (B, n_cls)
    assert father_p_out.shape == (B, f_cls)
    assert top_p_out.shape == (B, t_cls)

    # --- plain-JAX f32 reference of the head (same bf16 features) ---
    def head_ref(feat_bf16, cov_w, cov_b, p_w, attr_w):
        f = feat_bf16.astype(jnp.float32)
        logits = jnp.einsum('bhc,cp->bhp', f, cov_w) + cov_b[0]
        w = jax.nn.sigmoid(logits)
        local_max = w.max(axis=1)
        global_max = local_max.max(axis=1, keepdims=True)
        keep = (local_max >= threshold * global_max).astype(jnp.float32)
        w = w * keep[:, None, :]
        blocks = [jnp.max(f * w[:, :, k:k + 1], axis=1) for k in range(parts)]
        pooled = jnp.concatenate(blocks, axis=1)       # [B, P*C] part-major (torch.cat)
        return (pooled @ p_w) @ attr_w                 # two-step, like the module

    # Kernel streams bf16 weights / pooled activations (f32 accumulation), so
    # compare against the f32 reference with a correspondingly relaxed tolerance.
    for got, name in ((p_out, 'main'), (father_p_out, 'father'), (top_p_out, 'top')):
        feat = _stand_in_backbone(x, params[f'{name}_proj'], params[f'{name}_hw'])
        want = head_ref(feat, params[f'{name}_cov_w'], params[f'{name}_cov_b'],
                        params[f'{name}_p_w'], params[f'{name}_attr_w'])
        np.testing.assert_allclose(np.asarray(got), np.asarray(want),
                                   rtol=2e-2, atol=2e-3)

    print("KERNEL_OK")
</pallas_src>

<mosaic_0001>
module attributes {stable_mosaic.version = 11 : i64} {
  func.func @_branch_head_kernel(%arg0: i32, %arg1: memref<2xf32, #tpu.memory_space<smem>>, %arg2: memref<8x64x64xbf16, #tpu.memory_space<vmem>>, %arg3: memref<64x2xbf16, #tpu.memory_space<vmem>>, %arg4: memref<128x128xbf16, #tpu.memory_space<vmem>>, %arg5: memref<8x128xf32, #tpu.memory_space<vmem>>) attributes {dimension_semantics = [#tpu.dimension_semantics<parallel>], iteration_bounds = array<i64: 1>, scalar_prefetch = 0 : i64, scratch_operands = 0 : i64, tpu.core_type = #tpu.core_type<tc>, window_params = [{transform_indices = @transform_0, window_bounds = array<i64: 2>}, {transform_indices = @transform_1, window_bounds = array<i64: 8, 64, 64>}, {pipeline_mode = #tpu.pipeline_mode<synchronous>, transform_indices = @transform_2, window_bounds = array<i64: 64, 2>}, {pipeline_mode = #tpu.pipeline_mode<synchronous>, transform_indices = @transform_3, window_bounds = array<i64: 128, 128>}, {transform_indices = @transform_4, window_bounds = array<i64: 8, 128>}]} {
    %c0 = arith.constant 0 : index
    %c0_0 = arith.constant 0 : index
    %c0_1 = arith.constant 0 : index
    %0 = vector.load %arg2[%c0, %c0_0, %c0_1] : memref<8x64x64xbf16, #tpu.memory_space<vmem>>, vector<8x64x64xbf16>
    %1 = vector.shape_cast %0 : vector<8x64x64xbf16> to vector<512x64xbf16>
    %c0_2 = arith.constant 0 : index
    %c0_3 = arith.constant 0 : index
    %2 = vector.load %arg3[%c0_2, %c0_3] : memref<64x2xbf16, #tpu.memory_space<vmem>>, vector<64x2xbf16>
    %cst = arith.constant dense<0.000000e+00> : vector<512x2xf32>
    %3 = tpu.matmul %1, %2, %cst {dimension_numbers = #tpu.dot_dimension_numbers<[1], [0], [0], [1], [0, 0, 1, 1], [], []>} : vector<512x64xbf16>, vector<64x2xbf16>, vector<512x2xf32> -> vector<512x2xf32>
    %4 = vector.shape_cast %3 : vector<512x2xf32> to vector<8x64x2xf32>
    %5 = vector.extract_strided_slice %4 {offsets = [0, 0, 0], sizes = [8, 64, 1], strides = [1, 1, 1]} : vector<8x64x2xf32> to vector<8x64x1xf32>
    %c0_4 = arith.constant 0 : index
    %6 = memref.load %arg1[%c0_4] : memref<2xf32, #tpu.memory_space<smem>>
    %7 = vector.broadcast %6 : f32 to vector<8x64x1xf32>
    %8 = arith.addf %5, %7 : vector<8x64x1xf32>
    %9 = arith.negf %8 : vector<8x64x1xf32>
    %10 = math.exp %9 : vector<8x64x1xf32>
    %cst_5 = arith.constant 1.000000e+00 : f32
    %11 = vector.broadcast %cst_5 : f32 to vector<8x64x1xf32>
    %12 = arith.addf %11, %10 : vector<8x64x1xf32>
    %13 = arith.divf %11, %12 : vector<8x64x1xf32>
    %cst_6 = arith.constant dense<0xFF800000> : vector<8x1xf32>
    %14 = vector.multi_reduction <maximumf>, %13, %cst_6 [1] : vector<8x64x1xf32> to vector<8x1xf32>
    %15 = vector.extract_strided_slice %4 {offsets = [0, 0, 1], sizes = [8, 64, 1], strides = [1, 1, 1]} : vector<8x64x2xf32> to vector<8x64x1xf32>
    %c1 = arith.constant 1 : index
    %16 = memref.load %arg1[%c1] : memref<2xf32, #tpu.memory_space<smem>>
    %17 = vector.broadcast %16 : f32 to vector<8x64x1xf32>
    %18 = arith.addf %15, %17 : vector<8x64x1xf32>
    %19 = arith.negf %18 : vector<8x64x1xf32>
    %20 = math.exp %19 : vector<8x64x1xf32>
    %cst_7 = arith.constant 1.000000e+00 : f32
    %21 = vector.broadcast %cst_7 : f32 to vector<8x64x1xf32>
    %22 = arith.addf %21, %20 : vector<8x64x1xf32>
    %23 = arith.divf %21, %22 : vector<8x64x1xf32>
    %cst_8 = arith.constant dense<0xFF800000> : vector<8x1xf32>
    %24 = vector.multi_reduction <maximumf>, %23, %cst_8 [1] : vector<8x64x1xf32> to vector<8x1xf32>
    %25 = tpu.concatenate %14, %24 in 1 : vector<8x1xf32>, vector<8x1xf32> -> vector<8x2xf32>
    %cst_9 = arith.constant dense<0xFF800000> : vector<8xf32>
    %26 = vector.multi_reduction <maximumf>, %25, %cst_9 [1] : vector<8x2xf32> to vector<8xf32>
    %27 = vector.shape_cast %26 : vector<8xf32> to vector<8x1xf32>
    %cst_10 = arith.constant 5.000000e-01 : f32
    %28 = vector.broadcast %cst_10 : f32 to vector<8x1xf32>
    %29 = arith.mulf %28, %27 : vector<8x1xf32>
    %30 = vector.broadcast %29 : vector<8x1xf32> to vector<8x2xf32>
    %31 = arith.cmpf oge, %25, %30 : vector<8x2xf32>
    %32 = arith.extui %31 : vector<8x2xi1> to vector<8x2xi32>
    %33 = arith.sitofp %32 : vector<8x2xi32> to vector<8x2xf32>
    %34 = arith.truncf %13 : vector<8x64x1xf32> to vector<8x64x1xbf16>
    %35 = vector.broadcast %34 : vector<8x64x1xbf16> to vector<8x64x64xbf16>
    %36 = arith.mulf %0, %35 : vector<8x64x64xbf16>
    %cst_11 = arith.constant dense<0xFF80> : vector<8x64xbf16>
    %37 = vector.multi_reduction <maximumf>, %36, %cst_11 [1] : vector<8x64x64xbf16> to vector<8x64xbf16>
    %38 = arith.extf %37 : vector<8x64xbf16> to vector<8x64xf32>
    %39 = vector.extract_strided_slice %33 {offsets = [0, 0], sizes = [8, 1], strides = [1, 1]} : vector<8x2xf32> to vector<8x1xf32>
    %40 = vector.broadcast %39 : vector<8x1xf32> to vector<8x64xf32>
    %41 = arith.mulf %38, %40 : vector<8x64xf32>
    %42 = arith.truncf %41 : vector<8x64xf32> to vector<8x64xbf16>
    %43 = arith.truncf %23 : vector<8x64x1xf32> to vector<8x64x1xbf16>
    %44 = vector.broadcast %43 : vector<8x64x1xbf16> to vector<8x64x64xbf16>
    %45 = arith.mulf %0, %44 : vector<8x64x64xbf16>
    %cst_12 = arith.constant dense<0xFF80> : vector<8x64xbf16>
    %46 = vector.multi_reduction <maximumf>, %45, %cst_12 [1] : vector<8x64x64xbf16> to vector<8x64xbf16>
    %47 = arith.extf %46 : vector<8x64xbf16> to vector<8x64xf32>
    %48 = vector.extract_strided_slice %33 {offsets = [0, 1], sizes = [8, 1], strides = [1, 1]} : vector<8x2xf32> to vector<8x1xf32>
    %49 = vector.broadcast %48 : vector<8x1xf32> to vector<8x64xf32>
    %50 = arith.mulf %47, %49 : vector<8x64xf32>
    %51 = arith.truncf %50 : vector<8x64xf32> to vector<8x64xbf16>
    %52 = tpu.concatenate %42, %51 in 1 : vector<8x64xbf16>, vector<8x64xbf16> -> vector<8x128xbf16>
    %c0_13 = arith.constant 0 : index
    %c0_14 = arith.constant 0 : index
    %53 = vector.load %arg4[%c0_13, %c0_14] : memref<128x128xbf16, #tpu.memory_space<vmem>>, vector<128x128xbf16>
    %cst_15 = arith.constant dense<0.000000e+00> : vector<8x128xf32>
    %54 = tpu.matmul %52, %53, %cst_15 {dimension_numbers = #tpu.dot_dimension_numbers<[1], [0], [0], [1], [0, 0, 1, 1], [], []>} : vector<8x128xbf16>, vector<128x128xbf16>, vector<8x128xf32> -> vector<8x128xf32>
    %c0_16 = arith.constant 0 : index
    %c0_17 = arith.constant 0 : index
    %55 = vector.load %arg5[%c0_16, %c0_17] : memref<8x128xf32, #tpu.memory_space<vmem>>, vector<8x128xf32>
    tpu.vector_store %arg5[%c0_16, %c0_17], %54 {strides = array<i32>} : memref<8x128xf32, #tpu.memory_space<vmem>>, vector<8x128xf32>,
    return
  }
  func.func @transform_0(%arg0: i32) -> i32 {
    %c0_i32 = arith.constant 0 : i32
    %c0_i32_0 = arith.constant 0 : i32
    return %c0_i32 : i32
  }
  func.func @transform_1(%arg0: i32) -> (i32, i32, i32) {
    %c0_i32 = arith.constant 0 : i32
    %c0_i32_0 = arith.constant 0 : i32
    %c0_i32_1 = arith.constant 0 : i32
    return %arg0, %c0_i32, %c0_i32_0 : i32, i32, i32
  }
  func.func @transform_2(%arg0: i32) -> (i32, i32) {
    %c0_i32 = arith.constant 0 : i32
    %c0_i32_0 = arith.constant 0 : i32
    %c0_i32_1 = arith.constant 0 : i32
    return %c0_i32, %c0_i32_0 : i32, i32
  }
  func.func @transform_3(%arg0: i32) -> (i32, i32) {
    %c0_i32 = arith.constant 0 : i32
    %c0_i32_0 = arith.constant 0 : i32
    %c0_i32_1 = arith.constant 0 : i32
    return %c0_i32, %c0_i32_0 : i32, i32
  }
  func.func @transform_4(%arg0: i32) -> (i32, i32) {
    %c0_i32 = arith.constant 0 : i32
    %c0_i32_0 = arith.constant 0 : i32
    return %arg0, %c0_i32 : i32, i32
  }
}

module attributes {stable_mosaic.version = 11 : i64} {
  func.func @_branch_head_kernel(%arg0: i32, %arg1: memref<2xf32, #tpu.memory_space<smem>>, %arg2: memref<8x64x64xbf16, #tpu.memory_space<vmem>>, %arg3: memref<64x2xbf16, #tpu.memory_space<vmem>>, %arg4: memref<128x128xbf16, #tpu.memory_space<vmem>>, %arg5: memref<8x128xf32, #tpu.memory_space<vmem>>) attributes {dimension_semantics = [#tpu.dimension_semantics<parallel>], iteration_bounds = array<i64: 1>, scalar_prefetch = 0 : i64, scratch_operands = 0 : i64, tpu.core_type = #tpu.core_type<tc>, window_params = [{transform_indices = @transform_0, window_bounds = array<i64: 2>}, {transform_indices = @transform_1, window_bounds = array<i64: 8, 64, 64>}, {pipeline_mode = #tpu.pipeline_mode<synchronous>, transform_indices = @transform_2, window_bounds = array<i64: 64, 2>}, {pipeline_mode = #tpu.pipeline_mode<synchronous>, transform_indices = @transform_3, window_bounds = array<i64: 128, 128>}, {transform_indices = @transform_4, window_bounds = array<i64: 8, 128>}]} {
    %c0 = arith.constant 0 : index
    %c0_0 = arith.constant 0 : index
    %c0_1 = arith.constant 0 : index
    %0 = vector.load %arg2[%c0, %c0_0, %c0_1] : memref<8x64x64xbf16, #tpu.memory_space<vmem>>, vector<8x64x64xbf16>
    %1 = vector.shape_cast %0 : vector<8x64x64xbf16> to vector<512x64xbf16>
    %c0_2 = arith.constant 0 : index
    %c0_3 = arith.constant 0 : index
    %2 = vector.load %arg3[%c0_2, %c0_3] : memref<64x2xbf16, #tpu.memory_space<vmem>>, vector<64x2xbf16>
    %cst = arith.constant dense<0.000000e+00> : vector<512x2xf32>
    %3 = tpu.matmul %1, %2, %cst {dimension_numbers = #tpu.dot_dimension_numbers<[1], [0], [0], [1], [0, 0, 1, 1], [], []>} : vector<512x64xbf16>, vector<64x2xbf16>, vector<512x2xf32> -> vector<512x2xf32>
    %4 = vector.shape_cast %3 : vector<512x2xf32> to vector<8x64x2xf32>
    %5 = vector.extract_strided_slice %4 {offsets = [0, 0, 0], sizes = [8, 64, 1], strides = [1, 1, 1]} : vector<8x64x2xf32> to vector<8x64x1xf32>
    %c0_4 = arith.constant 0 : index
    %6 = memref.load %arg1[%c0_4] : memref<2xf32, #tpu.memory_space<smem>>
    %7 = vector.broadcast %6 : f32 to vector<8x64x1xf32>
    %8 = arith.addf %5, %7 : vector<8x64x1xf32>
    %9 = arith.negf %8 : vector<8x64x1xf32>
    %10 = math.exp %9 : vector<8x64x1xf32>
    %cst_5 = arith.constant 1.000000e+00 : f32
    %11 = vector.broadcast %cst_5 : f32 to vector<8x64x1xf32>
    %12 = arith.addf %11, %10 : vector<8x64x1xf32>
    %13 = arith.divf %11, %12 : vector<8x64x1xf32>
    %cst_6 = arith.constant dense<0xFF800000> : vector<8x1xf32>
    %14 = vector.multi_reduction <maximumf>, %13, %cst_6 [1] : vector<8x64x1xf32> to vector<8x1xf32>
    %15 = vector.extract_strided_slice %4 {offsets = [0, 0, 1], sizes = [8, 64, 1], strides = [1, 1, 1]} : vector<8x64x2xf32> to vector<8x64x1xf32>
    %c1 = arith.constant 1 : index
    %16 = memref.load %arg1[%c1] : memref<2xf32, #tpu.memory_space<smem>>
    %17 = vector.broadcast %16 : f32 to vector<8x64x1xf32>
    %18 = arith.addf %15, %17 : vector<8x64x1xf32>
    %19 = arith.negf %18 : vector<8x64x1xf32>
    %20 = math.exp %19 : vector<8x64x1xf32>
    %cst_7 = arith.constant 1.000000e+00 : f32
    %21 = vector.broadcast %cst_7 : f32 to vector<8x64x1xf32>
    %22 = arith.addf %21, %20 : vector<8x64x1xf32>
    %23 = arith.divf %21, %22 : vector<8x64x1xf32>
    %cst_8 = arith.constant dense<0xFF800000> : vector<8x1xf32>
    %24 = vector.multi_reduction <maximumf>, %23, %cst_8 [1] : vector<8x64x1xf32> to vector<8x1xf32>
    %25 = tpu.concatenate %14, %24 in 1 : vector<8x1xf32>, vector<8x1xf32> -> vector<8x2xf32>
    %cst_9 = arith.constant dense<0xFF800000> : vector<8xf32>
    %26 = vector.multi_reduction <maximumf>, %25, %cst_9 [1] : vector<8x2xf32> to vector<8xf32>
    %27 = vector.shape_cast %26 : vector<8xf32> to vector<8x1xf32>
    %cst_10 = arith.constant 5.000000e-01 : f32
    %28 = vector.broadcast %cst_10 : f32 to vector<8x1xf32>
    %29 = arith.mulf %28, %27 : vector<8x1xf32>
    %30 = vector.broadcast %29 : vector<8x1xf32> to vector<8x2xf32>
    %31 = arith.cmpf oge, %25, %30 : vector<8x2xf32>
    %32 = arith.extui %31 : vector<8x2xi1> to vector<8x2xi32>
    %33 = arith.sitofp %32 : vector<8x2xi32> to vector<8x2xf32>
    %34 = arith.truncf %13 : vector<8x64x1xf32> to vector<8x64x1xbf16>
    %35 = vector.broadcast %34 : vector<8x64x1xbf16> to vector<8x64x64xbf16>
    %36 = arith.mulf %0, %35 : vector<8x64x64xbf16>
    %cst_11 = arith.constant dense<0xFF80> : vector<8x64xbf16>
    %37 = vector.multi_reduction <maximumf>, %36, %cst_11 [1] : vector<8x64x64xbf16> to vector<8x64xbf16>
    %38 = arith.extf %37 : vector<8x64xbf16> to vector<8x64xf32>
    %39 = vector.extract_strided_slice %33 {offsets = [0, 0], sizes = [8, 1], strides = [1, 1]} : vector<8x2xf32> to vector<8x1xf32>
    %40 = vector.broadcast %39 : vector<8x1xf32> to vector<8x64xf32>
    %41 = arith.mulf %38, %40 : vector<8x64xf32>
    %42 = arith.truncf %41 : vector<8x64xf32> to vector<8x64xbf16>
    %43 = arith.truncf %23 : vector<8x64x1xf32> to vector<8x64x1xbf16>
    %44 = vector.broadcast %43 : vector<8x64x1xbf16> to vector<8x64x64xbf16>
    %45 = arith.mulf %0, %44 : vector<8x64x64xbf16>
    %cst_12 = arith.constant dense<0xFF80> : vector<8x64xbf16>
    %46 = vector.multi_reduction <maximumf>, %45, %cst_12 [1] : vector<8x64x64xbf16> to vector<8x64xbf16>
    %47 = arith.extf %46 : vector<8x64xbf16> to vector<8x64xf32>
    %48 = vector.extract_strided_slice %33 {offsets = [0, 1], sizes = [8, 1], strides = [1, 1]} : vector<8x2xf32> to vector<8x1xf32>
    %49 = vector.broadcast %48 : vector<8x1xf32> to vector<8x64xf32>
    %50 = arith.mulf %47, %49 : vector<8x64xf32>
    %51 = arith.truncf %50 : vector<8x64xf32> to vector<8x64xbf16>
    %52 = tpu.concatenate %42, %51 in 1 : vector<8x64xbf16>, vector<8x64xbf16> -> vector<8x128xbf16>
    %c0_13 = arith.constant 0 : index
    %c0_14 = arith.constant 0 : index
    %53 = vector.load %arg4[%c0_13, %c0_14] : memref<128x128xbf16, #tpu.memory_space<vmem>>, vector<128x128xbf16>
    %cst_15 = arith.constant dense<0.000000e+00> : vector<8x128xf32>
    %54 = tpu.matmul %52, %53, %cst_15 {dimension_numbers = #tpu.dot_dimension_numbers<[1], [0], [0], [1], [0, 0, 1, 1], [], []>} : vector<8x128xbf16>, vector<128x128xbf16>, vector<8x128xf32> -> vector<8x128xf32>
    %c0_16 = arith.constant 0 : index
    %c0_17 = arith.constant 0 : index
    %55 = vector.load %arg5[%c0_16, %c0_17] : memref<8x128xf32, #tpu.memory_space<vmem>>, vector<8x128xf32>
    tpu.vector_store %arg5[%c0_16, %c0_17], %54 {strides = array<i32>} : memref<8x128xf32, #tpu.memory_space<vmem>>, vector<8x128xf32>,
    return
  }
  func.func @transform_0(%arg0: i32) -> i32 {
    %c0_i32 = arith.constant 0 : i32
    %c0_i32_0 = arith.constant 0 : i32
    return %c0_i32 : i32
  }
  func.func @transform_1(%arg0: i32) -> (i32, i32, i32) {
    %c0_i32 = arith.constant 0 : i32
    %c0_i32_0 = arith.constant 0 : i32
    %c0_i32_1 = arith.constant 0 : i32
    return %arg0, %c0_i32, %c0_i32_0 : i32, i32, i32
  }
  func.func @transform_2(%arg0: i32) -> (i32, i32) {
    %c0_i32 = arith.constant 0 : i32
    %c0_i32_0 = arith.constant 0 : i32
    %c0_i32_1 = arith.constant 0 : i32
    return %c0_i32, %c0_i32_0 : i32, i32
  }
  func.func @transform_3(%arg0: i32) -> (i32, i32) {
    %c0_i32 = arith.constant 0 : i32
    %c0_i32_0 = arith.constant 0 : i32
    %c0_i32_1 = arith.constant 0 : i32
    return %c0_i32, %c0_i32_0 : i32, i32
  }
  func.func @transform_4(%arg0: i32) -> (i32, i32) {
    %c0_i32 = arith.constant 0 : i32
    %c0_i32_0 = arith.constant 0 : i32
    return %arg0, %c0_i32 : i32, i32
  }
}

</mosaic_0001>

<llo_original>
// kernel: tpu_custom_call.1
$region0: #{tpu_custom_call.1}
  #allocation0 [shape = 'u32[]', space=smem, size = 0x4, offset = 0x4, fixed_abs, tag = 'smem constant byte address 0x4 - core index']
  #allocation1 [shape = 'u32[144,128]{1,0:T(1,128)}', space=vmem, size = 0x12000, scoped, tag = 'internal scratch']
  %s0 = inlined_call_operand.vmem [shape: f32[2], index: 0, kind: input, shape index: {}]
  %s1 = inlined_call_operand.hbm [shape: bf16[8,64,64], index: 1, kind: input, shape index: {}]
  %s2 = inlined_call_operand.vmem [shape: bf16[64,2], index: 2, kind: input, shape index: {}]
  %s3 = inlined_call_operand.hbm [shape: bf16[128,128], index: 3, kind: input, shape index: {}]
  %s4 = inlined_call_operand.hbm [shape: f32[8,128], index: 4, kind: output, shape index: {}]
  %s5 = sld [smem:[#allocation0]]
  $region38: #{tpu_custom_call.1} parent=0
    _
  %s7 = ssub.s32 1, %s5
  %s8 = scalar_select 0, %s7, %s5
  $region1: #{tpu_custom_call.1} parent=0
    #allocation2 [shape = 'u8[512]{0}', space=smem, size = 0x200, scoped, tag = 'input window, operand 0, single buffered']
    #allocation3 [shape = 's32[1]{0}', space=sflag, size = 0x4, scoped, tag = 'scoped memory for tpu_custom_call.1']
    #allocation4 [shape = 's32[1]{0}', space=sflag, size = 0x4, scoped, tag = 'scoped memory for tpu_custom_call.1']
    #allocation5 [shape = 's32[1]{0}', space=sflag, size = 0x4, scoped, tag = 'scoped memory for tpu_custom_call.1']
    #allocation6 [shape = 'u8[131072]{0}', space=vmem, size = 0x20000, scoped, tag = 'input window, operand 1, single buffered']
    #allocation7 [shape = 'u8[32768]{0}', space=vmem, size = 0x8000, scoped, tag = 'input window, operand 3, single buffered']
    #allocation8 [shape = 's32[1]{0}', space=sflag, size = 0x4, scoped, tag = 'scoped memory for tpu_custom_call.1']
    #allocation9 [shape = 'u8[4096]{0}', space=vmem, size = 0x1000, scoped, tag = 'output window, operand 0, single buffered']
    %9 = vsyncpa [#allocation5], 0
    %10 = vsyncpa [#allocation3], 0
    %11 = vsyncpa [#allocation8], 0
    %12 = vsyncpa [#allocation4], 0
    // Predicated region
    $region2: #{tpu_custom_call.1} parent=1 // pred_check
      _
    $region3: #{tpu_custom_call.1} parent=1 // pred_check_branch
      %14 = sbr.rel (0) target = $region5
    $region4: #{tpu_custom_call.1} parent=1 // pred_region
      %s16 = ssub.s32 16, 16
      %17 = vsyncadd [#allocation5], %s16
      %s19 = sshll.u32 %s0, 4
      %s20 = int_to_ptr.vmem [resolvable:$true] %s19
      %22 = dma.vmem_to_smem %s20, 16, [#allocation2], [#allocation5]
    $region5: #{tpu_custom_call.1} parent=1 // pred_fallthru
      _
    // Predicated region
    $region6: #{tpu_custom_call.1} parent=1 // pred_check
      _
    $region7: #{tpu_custom_call.1} parent=1 // pred_check_branch
      %24 = sbr.rel (0) target = $region9
    $region8: #{tpu_custom_call.1} parent=1 // pred_region
      %s26 = ssub.s32 4096, 4096
      %27 = vsyncadd [#allocation3], %s26
      %s28 = sshll.u32 [#allocation6], 4
      %s29 = int_to_ptr.vmem [resolvable:$true] %s28
      %34 = dma.hbm_to_vmem [thread:$0]  %s1, 4096, %s29, [#allocation3], 64, 64, 4
    $region9: #{tpu_custom_call.1} parent=1 // pred_fallthru
      _
    // Predicated region
    $region10: #{tpu_custom_call.1} parent=1 // pred_check
      _
    $region11: #{tpu_custom_call.1} parent=1 // pred_check_branch
      %36 = sbr.rel (0) target = $region13
    $region12: #{tpu_custom_call.1} parent=1 // pred_region
      _
    $region13: #{tpu_custom_call.1} parent=1 // pred_fallthru
      _
    // Predicated region
    $region14: #{tpu_custom_call.1} parent=1 // pred_check
      _
    $region15: #{tpu_custom_call.1} parent=1 // pred_check_branch
      %38 = sbr.rel (0) target = $region17
    $region16: #{tpu_custom_call.1} parent=1 // pred_region
      %s40 = ssub.s32 1024, 1024
      %41 = vsyncadd [#allocation8], %s40
      %s42 = sshll.u32 [#allocation7], 4
      %s43 = int_to_ptr.vmem [resolvable:$true] %s42
      %48 = dma.hbm_to_vmem [thread:$0]  %s3, 1024, %s43, [#allocation8], 64, 64, 4
    $region17: #{tpu_custom_call.1} parent=1 // pred_fallthru
      _
    // Predicated region
    $region18: #{tpu_custom_call.1} parent=1 // pred_check
      _
    $region19: #{tpu_custom_call.1} parent=1 // pred_check_branch
      %50 = sbr.rel (0) target = $region21
    $region20: #{tpu_custom_call.1} parent=1 // pred_region
      %51 = dma.done [#allocation5], 16
    $region21: #{tpu_custom_call.1} parent=1 // pred_fallthru
      _
    // Predicated region
    $region22: #{tpu_custom_call.1} parent=1 // pred_check
      _
    $region23: #{tpu_custom_call.1} parent=1 // pred_check_branch
      %53 = sbr.rel (0) target = $region25
    $region24: #{tpu_custom_call.1} parent=1 // pred_region
      %54 = dma.done [#allocation3], 4096
    $region25: #{tpu_custom_call.1} parent=1 // pred_fallthru
      _
    // Predicated region
    $region26: #{tpu_custom_call.1} parent=1 // pred_check
      _
    $region27: #{tpu_custom_call.1} parent=1 // pred_check_branch
      %56 = sbr.rel (0) target = $region29
    $region28: #{tpu_custom_call.1} parent=1 // pred_region
      %57 = dma.done [#allocation8], 1024
    $region29: #{tpu_custom_call.1} parent=1 // pred_fallthru
      _
    %58 = sfence
    %v61 = vld [vmem:[#allocation6] sm:$0xf]
    %v62 = vld [vmem:[#allocation6 + $0x4] sm:$0xf]
    %v63 = vld [vmem:[#allocation6 + $0x8] sm:$0xf]
    %v64 = vld [vmem:[#allocation6 + $0xc] sm:$0xf]
    %v65 = vld [vmem:[#allocation6 + $0x10] sm:$0xf]
    %v66 = vld [vmem:[#allocation6 + $0x14] sm:$0xf]
    %v67 = vld [vmem:[#allocation6 + $0x18] sm:$0xf]
    %v68 = vld [vmem:[#allocation6 + $0x1c] sm:$0xf]
    %v69 = vld [vmem:[#allocation6 + $0x20] sm:$0xf]
    %v70 = vld [vmem:[#allocation6 + $0x24] sm:$0xf]
    %v71 = vld [vmem:[#allocation6 + $0x28] sm:$0xf]
    %v72 = vld [vmem:[#allocation6 + $0x2c] sm:$0xf]
    %v73 = vld [vmem:[#allocation6 + $0x30] sm:$0xf]
    %v74 = vld [vmem:[#allocation6 + $0x34] sm:$0xf]
    %v75 = vld [vmem:[#allocation6 + $0x38] sm:$0xf]
    %v76 = vld [vmem:[#allocation6 + $0x3c] sm:$0xf]
    %v77 = vld [vmem:[#allocation6 + $0x40] sm:$0xf]
    %v78 = vld [vmem:[#allocation6 + $0x44] sm:$0xf]
    %v79 = vld [vmem:[#allocation6 + $0x48] sm:$0xf]
    %v80 = vld [vmem:[#allocation6 + $0x4c] sm:$0xf]
    %v81 = vld [vmem:[#allocation6 + $0x50] sm:$0xf]
    %v82 = vld [vmem:[#allocation6 + $0x54] sm:$0xf]
    %v83 = vld [vmem:[#allocation6 + $0x58] sm:$0xf]
    %v84 = vld [vmem:[#allocation6 + $0x5c] sm:$0xf]
    %v85 = vld [vmem:[#allocation6 + $0x60] sm:$0xf]
    %v86 = vld [vmem:[#allocation6 + $0x64] sm:$0xf]
    %v87 = vld [vmem:[#allocation6 + $0x68] sm:$0xf]
    %v88 = vld [vmem:[#allocation6 + $0x6c] sm:$0xf]
    %v89 = vld [vmem:[#allocation6 + $0x70] sm:$0xf]
    %v90 = vld [vmem:[#allocation6 + $0x74] sm:$0xf]
    %v91 = vld [vmem:[#allocation6 + $0x78] sm:$0xf]
    %v92 = vld [vmem:[#allocation6 + $0x7c] sm:$0xf]
    %v93 = vld [vmem:[#allocation6 + $0x80] sm:$0xf]
    %v94 = vld [vmem:[#allocation6 + $0x84] sm:$0xf]
    %v95 = vld [vmem:[#allocation6 + $0x88] sm:$0xf]
    %v96 = vld [vmem:[#allocation6 + $0x8c] sm:$0xf]
    %v97 = vld [vmem:[#allocation6 + $0x90] sm:$0xf]
    %v98 = vld [vmem:[#allocation6 + $0x94] sm:$0xf]
    %v99 = vld [vmem:[#allocation6 + $0x98] sm:$0xf]
    %v100 = vld [vmem:[#allocation6 + $0x9c] sm:$0xf]
    %v101 = vld [vmem:[#allocation6 + $0xa0] sm:$0xf]
    %v102 = vld [vmem:[#allocation6 + $0xa4] sm:$0xf]
    %v103 = vld [vmem:[#allocation6 + $0xa8] sm:$0xf]
    %v104 = vld [vmem:[#allocation6 + $0xac] sm:$0xf]
    %v105 = vld [vmem:[#allocation6 + $0xb0] sm:$0xf]
    %v106 = vld [vmem:[#allocation6 + $0xb4] sm:$0xf]
    %v107 = vld [vmem:[#allocation6 + $0xb8] sm:$0xf]
    %v108 = vld [vmem:[#allocation6 + $0xbc] sm:$0xf]
    %v109 = vld [vmem:[#allocation6 + $0xc0] sm:$0xf]
    %v110 = vld [vmem:[#allocation6 + $0xc4] sm:$0xf]
    %v111 = vld [vmem:[#allocation6 + $0xc8] sm:$0xf]
    %v112 = vld [vmem:[#allocation6 + $0xcc] sm:$0xf]
    %v113 = vld [vmem:[#allocation6 + $0xd0] sm:$0xf]
    %v114 = vld [vmem:[#allocation6 + $0xd4] sm:$0xf]
    %v115 = vld [vmem:[#allocation6 + $0xd8] sm:$0xf]
    %v116 = vld [vmem:[#allocation6 + $0xdc] sm:$0xf]
    %v117 = vld [vmem:[#allocation6 + $0xe0] sm:$0xf]
    %v118 = vld [vmem:[#allocation6 + $0xe4] sm:$0xf]
    %v119 = vld [vmem:[#allocation6 + $0xe8] sm:$0xf]
    %v120 = vld [vmem:[#allocation6 + $0xec] sm:$0xf]
    %v121 = vld [vmem:[#allocation6 + $0xf0] sm:$0xf]
    %v122 = vld [vmem:[#allocation6 + $0xf4] sm:$0xf]
    %v123 = vld [vmem:[#allocation6 + $0xf8] sm:$0xf]
    %v124 = vld [vmem:[#allocation6 + $0xfc] sm:$0xf]
    %v125 = vld [vmem:[%s2] sm:$0xf]
    %v126 = vld [vmem:[%s2 + $0x4] sm:$0xf]
    %v127 = vld [vmem:[%s2 + $0x8] sm:$0xf]
    %v128 = vld [vmem:[%s2 + $0xc] sm:$0xf]
    %v129 = vld [vmem:[%s2 + $0x10] sm:$0xf]
    %v130 = vld [vmem:[%s2 + $0x14] sm:$0xf]
    %v131 = vld [vmem:[%s2 + $0x18] sm:$0xf]
    %v132 = vld [vmem:[%s2 + $0x1c] sm:$0xf]
    %v197 = vunpack.c.l.b16 %v61
    %v198 = vunpack.c.l.b16 %v62
    %v199 = vunpack.c.l.b16 %v63
    %v200 = vunpack.c.l.b16 %v64
    %v201 = vunpack.c.l.b16 %v65
    %v202 = vunpack.c.l.b16 %v66
    %v203 = vunpack.c.l.b16 %v67
    %v204 = vunpack.c.l.b16 %v68
    %v205 = vunpack.c.l.b16 %v69
    %v206 = vunpack.c.l.b16 %v70
    %v207 = vunpack.c.l.b16 %v71
    %v208 = vunpack.c.l.b16 %v72
    %v209 = vunpack.c.l.b16 %v73
    %v210 = vunpack.c.l.b16 %v74
    %v211 = vunpack.c.l.b16 %v75
    %v212 = vunpack.c.l.b16 %v76
    %v213 = vunpack.c.l.b16 %v77
    %v214 = vunpack.c.l.b16 %v78
    %v215 = vunpack.c.l.b16 %v79
    %v216 = vunpack.c.l.b16 %v80
    %v217 = vunpack.c.l.b16 %v81
    %v218 = vunpack.c.l.b16 %v82
    %v219 = vunpack.c.l.b16 %v83
    %v220 = vunpack.c.l.b16 %v84
    %v221 = vunpack.c.l.b16 %v85
    %v222 = vunpack.c.l.b16 %v86
    %v223 = vunpack.c.l.b16 %v87
    %v224 = vunpack.c.l.b16 %v88
    %v225 = vunpack.c.l.b16 %v89
    %v226 = vunpack.c.l.b16 %v90
    %v227 = vunpack.c.l.b16 %v91
    %v228 = vunpack.c.l.b16 %v92
    %v229 = vunpack.c.l.b16 %v93
    %v230 = vunpack.c.l.b16 %v94
    %v231 = vunpack.c.l.b16 %v95
    %v232 = vunpack.c.l.b16 %v96
    %v233 = vunpack.c.l.b16 %v97
    %v234 = vunpack.c.l.b16 %v98
    %v235 = vunpack.c.l.b16 %v99
    %v236 = vunpack.c.l.b16 %v100
    %v237 = vunpack.c.l.b16 %v101
    %v238 = vunpack.c.l.b16 %v102
    %v239 = vunpack.c.l.b16 %v103
    %v240 = vunpack.c.l.b16 %v104
    %v241 = vunpack.c.l.b16 %v105
    %v242 = vunpack.c.l.b16 %v106
    %v243 = vunpack.c.l.b16 %v107
    %v244 = vunpack.c.l.b16 %v108
    %v245 = vunpack.c.l.b16 %v109
    %v246 = vunpack.c.l.b16 %v110
    %v247 = vunpack.c.l.b16 %v111
    %v248 = vunpack.c.l.b16 %v112
    %v249 = vunpack.c.l.b16 %v113
    %v250 = vunpack.c.l.b16 %v114
    %v251 = vunpack.c.l.b16 %v115
    %v252 = vunpack.c.l.b16 %v116
    %v253 = vunpack.c.l.b16 %v117
    %v254 = vunpack.c.l.b16 %v118
    %v255 = vunpack.c.l.b16 %v119
    %v256 = vunpack.c.l.b16 %v120
    %v257 = vunpack.c.l.b16 %v121
    %v258 = vunpack.c.l.b16 %v122
    %v259 = vunpack.c.l.b16 %v123
    %v260 = vunpack.c.l.b16 %v124
    %v261 = vpack.c.b16 %v198, %v197
    %v262 = vpack.c.b16 %v200, %v199
    %v263 = vpack.c.b16 %v202, %v201
    %v264 = vpack.c.b16 %v204, %v203
    %v265 = vpack.c.b16 %v206, %v205
    %v266 = vpack.c.b16 %v208, %v207
    %v267 = vpack.c.b16 %v210, %v209
    %v268 = vpack.c.b16 %v212, %v211
    %v269 = vpack.c.b16 %v214, %v213
    %v270 = vpack.c.b16 %v216, %v215
    %v271 = vpack.c.b16 %v218, %v217
    %v272 = vpack.c.b16 %v220, %v219
    %v273 = vpack.c.b16 %v222, %v221
    %v274 = vpack.c.b16 %v224, %v223
    %v275 = vpack.c.b16 %v226, %v225
    %v276 = vpack.c.b16 %v228, %v227
    %v277 = vpack.c.b16 %v230, %v229
    %v278 = vpack.c.b16 %v232, %v231
    %v279 = vpack.c.b16 %v234, %v233
    %v280 = vpack.c.b16 %v236, %v235
    %v281 = vpack.c.b16 %v238, %v237
    %v282 = vpack.c.b16 %v240, %v239
    %v283 = vpack.c.b16 %v242, %v241
    %v284 = vpack.c.b16 %v244, %v243
    %v285 = vpack.c.b16 %v246, %v245
    %v286 = vpack.c.b16 %v248, %v247
    %v287 = vpack.c.b16 %v250, %v249
    %v288 = vpack.c.b16 %v252, %v251
    %v289 = vpack.c.b16 %v254, %v253
    %v290 = vpack.c.b16 %v256, %v255
    %v291 = vpack.c.b16 %v258, %v257
    %v292 = vpack.c.b16 %v260, %v259
    %v301 = vunpack.c.l.b16 %v125
    %v302 = vunpack.c.l.b16 %v126
    %v303 = vunpack.c.l.b16 %v127
    %v304 = vunpack.c.l.b16 %v128
    %v305 = vunpack.c.l.b16 %v129
    %v306 = vunpack.c.l.b16 %v130
    %v307 = vunpack.c.l.b16 %v131
    %v308 = vunpack.c.l.b16 %v132
    %v309 = vpack.c.b16 %v302, %v301
    %v310 = vpack.c.b16 %v304, %v303
    %v311 = vpack.c.b16 %v306, %v305
    %v312 = vpack.c.b16 %v308, %v307
    %vm317 = vcmask 523264
    %v319 = vsel %vm317, %v261, 0
    %v322 = vsel %vm317, %v262, 0
    %v325 = vsel %vm317, %v263, 0
    %v328 = vsel %vm317, %v264, 0
    %v331 = vsel %vm317, %v265, 0
    %v334 = vsel %vm317, %v266, 0
    %v337 = vsel %vm317, %v267, 0
    %v340 = vsel %vm317, %v268, 0
    %v343 = vsel %vm317, %v269, 0
    %v346 = vsel %vm317, %v270, 0
    %v349 = vsel %vm317, %v271, 0
    %v352 = vsel %vm317, %v272, 0
    %v355 = vsel %vm317, %v273, 0
    %v358 = vsel %vm317, %v274, 0
    %v361 = vsel %vm317, %v275, 0
    %v364 = vsel %vm317, %v276, 0
    %v367 = vsel %vm317, %v277, 0
    %v370 = vsel %vm317, %v278, 0
    %v373 = vsel %vm317, %v279, 0
    %v376 = vsel %vm317, %v280, 0
    %v379 = vsel %vm317, %v281, 0
    %v382 = vsel %vm317, %v282, 0
    %v385 = vsel %vm317, %v283, 0
    %v388 = vsel %vm317, %v284, 0
    %v391 = vsel %vm317, %v285, 0
    %v394 = vsel %vm317, %v286, 0
    %v397 = vsel %vm317, %v287, 0
    %v400 = vsel %vm317, %v288, 0
    %v403 = vsel %vm317, %v289, 0
    %v406 = vsel %vm317, %v290, 0
    %v409 = vsel %vm317, %v291, 0
    %v412 = vsel %vm317, %v292, 0
    %414 = vmatprep.subr.bf16.mxu0 0
    %415 = vmatpush1.bf16.msra.mxu0 0
    %416 = vmatprep.subr.bf16.mxu0 0
    %417 = vmatpush1.bf16.msra.mxu0 0
    %418 = vmatprep.subr.bf16.mxu0 0
    %419 = vmatpush1.bf16.msra.mxu0 0
    %420 = vmatprep.subr.bf16.mxu0 0
    %421 = vmatpush1.bf16.msra.mxu0 0
    %422 = vmatprep.subr.bf16.mxu0 0
    %423 = vmatpush1.bf16.msra.mxu0 %v312
    %424 = vmatprep.subr.bf16.mxu0 0
    %425 = vmatpush1.bf16.msra.mxu0 %v311
    %426 = vmatprep.subr.bf16.mxu0 0
    %427 = vmatpush1.bf16.msra.mxu0 %v310
    %428 = vmatprep.subr.bf16.mxu0 0
    %429 = vmatpush1.bf16.msra.mxu0 %v309
    %430 = vmatprep.subr.bf16.mxu0 0
    %431 = vmatpush2.bf16.msra.mxu0 0
    %432 = vmatprep.subr.bf16.mxu0 0
    %433 = vmatpush2.bf16.msra.mxu0 0
    %434 = vmatprep.subr.bf16.mxu0 0
    %435 = vmatpush2.bf16.msra.mxu0 0
    %436 = vmatprep.subr.bf16.mxu0 0
    %437 = vmatpush2.bf16.msra.mxu0 0
    %438 = vmatprep.subr.bf16.mxu0 0
    %439 = vmatpush2.bf16.msra.mxu0 0
    %440 = vmatprep.subr.bf16.mxu0 0
    %441 = vmatpush2.bf16.msra.mxu0 0
    %442 = vmatprep.subr.bf16.mxu0 0
    %443 = vmatpush2.bf16.msra.mxu0 0
    %444 = vmatprep.subr.bf16.mxu0 0
    %445 = vmatpush2.bf16.msra.mxu0 0
    %446 = vmatprep.mubr.bf16.mxu0 0
    %447 = vmatmul.mubr.bf16.gmra.mxu0 %v319
    %v448 = vpop.f32.mrf.mxu0
    %v449 = vadd.f32 0.0, %v448
    %v450 = vpop.f32.mrf.mxu0
    %v451 = vpop.f32.mrf.mxu0
    %v452 = vadd.f32 0.0, %v451
    %v453 = vpop.f32.mrf.mxu0
    %454 = vmatprep.mubr.bf16.mxu0 0
    %455 = vmatmul.mubr.bf16.gmra.mxu0 %v322
    %v456 = vpop.f32.mrf.mxu0
    %v457 = vadd.f32 0.0, %v456
    %v458 = vpop.f32.mrf.mxu0
    %v459 = vpop.f32.mrf.mxu0
    %v460 = vadd.f32 0.0, %v459
    %v461 = vpop.f32.mrf.mxu0
    %462 = vmatprep.mubr.bf16.mxu0 0
    %463 = vmatmul.mubr.bf16.gmra.mxu0 %v325
    %v464 = vpop.f32.mrf.mxu0
    %v465 = vadd.f32 0.0, %v464
    %v466 = vpop.f32.mrf.mxu0
    %v467 = vpop.f32.mrf.mxu0
    %v468 = vadd.f32 0.0, %v467
    %v469 = vpop.f32.mrf.mxu0
    %470 = vmatprep.mubr.bf16.mxu0 0
    %471 = vmatmul.mubr.bf16.gmra.mxu0 %v328
    %v472 = vpop.f32.mrf.mxu0
    %v473 = vadd.f32 0.0, %v472
    %v474 = vpop.f32.mrf.mxu0
    %v475 = vpop.f32.mrf.mxu0
    %v476 = vadd.f32 0.0, %v475
    %v477 = vpop.f32.mrf.mxu0
    %478 = vmatprep.mubr.bf16.mxu0 0
    %479 = vmatmul.mubr.bf16.gmra.mxu0 %v331
    %v480 = vpop.f32.mrf.mxu0
    %v481 = vadd.f32 0.0, %v480
    %v482 = vpop.f32.mrf.mxu0
    %v483 = vpop.f32.mrf.mxu0
    %v484 = vadd.f32 0.0, %v483
    %v485 = vpop.f32.mrf.mxu0
    %486 = vmatprep.mubr.bf16.mxu0 0
    %487 = vmatmul.mubr.bf16.gmra.mxu0 %v334
    %v488 = vpop.f32.mrf.mxu0
    %v489 = vadd.f32 0.0, %v488
    %v490 = vpop.f32.mrf.mxu0
    %v491 = vpop.f32.mrf.mxu0
    %v492 = vadd.f32 0.0, %v491
    %v493 = vpop.f32.mrf.mxu0
    %494 = vmatprep.mubr.bf16.mxu0 0
    %495 = vmatmul.mubr.bf16.gmra.mxu0 %v337
    %v496 = vpop.f32.mrf.mxu0
    %v497 = vadd.f32 0.0, %v496
    %v498 = vpop.f32.mrf.mxu0
    %v499 = vpop.f32.mrf.mxu0
    %v500 = vadd.f32 0.0, %v499
    %v501 = vpop.f32.mrf.mxu0
    %502 = vmatprep.mubr.bf16.mxu0 0
    %503 = vmatmul.mubr.bf16.gmra.mxu0 %v340
    %v504 = vpop.f32.mrf.mxu0
    %v505 = vadd.f32 0.0, %v504
    %v506 = vpop.f32.mrf.mxu0
    %v507 = vpop.f32.mrf.mxu0
    %v508 = vadd.f32 0.0, %v507
    %v509 = vpop.f32.mrf.mxu0
    %510 = vmatprep.mubr.bf16.mxu0 0
    %511 = vmatmul.mubr.bf16.gmra.mxu0 %v343
    %v512 = vpop.f32.mrf.mxu0
    %v513 = vadd.f32 0.0, %v512
    %v514 = vpop.f32.mrf.mxu0
    %v515 = vpop.f32.mrf.mxu0
    %v516 = vadd.f32 0.0, %v515
    %v517 = vpop.f32.mrf.mxu0
    %518 = vmatprep.mubr.bf16.mxu0 0
    %519 = vmatmul.mubr.bf16.gmra.mxu0 %v346
    %v520 = vpop.f32.mrf.mxu0
    %v521 = vadd.f32 0.0, %v520
    %v522 = vpop.f32.mrf.mxu0
    %v523 = vpop.f32.mrf.mxu0
    %v524 = vadd.f32 0.0, %v523
    %v525 = vpop.f32.mrf.mxu0
    %526 = vmatprep.mubr.bf16.mxu0 0
    %527 = vmatmul.mubr.bf16.gmra.mxu0 %v349
    %v528 = vpop.f32.mrf.mxu0
    %v529 = vadd.f32 0.0, %v528
    %v530 = vpop.f32.mrf.mxu0
    %v531 = vpop.f32.mrf.mxu0
    %v532 = vadd.f32 0.0, %v531
    %v533 = vpop.f32.mrf.mxu0
    %534 = vmatprep.mubr.bf16.mxu0 0
    %535 = vmatmul.mubr.bf16.gmra.mxu0 %v352
    %v536 = vpop.f32.mrf.mxu0
    %v537 = vadd.f32 0.0, %v536
    %v538 = vpop.f32.mrf.mxu0
    %v539 = vpop.f32.mrf.mxu0
    %v540 = vadd.f32 0.0, %v539
    %v541 = vpop.f32.mrf.mxu0
    %542 = vmatprep.mubr.bf16.mxu0 0
    %543 = vmatmul.mubr.bf16.gmra.mxu0 %v355
    %v544 = vpop.f32.mrf.mxu0
    %v545 = vadd.f32 0.0, %v544
    %v546 = vpop.f32.mrf.mxu0
    %v547 = vpop.f32.mrf.mxu0
    %v548 = vadd.f32 0.0, %v547
    %v549 = vpop.f32.mrf.mxu0
    %550 = vmatprep.mubr.bf16.mxu0 0
    %551 = vmatmul.mubr.bf16.gmra.mxu0 %v358
    %v552 = vpop.f32.mrf.mxu0
    %v553 = vadd.f32 0.0, %v552
    %v554 = vpop.f32.mrf.mxu0
    %v555 = vpop.f32.mrf.mxu0
    %v556 = vadd.f32 0.0, %v555
    %v557 = vpop.f32.mrf.mxu0
    %558 = vmatprep.mubr.bf16.mxu0 0
    %559 = vmatmul.mubr.bf16.gmra.mxu0 %v361
    %v560 = vpop.f32.mrf.mxu0
    %v561 = vadd.f32 0.0, %v560
    %v562 = vpop.f32.mrf.mxu0
    %v563 = vpop.f32.mrf.mxu0
    %v564 = vadd.f32 0.0, %v563
    %v565 = vpop.f32.mrf.mxu0
    %566 = vmatprep.mubr.bf16.mxu0 0
    %567 = vmatmul.mubr.bf16.gmra.mxu0 %v364
    %v568 = vpop.f32.mrf.mxu0
    %v569 = vadd.f32 0.0, %v568
    %v570 = vpop.f32.mrf.mxu0
    %v571 = vpop.f32.mrf.mxu0
    %v572 = vadd.f32 0.0, %v571
    %v573 = vpop.f32.mrf.mxu0
    %574 = vmatprep.mubr.bf16.mxu0 0
    %575 = vmatmul.mubr.bf16.gmra.mxu0 %v367
    %v576 = vpop.f32.mrf.mxu0
    %v577 = vadd.f32 0.0, %v576
    %v578 = vpop.f32.mrf.mxu0
    %v579 = vpop.f32.mrf.mxu0
    %v580 = vadd.f32 0.0, %v579
    %v581 = vpop.f32.mrf.mxu0
    %582 = vmatprep.mubr.bf16.mxu0 0
    %583 = vmatmul.mubr.bf16.gmra.mxu0 %v370
    %v584 = vpop.f32.mrf.mxu0
    %v585 = vadd.f32 0.0, %v584
    %v586 = vpop.f32.mrf.mxu0
    %v587 = vpop.f32.mrf.mxu0
    %v588 = vadd.f32 0.0, %v587
    %v589 = vpop.f32.mrf.mxu0
    %590 = vmatprep.mubr.bf16.mxu0 0
    %591 = vmatmul.mubr.bf16.gmra.mxu0 %v373
    %v592 = vpop.f32.mrf.mxu0
    %v593 = vadd.f32 0.0, %v592
    %v594 = vpop.f32.mrf.mxu0
    %v595 = vpop.f32.mrf.mxu0
    %v596 = vadd.f32 0.0, %v595
    %v597 = vpop.f32.mrf.mxu0
    %598 = vmatprep.mubr.bf16.mxu0 0
    %599 = vmatmul.mubr.bf16.gmra.mxu0 %v376
    %v600 = vpop.f32.mrf.mxu0
    %v601 = vadd.f32 0.0, %v600
    %v602 = vpop.f32.mrf.mxu0
    %v603 = vpop.f32.mrf.mxu0
    %v604 = vadd.f32 0.0, %v603
    %v605 = vpop.f32.mrf.mxu0
    %606 = vmatprep.mubr.bf16.mxu0 0
    %607 = vmatmul.mubr.bf16.gmra.mxu0 %v379
    %v608 = vpop.f32.mrf.mxu0
    %v609 = vadd.f32 0.0, %v608
    %v610 = vpop.f32.mrf.mxu0
    %v611 = vpop.f32.mrf.mxu0
    %v612 = vadd.f32 0.0, %v611
    %v613 = vpop.f32.mrf.mxu0
    %614 = vmatprep.mubr.bf16.mxu0 0
    %615 = vmatmul.mubr.bf16.gmra.mxu0 %v382
    %v616 = vpop.f32.mrf.mxu0
    %v617 = vadd.f32 0.0, %v616
    %v618 = vpop.f32.mrf.mxu0
    %v619 = vpop.f32.mrf.mxu0
    %v620 = vadd.f32 0.0, %v619
    %v621 = vpop.f32.mrf.mxu0
    %622 = vmatprep.mubr.bf16.mxu0 0
    %623 = vmatmul.mubr.bf16.gmra.mxu0 %v385
    %v624 = vpop.f32.mrf.mxu0
    %v625 = vadd.f32 0.0, %v624
    %v626 = vpop.f32.mrf.mxu0
    %v627 = vpop.f32.mrf.mxu0
    %v628 = vadd.f32 0.0, %v627
    %v629 = vpop.f32.mrf.mxu0
    %630 = vmatprep.mubr.bf16.mxu0 0
    %631 = vmatmul.mubr.bf16.gmra.mxu0 %v388
    %v632 = vpop.f32.mrf.mxu0
    %v633 = vadd.f32 0.0, %v632
    %v634 = vpop.f32.mrf.mxu0
    %v635 = vpop.f32.mrf.mxu0
    %v636 = vadd.f32 0.0, %v635
    %v637 = vpop.f32.mrf.mxu0
    %638 = vmatprep.mubr.bf16.mxu0 0
    %639 = vmatmul.mubr.bf16.gmra.mxu0 %v391
    %v640 = vpop.f32.mrf.mxu0
    %v641 = vadd.f32 0.0, %v640
    %v642 = vpop.f32.mrf.mxu0
    %v643 = vpop.f32.mrf.mxu0
    %v644 = vadd.f32 0.0, %v643
    %v645 = vpop.f32.mrf.mxu0
    %646 = vmatprep.mubr.bf16.mxu0 0
    %647 = vmatmul.mubr.bf16.gmra.mxu0 %v394
    %v648 = vpop.f32.mrf.mxu0
    %v649 = vadd.f32 0.0, %v648
    %v650 = vpop.f32.mrf.mxu0
    %v651 = vpop.f32.mrf.mxu0
    %v652 = vadd.f32 0.0, %v651
    %v653 = vpop.f32.mrf.mxu0
    %654 = vmatprep.mubr.bf16.mxu0 0
    %655 = vmatmul.mubr.bf16.gmra.mxu0 %v397
    %v656 = vpop.f32.mrf.mxu0
    %v657 = vadd.f32 0.0, %v656
    %v658 = vpop.f32.mrf.mxu0
    %v659 = vpop.f32.mrf.mxu0
    %v660 = vadd.f32 0.0, %v659
    %v661 = vpop.f32.mrf.mxu0
    %662 = vmatprep.mubr.bf16.mxu0 0
    %663 = vmatmul.mubr.bf16.gmra.mxu0 %v400
    %v664 = vpop.f32.mrf.mxu0
    %v665 = vadd.f32 0.0, %v664
    %v666 = vpop.f32.mrf.mxu0
    %v667 = vpop.f32.mrf.mxu0
    %v668 = vadd.f32 0.0, %v667
    %v669 = vpop.f32.mrf.mxu0
    %670 = vmatprep.mubr.bf16.mxu0 0
    %671 = vmatmul.mubr.bf16.gmra.mxu0 %v403
    %v672 = vpop.f32.mrf.mxu0
    %v673 = vadd.f32 0.0, %v672
    %v674 = vpop.f32.mrf.mxu0
    %v675 = vpop.f32.mrf.mxu0
    %v676 = vadd.f32 0.0, %v675
    %v677 = vpop.f32.mrf.mxu0
    %678 = vmatprep.mubr.bf16.mxu0 0
    %679 = vmatmul.mubr.bf16.gmra.mxu0 %v406
    %v680 = vpop.f32.mrf.mxu0
    %v681 = vadd.f32 0.0, %v680
    %v682 = vpop.f32.mrf.mxu0
    %v683 = vpop.f32.mrf.mxu0
    %v684 = vadd.f32 0.0, %v683
    %v685 = vpop.f32.mrf.mxu0
    %686 = vmatprep.mubr.bf16.mxu0 0
    %687 = vmatmul.mubr.bf16.gmra.mxu0 %v409
    %v688 = vpop.f32.mrf.mxu0
    %v689 = vadd.f32 0.0, %v688
    %v690 = vpop.f32.mrf.mxu0
    %v691 = vpop.f32.mrf.mxu0
    %v692 = vadd.f32 0.0, %v691
    %v693 = vpop.f32.mrf.mxu0
    %694 = vmatprep.mubr.bf16.mxu0 0
    %695 = vmatmul.mubr.bf16.gmra.mxu0 %v412
    %v696 = vpop.f32.mrf.mxu0
    %v697 = vadd.f32 0.0, %v696
    %v698 = vpop.f32.mrf.mxu0
    %v699 = vpop.f32.mrf.mxu0
    %v700 = vadd.f32 0.0, %v699
    %v701 = vpop.f32.mrf.mxu0
    %702 = vdwg.mxu0
    %s703 = sld [smem:[#allocation2]]
    %v704 = vstv %s703
    %v705 = vadd.f32 %v449, %v704
    %v706 = vadd.f32 %v452, %v704
    %v707 = vadd.f32 %v457, %v704
    %v708 = vadd.f32 %v460, %v704
    %v709 = vadd.f32 %v465, %v704
    %v710 = vadd.f32 %v468, %v704
    %v711 = vadd.f32 %v473, %v704
    %v712 = vadd.f32 %v476, %v704
    %v713 = vadd.f32 %v481, %v704
    %v714 = vadd.f32 %v484, %v704
    %v715 = vadd.f32 %v489, %v704
    %v716 = vadd.f32 %v492, %v704
    %v717 = vadd.f32 %v497, %v704
    %v718 = vadd.f32 %v500, %v704
    %v719 = vadd.f32 %v505, %v704
    %v720 = vadd.f32 %v508, %v704
    %v721 = vadd.f32 %v513, %v704
    %v722 = vadd.f32 %v516, %v704
    %v723 = vadd.f32 %v521, %v704
    %v724 = vadd.f32 %v524, %v704
    %v725 = vadd.f32 %v529, %v704
    %v726 = vadd.f32 %v532, %v704
    %v727 = vadd.f32 %v537, %v704
    %v728 = vadd.f32 %v540, %v704
    %v729 = vadd.f32 %v545, %v704
    %v730 = vadd.f32 %v548, %v704
    %v731 = vadd.f32 %v553, %v704
    %v732 = vadd.f32 %v556, %v704
    %v733 = vadd.f32 %v561, %v704
    %v734 = vadd.f32 %v564, %v704
    %v735 = vadd.f32 %v569, %v704
    %v736 = vadd.f32 %v572, %v704
    %v737 = vadd.f32 %v577, %v704
    %v738 = vadd.f32 %v580, %v704
    %v739 = vadd.f32 %v585, %v704
    %v740 = vadd.f32 %v588, %v704
    %v741 = vadd.f32 %v593, %v704
    %v742 = vadd.f32 %v596, %v704
    %v743 = vadd.f32 %v601, %v704
    %v744 = vadd.f32 %v604, %v704
    %v745 = vadd.f32 %v609, %v704
    %v746 = vadd.f32 %v612, %v704
    %v747 = vadd.f32 %v617, %v704
    %v748 = vadd.f32 %v620, %v704
    %v749 = vadd.f32 %v625, %v704
    %v750 = vadd.f32 %v628, %v704
    %v751 = vadd.f32 %v633, %v704
    %v752 = vadd.f32 %v636, %v704
    %v753 = vadd.f32 %v641, %v704
    %v754 = vadd.f32 %v644, %v704
    %v755 = vadd.f32 %v649, %v704
    %v756 = vadd.f32 %v652, %v704
    %v757 = vadd.f32 %v657, %v704
    %v758 = vadd.f32 %v660, %v704
    %v759 = vadd.f32 %v665, %v704
    %v760 = vadd.f32 %v668, %v704
    %v761 = vadd.f32 %v673, %v704
    %v762 = vadd.f32 %v676, %v704
    %v763 = vadd.f32 %v681, %v704
    %v764 = vadd.f32 %v684, %v704
    %v765 = vadd.f32 %v689, %v704
    %v766 = vadd.f32 %v692, %v704
    %v767 = vadd.f32 %v697, %v704
    %v768 = vadd.f32 %v700, %v704
    %v769 = vxor.u32 %v705, 2147483648
    %v770 = vxor.u32 %v706, 2147483648
    %v771 = vxor.u32 %v707, 2147483648
    %v772 = vxor.u32 %v708, 2147483648
    %v773 = vxor.u32 %v709, 2147483648
    %v774 = vxor.u32 %v710, 2147483648
    %v775 = vxor.u32 %v711, 2147483648
    %v776 = vxor.u32 %v712, 2147483648
    %v777 = vxor.u32 %v713, 2147483648
    %v778 = vxor.u32 %v714, 2147483648
    %v779 = vxor.u32 %v715, 2147483648
    %v780 = vxor.u32 %v716, 2147483648
    %v781 = vxor.u32 %v717, 2147483648
    %v782 = vxor.u32 %v718, 2147483648
    %v783 = vxor.u32 %v719, 2147483648
    %v784 = vxor.u32 %v720, 2147483648
    %v785 = vxor.u32 %v721, 2147483648
    %v786 = vxor.u32 %v722, 2147483648
    %v787 = vxor.u32 %v723, 2147483648
    %v788 = vxor.u32 %v724, 2147483648
    %v789 = vxor.u32 %v725, 2147483648
    %v790 = vxor.u32 %v726, 2147483648
    %v791 = vxor.u32 %v727, 2147483648
    %v792 = vxor.u32 %v728, 2147483648
    %v793 = vxor.u32 %v729, 2147483648
    %v794 = vxor.u32 %v730, 2147483648
    %v795 = vxor.u32 %v731, 2147483648
    %v796 = vxor.u32 %v732, 2147483648
    %v797 = vxor.u32 %v733, 2147483648
    %v798 = vxor.u32 %v734, 2147483648
    %v799 = vxor.u32 %v735, 2147483648
    %v800 = vxor.u32 %v736, 2147483648
    %v801 = vxor.u32 %v737, 2147483648
    %v802 = vxor.u32 %v738, 2147483648
    %v803 = vxor.u32 %v739, 2147483648
    %v804 = vxor.u32 %v740, 2147483648
    %v805 = vxor.u32 %v741, 2147483648
    %v806 = vxor.u32 %v742, 2147483648
    %v807 = vxor.u32 %v743, 2147483648
    %v808 = vxor.u32 %v744, 2147483648
    %v809 = vxor.u32 %v745, 2147483648
    %v810 = vxor.u32 %v746, 2147483648
    %v811 = vxor.u32 %v747, 2147483648
    %v812 = vxor.u32 %v748, 2147483648
    %v813 = vxor.u32 %v749, 2147483648
    %v814 = vxor.u32 %v750, 2147483648
    %v815 = vxor.u32 %v751, 2147483648
    %v816 = vxor.u32 %v752, 2147483648
    %v817 = vxor.u32 %v753, 2147483648
    %v818 = vxor.u32 %v754, 2147483648
    %v819 = vxor.u32 %v755, 2147483648
    %v820 = vxor.u32 %v756, 2147483648
    %v821 = vxor.u32 %v757, 2147483648
    %v822 = vxor.u32 %v758, 2147483648
    %v823 = vxor.u32 %v759, 2147483648
    %v824 = vxor.u32 %v760, 2147483648
    %v825 = vxor.u32 %v761, 2147483648
    %v826 = vxor.u32 %v762, 2147483648
    %v827 = vxor.u32 %v763, 2147483648
    %v828 = vxor.u32 %v764, 2147483648
    %v829 = vxor.u32 %v765, 2147483648
    %v830 = vxor.u32 %v766, 2147483648
    %v831 = vxor.u32 %v767, 2147483648
    %v832 = vxor.u32 %v768, 2147483648
    %v833 = vmul.f32 %v769, 1.442695
    %v834 = vpow.pop %v833
    %v835 = vmul.f32 %v770, 1.442695
    %v836 = vpow.pop %v835
    %v837 = vmul.f32 %v771, 1.442695
    %v838 = vpow.pop %v837
    %v839 = vmul.f32 %v772, 1.442695
    %v840 = vpow.pop %v839
    %v841 = vmul.f32 %v773, 1.442695
    %v842 = vpow.pop %v841
    %v843 = vmul.f32 %v774, 1.442695
    %v844 = vpow.pop %v843
    %v845 = vmul.f32 %v775, 1.442695
    %v846 = vpow.pop %v845
    %v847 = vmul.f32 %v776, 1.442695
    %v848 = vpow.pop %v847
    %v849 = vmul.f32 %v777, 1.442695
    %v850 = vpow.pop %v849
    %v851 = vmul.f32 %v778, 1.442695
    %v852 = vpow.pop %v851
    %v853 = vmul.f32 %v779, 1.442695
    %v854 = vpow.pop %v853
    %v855 = vmul.f32 %v780, 1.442695
    %v856 = vpow.pop %v855
    %v857 = vmul.f32 %v781, 1.442695
    %v858 = vpow.pop %v857
    %v859 = vmul.f32 %v782, 1.442695
    %v860 = vpow.pop %v859
    %v861 = vmul.f32 %v783, 1.442695
    %v862 = vpow.pop %v861
    %v863 = vmul.f32 %v784, 1.442695
    %v864 = vpow.pop %v863
    %v865 = vmul.f32 %v785, 1.442695
    %v866 = vpow.pop %v865
    %v867 = vmul.f32 %v786, 1.442695
    %v868 = vpow.pop %v867
    %v869 = vmul.f32 %v787, 1.442695
    %v870 = vpow.pop %v869
    %v871 = vmul.f32 %v788, 1.442695
    %v872 = vpow.pop %v871
    %v873 = vmul.f32 %v789, 1.442695
    %v874 = vpow.pop %v873
    %v875 = vmul.f32 %v790, 1.442695
    %v876 = vpow.pop %v875
    %v877 = vmul.f32 %v791, 1.442695
    %v878 = vpow.pop %v877
    %v879 = vmul.f32 %v792, 1.442695
    %v880 = vpow.pop %v879
    %v881 = vmul.f32 %v793, 1.442695
    %v882 = vpow.pop %v881
    %v883 = vmul.f32 %v794, 1.442695
    %v884 = vpow.pop %v883
    %v885 = vmul.f32 %v795, 1.442695
    %v886 = vpow.pop %v885
    %v887 = vmul.f32 %v796, 1.442695
    %v888 = vpow.pop %v887
    %v889 = vmul.f32 %v797, 1.442695
    %v890 = vpow.pop %v889
    %v891 = vmul.f32 %v798, 1.442695
    %v892 = vpow.pop %v891
    %v893 = vmul.f32 %v799, 1.442695
    %v894 = vpow.pop %v893
    %v895 = vmul.f32 %v800, 1.442695
    %v896 = vpow.pop %v895
    %v897 = vmul.f32 %v801, 1.442695
    %v898 = vpow.pop %v897
    %v899 = vmul.f32 %v802, 1.442695
    %v900 = vpow.pop %v899
    %v901 = vmul.f32 %v803, 1.442695
    %v902 = vpow.pop %v901
    %v903 = vmul.f32 %v804, 1.442695
    %v904 = vpow.pop %v903
    %v905 = vmul.f32 %v805, 1.442695
    %v906 = vpow.pop %v905
    %v907 = vmul.f32 %v806, 1.442695
    %v908 = vpow.pop %v907
    %v909 = vmul.f32 %v807, 1.442695
    %v910 = vpow.pop %v909
    %v911 = vmul.f32 %v808, 1.442695
    %v912 = vpow.pop %v911
    %v913 = vmul.f32 %v809, 1.442695
    %v914 = vpow.pop %v913
    %v915 = vmul.f32 %v810, 1.442695
    %v916 = vpow.pop %v915
    %v917 = vmul.f32 %v811, 1.442695
    %v918 = vpow.pop %v917
    %v919 = vmul.f32 %v812, 1.442695
    %v920 = vpow.pop %v919
    %v921 = vmul.f32 %v813, 1.442695
    %v922 = vpow.pop %v921
    %v923 = vmul.f32 %v814, 1.442695
    %v924 = vpow.pop %v923
    %v925 = vmul.f32 %v815, 1.442695
    %v926 = vpow.pop %v925
    %v927 = vmul.f32 %v816, 1.442695
    %v928 = vpow.pop %v927
    %v929 = vmul.f32 %v817, 1.442695
    %v930 = vpow.pop %v929
    %v931 = vmul.f32 %v818, 1.442695
    %v932 = vpow.pop %v931
    %v933 = vmul.f32 %v819, 1.442695
    %v934 = vpow.pop %v933
    %v935 = vmul.f32 %v820, 1.442695
    %v936 = vpow.pop %v935
    %v937 = vmul.f32 %v821, 1.442695
    %v938 = vpow.pop %v937
    %v939 = vmul.f32 %v822, 1.442695
    %v940 = vpow.pop %v939
    %v941 = vmul.f32 %v823, 1.442695
    %v942 = vpow.pop %v941
    %v943 = vmul.f32 %v824, 1.442695
    %v944 = vpow.pop %v943
    %v945 = vmul.f32 %v825, 1.442695
    %v946 = vpow.pop %v945
    %v947 = vmul.f32 %v826, 1.442695
    %v948 = vpow.pop %v947
    %v949 = vmul.f32 %v827, 1.442695
    %v950 = vpow.pop %v949
    %v951 = vmul.f32 %v828, 1.442695
    %v952 = vpow.pop %v951
    %v953 = vmul.f32 %v829, 1.442695
    %v954 = vpow.pop %v953
    %v955 = vmul.f32 %v830, 1.442695
    %v956 = vpow.pop %v955
    %v957 = vmul.f32 %v831, 1.442695
    %v958 = vpow.pop %v957
    %v959 = vmul.f32 %v832, 1.442695
    %v960 = vpow.pop %v959
    %v961 = vadd.f32 %v834, 1.0
    %v962 = vadd.f32 %v836, 1.0
    %v963 = vadd.f32 %v838, 1.0
    %v964 = vadd.f32 %v840, 1.0
    %v965 = vadd.f32 %v842, 1.0
    %v966 = vadd.f32 %v844, 1.0
    %v967 = vadd.f32 %v846, 1.0
    %v968 = vadd.f32 %v848, 1.0
    %v969 = vadd.f32 %v850, 1.0
    %v970 = vadd.f32 %v852, 1.0
    %v971 = vadd.f32 %v854, 1.0
    %v972 = vadd.f32 %v856, 1.0
    %v973 = vadd.f32 %v858, 1.0
    %v974 = vadd.f32 %v860, 1.0
    %v975 = vadd.f32 %v862, 1.0
    %v976 = vadd.f32 %v864, 1.0
    %v977 = vadd.f32 %v866, 1.0
    %v978 = vadd.f32 %v868, 1.0
    %v979 = vadd.f32 %v870, 1.0
    %v980 = vadd.f32 %v872, 1.0
    %v981 = vadd.f32 %v874, 1.0
    %v982 = vadd.f32 %v876, 1.0
    %v983 = vadd.f32 %v878, 1.0
    %v984 = vadd.f32 %v880, 1.0
    %v985 = vadd.f32 %v882, 1.0
    %v986 = vadd.f32 %v884, 1.0
    %v987 = vadd.f32 %v886, 1.0
    %v988 = vadd.f32 %v888, 1.0
    %v989 = vadd.f32 %v890, 1.0
    %v990 = vadd.f32 %v892, 1.0
    %v991 = vadd.f32 %v894, 1.0
    %v992 = vadd.f32 %v896, 1.0
    %v993 = vadd.f32 %v898, 1.0
    %v994 = vadd.f32 %v900, 1.0
    %v995 = vadd.f32 %v902, 1.0
    %v996 = vadd.f32 %v904, 1.0
    %v997 = vadd.f32 %v906, 1.0
    %v998 = vadd.f32 %v908, 1.0
    %v999 = vadd.f32 %v910, 1.0
    %v1000 = vadd.f32 %v912, 1.0
    %v1001 = vadd.f32 %v914, 1.0
    %v1002 = vadd.f32 %v916, 1.0
    %v1003 = vadd.f32 %v918, 1.0
    %v1004 = vadd.f32 %v920, 1.0
    %v1005 = vadd.f32 %v922, 1.0
    %v1006 = vadd.f32 %v924, 1.0
    %v1007 = vadd.f32 %v926, 1.0
    %v1008 = vadd.f32 %v928, 1.0
    %v1009 = vadd.f32 %v930, 1.0
    %v1010 = vadd.f32 %v932, 1.0
    %v1011 = vadd.f32 %v934, 1.0
    %v1012 = vadd.f32 %v936, 1.0
    %v1013 = vadd.f32 %v938, 1.0
    %v1014 = vadd.f32 %v940, 1.0
    %v1015 = vadd.f32 %v942, 1.0
    %v1016 = vadd.f32 %v944, 1.0
    %v1017 = vadd.f32 %v946, 1.0
    %v1018 = vadd.f32 %v948, 1.0
    %v1019 = vadd.f32 %v950, 1.0
    %v1020 = vadd.f32 %v952, 1.0
    %v1021 = vadd.f32 %v954, 1.0
    %v1022 = vadd.f32 %v956, 1.0
    %v1023 = vadd.f32 %v958, 1.0
    %v1024 = vadd.f32 %v960, 1.0
    %v1025 = vrcp.pop %v961
    %v1026 = vmul.f32 1.0, %v1025
    %v1027 = vrcp.pop %v962
    %v1028 = vmul.f32 1.0, %v1027
    %v1029 = vrcp.pop %v963
    %v1030 = vmul.f32 1.0, %v1029
    %v1031 = vrcp.pop %v964
    %v1032 = vmul.f32 1.0, %v1031
    %v1033 = vrcp.pop %v965
    %v1034 = vmul.f32 1.0, %v1033
    %v1035 = vrcp.pop %v966
    %v1036 = vmul.f32 1.0, %v1035
    %v1037 = vrcp.pop %v967
    %v1038 = vmul.f32 1.0, %v1037
    %v1039 = vrcp.pop %v968
    %v1040 = vmul.f32 1.0, %v1039
    %v1041 = vrcp.pop %v969
    %v1042 = vmul.f32 1.0, %v1041
    %v1043 = vrcp.pop %v970
    %v1044 = vmul.f32 1.0, %v1043
    %v1045 = vrcp.pop %v971
    %v1046 = vmul.f32 1.0, %v1045
    %v1047 = vrcp.pop %v972
    %v1048 = vmul.f32 1.0, %v1047
    %v1049 = vrcp.pop %v973
    %v1050 = vmul.f32 1.0, %v1049
    %v1051 = vrcp.pop %v974
    %v1052 = vmul.f32 1.0, %v1051
    %v1053 = vrcp.pop %v975
    %v1054 = vmul.f32 1.0, %v1053
    %v1055 = vrcp.pop %v976
    %v1056 = vmul.f32 1.0, %v1055
    %v1057 = vrcp.pop %v977
    %v1058 = vmul.f32 1.0, %v1057
    %v1059 = vrcp.pop %v978
    %v1060 = vmul.f32 1.0, %v1059
    %v1061 = vrcp.pop %v979
    %v1062 = vmul.f32 1.0, %v1061
    %v1063 = vrcp.pop %v980
    %v1064 = vmul.f32 1.0, %v1063
    %v1065 = vrcp.pop %v981
    %v1066 = vmul.f32 1.0, %v1065
    %v1067 = vrcp.pop %v982
    %v1068 = vmul.f32 1.0, %v1067
    %v1069 = vrcp.pop %v983
    %v1070 = vmul.f32 1.0, %v1069
    %v1071 = vrcp.pop %v984
    %v1072 = vmul.f32 1.0, %v1071
    %v1073 = vrcp.pop %v985
    %v1074 = vmul.f32 1.0, %v1073
    %v1075 = vrcp.pop %v986
    %v1076 = vmul.f32 1.0, %v1075
    %v1077 = vrcp.pop %v987
    %v1078 = vmul.f32 1.0, %v1077
    %v1079 = vrcp.pop %v988
    %v1080 = vmul.f32 1.0, %v1079
    %v1081 = vrcp.pop %v989
    %v1082 = vmul.f32 1.0, %v1081
    %v1083 = vrcp.pop %v990
    %v1084 = vmul.f32 1.0, %v1083
    %v1085 = vrcp.pop %v991
    %v1086 = vmul.f32 1.0, %v1085
    %v1087 = vrcp.pop %v992
    %v1088 = vmul.f32 1.0, %v1087
    %v1089 = vrcp.pop %v993
    %v1090 = vmul.f32 1.0, %v1089
    %v1091 = vrcp.pop %v994
    %v1092 = vmul.f32 1.0, %v1091
    %v1093 = vrcp.pop %v995
    %v1094 = vmul.f32 1.0, %v1093
    %v1095 = vrcp.pop %v996
    %v1096 = vmul.f32 1.0, %v1095
    %v1097 = vrcp.pop %v997
    %v1098 = vmul.f32 1.0, %v1097
    %v1099 = vrcp.pop %v998
    %v1100 = vmul.f32 1.0, %v1099
    %v1101 = vrcp.pop %v999
    %v1102 = vmul.f32 1.0, %v1101
    %v1103 = vrcp.pop %v1000
    %v1104 = vmul.f32 1.0, %v1103
    %v1105 = vrcp.pop %v1001
    %v1106 = vmul.f32 1.0, %v1105
    %v1107 = vrcp.pop %v1002
    %v1108 = vmul.f32 1.0, %v1107
    %v1109 = vrcp.pop %v1003
    %v1110 = vmul.f32 1.0, %v1109
    %v1111 = vrcp.pop %v1004
    %v1112 = vmul.f32 1.0, %v1111
    %v1113 = vrcp.pop %v1005
    %v1114 = vmul.f32 1.0, %v1113
    %v1115 = vrcp.pop %v1006
    %v1116 = vmul.f32 1.0, %v1115
    %v1117 = vrcp.pop %v1007
    %v1118 = vmul.f32 1.0, %v1117
    %v1119 = vrcp.pop %v1008
    %v1120 = vmul.f32 1.0, %v1119
    %v1121 = vrcp.pop %v1009
    %v1122 = vmul.f32 1.0, %v1121
    %v1123 = vrcp.pop %v1010
    %v1124 = vmul.f32 1.0, %v1123
    %v1125 = vrcp.pop %v1011
    %v1126 = vmul.f32 1.0, %v1125
    %v1127 = vrcp.pop %v1012
    %v1128 = vmul.f32 1.0, %v1127
    %v1129 = vrcp.pop %v1013
    %v1130 = vmul.f32 1.0, %v1129
    %v1131 = vrcp.pop %v1014
    %v1132 = vmul.f32 1.0, %v1131
    %v1133 = vrcp.pop %v1015
    %v1134 = vmul.f32 1.0, %v1133
    %v1135 = vrcp.pop %v1016
    %v1136 = vmul.f32 1.0, %v1135
    %v1137 = vrcp.pop %v1017
    %v1138 = vmul.f32 1.0, %v1137
    %v1139 = vrcp.pop %v1018
    %v1140 = vmul.f32 1.0, %v1139
    %v1141 = vrcp.pop %v1019
    %v1142 = vmul.f32 1.0, %v1141
    %v1143 = vrcp.pop %v1020
    %v1144 = vmul.f32 1.0, %v1143
    %v1145 = vrcp.pop %v1021
    %v1146 = vmul.f32 1.0, %v1145
    %v1147 = vrcp.pop %v1022
    %v1148 = vmul.f32 1.0, %v1147
    %v1149 = vrcp.pop %v1023
    %v1150 = vmul.f32 1.0, %v1149
    %v1151 = vrcp.pop %v1024
    %v1152 = vmul.f32 1.0, %v1151
    %vm1153 = vcmask 7168
    %v1154 = vsel %vm1153, %v1026, -inf
    %v1155 = vsel %vm1153, %v1028, -inf
    %v1156 = vmax.f32 %v1154, %v1155
    %v1157 = vsel %vm1153, %v1030, -inf
    %v1158 = vmax.f32 %v1156, %v1157
    %v1159 = vsel %vm1153, %v1032, -inf
    %v1160 = vmax.f32 %v1158, %v1159
    %v1161 = vsel %vm1153, %v1034, -inf
    %v1162 = vmax.f32 %v1160, %v1161
    %v1163 = vsel %vm1153, %v1036, -inf
    %v1164 = vmax.f32 %v1162, %v1163
    %v1165 = vsel %vm1153, %v1038, -inf
    %v1166 = vmax.f32 %v1164, %v1165
    %v1167 = vsel %vm1153, %v1040, -inf
    %v1168 = vmax.f32 %v1166, %v1167
    %v1169 = vrot.slane %v1168, 4
    %v1170 = vmax.f32 %v1168, %v1169
    %v1171 = vrot.slane %v1170, 2
    %v1172 = vmax.f32 %v1170, %v1171
    %v1173 = vrot.slane %v1172, 1
    %v1174 = vmax.f32 %v1172, %v1173
    %v1175 = vsel %vm1153, %v1042, -inf
    %v1176 = vsel %vm1153, %v1044, -inf
    %v1177 = vmax.f32 %v1175, %v1176
    %v1178 = vsel %vm1153, %v1046, -inf
    %v1179 = vmax.f32 %v1177, %v1178
    %v1180 = vsel %vm1153, %v1048, -inf
    %v1181 = vmax.f32 %v1179, %v1180
    %v1182 = vsel %vm1153, %v1050, -inf
    %v1183 = vmax.f32 %v1181, %v1182
    %v1184 = vsel %vm1153, %v1052, -inf
    %v1185 = vmax.f32 %v1183, %v1184
    %v1186 = vsel %vm1153, %v1054, -inf
    %v1187 = vmax.f32 %v1185, %v1186
    %v1188 = vsel %vm1153, %v1056, -inf
    %v1189 = vmax.f32 %v1187, %v1188
    %v1190 = vrot.slane %v1189, 4
    %v1191 = vmax.f32 %v1189, %v1190
    %v1192 = vrot.slane %v1191, 2
    %v1193 = vmax.f32 %v1191, %v1192
    %v1194 = vrot.slane %v1193, 1
    %v1195 = vmax.f32 %v1193, %v1194
    %v1196 = vsel %vm1153, %v1058, -inf
    %v1197 = vsel %vm1153, %v1060, -inf
    %v1198 = vmax.f32 %v1196, %v1197
    %v1199 = vsel %vm1153, %v1062, -inf
    %v1200 = vmax.f32 %v1198, %v1199
    %v1201 = vsel %vm1153, %v1064, -inf
    %v1202 = vmax.f32 %v1200, %v1201
    %v1203 = vsel %vm1153, %v1066, -inf
    %v1204 = vmax.f32 %v1202, %v1203
    %v1205 = vsel %vm1153, %v1068, -inf
    %v1206 = vmax.f32 %v1204, %v1205
    %v1207 = vsel %vm1153, %v1070, -inf
    %v1208 = vmax.f32 %v1206, %v1207
    %v1209 = vsel %vm1153, %v1072, -inf
    %v1210 = vmax.f32 %v1208, %v1209
    %v1211 = vrot.slane %v1210, 4
    %v1212 = vmax.f32 %v1210, %v1211
    %v1213 = vrot.slane %v1212, 2
    %v1214 = vmax.f32 %v1212, %v1213
    %v1215 = vrot.slane %v1214, 1
    %v1216 = vmax.f32 %v1214, %v1215
    %v1217 = vsel %vm1153, %v1074, -inf
    %v1218 = vsel %vm1153, %v1076, -inf
    %v1219 = vmax.f32 %v1217, %v1218
    %v1220 = vsel %vm1153, %v1078, -inf
    %v1221 = vmax.f32 %v1219, %v1220
    %v1222 = vsel %vm1153, %v1080, -inf
    %v1223 = vmax.f32 %v1221, %v1222
    %v1224 = vsel %vm1153, %v1082, -inf
    %v1225 = vmax.f32 %v1223, %v1224
    %v1226 = vsel %vm1153, %v1084, -inf
    %v1227 = vmax.f32 %v1225, %v1226
    %v1228 = vsel %vm1153, %v1086, -inf
    %v1229 = vmax.f32 %v1227, %v1228
    %v1230 = vsel %vm1153, %v1088, -inf
    %v1231 = vmax.f32 %v1229, %v1230
    %v1232 = vrot.slane %v1231, 4
    %v1233 = vmax.f32 %v1231, %v1232
    %v1234 = vrot.slane %v1233, 2
    %v1235 = vmax.f32 %v1233, %v1234
    %v1236 = vrot.slane %v1235, 1
    %v1237 = vmax.f32 %v1235, %v1236
    %v1238 = vsel %vm1153, %v1090, -inf
    %v1239 = vsel %vm1153, %v1092, -inf
    %v1240 = vmax.f32 %v1238, %v1239
    %v1241 = vsel %vm1153, %v1094, -inf
    %v1242 = vmax.f32 %v1240, %v1241
    %v1243 = vsel %vm1153, %v1096, -inf
    %v1244 = vmax.f32 %v1242, %v1243
    %v1245 = vsel %vm1153, %v1098, -inf
    %v1246 = vmax.f32 %v1244, %v1245
    %v1247 = vsel %vm1153, %v1100, -inf
    %v1248 = vmax.f32 %v1246, %v1247
    %v1249 = vsel %vm1153, %v1102, -inf
    %v1250 = vmax.f32 %v1248, %v1249
    %v1251 = vsel %vm1153, %v1104, -inf
    %v1252 = vmax.f32 %v1250, %v1251
    %v1253 = vrot.slane %v1252, 4
    %v1254 = vmax.f32 %v1252, %v1253
    %v1255 = vrot.slane %v1254, 2
    %v1256 = vmax.f32 %v1254, %v1255
    %v1257 = vrot.slane %v1256, 1
    %v1258 = vmax.f32 %v1256, %v1257
    %v1259 = vsel %vm1153, %v1106, -inf
    %v1260 = vsel %vm1153, %v1108, -inf
    %v1261 = vmax.f32 %v1259, %v1260
    %v1262 = vsel %vm1153, %v1110, -inf
    %v1263 = vmax.f32 %v1261, %v1262
    %v1264 = vsel %vm1153, %v1112, -inf
    %v1265 = vmax.f32 %v1263, %v1264
    %v1266 = vsel %vm1153, %v1114, -inf
    %v1267 = vmax.f32 %v1265, %v1266
    %v1268 = vsel %vm1153, %v1116, -inf
    %v1269 = vmax.f32 %v1267, %v1268
    %v1270 = vsel %vm1153, %v1118, -inf
    %v1271 = vmax.f32 %v1269, %v1270
    %v1272 = vsel %vm1153, %v1120, -inf
    %v1273 = vmax.f32 %v1271, %v1272
    %v1274 = vrot.slane %v1273, 4
    %v1275 = vmax.f32 %v1273, %v1274
    %v1276 = vrot.slane %v1275, 2
    %v1277 = vmax.f32 %v1275, %v1276
    %v1278 = vrot.slane %v1277, 1
    %v1279 = vmax.f32 %v1277, %v1278
    %v1280 = vsel %vm1153, %v1122, -inf
    %v1281 = vsel %vm1153, %v1124, -inf
    %v1282 = vmax.f32 %v1280, %v1281
    %v1283 = vsel %vm1153, %v1126, -inf
    %v1284 = vmax.f32 %v1282, %v1283
    %v1285 = vsel %vm1153, %v1128, -inf
    %v1286 = vmax.f32 %v1284, %v1285
    %v1287 = vsel %vm1153, %v1130, -inf
    %v1288 = vmax.f32 %v1286, %v1287
    %v1289 = vsel %vm1153, %v1132, -inf
    %v1290 = vmax.f32 %v1288, %v1289
    %v1291 = vsel %vm1153, %v1134, -inf
    %v1292 = vmax.f32 %v1290, %v1291
    %v1293 = vsel %vm1153, %v1136, -inf
    %v1294 = vmax.f32 %v1292, %v1293
    %v1295 = vrot.slane %v1294, 4
    %v1296 = vmax.f32 %v1294, %v1295
    %v1297 = vrot.slane %v1296, 2
    %v1298 = vmax.f32 %v1296, %v1297
    %v1299 = vrot.slane %v1298, 1
    %v1300 = vmax.f32 %v1298, %v1299
    %v1301 = vsel %vm1153, %v1138, -inf
    %v1302 = vsel %vm1153, %v1140, -inf
    %v1303 = vmax.f32 %v1301, %v1302
    %v1304 = vsel %vm1153, %v1142, -inf
    %v1305 = vmax.f32 %v1303, %v1304
    %v1306 = vsel %vm1153, %v1144, -inf
    %v1307 = vmax.f32 %v1305, %v1306
    %v1308 = vsel %vm1153, %v1146, -inf
    %v1309 = vmax.f32 %v1307, %v1308
    %v1310 = vsel %vm1153, %v1148, -inf
    %v1311 = vmax.f32 %v1309, %v1310
    %v1312 = vsel %vm1153, %v1150, -inf
    %v1313 = vmax.f32 %v1311, %v1312
    %v1314 = vsel %vm1153, %v1152, -inf
    %v1315 = vmax.f32 %v1313, %v1314
    %v1316 = vrot.slane %v1315, 4
    %v1317 = vmax.f32 %v1315, %v1316
    %v1318 = vrot.slane %v1317, 2
    %v1319 = vmax.f32 %v1317, %v1318
    %v1320 = vrot.slane %v1319, 1
    %v1321 = vmax.f32 %v1319, %v1320
    %s1322 = sld [smem:[#allocation2 + $0x1]]
    %v1323 = vstv %s1322
    %v1324 = vadd.f32 %v449, %v1323
    %v1325 = vadd.f32 %v452, %v1323
    %v1326 = vadd.f32 %v457, %v1323
    %v1327 = vadd.f32 %v460, %v1323
    %v1328 = vadd.f32 %v465, %v1323
    %v1329 = vadd.f32 %v468, %v1323
    %v1330 = vadd.f32 %v473, %v1323
    %v1331 = vadd.f32 %v476, %v1323
    %v1332 = vadd.f32 %v481, %v1323
    %v1333 = vadd.f32 %v484, %v1323
    %v1334 = vadd.f32 %v489, %v1323
    %v1335 = vadd.f32 %v492, %v1323
    %v1336 = vadd.f32 %v497, %v1323
    %v1337 = vadd.f32 %v500, %v1323
    %v1338 = vadd.f32 %v505, %v1323
    %v1339 = vadd.f32 %v508, %v1323
    %v1340 = vadd.f32 %v513, %v1323
    %v1341 = vadd.f32 %v516, %v1323
    %v1342 = vadd.f32 %v521, %v1323
    %v1343 = vadd.f32 %v524, %v1323
    %v1344 = vadd.f32 %v529, %v1323
    %v1345 = vadd.f32 %v532, %v1323
    %v1346 = vadd.f32 %v537, %v1323
    %v1347 = vadd.f32 %v540, %v1323
    %v1348 = vadd.f32 %v545, %v1323
    %v1349 = vadd.f32 %v548, %v1323
    %v1350 = vadd.f32 %v553, %v1323
    %v1351 = vadd.f32 %v556, %v1323
    %v1352 = vadd.f32 %v561, %v1323
    %v1353 = vadd.f32 %v564, %v1323
    %v1354 = vadd.f32 %v569, %v1323
    %v1355 = vadd.f32 %v572, %v1323
    %v1356 = vadd.f32 %v577, %v1323
    %v1357 = vadd.f32 %v580, %v1323
    %v1358 = vadd.f32 %v585, %v1323
    %v1359 = vadd.f32 %v588, %v1323
    %v1360 = vadd.f32 %v593, %v1323
    %v1361 = vadd.f32 %v596, %v1323
    %v1362 = vadd.f32 %v601, %v1323
    %v1363 = vadd.f32 %v604, %v1323
    %v1364 = vadd.f32 %v609, %v1323
    %v1365 = vadd.f32 %v612, %v1323
    %v1366 = vadd.f32 %v617, %v1323
    %v1367 = vadd.f32 %v620, %v1323
    %v1368 = vadd.f32 %v625, %v1323
    %v1369 = vadd.f32 %v628, %v1323
    %v1370 = vadd.f32 %v633, %v1323
    %v1371 = vadd.f32 %v636, %v1323
    %v1372 = vadd.f32 %v641, %v1323
    %v1373 = vadd.f32 %v644, %v1323
    %v1374 = vadd.f32 %v649, %v1323
    %v1375 = vadd.f32 %v652, %v1323
    %v1376 = vadd.f32 %v657, %v1323
    %v1377 = vadd.f32 %v660, %v1323
    %v1378 = vadd.f32 %v665, %v1323
    %v1379 = vadd.f32 %v668, %v1323
    %v1380 = vadd.f32 %v673, %v1323
    %v1381 = vadd.f32 %v676, %v1323
    %v1382 = vadd.f32 %v681, %v1323
    %v1383 = vadd.f32 %v684, %v1323
    %v1384 = vadd.f32 %v689, %v1323
    %v1385 = vadd.f32 %v692, %v1323
    %v1386 = vadd.f32 %v697, %v1323
    %v1387 = vadd.f32 %v700, %v1323
    %v1388 = vxor.u32 %v1324, 2147483648
    %v1389 = vxor.u32 %v1325, 2147483648
    %v1390 = vxor.u32 %v1326, 2147483648
    %v1391 = vxor.u32 %v1327, 2147483648
    %v1392 = vxor.u32 %v1328, 2147483648
    %v1393 = vxor.u32 %v1329, 2147483648
    %v1394 = vxor.u32 %v1330, 2147483648
    %v1395 = vxor.u32 %v1331, 2147483648
    %v1396 = vxor.u32 %v1332, 2147483648
    %v1397 = vxor.u32 %v1333, 2147483648
    %v1398 = vxor.u32 %v1334, 2147483648
    %v1399 = vxor.u32 %v1335, 2147483648
    %v1400 = vxor.u32 %v1336, 2147483648
    %v1401 = vxor.u32 %v1337, 2147483648
    %v1402 = vxor.u32 %v1338, 2147483648
    %v1403 = vxor.u32 %v1339, 2147483648
    %v1404 = vxor.u32 %v1340, 2147483648
    %v1405 = vxor.u32 %v1341, 2147483648
    %v1406 = vxor.u32 %v1342, 2147483648
    %v1407 = vxor.u32 %v1343, 2147483648
    %v1408 = vxor.u32 %v1344, 2147483648
    %v1409 = vxor.u32 %v1345, 2147483648
    %v1410 = vxor.u32 %v1346, 2147483648
    %v1411 = vxor.u32 %v1347, 2147483648
    %v1412 = vxor.u32 %v1348, 2147483648
    %v1413 = vxor.u32 %v1349, 2147483648
    %v1414 = vxor.u32 %v1350, 2147483648
    %v1415 = vxor.u32 %v1351, 2147483648
    %v1416 = vxor.u32 %v1352, 2147483648
    %v1417 = vxor.u32 %v1353, 2147483648
    %v1418 = vxor.u32 %v1354, 2147483648
    %v1419 = vxor.u32 %v1355, 2147483648
    %v1420 = vxor.u32 %v1356, 2147483648
    %v1421 = vxor.u32 %v1357, 2147483648
    %v1422 = vxor.u32 %v1358, 2147483648
    %v1423 = vxor.u32 %v1359, 2147483648
    %v1424 = vxor.u32 %v1360, 2147483648
    %v1425 = vxor.u32 %v1361, 2147483648
    %v1426 = vxor.u32 %v1362, 2147483648
    %v1427 = vxor.u32 %v1363, 2147483648
    %v1428 = vxor.u32 %v1364, 2147483648
    %v1429 = vxor.u32 %v1365, 2147483648
    %v1430 = vxor.u32 %v1366, 2147483648
    %v1431 = vxor.u32 %v1367, 2147483648
    %v1432 = vxor.u32 %v1368, 2147483648
    %v1433 = vxor.u32 %v1369, 2147483648
    %v1434 = vxor.u32 %v1370, 2147483648
    %v1435 = vxor.u32 %v1371, 2147483648
    %v1436 = vxor.u32 %v1372, 2147483648
    %v1437 = vxor.u32 %v1373, 2147483648
    %v1438 = vxor.u32 %v1374, 2147483648
    %v1439 = vxor.u32 %v1375, 2147483648
    %v1440 = vxor.u32 %v1376, 2147483648
    %v1441 = vxor.u32 %v1377, 2147483648
    %v1442 = vxor.u32 %v1378, 2147483648
    %v1443 = vxor.u32 %v1379, 2147483648
    %v1444 = vxor.u32 %v1380, 2147483648
    %v1445 = vxor.u32 %v1381, 2147483648
    %v1446 = vxor.u32 %v1382, 2147483648
    %v1447 = vxor.u32 %v1383, 2147483648
    %v1448 = vxor.u32 %v1384, 2147483648
    %v1449 = vxor.u32 %v1385, 2147483648
    %v1450 = vxor.u32 %v1386, 2147483648
    %v1451 = vxor.u32 %v1387, 2147483648
    %v1452 = vmul.f32 %v1388, 1.442695
    %v1453 = vpow.pop %v1452
    %v1454 = vmul.f32 %v1389, 1.442695
    %v1455 = vpow.pop %v1454
    %v1456 = vmul.f32 %v1390, 1.442695
    %v1457 = vpow.pop %v1456
    %v1458 = vmul.f32 %v1391, 1.442695
    %v1459 = vpow.pop %v1458
    %v1460 = vmul.f32 %v1392, 1.442695
    %v1461 = vpow.pop %v1460
    %v1462 = vmul.f32 %v1393, 1.442695
    %v1463 = vpow.pop %v1462
    %v1464 = vmul.f32 %v1394, 1.442695
    %v1465 = vpow.pop %v1464
    %v1466 = vmul.f32 %v1395, 1.442695
    %v1467 = vpow.pop %v1466
    %v1468 = vmul.f32 %v1396, 1.442695
    %v1469 = vpow.pop %v1468
    %v1470 = vmul.f32 %v1397, 1.442695
    %v1471 = vpow.pop %v1470
    %v1472 = vmul.f32 %v1398, 1.442695
    %v1473 = vpow.pop %v1472
    %v1474 = vmul.f32 %v1399, 1.442695
    %v1475 = vpow.pop %v1474
    %v1476 = vmul.f32 %v1400, 1.442695
    %v1477 = vpow.pop %v1476
    %v1478 = vmul.f32 %v1401, 1.442695
    %v1479 = vpow.pop %v1478
    %v1480 = vmul.f32 %v1402, 1.442695
    %v1481 = vpow.pop %v1480
    %v1482 = vmul.f32 %v1403, 1.442695
    %v1483 = vpow.pop %v1482
    %v1484 = vmul.f32 %v1404, 1.442695
    %v1485 = vpow.pop %v1484
    %v1486 = vmul.f32 %v1405, 1.442695
    %v1487 = vpow.pop %v1486
    %v1488 = vmul.f32 %v1406, 1.442695
    %v1489 = vpow.pop %v1488
    %v1490 = vmul.f32 %v1407, 1.442695
    %v1491 = vpow.pop %v1490
    %v1492 = vmul.f32 %v1408, 1.442695
    %v1493 = vpow.pop %v1492
    %v1494 = vmul.f32 %v1409, 1.442695
    %v1495 = vpow.pop %v1494
    %v1496 = vmul.f32 %v1410, 1.442695
    %v1497 = vpow.pop %v1496
    %v1498 = vmul.f32 %v1411, 1.442695
    %v1499 = vpow.pop %v1498
    %v1500 = vmul.f32 %v1412, 1.442695
    %v1501 = vpow.pop %v1500
    %v1502 = vmul.f32 %v1413, 1.442695
    %v1503 = vpow.pop %v1502
    %v1504 = vmul.f32 %v1414, 1.442695
    %v1505 = vpow.pop %v1504
    %v1506 = vmul.f32 %v1415, 1.442695
    %v1507 = vpow.pop %v1506
    %v1508 = vmul.f32 %v1416, 1.442695
    %v1509 = vpow.pop %v1508
    %v1510 = vmul.f32 %v1417, 1.442695
    %v1511 = vpow.pop %v1510
    %v1512 = vmul.f32 %v1418, 1.442695
    %v1513 = vpow.pop %v1512
    %v1514 = vmul.f32 %v1419, 1.442695
    %v1515 = vpow.pop %v1514
    %v1516 = vmul.f32 %v1420, 1.442695
    %v1517 = vpow.pop %v1516
    %v1518 = vmul.f32 %v1421, 1.442695
    %v1519 = vpow.pop %v1518
    %v1520 = vmul.f32 %v1422, 1.442695
    %v1521 = vpow.pop %v1520
    %v1522 = vmul.f32 %v1423, 1.442695
    %v1523 = vpow.pop %v1522
    %v1524 = vmul.f32 %v1424, 1.442695
    %v1525 = vpow.pop %v1524
    %v1526 = vmul.f32 %v1425, 1.442695
    %v1527 = vpow.pop %v1526
    %v1528 = vmul.f32 %v1426, 1.442695
    %v1529 = vpow.pop %v1528
    %v1530 = vmul.f32 %v1427, 1.442695
    %v1531 = vpow.pop %v1530
    %v1532 = vmul.f32 %v1428, 1.442695
    %v1533 = vpow.pop %v1532
    %v1534 = vmul.f32 %v1429, 1.442695
    %v1535 = vpow.pop %v1534
    %v1536 = vmul.f32 %v1430, 1.442695
    %v1537 = vpow.pop %v1536
    %v1538 = vmul.f32 %v1431, 1.442695
    %v1539 = vpow.pop %v1538
    %v1540 = vmul.f32 %v1432, 1.442695
    %v1541 = vpow.pop %v1540
    %v1542 = vmul.f32 %v1433, 1.442695
    %v1543 = vpow.pop %v1542
    %v1544 = vmul.f32 %v1434, 1.442695
    %v1545 = vpow.pop %v1544
    %v1546 = vmul.f32 %v1435, 1.442695
    %v1547 = vpow.pop %v1546
    %v1548 = vmul.f32 %v1436, 1.442695
    %v1549 = vpow.pop %v1548
    %v1550 = vmul.f32 %v1437, 1.442695
    %v1551 = vpow.pop %v1550
    %v1552 = vmul.f32 %v1438, 1.442695
    %v1553 = vpow.pop %v1552
    %v1554 = vmul.f32 %v1439, 1.442695
    %v1555 = vpow.pop %v1554
    %v1556 = vmul.f32 %v1440, 1.442695
    %v1557 = vpow.pop %v1556
    %v1558 = vmul.f32 %v1441, 1.442695
    %v1559 = vpow.pop %v1558
    %v1560 = vmul.f32 %v1442, 1.442695
    %v1561 = vpow.pop %v1560
    %v1562 = vmul.f32 %v1443, 1.442695
    %v1563 = vpow.pop %v1562
    %v1564 = vmul.f32 %v1444, 1.442695
    %v1565 = vpow.pop %v1564
    %v1566 = vmul.f32 %v1445, 1.442695
    %v1567 = vpow.pop %v1566
    %v1568 = vmul.f32 %v1446, 1.442695
    %v1569 = vpow.pop %v1568
    %v1570 = vmul.f32 %v1447, 1.442695
    %v1571 = vpow.pop %v1570
    %v1572 = vmul.f32 %v1448, 1.442695
    %v1573 = vpow.pop %v1572
    %v1574 = vmul.f32 %v1449, 1.442695
    %v1575 = vpow.pop %v1574
    %v1576 = vmul.f32 %v1450, 1.442695
    %v1577 = vpow.pop %v1576
    %v1578 = vmul.f32 %v1451, 1.442695
    %v1579 = vpow.pop %v1578
    %v1580 = vadd.f32 %v1453, 1.0
    %v1581 = vadd.f32 %v1455, 1.0
    %v1582 = vadd.f32 %v1457, 1.0
    %v1583 = vadd.f32 %v1459, 1.0
    %v1584 = vadd.f32 %v1461, 1.0
    %v1585 = vadd.f32 %v1463, 1.0
    %v1586 = vadd.f32 %v1465, 1.0
    %v1587 = vadd.f32 %v1467, 1.0
    %v1588 = vadd.f32 %v1469, 1.0
    %v1589 = vadd.f32 %v1471, 1.0
    %v1590 = vadd.f32 %v1473, 1.0
    %v1591 = vadd.f32 %v1475, 1.0
    %v1592 = vadd.f32 %v1477, 1.0
    %v1593 = vadd.f32 %v1479, 1.0
    %v1594 = vadd.f32 %v1481, 1.0
    %v1595 = vadd.f32 %v1483, 1.0
    %v1596 = vadd.f32 %v1485, 1.0
    %v1597 = vadd.f32 %v1487, 1.0
    %v1598 = vadd.f32 %v1489, 1.0
    %v1599 = vadd.f32 %v1491, 1.0
    %v1600 = vadd.f32 %v1493, 1.0
    %v1601 = vadd.f32 %v1495, 1.0
    %v1602 = vadd.f32 %v1497, 1.0
    %v1603 = vadd.f32 %v1499, 1.0
    %v1604 = vadd.f32 %v1501, 1.0
    %v1605 = vadd.f32 %v1503, 1.0
    %v1606 = vadd.f32 %v1505, 1.0
    %v1607 = vadd.f32 %v1507, 1.0
    %v1608 = vadd.f32 %v1509, 1.0
    %v1609 = vadd.f32 %v1511, 1.0
    %v1610 = vadd.f32 %v1513, 1.0
    %v1611 = vadd.f32 %v1515, 1.0
    %v1612 = vadd.f32 %v1517, 1.0
    %v1613 = vadd.f32 %v1519, 1.0
    %v1614 = vadd.f32 %v1521, 1.0
    %v1615 = vadd.f32 %v1523, 1.0
    %v1616 = vadd.f32 %v1525, 1.0
    %v1617 = vadd.f32 %v1527, 1.0
    %v1618 = vadd.f32 %v1529, 1.0
    %v1619 = vadd.f32 %v1531, 1.0
    %v1620 = vadd.f32 %v1533, 1.0
    %v1621 = vadd.f32 %v1535, 1.0
    %v1622 = vadd.f32 %v1537, 1.0
    %v1623 = vadd.f32 %v1539, 1.0
    %v1624 = vadd.f32 %v1541, 1.0
    %v1625 = vadd.f32 %v1543, 1.0
    %v1626 = vadd.f32 %v1545, 1.0
    %v1627 = vadd.f32 %v1547, 1.0
    %v1628 = vadd.f32 %v1549, 1.0
    %v1629 = vadd.f32 %v1551, 1.0
    %v1630 = vadd.f32 %v1553, 1.0
    %v1631 = vadd.f32 %v1555, 1.0
    %v1632 = vadd.f32 %v1557, 1.0
    %v1633 = vadd.f32 %v1559, 1.0
    %v1634 = vadd.f32 %v1561, 1.0
    %v1635 = vadd.f32 %v1563, 1.0
    %v1636 = vadd.f32 %v1565, 1.0
    %v1637 = vadd.f32 %v1567, 1.0
    %v1638 = vadd.f32 %v1569, 1.0
    %v1639 = vadd.f32 %v1571, 1.0
    %v1640 = vadd.f32 %v1573, 1.0
    %v1641 = vadd.f32 %v1575, 1.0
    %v1642 = vadd.f32 %v1577, 1.0
    %v1643 = vadd.f32 %v1579, 1.0
    %v1644 = vrcp.pop %v1580
    %v1645 = vmul.f32 1.0, %v1644
    %v1646 = vrcp.pop %v1581
    %v1647 = vmul.f32 1.0, %v1646
    %v1648 = vrcp.pop %v1582
    %v1649 = vmul.f32 1.0, %v1648
    %v1650 = vrcp.pop %v1583
    %v1651 = vmul.f32 1.0, %v1650
    %v1652 = vrcp.pop %v1584
    %v1653 = vmul.f32 1.0, %v1652
    %v1654 = vrcp.pop %v1585
    %v1655 = vmul.f32 1.0, %v1654
    %v1656 = vrcp.pop %v1586
    %v1657 = vmul.f32 1.0, %v1656
    %v1658 = vrcp.pop %v1587
    %v1659 = vmul.f32 1.0, %v1658
    %v1660 = vrcp.pop %v1588
    %v1661 = vmul.f32 1.0, %v1660
    %v1662 = vrcp.pop %v1589
    %v1663 = vmul.f32 1.0, %v1662
    %v1664 = vrcp.pop %v1590
    %v1665 = vmul.f32 1.0, %v1664
    %v1666 = vrcp.pop %v1591
    %v1667 = vmul.f32 1.0, %v1666
    %v1668 = vrcp.pop %v1592
    %v1669 = vmul.f32 1.0, %v1668
    %v1670 = vrcp.pop %v1593
    %v1671 = vmul.f32 1.0, %v1670
    %v1672 = vrcp.pop %v1594
    %v1673 = vmul.f32 1.0, %v1672
    %v1674 = vrcp.pop %v1595
    %v1675 = vmul.f32 1.0, %v1674
    %v1676 = vrcp.pop %v1596
    %v1677 = vmul.f32 1.0, %v1676
    %v1678 = vrcp.pop %v1597
    %v1679 = vmul.f32 1.0, %v1678
    %v1680 = vrcp.pop %v1598
    %v1681 = vmul.f32 1.0, %v1680
    %v1682 = vrcp.pop %v1599
    %v1683 = vmul.f32 1.0, %v1682
    %v1684 = vrcp.pop %v1600
    %v1685 = vmul.f32 1.0, %v1684
    %v1686 = vrcp.pop %v1601
    %v1687 = vmul.f32 1.0, %v1686
    %v1688 = vrcp.pop %v1602
    %v1689 = vmul.f32 1.0, %v1688
    %v1690 = vrcp.pop %v1603
    %v1691 = vmul.f32 1.0, %v1690
    %v1692 = vrcp.pop %v1604
    %v1693 = vmul.f32 1.0, %v1692
    %v1694 = vrcp.pop %v1605
    %v1695 = vmul.f32 1.0, %v1694
    %v1696 = vrcp.pop %v1606
    %v1697 = vmul.f32 1.0, %v1696
    %v1698 = vrcp.pop %v1607
    %v1699 = vmul.f32 1.0, %v1698
    %v1700 = vrcp.pop %v1608
    %v1701 = vmul.f32 1.0, %v1700
    %v1702 = vrcp.pop %v1609
    %v1703 = vmul.f32 1.0, %v1702
    %v1704 = vrcp.pop %v1610
    %v1705 = vmul.f32 1.0, %v1704
    %v1706 = vrcp.pop %v1611
    %v1707 = vmul.f32 1.0, %v1706
    %v1708 = vrcp.pop %v1612
    %v1709 = vmul.f32 1.0, %v1708
    %v1710 = vrcp.pop %v1613
    %v1711 = vmul.f32 1.0, %v1710
    %v1712 = vrcp.pop %v1614
    %v1713 = vmul.f32 1.0, %v1712
    %v1714 = vrcp.pop %v1615
    %v1715 = vmul.f32 1.0, %v1714
    %v1716 = vrcp.pop %v1616
    %v1717 = vmul.f32 1.0, %v1716
    %v1718 = vrcp.pop %v1617
    %v1719 = vmul.f32 1.0, %v1718
    %v1720 = vrcp.pop %v1618
    %v1721 = vmul.f32 1.0, %v1720
    %v1722 = vrcp.pop %v1619
    %v1723 = vmul.f32 1.0, %v1722
    %v1724 = vrcp.pop %v1620
    %v1725 = vmul.f32 1.0, %v1724
    %v1726 = vrcp.pop %v1621
    %v1727 = vmul.f32 1.0, %v1726
    %v1728 = vrcp.pop %v1622
    %v1729 = vmul.f32 1.0, %v1728
    %v1730 = vrcp.pop %v1623
    %v1731 = vmul.f32 1.0, %v1730
    %v1732 = vrcp.pop %v1624
    %v1733 = vmul.f32 1.0, %v1732
    %v1734 = vrcp.pop %v1625
    %v1735 = vmul.f32 1.0, %v1734
    %v1736 = vrcp.pop %v1626
    %v1737 = vmul.f32 1.0, %v1736
    %v1738 = vrcp.pop %v1627
    %v1739 = vmul.f32 1.0, %v1738
    %v1740 = vrcp.pop %v1628
    %v1741 = vmul.f32 1.0, %v1740
    %v1742 = vrcp.pop %v1629
    %v1743 = vmul.f32 1.0, %v1742
    %v1744 = vrcp.pop %v1630
    %v1745 = vmul.f32 1.0, %v1744
    %v1746 = vrcp.pop %v1631
    %v1747 = vmul.f32 1.0, %v1746
    %v1748 = vrcp.pop %v1632
    %v1749 = vmul.f32 1.0, %v1748
    %v1750 = vrcp.pop %v1633
    %v1751 = vmul.f32 1.0, %v1750
    %v1752 = vrcp.pop %v1634
    %v1753 = vmul.f32 1.0, %v1752
    %v1754 = vrcp.pop %v1635
    %v1755 = vmul.f32 1.0, %v1754
    %v1756 = vrcp.pop %v1636
    %v1757 = vmul.f32 1.0, %v1756
    %v1758 = vrcp.pop %v1637
    %v1759 = vmul.f32 1.0, %v1758
    %v1760 = vrcp.pop %v1638
    %v1761 = vmul.f32 1.0, %v1760
    %v1762 = vrcp.pop %v1639
    %v1763 = vmul.f32 1.0, %v1762
    %v1764 = vrcp.pop %v1640
    %v1765 = vmul.f32 1.0, %v1764
    %v1766 = vrcp.pop %v1641
    %v1767 = vmul.f32 1.0, %v1766
    %v1768 = vrcp.pop %v1642
    %v1769 = vmul.f32 1.0, %v1768
    %v1770 = vrcp.pop %v1643
    %v1771 = vmul.f32 1.0, %v1770
    %vm1772 = vcmask 15368
    %v1773 = vsel %vm1772, %v1645, -inf
    %v1774 = vsel %vm1772, %v1647, -inf
    %v1775 = vmax.f32 %v1773, %v1774
    %v1776 = vsel %vm1772, %v1649, -inf
    %v1777 = vmax.f32 %v1775, %v1776
    %v1778 = vsel %vm1772, %v1651, -inf
    %v1779 = vmax.f32 %v1777, %v1778
    %v1780 = vsel %vm1772, %v1653, -inf
    %v1781 = vmax.f32 %v1779, %v1780
    %v1782 = vsel %vm1772, %v1655, -inf
    %v1783 = vmax.f32 %v1781, %v1782
    %v1784 = vsel %vm1772, %v1657, -inf
    %v1785 = vmax.f32 %v1783, %v1784
    %v1786 = vsel %vm1772, %v1659, -inf
    %v1787 = vmax.f32 %v1785, %v1786
    %v1788 = vrot.slane %v1787, 4
    %v1789 = vmax.f32 %v1787, %v1788
    %v1790 = vrot.slane %v1789, 2
    %v1791 = vmax.f32 %v1789, %v1790
    %v1792 = vrot.slane %v1791, 1
    %v1793 = vmax.f32 %v1791, %v1792
    %v1794 = vsel %vm1772, %v1661, -inf
    %v1795 = vsel %vm1772, %v1663, -inf
    %v1796 = vmax.f32 %v1794, %v1795
    %v1797 = vsel %vm1772, %v1665, -inf
    %v1798 = vmax.f32 %v1796, %v1797
    %v1799 = vsel %vm1772, %v1667, -inf
    %v1800 = vmax.f32 %v1798, %v1799
    %v1801 = vsel %vm1772, %v1669, -inf
    %v1802 = vmax.f32 %v1800, %v1801
    %v1803 = vsel %vm1772, %v1671, -inf
    %v1804 = vmax.f32 %v1802, %v1803
    %v1805 = vsel %vm1772, %v1673, -inf
    %v1806 = vmax.f32 %v1804, %v1805
    %v1807 = vsel %vm1772, %v1675, -inf
    %v1808 = vmax.f32 %v1806, %v1807
    %v1809 = vrot.slane %v1808, 4
    %v1810 = vmax.f32 %v1808, %v1809
    %v1811 = vrot.slane %v1810, 2
    %v1812 = vmax.f32 %v1810, %v1811
    %v1813 = vrot.slane %v1812, 1
    %v1814 = vmax.f32 %v1812, %v1813
    %v1815 = vsel %vm1772, %v1677, -inf
    %v1816 = vsel %vm1772, %v1679, -inf
    %v1817 = vmax.f32 %v1815, %v1816
    %v1818 = vsel %vm1772, %v1681, -inf
    %v1819 = vmax.f32 %v1817, %v1818
    %v1820 = vsel %vm1772, %v1683, -inf
    %v1821 = vmax.f32 %v1819, %v1820
    %v1822 = vsel %vm1772, %v1685, -inf
    %v1823 = vmax.f32 %v1821, %v1822
    %v1824 = vsel %vm1772, %v1687, -inf
    %v1825 = vmax.f32 %v1823, %v1824
    %v1826 = vsel %vm1772, %v1689, -inf
    %v1827 = vmax.f32 %v1825, %v1826
    %v1828 = vsel %vm1772, %v1691, -inf
    %v1829 = vmax.f32 %v1827, %v1828
    %v1830 = vrot.slane %v1829, 4
    %v1831 = vmax.f32 %v1829, %v1830
    %v1832 = vrot.slane %v1831, 2
    %v1833 = vmax.f32 %v1831, %v1832
    %v1834 = vrot.slane %v1833, 1
    %v1835 = vmax.f32 %v1833, %v1834
    %v1836 = vsel %vm1772, %v1693, -inf
    %v1837 = vsel %vm1772, %v1695, -inf
    %v1838 = vmax.f32 %v1836, %v1837
    %v1839 = vsel %vm1772, %v1697, -inf
    %v1840 = vmax.f32 %v1838, %v1839
    %v1841 = vsel %vm1772, %v1699, -inf
    %v1842 = vmax.f32 %v1840, %v1841
    %v1843 = vsel %vm1772, %v1701, -inf
    %v1844 = vmax.f32 %v1842, %v1843
    %v1845 = vsel %vm1772, %v1703, -inf
    %v1846 = vmax.f32 %v1844, %v1845
    %v1847 = vsel %vm1772, %v1705, -inf
    %v1848 = vmax.f32 %v1846, %v1847
    %v1849 = vsel %vm1772, %v1707, -inf
    %v1850 = vmax.f32 %v1848, %v1849
    %v1851 = vrot.slane %v1850, 4
    %v1852 = vmax.f32 %v1850, %v1851
    %v1853 = vrot.slane %v1852, 2
    %v1854 = vmax.f32 %v1852, %v1853
    %v1855 = vrot.slane %v1854, 1
    %v1856 = vmax.f32 %v1854, %v1855
    %v1857 = vsel %vm1772, %v1709, -inf
    %v1858 = vsel %vm1772, %v1711, -inf
    %v1859 = vmax.f32 %v1857, %v1858
    %v1860 = vsel %vm1772, %v1713, -inf
    %v1861 = vmax.f32 %v1859, %v1860
    %v1862 = vsel %vm1772, %v1715, -inf
    %v1863 = vmax.f32 %v1861, %v1862
    %v1864 = vsel %vm1772, %v1717, -inf
    %v1865 = vmax.f32 %v1863, %v1864
    %v1866 = vsel %vm1772, %v1719, -inf
    %v1867 = vmax.f32 %v1865, %v1866
    %v1868 = vsel %vm1772, %v1721, -inf
    %v1869 = vmax.f32 %v1867, %v1868
    %v1870 = vsel %vm1772, %v1723, -inf
    %v1871 = vmax.f32 %v1869, %v1870
    %v1872 = vrot.slane %v1871, 4
    %v1873 = vmax.f32 %v1871, %v1872
    %v1874 = vrot.slane %v1873, 2
    %v1875 = vmax.f32 %v1873, %v1874
    %v1876 = vrot.slane %v1875, 1
    %v1877 = vmax.f32 %v1875, %v1876
    %v1878 = vsel %vm1772, %v1725, -inf
    %v1879 = vsel %vm1772, %v1727, -inf
    %v1880 = vmax.f32 %v1878, %v1879
    %v1881 = vsel %vm1772, %v1729, -inf
    %v1882 = vmax.f32 %v1880, %v1881
    %v1883 = vsel %vm1772, %v1731, -inf
    %v1884 = vmax.f32 %v1882, %v1883
    %v1885 = vsel %vm1772, %v1733, -inf
    %v1886 = vmax.f32 %v1884, %v1885
    %v1887 = vsel %vm1772, %v1735, -inf
    %v1888 = vmax.f32 %v1886, %v1887
    %v1889 = vsel %vm1772, %v1737, -inf
    %v1890 = vmax.f32 %v1888, %v1889
    %v1891 = vsel %vm1772, %v1739, -inf
    %v1892 = vmax.f32 %v1890, %v1891
    %v1893 = vrot.slane %v1892, 4
    %v1894 = vmax.f32 %v1892, %v1893
    %v1895 = vrot.slane %v1894, 2
    %v1896 = vmax.f32 %v1894, %v1895
    %v1897 = vrot.slane %v1896, 1
    %v1898 = vmax.f32 %v1896, %v1897
    %v1899 = vsel %vm1772, %v1741, -inf
    %v1900 = vsel %vm1772, %v1743, -inf
    %v1901 = vmax.f32 %v1899, %v1900
    %v1902 = vsel %vm1772, %v1745, -inf
    %v1903 = vmax.f32 %v1901, %v1902
    %v1904 = vsel %vm1772, %v1747, -inf
    %v1905 = vmax.f32 %v1903, %v1904
    %v1906 = vsel %vm1772, %v1749, -inf
    %v1907 = vmax.f32 %v1905, %v1906
    %v1908 = vsel %vm1772, %v1751, -inf
    %v1909 = vmax.f32 %v1907, %v1908
    %v1910 = vsel %vm1772, %v1753, -inf
    %v1911 = vmax.f32 %v1909, %v1910
    %v1912 = vsel %vm1772, %v1755, -inf
    %v1913 = vmax.f32 %v1911, %v1912
    %v1914 = vrot.slane %v1913, 4
    %v1915 = vmax.f32 %v1913, %v1914
    %v1916 = vrot.slane %v1915, 2
    %v1917 = vmax.f32 %v1915, %v1916
    %v1918 = vrot.slane %v1917, 1
    %v1919 = vmax.f32 %v1917, %v1918
    %v1920 = vsel %vm1772, %v1757, -inf
    %v1921 = vsel %vm1772, %v1759, -inf
    %v1922 = vmax.f32 %v1920, %v1921
    %v1923 = vsel %vm1772, %v1761, -inf
    %v1924 = vmax.f32 %v1922, %v1923
    %v1925 = vsel %vm1772, %v1763, -inf
    %v1926 = vmax.f32 %v1924, %v1925
    %v1927 = vsel %vm1772, %v1765, -inf
    %v1928 = vmax.f32 %v1926, %v1927
    %v1929 = vsel %vm1772, %v1767, -inf
    %v1930 = vmax.f32 %v1928, %v1929
    %v1931 = vsel %vm1772, %v1769, -inf
    %v1932 = vmax.f32 %v1930, %v1931
    %v1933 = vsel %vm1772, %v1771, -inf
    %v1934 = vmax.f32 %v1932, %v1933
    %v1935 = vrot.slane %v1934, 4
    %v1936 = vmax.f32 %v1934, %v1935
    %v1937 = vrot.slane %v1936, 2
    %v1938 = vmax.f32 %v1936, %v1937
    %v1939 = vrot.slane %v1938, 1
    %v1940 = vmax.f32 %v1938, %v1939
    %vm1949 = vcmask 1041409
    %v1950 = vsel %vm1949, %v1195, %v1174
    %vm1951 = vcmask 1042434
    %v1952 = vsel %vm1951, %v1216, %v1950
    %vm1953 = vcmask 1043459
    %v1954 = vsel %vm1953, %v1237, %v1952
    %vm1955 = vcmask 1044484
    %v1956 = vsel %vm1955, %v1258, %v1954
    %vm1957 = vcmask 1045509
    %v1958 = vsel %vm1957, %v1279, %v1956
    %vm1959 = vcmask 1046534
    %v1960 = vsel %vm1959, %v1300, %v1958
    %vm1961 = vcmask 1047559
    %v1962 = vsel %vm1961, %v1321, %v1960
    %v1972 = vsel %vm1949, %v1814, %v1793
    %v1973 = vsel %vm1951, %v1835, %v1972
    %v1974 = vsel %vm1953, %v1856, %v1973
    %v1975 = vsel %vm1955, %v1877, %v1974
    %v1976 = vsel %vm1957, %v1898, %v1975
    %v1977 = vsel %vm1959, %v1919, %v1976
    %v1978 = vsel %vm1961, %v1940, %v1977
    %v1980 = vsel %vm1153, %v1962, %v1978
    %vm1981 = vcmask 15360
    %v1982 = vsel %vm1981, %v1980, -inf
    %1983 = vmax.xlane.f32.xlu0 %v1982
    %v1984 = vpop.xlane.xlu0 %1983
    %v1985 = vmul.f32 %v1984, 0.5
    %vm1986 = vcmp.ge.f32.partialorder %v1980, %v1985
    %v1987 = vsel %vm1986, 1, 0
    %v1988 = vcvt.s32.f32 %v1987
    %v1989 = vpack.c.bf16 %v1028, %v1026
    %v1990 = vpack.c.bf16 %v1032, %v1030
    %v1991 = vpack.c.bf16 %v1036, %v1034
    %v1992 = vpack.c.bf16 %v1040, %v1038
    %v1993 = vpack.c.bf16 %v1044, %v1042
    %v1994 = vpack.c.bf16 %v1048, %v1046
    %v1995 = vpack.c.bf16 %v1052, %v1050
    %v1996 = vpack.c.bf16 %v1056, %v1054
    %v1997 = vpack.c.bf16 %v1060, %v1058
    %v1998 = vpack.c.bf16 %v1064, %v1062
    %v1999 = vpack.c.bf16 %v1068, %v1066
    %v2000 = vpack.c.bf16 %v1072, %v1070
    %v2001 = vpack.c.bf16 %v1076, %v1074
    %v2002 = vpack.c.bf16 %v1080, %v1078
    %v2003 = vpack.c.bf16 %v1084, %v1082
    %v2004 = vpack.c.bf16 %v1088, %v1086
    %v2005 = vpack.c.bf16 %v1092, %v1090
    %v2006 = vpack.c.bf16 %v1096, %v1094
    %v2007 = vpack.c.bf16 %v1100, %v1098
    %v2008 = vpack.c.bf16 %v1104, %v1102
    %v2009 = vpack.c.bf16 %v1108, %v1106
    %v2010 = vpack.c.bf16 %v1112, %v1110
    %v2011 = vpack.c.bf16 %v1116, %v1114
    %v2012 = vpack.c.bf16 %v1120, %v1118
    %v2013 = vpack.c.bf16 %v1124, %v1122
    %v2014 = vpack.c.bf16 %v1128, %v1126
    %v2015 = vpack.c.bf16 %v1132, %v1130
    %v2016 = vpack.c.bf16 %v1136, %v1134
    %v2017 = vpack.c.bf16 %v1140, %v1138
    %v2018 = vpack.c.bf16 %v1144, %v1142
    %v2019 = vpack.c.bf16 %v1148, %v1146
    %v2020 = vpack.c.bf16 %v1152, %v1150
    %2022 = vset.pattern.permute.xlu0 0
    %2023 = vperm.xlu0 %2022, %v1989
    %v2024 = vpop.permute.xlu0 %2023
    %2026 = vset.pattern.permute.xlu0 0
    %2027 = vperm.xlu0 %2026, %v1990
    %v2028 = vpop.permute.xlu0 %2027
    %2030 = vset.pattern.permute.xlu0 0
    %2031 = vperm.xlu0 %2030, %v1991
    %v2032 = vpop.permute.xlu0 %2031
    %2034 = vset.pattern.permute.xlu0 0
    %2035 = vperm.xlu0 %2034, %v1992
    %v2036 = vpop.permute.xlu0 %2035
    %2038 = vset.pattern.permute.xlu0 0
    %2039 = vperm.xlu0 %2038, %v1993
    %v2040 = vpop.permute.xlu0 %2039
    %2042 = vset.pattern.permute.xlu0 0
    %2043 = vperm.xlu0 %2042, %v1994
    %v2044 = vpop.permute.xlu0 %2043
    %2046 = vset.pattern.permute.xlu0 0
    %2047 = vperm.xlu0 %2046, %v1995
    %v2048 = vpop.permute.xlu0 %2047
    %2050 = vset.pattern.permute.xlu0 0
    %2051 = vperm.xlu0 %2050, %v1996
    %v2052 = vpop.permute.xlu0 %2051
    %2054 = vset.pattern.permute.xlu0 0
    %2055 = vperm.xlu0 %2054, %v1997
    %v2056 = vpop.permute.xlu0 %2055
    %2058 = vset.pattern.permute.xlu0 0
    %2059 = vperm.xlu0 %2058, %v1998
    %v2060 = vpop.permute.xlu0 %2059
    %2062 = vset.pattern.permute.xlu0 0
    %2063 = vperm.xlu0 %2062, %v1999
    %v2064 = vpop.permute.xlu0 %2063
    %2066 = vset.pattern.permute.xlu0 0
    %2067 = vperm.xlu0 %2066, %v2000
    %v2068 = vpop.permute.xlu0 %2067
    %2070 = vset.pattern.permute.xlu0 0
    %2071 = vperm.xlu0 %2070, %v2001
    %v2072 = vpop.permute.xlu0 %2071
    %2074 = vset.pattern.permute.xlu0 0
    %2075 = vperm.xlu0 %2074, %v2002
    %v2076 = vpop.permute.xlu0 %2075
    %2078 = vset.pattern.permute.xlu0 0
    %2079 = vperm.xlu0 %2078, %v2003
    %v2080 = vpop.permute.xlu0 %2079
    %2082 = vset.pattern.permute.xlu0 0
    %2083 = vperm.xlu0 %2082, %v2004
    %v2084 = vpop.permute.xlu0 %2083
    %2086 = vset.pattern.permute.xlu0 0
    %2087 = vperm.xlu0 %2086, %v2005
    %v2088 = vpop.permute.xlu0 %2087
    %2090 = vset.pattern.permute.xlu0 0
    %2091 = vperm.xlu0 %2090, %v2006
    %v2092 = vpop.permute.xlu0 %2091
    %2094 = vset.pattern.permute.xlu0 0
    %2095 = vperm.xlu0 %2094, %v2007
    %v2096 = vpop.permute.xlu0 %2095
    %2098 = vset.pattern.permute.xlu0 0
    %2099 = vperm.xlu0 %2098, %v2008
    %v2100 = vpop.permute.xlu0 %2099
    %2102 = vset.pattern.permute.xlu0 0
    %2103 = vperm.xlu0 %2102, %v2009
    %v2104 = vpop.permute.xlu0 %2103
    %2106 = vset.pattern.permute.xlu0 0
    %2107 = vperm.xlu0 %2106, %v2010
    %v2108 = vpop.permute.xlu0 %2107
    %2110 = vset.pattern.permute.xlu0 0
    %2111 = vperm.xlu0 %2110, %v2011
    %v2112 = vpop.permute.xlu0 %2111
    %2114 = vset.pattern.permute.xlu0 0
    %2115 = vperm.xlu0 %2114, %v2012
    %v2116 = vpop.permute.xlu0 %2115
    %2118 = vset.pattern.permute.xlu0 0
    %2119 = vperm.xlu0 %2118, %v2013
    %v2120 = vpop.permute.xlu0 %2119
    %2122 = vset.pattern.permute.xlu0 0
    %2123 = vperm.xlu0 %2122, %v2014
    %v2124 = vpop.permute.xlu0 %2123
    %2126 = vset.pattern.permute.xlu0 0
    %2127 = vperm.xlu0 %2126, %v2015
    %v2128 = vpop.permute.xlu0 %2127
    %2130 = vset.pattern.permute.xlu0 0
    %2131 = vperm.xlu0 %2130, %v2016
    %v2132 = vpop.permute.xlu0 %2131
    %2134 = vset.pattern.permute.xlu0 0
    %2135 = vperm.xlu0 %2134, %v2017
    %v2136 = vpop.permute.xlu0 %2135
    %2138 = vset.pattern.permute.xlu0 0
    %2139 = vperm.xlu0 %2138, %v2018
    %v2140 = vpop.permute.xlu0 %2139
    %2142 = vset.pattern.permute.xlu0 0
    %2143 = vperm.xlu0 %2142, %v2019
    %v2144 = vpop.permute.xlu0 %2143
    %2146 = vset.pattern.permute.xlu0 0
    %2147 = vperm.xlu0 %2146, %v2020
    %v2148 = vpop.permute.xlu0 %2147
    %v2182 = vunpack.c.l.s4 839922192
    %v2183 = vunpack.c.0.s8 %v2182
    %v2184 = vlaneseq
    %v2185 = vshrl.u32 %v2184, 7
    %v2186 = vsub.s32 %v2183, %v2185
    %v2187 = vrot.slane %v2024, %v2186
    %v2189 = vunpack.c.l.s4 1985246804
    %v2190 = vunpack.c.0.s8 %v2189
    %v2191 = vlaneseq
    %v2192 = vshrl.u32 %v2191, 7
    %v2193 = vsub.s32 %v2190, %v2192
    %v2194 = vrot.slane %v2024, %v2193
    %v2196 = vunpack.c.l.s4 839922192
    %v2197 = vunpack.c.0.s8 %v2196
    %v2198 = vlaneseq
    %v2199 = vshrl.u32 %v2198, 7
    %v2200 = vsub.s32 %v2197, %v2199
    %v2201 = vrot.slane %v2028, %v2200
    %v2203 = vunpack.c.l.s4 1985246804
    %v2204 = vunpack.c.0.s8 %v2203
    %v2205 = vlaneseq
    %v2206 = vshrl.u32 %v2205, 7
    %v2207 = vsub.s32 %v2204, %v2206
    %v2208 = vrot.slane %v2028, %v2207
    %v2210 = vunpack.c.l.s4 839922192
    %v2211 = vunpack.c.0.s8 %v2210
    %v2212 = vlaneseq
    %v2213 = vshrl.u32 %v2212, 7
    %v2214 = vsub.s32 %v2211, %v2213
    %v2215 = vrot.slane %v2032, %v2214
    %v2217 = vunpack.c.l.s4 1985246804
    %v2218 = vunpack.c.0.s8 %v2217
    %v2219 = vlaneseq
    %v2220 = vshrl.u32 %v2219, 7
    %v2221 = vsub.s32 %v2218, %v2220
    %v2222 = vrot.slane %v2032, %v2221
    %v2224 = vunpack.c.l.s4 839922192
    %v2225 = vunpack.c.0.s8 %v2224
    %v2226 = vlaneseq
    %v2227 = vshrl.u32 %v2226, 7
    %v2228 = vsub.s32 %v2225, %v2227
    %v2229 = vrot.slane %v2036, %v2228
    %v2231 = vunpack.c.l.s4 1985246804
    %v2232 = vunpack.c.0.s8 %v2231
    %v2233 = vlaneseq
    %v2234 = vshrl.u32 %v2233, 7
    %v2235 = vsub.s32 %v2232, %v2234
    %v2236 = vrot.slane %v2036, %v2235
    %v2238 = vunpack.c.l.s4 839922192
    %v2239 = vunpack.c.0.s8 %v2238
    %v2240 = vlaneseq
    %v2241 = vshrl.u32 %v2240, 7
    %v2242 = vsub.s32 %v2239, %v2241
    %v2243 = vrot.slane %v2040, %v2242
    %v2245 = vunpack.c.l.s4 1985246804
    %v2246 = vunpack.c.0.s8 %v2245
    %v2247 = vlaneseq
    %v2248 = vshrl.u32 %v2247, 7
    %v2249 = vsub.s32 %v2246, %v2248
    %v2250 = vrot.slane %v2040, %v2249
    %v2252 = vunpack.c.l.s4 839922192
    %v2253 = vunpack.c.0.s8 %v2252
    %v2254 = vlaneseq
    %v2255 = vshrl.u32 %v2254, 7
    %v2256 = vsub.s32 %v2253, %v2255
    %v2257 = vrot.slane %v2044, %v2256
    %v2259 = vunpack.c.l.s4 1985246804
    %v2260 = vunpack.c.0.s8 %v2259
    %v2261 = vlaneseq
    %v2262 = vshrl.u32 %v2261, 7
    %v2263 = vsub.s32 %v2260, %v2262
    %v2264 = vrot.slane %v2044, %v2263
    %v2266 = vunpack.c.l.s4 839922192
    %v2267 = vunpack.c.0.s8 %v2266
    %v2268 = vlaneseq
    %v2269 = vshrl.u32 %v2268, 7
    %v2270 = vsub.s32 %v2267, %v2269
    %v2271 = vrot.slane %v2048, %v2270
    %v2273 = vunpack.c.l.s4 1985246804
    %v2274 = vunpack.c.0.s8 %v2273
    %v2275 = vlaneseq
    %v2276 = vshrl.u32 %v2275, 7
    %v2277 = vsub.s32 %v2274, %v2276
    %v2278 = vrot.slane %v2048, %v2277
    %v2280 = vunpack.c.l.s4 839922192
    %v2281 = vunpack.c.0.s8 %v2280
    %v2282 = vlaneseq
    %v2283 = vshrl.u32 %v2282, 7
    %v2284 = vsub.s32 %v2281, %v2283
    %v2285 = vrot.slane %v2052, %v2284
    %v2287 = vunpack.c.l.s4 1985246804
    %v2288 = vunpack.c.0.s8 %v2287
    %v2289 = vlaneseq
    %v2290 = vshrl.u32 %v2289, 7
    %v2291 = vsub.s32 %v2288, %v2290
    %v2292 = vrot.slane %v2052, %v2291
    %v2294 = vunpack.c.l.s4 839922192
    %v2295 = vunpack.c.0.s8 %v2294
    %v2296 = vlaneseq
    %v2297 = vshrl.u32 %v2296, 7
    %v2298 = vsub.s32 %v2295, %v2297
    %v2299 = vrot.slane %v2056, %v2298
    %v2301 = vunpack.c.l.s4 1985246804
    %v2302 = vunpack.c.0.s8 %v2301
    %v2303 = vlaneseq
    %v2304 = vshrl.u32 %v2303, 7
    %v2305 = vsub.s32 %v2302, %v2304
    %v2306 = vrot.slane %v2056, %v2305
    %v2308 = vunpack.c.l.s4 839922192
    %v2309 = vunpack.c.0.s8 %v2308
    %v2310 = vlaneseq
    %v2311 = vshrl.u32 %v2310, 7
    %v2312 = vsub.s32 %v2309, %v2311
    %v2313 = vrot.slane %v2060, %v2312
    %v2315 = vunpack.c.l.s4 1985246804
    %v2316 = vunpack.c.0.s8 %v2315
    %v2317 = vlaneseq
    %v2318 = vshrl.u32 %v2317, 7
    %v2319 = vsub.s32 %v2316, %v2318
    %v2320 = vrot.slane %v2060, %v2319
    %v2322 = vunpack.c.l.s4 839922192
    %v2323 = vunpack.c.0.s8 %v2322
    %v2324 = vlaneseq
    %v2325 = vshrl.u32 %v2324, 7
    %v2326 = vsub.s32 %v2323, %v2325
    %v2327 = vrot.slane %v2064, %v2326
    %v2329 = vunpack.c.l.s4 1985246804
    %v2330 = vunpack.c.0.s8 %v2329
    %v2331 = vlaneseq
    %v2332 = vshrl.u32 %v2331, 7
    %v2333 = vsub.s32 %v2330, %v2332
    %v2334 = vrot.slane %v2064, %v2333
    %v2336 = vunpack.c.l.s4 839922192
    %v2337 = vunpack.c.0.s8 %v2336
    %v2338 = vlaneseq
    %v2339 = vshrl.u32 %v2338, 7
    %v2340 = vsub.s32 %v2337, %v2339
    %v2341 = vrot.slane %v2068, %v2340
    %v2343 = vunpack.c.l.s4 1985246804
    %v2344 = vunpack.c.0.s8 %v2343
    %v2345 = vlaneseq
    %v2346 = vshrl.u32 %v2345, 7
    %v2347 = vsub.s32 %v2344, %v2346
    %v2348 = vrot.slane %v2068, %v2347
    %v2350 = vunpack.c.l.s4 839922192
    %v2351 = vunpack.c.0.s8 %v2350
    %v2352 = vlaneseq
    %v2353 = vshrl.u32 %v2352, 7
    %v2354 = vsub.s32 %v2351, %v2353
    %v2355 = vrot.slane %v2072, %v2354
    %v2357 = vunpack.c.l.s4 1985246804
    %v2358 = vunpack.c.0.s8 %v2357
    %v2359 = vlaneseq
    %v2360 = vshrl.u32 %v2359, 7
    %v2361 = vsub.s32 %v2358, %v2360
    %v2362 = vrot.slane %v2072, %v2361
    %v2364 = vunpack.c.l.s4 839922192
    %v2365 = vunpack.c.0.s8 %v2364
    %v2366 = vlaneseq
    %v2367 = vshrl.u32 %v2366, 7
    %v2368 = vsub.s32 %v2365, %v2367
    %v2369 = vrot.slane %v2076, %v2368
    %v2371 = vunpack.c.l.s4 1985246804
    %v2372 = vunpack.c.0.s8 %v2371
    %v2373 = vlaneseq
    %v2374 = vshrl.u32 %v2373, 7
    %v2375 = vsub.s32 %v2372, %v2374
    %v2376 = vrot.slane %v2076, %v2375
    %v2378 = vunpack.c.l.s4 839922192
    %v2379 = vunpack.c.0.s8 %v2378
    %v2380 = vlaneseq
    %v2381 = vshrl.u32 %v2380, 7
    %v2382 = vsub.s32 %v2379, %v2381
    %v2383 = vrot.slane %v2080, %v2382
    %v2385 = vunpack.c.l.s4 1985246804
    %v2386 = vunpack.c.0.s8 %v2385
    %v2387 = vlaneseq
    %v2388 = vshrl.u32 %v2387, 7
    %v2389 = vsub.s32 %v2386, %v2388
    %v2390 = vrot.slane %v2080, %v2389
    %v2392 = vunpack.c.l.s4 839922192
    %v2393 = vunpack.c.0.s8 %v2392
    %v2394 = vlaneseq
    %v2395 = vshrl.u32 %v2394, 7
    %v2396 = vsub.s32 %v2393, %v2395
    %v2397 = vrot.slane %v2084, %v2396
    %v2399 = vunpack.c.l.s4 1985246804
    %v2400 = vunpack.c.0.s8 %v2399
    %v2401 = vlaneseq
    %v2402 = vshrl.u32 %v2401, 7
    %v2403 = vsub.s32 %v2400, %v2402
    %v2404 = vrot.slane %v2084, %v2403
    %v2406 = vunpack.c.l.s4 839922192
    %v2407 = vunpack.c.0.s8 %v2406
    %v2408 = vlaneseq
    %v2409 = vshrl.u32 %v2408, 7
    %v2410 = vsub.s32 %v2407, %v2409
    %v2411 = vrot.slane %v2088, %v2410
    %v2413 = vunpack.c.l.s4 1985246804
    %v2414 = vunpack.c.0.s8 %v2413
    %v2415 = vlaneseq
    %v2416 = vshrl.u32 %v2415, 7
    %v2417 = vsub.s32 %v2414, %v2416
    %v2418 = vrot.slane %v2088, %v2417
    %v2420 = vunpack.c.l.s4 839922192
    %v2421 = vunpack.c.0.s8 %v2420
    %v2422 = vlaneseq
    %v2423 = vshrl.u32 %v2422, 7
    %v2424 = vsub.s32 %v2421, %v2423
    %v2425 = vrot.slane %v2092, %v2424
    %v2427 = vunpack.c.l.s4 1985246804
    %v2428 = vunpack.c.0.s8 %v2427
    %v2429 = vlaneseq
    %v2430 = vshrl.u32 %v2429, 7
    %v2431 = vsub.s32 %v2428, %v2430
    %v2432 = vrot.slane %v2092, %v2431
    %v2434 = vunpack.c.l.s4 839922192
    %v2435 = vunpack.c.0.s8 %v2434
    %v2436 = vlaneseq
    %v2437 = vshrl.u32 %v2436, 7
    %v2438 = vsub.s32 %v2435, %v2437
    %v2439 = vrot.slane %v2096, %v2438
    %v2441 = vunpack.c.l.s4 1985246804
    %v2442 = vunpack.c.0.s8 %v2441
    %v2443 = vlaneseq
    %v2444 = vshrl.u32 %v2443, 7
    %v2445 = vsub.s32 %v2442, %v2444
    %v2446 = vrot.slane %v2096, %v2445
    %v2448 = vunpack.c.l.s4 839922192
    %v2449 = vunpack.c.0.s8 %v2448
    %v2450 = vlaneseq
    %v2451 = vshrl.u32 %v2450, 7
    %v2452 = vsub.s32 %v2449, %v2451
    %v2453 = vrot.slane %v2100, %v2452
    %v2455 = vunpack.c.l.s4 1985246804
    %v2456 = vunpack.c.0.s8 %v2455
    %v2457 = vlaneseq
    %v2458 = vshrl.u32 %v2457, 7
    %v2459 = vsub.s32 %v2456, %v2458
    %v2460 = vrot.slane %v2100, %v2459
    %v2462 = vunpack.c.l.s4 839922192
    %v2463 = vunpack.c.0.s8 %v2462
    %v2464 = vlaneseq
    %v2465 = vshrl.u32 %v2464, 7
    %v2466 = vsub.s32 %v2463, %v2465
    %v2467 = vrot.slane %v2104, %v2466
    %v2469 = vunpack.c.l.s4 1985246804
    %v2470 = vunpack.c.0.s8 %v2469
    %v2471 = vlaneseq
    %v2472 = vshrl.u32 %v2471, 7
    %v2473 = vsub.s32 %v2470, %v2472
    %v2474 = vrot.slane %v2104, %v2473
    %v2476 = vunpack.c.l.s4 839922192
    %v2477 = vunpack.c.0.s8 %v2476
    %v2478 = vlaneseq
    %v2479 = vshrl.u32 %v2478, 7
    %v2480 = vsub.s32 %v2477, %v2479
    %v2481 = vrot.slane %v2108, %v2480
    %v2483 = vunpack.c.l.s4 1985246804
    %v2484 = vunpack.c.0.s8 %v2483
    %v2485 = vlaneseq
    %v2486 = vshrl.u32 %v2485, 7
    %v2487 = vsub.s32 %v2484, %v2486
    %v2488 = vrot.slane %v2108, %v2487
    %v2490 = vunpack.c.l.s4 839922192
    %v2491 = vunpack.c.0.s8 %v2490
    %v2492 = vlaneseq
    %v2493 = vshrl.u32 %v2492, 7
    %v2494 = vsub.s32 %v2491, %v2493
    %v2495 = vrot.slane %v2112, %v2494
    %v2497 = vunpack.c.l.s4 1985246804
    %v2498 = vunpack.c.0.s8 %v2497
    %v2499 = vlaneseq
    %v2500 = vshrl.u32 %v2499, 7
    %v2501 = vsub.s32 %v2498, %v2500
    %v2502 = vrot.slane %v2112, %v2501
    %v2504 = vunpack.c.l.s4 839922192
    %v2505 = vunpack.c.0.s8 %v2504
    %v2506 = vlaneseq
    %v2507 = vshrl.u32 %v2506, 7
    %v2508 = vsub.s32 %v2505, %v2507
    %v2509 = vrot.slane %v2116, %v2508
    %v2511 = vunpack.c.l.s4 1985246804
    %v2512 = vunpack.c.0.s8 %v2511
    %v2513 = vlaneseq
    %v2514 = vshrl.u32 %v2513, 7
    %v2515 = vsub.s32 %v2512, %v2514
    %v2516 = vrot.slane %v2116, %v2515
    %v2518 = vunpack.c.l.s4 839922192
    %v2519 = vunpack.c.0.s8 %v2518
    %v2520 = vlaneseq
    %v2521 = vshrl.u32 %v2520, 7
    %v2522 = vsub.s32 %v2519, %v2521
    %v2523 = vrot.slane %v2120, %v2522
    %v2525 = vunpack.c.l.s4 1985246804
    %v2526 = vunpack.c.0.s8 %v2525
    %v2527 = vlaneseq
    %v2528 = vshrl.u32 %v2527, 7
    %v2529 = vsub.s32 %v2526, %v2528
    %v2530 = vrot.slane %v2120, %v2529
    %v2532 = vunpack.c.l.s4 839922192
    %v2533 = vunpack.c.0.s8 %v2532
    %v2534 = vlaneseq
    %v2535 = vshrl.u32 %v2534, 7
    %v2536 = vsub.s32 %v2533, %v2535
    %v2537 = vrot.slane %v2124, %v2536
    %v2539 = vunpack.c.l.s4 1985246804
    %v2540 = vunpack.c.0.s8 %v2539
    %v2541 = vlaneseq
    %v2542 = vshrl.u32 %v2541, 7
    %v2543 = vsub.s32 %v2540, %v2542
    %v2544 = vrot.slane %v2124, %v2543
    %v2546 = vunpack.c.l.s4 839922192
    %v2547 = vunpack.c.0.s8 %v2546
    %v2548 = vlaneseq
    %v2549 = vshrl.u32 %v2548, 7
    %v2550 = vsub.s32 %v2547, %v2549
    %v2551 = vrot.slane %v2128, %v2550
    %v2553 = vunpack.c.l.s4 1985246804
    %v2554 = vunpack.c.0.s8 %v2553
    %v2555 = vlaneseq
    %v2556 = vshrl.u32 %v2555, 7
    %v2557 = vsub.s32 %v2554, %v2556
    %v2558 = vrot.slane %v2128, %v2557
    %v2560 = vunpack.c.l.s4 839922192
    %v2561 = vunpack.c.0.s8 %v2560
    %v2562 = vlaneseq
    %v2563 = vshrl.u32 %v2562, 7
    %v2564 = vsub.s32 %v2561, %v2563
    %v2565 = vrot.slane %v2132, %v2564
    %v2567 = vunpack.c.l.s4 1985246804
    %v2568 = vunpack.c.0.s8 %v2567
    %v2569 = vlaneseq
    %v2570 = vshrl.u32 %v2569, 7
    %v2571 = vsub.s32 %v2568, %v2570
    %v2572 = vrot.slane %v2132, %v2571
    %v2574 = vunpack.c.l.s4 839922192
    %v2575 = vunpack.c.0.s8 %v2574
    %v2576 = vlaneseq
    %v2577 = vshrl.u32 %v2576, 7
    %v2578 = vsub.s32 %v2575, %v2577
    %v2579 = vrot.slane %v2136, %v2578
    %v2581 = vunpack.c.l.s4 1985246804
    %v2582 = vunpack.c.0.s8 %v2581
    %v2583 = vlaneseq
    %v2584 = vshrl.u32 %v2583, 7
    %v2585 = vsub.s32 %v2582, %v2584
    %v2586 = vrot.slane %v2136, %v2585
    %v2588 = vunpack.c.l.s4 839922192
    %v2589 = vunpack.c.0.s8 %v2588
    %v2590 = vlaneseq
    %v2591 = vshrl.u32 %v2590, 7
    %v2592 = vsub.s32 %v2589, %v2591
    %v2593 = vrot.slane %v2140, %v2592
    %v2595 = vunpack.c.l.s4 1985246804
    %v2596 = vunpack.c.0.s8 %v2595
    %v2597 = vlaneseq
    %v2598 = vshrl.u32 %v2597, 7
    %v2599 = vsub.s32 %v2596, %v2598
    %v2600 = vrot.slane %v2140, %v2599
    %v2602 = vunpack.c.l.s4 839922192
    %v2603 = vunpack.c.0.s8 %v2602
    %v2604 = vlaneseq
    %v2605 = vshrl.u32 %v2604, 7
    %v2606 = vsub.s32 %v2603, %v2605
    %v2607 = vrot.slane %v2144, %v2606
    %v2609 = vunpack.c.l.s4 1985246804
    %v2610 = vunpack.c.0.s8 %v2609
    %v2611 = vlaneseq
    %v2612 = vshrl.u32 %v2611, 7
    %v2613 = vsub.s32 %v2610, %v2612
    %v2614 = vrot.slane %v2144, %v2613
    %v2616 = vunpack.c.l.s4 839922192
    %v2617 = vunpack.c.0.s8 %v2616
    %v2618 = vlaneseq
    %v2619 = vshrl.u32 %v2618, 7
    %v2620 = vsub.s32 %v2617, %v2619
    %v2621 = vrot.slane %v2148, %v2620
    %v2623 = vunpack.c.l.s4 1985246804
    %v2624 = vunpack.c.0.s8 %v2623
    %v2625 = vlaneseq
    %v2626 = vshrl.u32 %v2625, 7
    %v2627 = vsub.s32 %v2624, %v2626
    %v2628 = vrot.slane %v2148, %v2627
    %v2693 = vmul.bf16 %v61, %v2187
    %v2694 = vmul.bf16 %v62, %v2194
    %v2695 = vmul.bf16 %v63, %v2201
    %v2696 = vmul.bf16 %v64, %v2208
    %v2697 = vmul.bf16 %v65, %v2215
    %v2698 = vmul.bf16 %v66, %v2222
    %v2699 = vmul.bf16 %v67, %v2229
    %v2700 = vmul.bf16 %v68, %v2236
    %v2701 = vmul.bf16 %v69, %v2243
    %v2702 = vmul.bf16 %v70, %v2250
    %v2703 = vmul.bf16 %v71, %v2257
    %v2704 = vmul.bf16 %v72, %v2264
    %v2705 = vmul.bf16 %v73, %v2271
    %v2706 = vmul.bf16 %v74, %v2278
    %v2707 = vmul.bf16 %v75, %v2285
    %v2708 = vmul.bf16 %v76, %v2292
    %v2709 = vmul.bf16 %v77, %v2299
    %v2710 = vmul.bf16 %v78, %v2306
    %v2711 = vmul.bf16 %v79, %v2313
    %v2712 = vmul.bf16 %v80, %v2320
    %v2713 = vmul.bf16 %v81, %v2327
    %v2714 = vmul.bf16 %v82, %v2334
    %v2715 = vmul.bf16 %v83, %v2341
    %v2716 = vmul.bf16 %v84, %v2348
    %v2717 = vmul.bf16 %v85, %v2355
    %v2718 = vmul.bf16 %v86, %v2362
    %v2719 = vmul.bf16 %v87, %v2369
    %v2720 = vmul.bf16 %v88, %v2376
    %v2721 = vmul.bf16 %v89, %v2383
    %v2722 = vmul.bf16 %v90, %v2390
    %v2723 = vmul.bf16 %v91, %v2397
    %v2724 = vmul.bf16 %v92, %v2404
    %v2725 = vmul.bf16 %v93, %v2411
    %v2726 = vmul.bf16 %v94, %v2418
    %v2727 = vmul.bf16 %v95, %v2425
    %v2728 = vmul.bf16 %v96, %v2432
    %v2729 = vmul.bf16 %v97, %v2439
    %v2730 = vmul.bf16 %v98, %v2446
    %v2731 = vmul.bf16 %v99, %v2453
    %v2732 = vmul.bf16 %v100, %v2460
    %v2733 = vmul.bf16 %v101, %v2467
    %v2734 = vmul.bf16 %v102, %v2474
    %v2735 = vmul.bf16 %v103, %v2481
    %v2736 = vmul.bf16 %v104, %v2488
    %v2737 = vmul.bf16 %v105, %v2495
    %v2738 = vmul.bf16 %v106, %v2502
    %v2739 = vmul.bf16 %v107, %v2509
    %v2740 = vmul.bf16 %v108, %v2516
    %v2741 = vmul.bf16 %v109, %v2523
    %v2742 = vmul.bf16 %v110, %v2530
    %v2743 = vmul.bf16 %v111, %v2537
    %v2744 = vmul.bf16 %v112, %v2544
    %v2745 = vmul.bf16 %v113, %v2551
    %v2746 = vmul.bf16 %v114, %v2558
    %v2747 = vmul.bf16 %v115, %v2565
    %v2748 = vmul.bf16 %v116, %v2572
    %v2749 = vmul.bf16 %v117, %v2579
    %v2750 = vmul.bf16 %v118, %v2586
    %v2751 = vmul.bf16 %v119, %v2593
    %v2752 = vmul.bf16 %v120, %v2600
    %v2753 = vmul.bf16 %v121, %v2607
    %v2754 = vmul.bf16 %v122, %v2614
    %v2755 = vmul.bf16 %v123, %v2621
    %v2756 = vmul.bf16 %v124, %v2628
    %v2821 = vunpack.c.l.b16 %v2693
    %v2822 = vunpack.c.l.b16 %v2694
    %v2823 = vunpack.c.l.b16 %v2695
    %v2824 = vunpack.c.l.b16 %v2696
    %v2825 = vunpack.c.l.b16 %v2697
    %v2826 = vunpack.c.l.b16 %v2698
    %v2827 = vunpack.c.l.b16 %v2699
    %v2828 = vunpack.c.l.b16 %v2700
    %v2829 = vunpack.c.l.b16 %v2701
    %v2830 = vunpack.c.l.b16 %v2702
    %v2831 = vunpack.c.l.b16 %v2703
    %v2832 = vunpack.c.l.b16 %v2704
    %v2833 = vunpack.c.l.b16 %v2705
    %v2834 = vunpack.c.l.b16 %v2706
    %v2835 = vunpack.c.l.b16 %v2707
    %v2836 = vunpack.c.l.b16 %v2708
    %v2837 = vunpack.c.l.b16 %v2709
    %v2838 = vunpack.c.l.b16 %v2710
    %v2839 = vunpack.c.l.b16 %v2711
    %v2840 = vunpack.c.l.b16 %v2712
    %v2841 = vunpack.c.l.b16 %v2713
    %v2842 = vunpack.c.l.b16 %v2714
    %v2843 = vunpack.c.l.b16 %v2715
    %v2844 = vunpack.c.l.b16 %v2716
    %v2845 = vunpack.c.l.b16 %v2717
    %v2846 = vunpack.c.l.b16 %v2718
    %v2847 = vunpack.c.l.b16 %v2719
    %v2848 = vunpack.c.l.b16 %v2720
    %v2849 = vunpack.c.l.b16 %v2721
    %v2850 = vunpack.c.l.b16 %v2722
    %v2851 = vunpack.c.l.b16 %v2723
    %v2852 = vunpack.c.l.b16 %v2724
    %v2853 = vunpack.c.l.b16 %v2725
    %v2854 = vunpack.c.l.b16 %v2726
    %v2855 = vunpack.c.l.b16 %v2727
    %v2856 = vunpack.c.l.b16 %v2728
    %v2857 = vunpack.c.l.b16 %v2729
    %v2858 = vunpack.c.l.b16 %v2730
    %v2859 = vunpack.c.l.b16 %v2731
    %v2860 = vunpack.c.l.b16 %v2732
    %v2861 = vunpack.c.l.b16 %v2733
    %v2862 = vunpack.c.l.b16 %v2734
    %v2863 = vunpack.c.l.b16 %v2735
    %v2864 = vunpack.c.l.b16 %v2736
    %v2865 = vunpack.c.l.b16 %v2737
    %v2866 = vunpack.c.l.b16 %v2738
    %v2867 = vunpack.c.l.b16 %v2739
    %v2868 = vunpack.c.l.b16 %v2740
    %v2869 = vunpack.c.l.b16 %v2741
    %v2870 = vunpack.c.l.b16 %v2742
    %v2871 = vunpack.c.l.b16 %v2743
    %v2872 = vunpack.c.l.b16 %v2744
    %v2873 = vunpack.c.l.b16 %v2745
    %v2874 = vunpack.c.l.b16 %v2746
    %v2875 = vunpack.c.l.b16 %v2747
    %v2876 = vunpack.c.l.b16 %v2748
    %v2877 = vunpack.c.l.b16 %v2749
    %v2878 = vunpack.c.l.b16 %v2750
    %v2879 = vunpack.c.l.b16 %v2751
    %v2880 = vunpack.c.l.b16 %v2752
    %v2881 = vunpack.c.l.b16 %v2753
    %v2882 = vunpack.c.l.b16 %v2754
    %v2883 = vunpack.c.l.b16 %v2755
    %v2884 = vunpack.c.l.b16 %v2756
    %v2885 = vpack.c.b16 %v2822, %v2821
    %v2886 = vpack.c.b16 %v2824, %v2823
    %v2887 = vpack.c.b16 %v2826, %v2825
    %v2888 = vpack.c.b16 %v2828, %v2827
    %v2889 = vpack.c.b16 %v2830, %v2829
    %v2890 = vpack.c.b16 %v2832, %v2831
    %v2891 = vpack.c.b16 %v2834, %v2833
    %v2892 = vpack.c.b16 %v2836, %v2835
    %v2893 = vpack.c.b16 %v2838, %v2837
    %v2894 = vpack.c.b16 %v2840, %v2839
    %v2895 = vpack.c.b16 %v2842, %v2841
    %v2896 = vpack.c.b16 %v2844, %v2843
    %v2897 = vpack.c.b16 %v2846, %v2845
    %v2898 = vpack.c.b16 %v2848, %v2847
    %v2899 = vpack.c.b16 %v2850, %v2849
    %v2900 = vpack.c.b16 %v2852, %v2851
    %v2901 = vpack.c.b16 %v2854, %v2853
    %v2902 = vpack.c.b16 %v2856, %v2855
    %v2903 = vpack.c.b16 %v2858, %v2857
    %v2904 = vpack.c.b16 %v2860, %v2859
    %v2905 = vpack.c.b16 %v2862, %v2861
    %v2906 = vpack.c.b16 %v2864, %v2863
    %v2907 = vpack.c.b16 %v2866, %v2865
    %v2908 = vpack.c.b16 %v2868, %v2867
    %v2909 = vpack.c.b16 %v2870, %v2869
    %v2910 = vpack.c.b16 %v2872, %v2871
    %v2911 = vpack.c.b16 %v2874, %v2873
    %v2912 = vpack.c.b16 %v2876, %v2875
    %v2913 = vpack.c.b16 %v2878, %v2877
    %v2914 = vpack.c.b16 %v2880, %v2879
    %v2915 = vpack.c.b16 %v2882, %v2881
    %v2916 = vpack.c.b16 %v2884, %v2883
    %v2919 = vsel %vm317, %v2885, 4286644096
    %v2922 = vsel %vm317, %v2886, 4286644096
    %v2924 = vmax.bf16 %v2919, %v2922
    %v2926 = vsel %vm317, %v2887, 4286644096
    %v2928 = vmax.bf16 %v2924, %v2926
    %v2930 = vsel %vm317, %v2888, 4286644096
    %v2932 = vmax.bf16 %v2928, %v2930
    %v2933 = vunpack.i.l.bf16 %v2932
    %v2934 = vunpack.i.h.bf16 %v2932
    %v2935 = vmax.f32 %v2933, %v2934
    %v2936 = vrot.slane %v2935, 4
    %v2937 = vmax.f32 %v2935, %v2936
    %v2938 = vrot.slane %v2937, 2
    %v2939 = vmax.f32 %v2937, %v2938
    %v2940 = vrot.slane %v2939, 1
    %v2941 = vmax.f32 %v2939, %v2940
    %v2942 = vpack.i.bf16 %v2941, %v2941
    %v2944 = vsel %vm317, %v2889, 4286644096
    %v2947 = vsel %vm317, %v2890, 4286644096
    %v2949 = vmax.bf16 %v2944, %v2947
    %v2951 = vsel %vm317, %v2891, 4286644096
    %v2953 = vmax.bf16 %v2949, %v2951
    %v2955 = vsel %vm317, %v2892, 4286644096
    %v2957 = vmax.bf16 %v2953, %v2955
    %v2958 = vunpack.i.l.bf16 %v2957
    %v2959 = vunpack.i.h.bf16 %v2957
    %v2960 = vmax.f32 %v2958, %v2959
    %v2961 = vrot.slane %v2960, 4
    %v2962 = vmax.f32 %v2960, %v2961
    %v2963 = vrot.slane %v2962, 2
    %v2964 = vmax.f32 %v2962, %v2963
    %v2965 = vrot.slane %v2964, 1
    %v2966 = vmax.f32 %v2964, %v2965
    %v2967 = vpack.i.bf16 %v2966, %v2966
    %v2969 = vsel %vm317, %v2893, 4286644096
    %v2972 = vsel %vm317, %v2894, 4286644096
    %v2974 = vmax.bf16 %v2969, %v2972
    %v2976 = vsel %vm317, %v2895, 4286644096
    %v2978 = vmax.bf16 %v2974, %v2976
    %v2980 = vsel %vm317, %v2896, 4286644096
    %v2982 = vmax.bf16 %v2978, %v2980
    %v2983 = vunpack.i.l.bf16 %v2982
    %v2984 = vunpack.i.h.bf16 %v2982
    %v2985 = vmax.f32 %v2983, %v2984
    %v2986 = vrot.slane %v2985, 4
    %v2987 = vmax.f32 %v2985, %v2986
    %v2988 = vrot.slane %v2987, 2
    %v2989 = vmax.f32 %v2987, %v2988
    %v2990 = vrot.slane %v2989, 1
    %v2991 = vmax.f32 %v2989, %v2990
    %v2992 = vpack.i.bf16 %v2991, %v2991
    %v2994 = vsel %vm317, %v2897, 4286644096
    %v2997 = vsel %vm317, %v2898, 4286644096
    %v2999 = vmax.bf16 %v2994, %v2997
    %v3001 = vsel %vm317, %v2899, 4286644096
    %v3003 = vmax.bf16 %v2999, %v3001
    %v3005 = vsel %vm317, %v2900, 4286644096
    %v3007 = vmax.bf16 %v3003, %v3005
    %v3008 = vunpack.i.l.bf16 %v3007
    %v3009 = vunpack.i.h.bf16 %v3007
    %v3010 = vmax.f32 %v3008, %v3009
    %v3011 = vrot.slane %v3010, 4
    %v3012 = vmax.f32 %v3010, %v3011
    %v3013 = vrot.slane %v3012, 2
    %v3014 = vmax.f32 %v3012, %v3013
    %v3015 = vrot.slane %v3014, 1
    %v3016 = vmax.f32 %v3014, %v3015
    %v3017 = vpack.i.bf16 %v3016, %v3016
    %v3019 = vsel %vm317, %v2901, 4286644096
    %v3022 = vsel %vm317, %v2902, 4286644096
    %v3024 = vmax.bf16 %v3019, %v3022
    %v3026 = vsel %vm317, %v2903, 4286644096
    %v3028 = vmax.bf16 %v3024, %v3026
    %v3030 = vsel %vm317, %v2904, 4286644096
    %v3032 = vmax.bf16 %v3028, %v3030
    %v3033 = vunpack.i.l.bf16 %v3032
    %v3034 = vunpack.i.h.bf16 %v3032
    %v3035 = vmax.f32 %v3033, %v3034
    %v3036 = vrot.slane %v3035, 4
    %v3037 = vmax.f32 %v3035, %v3036
    %v3038 = vrot.slane %v3037, 2
    %v3039 = vmax.f32 %v3037, %v3038
    %v3040 = vrot.slane %v3039, 1
    %v3041 = vmax.f32 %v3039, %v3040
    %v3042 = vpack.i.bf16 %v3041, %v3041
    %v3044 = vsel %vm317, %v2905, 4286644096
    %v3047 = vsel %vm317, %v2906, 4286644096
    %v3049 = vmax.bf16 %v3044, %v3047
    %v3051 = vsel %vm317, %v2907, 4286644096
    %v3053 = vmax.bf16 %v3049, %v3051
    %v3055 = vsel %vm317, %v2908, 4286644096
    %v3057 = vmax.bf16 %v3053, %v3055
    %v3058 = vunpack.i.l.bf16 %v3057
    %v3059 = vunpack.i.h.bf16 %v3057
    %v3060 = vmax.f32 %v3058, %v3059
    %v3061 = vrot.slane %v3060, 4
    %v3062 = vmax.f32 %v3060, %v3061
    %v3063 = vrot.slane %v3062, 2
    %v3064 = vmax.f32 %v3062, %v3063
    %v3065 = vrot.slane %v3064, 1
    %v3066 = vmax.f32 %v3064, %v3065
    %v3067 = vpack.i.bf16 %v3066, %v3066
    %v3069 = vsel %vm317, %v2909, 4286644096
    %v3072 = vsel %vm317, %v2910, 4286644096
    %v3074 = vmax.bf16 %v3069, %v3072
    %v3076 = vsel %vm317, %v2911, 4286644096
    %v3078 = vmax.bf16 %v3074, %v3076
    %v3080 = vsel %vm317, %v2912, 4286644096
    %v3082 = vmax.bf16 %v3078, %v3080
    %v3083 = vunpack.i.l.bf16 %v3082
    %v3084 = vunpack.i.h.bf16 %v3082
    %v3085 = vmax.f32 %v3083, %v3084
    %v3086 = vrot.slane %v3085, 4
    %v3087 = vmax.f32 %v3085, %v3086
    %v3088 = vrot.slane %v3087, 2
    %v3089 = vmax.f32 %v3087, %v3088
    %v3090 = vrot.slane %v3089, 1
    %v3091 = vmax.f32 %v3089, %v3090
    %v3092 = vpack.i.bf16 %v3091, %v3091
    %v3094 = vsel %vm317, %v2913, 4286644096
    %v3097 = vsel %vm317, %v2914, 4286644096
    %v3099 = vmax.bf16 %v3094, %v3097
    %v3101 = vsel %vm317, %v2915, 4286644096
    %v3103 = vmax.bf16 %v3099, %v3101
    %v3105 = vsel %vm317, %v2916, 4286644096
    %v3107 = vmax.bf16 %v3103, %v3105
    %v3108 = vunpack.i.l.bf16 %v3107
    %v3109 = vunpack.i.h.bf16 %v3107
    %v3110 = vmax.f32 %v3108, %v3109
    %v3111 = vrot.slane %v3110, 4
    %v3112 = vmax.f32 %v3110, %v3111
    %v3113 = vrot.slane %v3112, 2
    %v3114 = vmax.f32 %v3112, %v3113
    %v3115 = vrot.slane %v3114, 1
    %v3116 = vmax.f32 %v3114, %v3115
    %v3117 = vpack.i.bf16 %v3116, %v3116
    %v3118 = vunpack.c.l.bf16 %v2942
    %v3119 = vunpack.c.l.bf16 %v2967
    %v3120 = vunpack.c.l.bf16 %v2992
    %v3121 = vunpack.c.l.bf16 %v3017
    %v3122 = vunpack.c.l.bf16 %v3042
    %v3123 = vunpack.c.l.bf16 %v3067
    %v3124 = vunpack.c.l.bf16 %v3092
    %v3125 = vunpack.c.l.bf16 %v3117
    %3127 = vset.pattern.permute.xlu0 0
    %3128 = vperm.xlu0 %3127, %v1988
    %v3129 = vpop.permute.xlu0 %3128
    %v3130 = vrot.slane %v3129, 1
    %v3131 = vrot.slane %v3129, 2
    %v3132 = vrot.slane %v3129, 3
    %v3133 = vrot.slane %v3129, 4
    %v3134 = vrot.slane %v3129, 5
    %v3135 = vrot.slane %v3129, 6
    %v3136 = vrot.slane %v3129, 7
    %v3145 = vmul.f32 %v3118, %v3129
    %v3146 = vmul.f32 %v3119, %v3130
    %v3147 = vmul.f32 %v3120, %v3131
    %v3148 = vmul.f32 %v3121, %v3132
    %v3149 = vmul.f32 %v3122, %v3133
    %v3150 = vmul.f32 %v3123, %v3134
    %v3151 = vmul.f32 %v3124, %v3135
    %v3152 = vmul.f32 %v3125, %v3136
    %v3153 = vpack.c.bf16 %v3145, %v3145
    %v3154 = vpack.c.bf16 %v3146, %v3146
    %v3155 = vpack.c.bf16 %v3147, %v3147
    %v3156 = vpack.c.bf16 %v3148, %v3148
    %v3157 = vpack.c.bf16 %v3149, %v3149
    %v3158 = vpack.c.bf16 %v3150, %v3150
    %v3159 = vpack.c.bf16 %v3151, %v3151
    %v3160 = vpack.c.bf16 %v3152, %v3152
    %v3161 = vpack.c.bf16 %v1647, %v1645
    %v3162 = vpack.c.bf16 %v1651, %v1649
    %v3163 = vpack.c.bf16 %v1655, %v1653
    %v3164 = vpack.c.bf16 %v1659, %v1657
    %v3165 = vpack.c.bf16 %v1663, %v1661
    %v3166 = vpack.c.bf16 %v1667, %v1665
    %v3167 = vpack.c.bf16 %v1671, %v1669
    %v3168 = vpack.c.bf16 %v1675, %v1673
    %v3169 = vpack.c.bf16 %v1679, %v1677
    %v3170 = vpack.c.bf16 %v1683, %v1681
    %v3171 = vpack.c.bf16 %v1687, %v1685
    %v3172 = vpack.c.bf16 %v1691, %v1689
    %v3173 = vpack.c.bf16 %v1695, %v1693
    %v3174 = vpack.c.bf16 %v1699, %v1697
    %v3175 = vpack.c.bf16 %v1703, %v1701
    %v3176 = vpack.c.bf16 %v1707, %v1705
    %v3177 = vpack.c.bf16 %v1711, %v1709
    %v3178 = vpack.c.bf16 %v1715, %v1713
    %v3179 = vpack.c.bf16 %v1719, %v1717
    %v3180 = vpack.c.bf16 %v1723, %v1721
    %v3181 = vpack.c.bf16 %v1727, %v1725
    %v3182 = vpack.c.bf16 %v1731, %v1729
    %v3183 = vpack.c.bf16 %v1735, %v1733
    %v3184 = vpack.c.bf16 %v1739, %v1737
    %v3185 = vpack.c.bf16 %v1743, %v1741
    %v3186 = vpack.c.bf16 %v1747, %v1745
    %v3187 = vpack.c.bf16 %v1751, %v1749
    %v3188 = vpack.c.bf16 %v1755, %v1753
    %v3189 = vpack.c.bf16 %v1759, %v1757
    %v3190 = vpack.c.bf16 %v1763, %v1761
    %v3191 = vpack.c.bf16 %v1767, %v1765
    %v3192 = vpack.c.bf16 %v1771, %v1769
    %3194 = vset.pattern.permute.xlu0 1
    %3195 = vperm.xlu0 %3194, %v3161
    %v3196 = vpop.permute.xlu0 %3195
    %3198 = vset.pattern.permute.xlu0 1
    %3199 = vperm.xlu0 %3198, %v3162
    %v3200 = vpop.permute.xlu0 %3199
    %3202 = vset.pattern.permute.xlu0 1
    %3203 = vperm.xlu0 %3202, %v3163
    %v3204 = vpop.permute.xlu0 %3203
    %3206 = vset.pattern.permute.xlu0 1
    %3207 = vperm.xlu0 %3206, %v3164
    %v3208 = vpop.permute.xlu0 %3207
    %3210 = vset.pattern.permute.xlu0 1
    %3211 = vperm.xlu0 %3210, %v3165
    %v3212 = vpop.permute.xlu0 %3211
    %3214 = vset.pattern.permute.xlu0 1
    %3215 = vperm.xlu0 %3214, %v3166
    %v3216 = vpop.permute.xlu0 %3215
    %3218 = vset.pattern.permute.xlu0 1
    %3219 = vperm.xlu0 %3218, %v3167
    %v3220 = vpop.permute.xlu0 %3219
    %3222 = vset.pattern.permute.xlu0 1
    %3223 = vperm.xlu0 %3222, %v3168
    %v3224 = vpop.permute.xlu0 %3223
    %3226 = vset.pattern.permute.xlu0 1
    %3227 = vperm.xlu0 %3226, %v3169
    %v3228 = vpop.permute.xlu0 %3227
    %3230 = vset.pattern.permute.xlu0 1
    %3231 = vperm.xlu0 %3230, %v3170
    %v3232 = vpop.permute.xlu0 %3231
    %3234 = vset.pattern.permute.xlu0 1
    %3235 = vperm.xlu0 %3234, %v3171
    %v3236 = vpop.permute.xlu0 %3235
    %3238 = vset.pattern.permute.xlu0 1
    %3239 = vperm.xlu0 %3238, %v3172
    %v3240 = vpop.permute.xlu0 %3239
    %3242 = vset.pattern.permute.xlu0 1
    %3243 = vperm.xlu0 %3242, %v3173
    %v3244 = vpop.permute.xlu0 %3243
    %3246 = vset.pattern.permute.xlu0 1
    %3247 = vperm.xlu0 %3246, %v3174
    %v3248 = vpop.permute.xlu0 %3247
    %3250 = vset.pattern.permute.xlu0 1
    %3251 = vperm.xlu0 %3250, %v3175
    %v3252 = vpop.permute.xlu0 %3251
    %3254 = vset.pattern.permute.xlu0 1
    %3255 = vperm.xlu0 %3254, %v3176
    %v3256 = vpop.permute.xlu0 %3255
    %3258 = vset.pattern.permute.xlu0 1
    %3259 = vperm.xlu0 %3258, %v3177
    %v3260 = vpop.permute.xlu0 %3259
    %3262 = vset.pattern.permute.xlu0 1
    %3263 = vperm.xlu0 %3262, %v3178
    %v3264 = vpop.permute.xlu0 %3263
    %3266 = vset.pattern.permute.xlu0 1
    %3267 = vperm.xlu0 %3266, %v3179
    %v3268 = vpop.permute.xlu0 %3267
    %3270 = vset.pattern.permute.xlu0 1
    %3271 = vperm.xlu0 %3270, %v3180
    %v3272 = vpop.permute.xlu0 %3271
    %3274 = vset.pattern.permute.xlu0 1
    %3275 = vperm.xlu0 %3274, %v3181
    %v3276 = vpop.permute.xlu0 %3275
    %3278 = vset.pattern.permute.xlu0 1
    %3279 = vperm.xlu0 %3278, %v3182
    %v3280 = vpop.permute.xlu0 %3279
    %3282 = vset.pattern.permute.xlu0 1
    %3283 = vperm.xlu0 %3282, %v3183
    %v3284 = vpop.permute.xlu0 %3283
    %3286 = vset.pattern.permute.xlu0 1
    %3287 = vperm.xlu0 %3286, %v3184
    %v3288 = vpop.permute.xlu0 %3287
    %3290 = vset.pattern.permute.xlu0 1
    %3291 = vperm.xlu0 %3290, %v3185
    %v3292 = vpop.permute.xlu0 %3291
    %3294 = vset.pattern.permute.xlu0 1
    %3295 = vperm.xlu0 %3294, %v3186
    %v3296 = vpop.permute.xlu0 %3295
    %3298 = vset.pattern.permute.xlu0 1
    %3299 = vperm.xlu0 %3298, %v3187
    %v3300 = vpop.permute.xlu0 %3299
    %3302 = vset.pattern.permute.xlu0 1
    %3303 = vperm.xlu0 %3302, %v3188
    %v3304 = vpop.permute.xlu0 %3303
    %3306 = vset.pattern.permute.xlu0 1
    %3307 = vperm.xlu0 %3306, %v3189
    %v3308 = vpop.permute.xlu0 %3307
    %3310 = vset.pattern.permute.xlu0 1
    %3311 = vperm.xlu0 %3310, %v3190
    %v3312 = vpop.permute.xlu0 %3311
    %3314 = vset.pattern.permute.xlu0 1
    %3315 = vperm.xlu0 %3314, %v3191
    %v3316 = vpop.permute.xlu0 %3315
    %3318 = vset.pattern.permute.xlu0 1
    %3319 = vperm.xlu0 %3318, %v3192
    %v3320 = vpop.permute.xlu0 %3319
    %v3354 = vunpack.c.l.s4 839922192
    %v3355 = vunpack.c.0.s8 %v3354
    %v3356 = vlaneseq
    %v3357 = vshrl.u32 %v3356, 7
    %v3358 = vsub.s32 %v3355, %v3357
    %v3359 = vrot.slane %v3196, %v3358
    %v3361 = vunpack.c.l.s4 1985246804
    %v3362 = vunpack.c.0.s8 %v3361
    %v3363 = vlaneseq
    %v3364 = vshrl.u32 %v3363, 7
    %v3365 = vsub.s32 %v3362, %v3364
    %v3366 = vrot.slane %v3196, %v3365
    %v3368 = vunpack.c.l.s4 839922192
    %v3369 = vunpack.c.0.s8 %v3368
    %v3370 = vlaneseq
    %v3371 = vshrl.u32 %v3370, 7
    %v3372 = vsub.s32 %v3369, %v3371
    %v3373 = vrot.slane %v3200, %v3372
    %v3375 = vunpack.c.l.s4 1985246804
    %v3376 = vunpack.c.0.s8 %v3375
    %v3377 = vlaneseq
    %v3378 = vshrl.u32 %v3377, 7
    %v3379 = vsub.s32 %v3376, %v3378
    %v3380 = vrot.slane %v3200, %v3379
    %v3382 = vunpack.c.l.s4 839922192
    %v3383 = vunpack.c.0.s8 %v3382
    %v3384 = vlaneseq
    %v3385 = vshrl.u32 %v3384, 7
    %v3386 = vsub.s32 %v3383, %v3385
    %v3387 = vrot.slane %v3204, %v3386
    %v3389 = vunpack.c.l.s4 1985246804
    %v3390 = vunpack.c.0.s8 %v3389
    %v3391 = vlaneseq
    %v3392 = vshrl.u32 %v3391, 7
    %v3393 = vsub.s32 %v3390, %v3392
    %v3394 = vrot.slane %v3204, %v3393
    %v3396 = vunpack.c.l.s4 839922192
    %v3397 = vunpack.c.0.s8 %v3396
    %v3398 = vlaneseq
    %v3399 = vshrl.u32 %v3398, 7
    %v3400 = vsub.s32 %v3397, %v3399
    %v3401 = vrot.slane %v3208, %v3400
    %v3403 = vunpack.c.l.s4 1985246804
    %v3404 = vunpack.c.0.s8 %v3403
    %v3405 = vlaneseq
    %v3406 = vshrl.u32 %v3405, 7
    %v3407 = vsub.s32 %v3404, %v3406
    %v3408 = vrot.slane %v3208, %v3407
    %v3410 = vunpack.c.l.s4 839922192
    %v3411 = vunpack.c.0.s8 %v3410
    %v3412 = vlaneseq
    %v3413 = vshrl.u32 %v3412, 7
    %v3414 = vsub.s32 %v3411, %v3413
    %v3415 = vrot.slane %v3212, %v3414
    %v3417 = vunpack.c.l.s4 1985246804
    %v3418 = vunpack.c.0.s8 %v3417
    %v3419 = vlaneseq
    %v3420 = vshrl.u32 %v3419, 7
    %v3421 = vsub.s32 %v3418, %v3420
    %v3422 = vrot.slane %v3212, %v3421
    %v3424 = vunpack.c.l.s4 839922192
    %v3425 = vunpack.c.0.s8 %v3424
    %v3426 = vlaneseq
    %v3427 = vshrl.u32 %v3426, 7
    %v3428 = vsub.s32 %v3425, %v3427
    %v3429 = vrot.slane %v3216, %v3428
    %v3431 = vunpack.c.l.s4 1985246804
    %v3432 = vunpack.c.0.s8 %v3431
    %v3433 = vlaneseq
    %v3434 = vshrl.u32 %v3433, 7
    %v3435 = vsub.s32 %v3432, %v3434
    %v3436 = vrot.slane %v3216, %v3435
    %v3438 = vunpack.c.l.s4 839922192
    %v3439 = vunpack.c.0.s8 %v3438
    %v3440 = vlaneseq
    %v3441 = vshrl.u32 %v3440, 7
    %v3442 = vsub.s32 %v3439, %v3441
    %v3443 = vrot.slane %v3220, %v3442
    %v3445 = vunpack.c.l.s4 1985246804
    %v3446 = vunpack.c.0.s8 %v3445
    %v3447 = vlaneseq
    %v3448 = vshrl.u32 %v3447, 7
    %v3449 = vsub.s32 %v3446, %v3448
    %v3450 = vrot.slane %v3220, %v3449
    %v3452 = vunpack.c.l.s4 839922192
    %v3453 = vunpack.c.0.s8 %v3452
    %v3454 = vlaneseq
    %v3455 = vshrl.u32 %v3454, 7
    %v3456 = vsub.s32 %v3453, %v3455
    %v3457 = vrot.slane %v3224, %v3456
    %v3459 = vunpack.c.l.s4 1985246804
    %v3460 = vunpack.c.0.s8 %v3459
    %v3461 = vlaneseq
    %v3462 = vshrl.u32 %v3461, 7
    %v3463 = vsub.s32 %v3460, %v3462
    %v3464 = vrot.slane %v3224, %v3463
    %v3466 = vunpack.c.l.s4 839922192
    %v3467 = vunpack.c.0.s8 %v3466
    %v3468 = vlaneseq
    %v3469 = vshrl.u32 %v3468, 7
    %v3470 = vsub.s32 %v3467, %v3469
    %v3471 = vrot.slane %v3228, %v3470
    %v3473 = vunpack.c.l.s4 1985246804
    %v3474 = vunpack.c.0.s8 %v3473
    %v3475 = vlaneseq
    %v3476 = vshrl.u32 %v3475, 7
    %v3477 = vsub.s32 %v3474, %v3476
    %v3478 = vrot.slane %v3228, %v3477
    %v3480 = vunpack.c.l.s4 839922192
    %v3481 = vunpack.c.0.s8 %v3480
    %v3482 = vlaneseq
    %v3483 = vshrl.u32 %v3482, 7
    %v3484 = vsub.s32 %v3481, %v3483
    %v3485 = vrot.slane %v3232, %v3484
    %v3487 = vunpack.c.l.s4 1985246804
    %v3488 = vunpack.c.0.s8 %v3487
    %v3489 = vlaneseq
    %v3490 = vshrl.u32 %v3489, 7
    %v3491 = vsub.s32 %v3488, %v3490
    %v3492 = vrot.slane %v3232, %v3491
    %v3494 = vunpack.c.l.s4 839922192
    %v3495 = vunpack.c.0.s8 %v3494
    %v3496 = vlaneseq
    %v3497 = vshrl.u32 %v3496, 7
    %v3498 = vsub.s32 %v3495, %v3497
    %v3499 = vrot.slane %v3236, %v3498
    %v3501 = vunpack.c.l.s4 1985246804
    %v3502 = vunpack.c.0.s8 %v3501
    %v3503 = vlaneseq
    %v3504 = vshrl.u32 %v3503, 7
    %v3505 = vsub.s32 %v3502, %v3504
    %v3506 = vrot.slane %v3236, %v3505
    %v3508 = vunpack.c.l.s4 839922192
    %v3509 = vunpack.c.0.s8 %v3508
    %v3510 = vlaneseq
    %v3511 = vshrl.u32 %v3510, 7
    %v3512 = vsub.s32 %v3509, %v3511
    %v3513 = vrot.slane %v3240, %v3512
    %v3515 = vunpack.c.l.s4 1985246804
    %v3516 = vunpack.c.0.s8 %v3515
    %v3517 = vlaneseq
    %v3518 = vshrl.u32 %v3517, 7
    %v3519 = vsub.s32 %v3516, %v3518
    %v3520 = vrot.slane %v3240, %v3519
    %v3522 = vunpack.c.l.s4 839922192
    %v3523 = vunpack.c.0.s8 %v3522
    %v3524 = vlaneseq
    %v3525 = vshrl.u32 %v3524, 7
    %v3526 = vsub.s32 %v3523, %v3525
    %v3527 = vrot.slane %v3244, %v3526
    %v3529 = vunpack.c.l.s4 1985246804
    %v3530 = vunpack.c.0.s8 %v3529
    %v3531 = vlaneseq
    %v3532 = vshrl.u32 %v3531, 7
    %v3533 = vsub.s32 %v3530, %v3532
    %v3534 = vrot.slane %v3244, %v3533
    %v3536 = vunpack.c.l.s4 839922192
    %v3537 = vunpack.c.0.s8 %v3536
    %v3538 = vlaneseq
    %v3539 = vshrl.u32 %v3538, 7
    %v3540 = vsub.s32 %v3537, %v3539
    %v3541 = vrot.slane %v3248, %v3540
    %v3543 = vunpack.c.l.s4 1985246804
    %v3544 = vunpack.c.0.s8 %v3543
    %v3545 = vlaneseq
    %v3546 = vshrl.u32 %v3545, 7
    %v3547 = vsub.s32 %v3544, %v3546
    %v3548 = vrot.slane %v3248, %v3547
    %v3550 = vunpack.c.l.s4 839922192
    %v3551 = vunpack.c.0.s8 %v3550
    %v3552 = vlaneseq
    %v3553 = vshrl.u32 %v3552, 7
    %v3554 = vsub.s32 %v3551, %v3553
    %v3555 = vrot.slane %v3252, %v3554
    %v3557 = vunpack.c.l.s4 1985246804
    %v3558 = vunpack.c.0.s8 %v3557
    %v3559 = vlaneseq
    %v3560 = vshrl.u32 %v3559, 7
    %v3561 = vsub.s32 %v3558, %v3560
    %v3562 = vrot.slane %v3252, %v3561
    %v3564 = vunpack.c.l.s4 839922192
    %v3565 = vunpack.c.0.s8 %v3564
    %v3566 = vlaneseq
    %v3567 = vshrl.u32 %v3566, 7
    %v3568 = vsub.s32 %v3565, %v3567
    %v3569 = vrot.slane %v3256, %v3568
    %v3571 = vunpack.c.l.s4 1985246804
    %v3572 = vunpack.c.0.s8 %v3571
    %v3573 = vlaneseq
    %v3574 = vshrl.u32 %v3573, 7
    %v3575 = vsub.s32 %v3572, %v3574
    %v3576 = vrot.slane %v3256, %v3575
    %v3578 = vunpack.c.l.s4 839922192
    %v3579 = vunpack.c.0.s8 %v3578
    %v3580 = vlaneseq
    %v3581 = vshrl.u32 %v3580, 7
    %v3582 = vsub.s32 %v3579, %v3581
    %v3583 = vrot.slane %v3260, %v3582
    %v3585 = vunpack.c.l.s4 1985246804
    %v3586 = vunpack.c.0.s8 %v3585
    %v3587 = vlaneseq
    %v3588 = vshrl.u32 %v3587, 7
    %v3589 = vsub.s32 %v3586, %v3588
    %v3590 = vrot.slane %v3260, %v3589
    %v3592 = vunpack.c.l.s4 839922192
    %v3593 = vunpack.c.0.s8 %v3592
    %v3594 = vlaneseq
    %v3595 = vshrl.u32 %v3594, 7
    %v3596 = vsub.s32 %v3593, %v3595
    %v3597 = vrot.slane %v3264, %v3596
    %v3599 = vunpack.c.l.s4 1985246804
    %v3600 = vunpack.c.0.s8 %v3599
    %v3601 = vlaneseq
    %v3602 = vshrl.u32 %v3601, 7
    %v3603 = vsub.s32 %v3600, %v3602
    %v3604 = vrot.slane %v3264, %v3603
    %v3606 = vunpack.c.l.s4 839922192
    %v3607 = vunpack.c.0.s8 %v3606
    %v3608 = vlaneseq
    %v3609 = vshrl.u32 %v3608, 7
    %v3610 = vsub.s32 %v3607, %v3609
    %v3611 = vrot.slane %v3268, %v3610
    %v3613 = vunpack.c.l.s4 1985246804
    %v3614 = vunpack.c.0.s8 %v3613
    %v3615 = vlaneseq
    %v3616 = vshrl.u32 %v3615, 7
    %v3617 = vsub.s32 %v3614, %v3616
    %v3618 = vrot.slane %v3268, %v3617
    %v3620 = vunpack.c.l.s4 839922192
    %v3621 = vunpack.c.0.s8 %v3620
    %v3622 = vlaneseq
    %v3623 = vshrl.u32 %v3622, 7
    %v3624 = vsub.s32 %v3621, %v3623
    %v3625 = vrot.slane %v3272, %v3624
    %v3627 = vunpack.c.l.s4 1985246804
    %v3628 = vunpack.c.0.s8 %v3627
    %v3629 = vlaneseq
    %v3630 = vshrl.u32 %v3629, 7
    %v3631 = vsub.s32 %v3628, %v3630
    %v3632 = vrot.slane %v3272, %v3631
    %v3634 = vunpack.c.l.s4 839922192
    %v3635 = vunpack.c.0.s8 %v3634
    %v3636 = vlaneseq
    %v3637 = vshrl.u32 %v3636, 7
    %v3638 = vsub.s32 %v3635, %v3637
    %v3639 = vrot.slane %v3276, %v3638
    %v3641 = vunpack.c.l.s4 1985246804
    %v3642 = vunpack.c.0.s8 %v3641
    %v3643 = vlaneseq
    %v3644 = vshrl.u32 %v3643, 7
    %v3645 = vsub.s32 %v3642, %v3644
    %v3646 = vrot.slane %v3276, %v3645
    %v3648 = vunpack.c.l.s4 839922192
    %v3649 = vunpack.c.0.s8 %v3648
    %v3650 = vlaneseq
    %v3651 = vshrl.u32 %v3650, 7
    %v3652 = vsub.s32 %v3649, %v3651
    %v3653 = vrot.slane %v3280, %v3652
    %v3655 = vunpack.c.l.s4 1985246804
    %v3656 = vunpack.c.0.s8 %v3655
    %v3657 = vlaneseq
    %v3658 = vshrl.u32 %v3657, 7
    %v3659 = vsub.s32 %v3656, %v3658
    %v3660 = vrot.slane %v3280, %v3659
    %v3662 = vunpack.c.l.s4 839922192
    %v3663 = vunpack.c.0.s8 %v3662
    %v3664 = vlaneseq
    %v3665 = vshrl.u32 %v3664, 7
    %v3666 = vsub.s32 %v3663, %v3665
    %v3667 = vrot.slane %v3284, %v3666
    %v3669 = vunpack.c.l.s4 1985246804
    %v3670 = vunpack.c.0.s8 %v3669
    %v3671 = vlaneseq
    %v3672 = vshrl.u32 %v3671, 7
    %v3673 = vsub.s32 %v3670, %v3672
    %v3674 = vrot.slane %v3284, %v3673
    %v3676 = vunpack.c.l.s4 839922192
    %v3677 = vunpack.c.0.s8 %v3676
    %v3678 = vlaneseq
    %v3679 = vshrl.u32 %v3678, 7
    %v3680 = vsub.s32 %v3677, %v3679
    %v3681 = vrot.slane %v3288, %v3680
    %v3683 = vunpack.c.l.s4 1985246804
    %v3684 = vunpack.c.0.s8 %v3683
    %v3685 = vlaneseq
    %v3686 = vshrl.u32 %v3685, 7
    %v3687 = vsub.s32 %v3684, %v3686
    %v3688 = vrot.slane %v3288, %v3687
    %v3690 = vunpack.c.l.s4 839922192
    %v3691 = vunpack.c.0.s8 %v3690
    %v3692 = vlaneseq
    %v3693 = vshrl.u32 %v3692, 7
    %v3694 = vsub.s32 %v3691, %v3693
    %v3695 = vrot.slane %v3292, %v3694
    %v3697 = vunpack.c.l.s4 1985246804
    %v3698 = vunpack.c.0.s8 %v3697
    %v3699 = vlaneseq
    %v3700 = vshrl.u32 %v3699, 7
    %v3701 = vsub.s32 %v3698, %v3700
    %v3702 = vrot.slane %v3292, %v3701
    %v3704 = vunpack.c.l.s4 839922192
    %v3705 = vunpack.c.0.s8 %v3704
    %v3706 = vlaneseq
    %v3707 = vshrl.u32 %v3706, 7
    %v3708 = vsub.s32 %v3705, %v3707
    %v3709 = vrot.slane %v3296, %v3708
    %v3711 = vunpack.c.l.s4 1985246804
    %v3712 = vunpack.c.0.s8 %v3711
    %v3713 = vlaneseq
    %v3714 = vshrl.u32 %v3713, 7
    %v3715 = vsub.s32 %v3712, %v3714
    %v3716 = vrot.slane %v3296, %v3715
    %v3718 = vunpack.c.l.s4 839922192
    %v3719 = vunpack.c.0.s8 %v3718
    %v3720 = vlaneseq
    %v3721 = vshrl.u32 %v3720, 7
    %v3722 = vsub.s32 %v3719, %v3721
    %v3723 = vrot.slane %v3300, %v3722
    %v3725 = vunpack.c.l.s4 1985246804
    %v3726 = vunpack.c.0.s8 %v3725
    %v3727 = vlaneseq
    %v3728 = vshrl.u32 %v3727, 7
    %v3729 = vsub.s32 %v3726, %v3728
    %v3730 = vrot.slane %v3300, %v3729
    %v3732 = vunpack.c.l.s4 839922192
    %v3733 = vunpack.c.0.s8 %v3732
    %v3734 = vlaneseq
    %v3735 = vshrl.u32 %v3734, 7
    %v3736 = vsub.s32 %v3733, %v3735
    %v3737 = vrot.slane %v3304, %v3736
    %v3739 = vunpack.c.l.s4 1985246804
    %v3740 = vunpack.c.0.s8 %v3739
    %v3741 = vlaneseq
    %v3742 = vshrl.u32 %v3741, 7
    %v3743 = vsub.s32 %v3740, %v3742
    %v3744 = vrot.slane %v3304, %v3743
    %v3746 = vunpack.c.l.s4 839922192
    %v3747 = vunpack.c.0.s8 %v3746
    %v3748 = vlaneseq
    %v3749 = vshrl.u32 %v3748, 7
    %v3750 = vsub.s32 %v3747, %v3749
    %v3751 = vrot.slane %v3308, %v3750
    %v3753 = vunpack.c.l.s4 1985246804
    %v3754 = vunpack.c.0.s8 %v3753
    %v3755 = vlaneseq
    %v3756 = vshrl.u32 %v3755, 7
    %v3757 = vsub.s32 %v3754, %v3756
    %v3758 = vrot.slane %v3308, %v3757
    %v3760 = vunpack.c.l.s4 839922192
    %v3761 = vunpack.c.0.s8 %v3760
    %v3762 = vlaneseq
    %v3763 = vshrl.u32 %v3762, 7
    %v3764 = vsub.s32 %v3761, %v3763
    %v3765 = vrot.slane %v3312, %v3764
    %v3767 = vunpack.c.l.s4 1985246804
    %v3768 = vunpack.c.0.s8 %v3767
    %v3769 = vlaneseq
    %v3770 = vshrl.u32 %v3769, 7
    %v3771 = vsub.s32 %v3768, %v3770
    %v3772 = vrot.slane %v3312, %v3771
    %v3774 = vunpack.c.l.s4 839922192
    %v3775 = vunpack.c.0.s8 %v3774
    %v3776 = vlaneseq
    %v3777 = vshrl.u32 %v3776, 7
    %v3778 = vsub.s32 %v3775, %v3777
    %v3779 = vrot.slane %v3316, %v3778
    %v3781 = vunpack.c.l.s4 1985246804
    %v3782 = vunpack.c.0.s8 %v3781
    %v3783 = vlaneseq
    %v3784 = vshrl.u32 %v3783, 7
    %v3785 = vsub.s32 %v3782, %v3784
    %v3786 = vrot.slane %v3316, %v3785
    %v3788 = vunpack.c.l.s4 839922192
    %v3789 = vunpack.c.0.s8 %v3788
    %v3790 = vlaneseq
    %v3791 = vshrl.u32 %v3790, 7
    %v3792 = vsub.s32 %v3789, %v3791
    %v3793 = vrot.slane %v3320, %v3792
    %v3795 = vunpack.c.l.s4 1985246804
    %v3796 = vunpack.c.0.s8 %v3795
    %v3797 = vlaneseq
    %v3798 = vshrl.u32 %v3797, 7
    %v3799 = vsub.s32 %v3796, %v3798
    %v3800 = vrot.slane %v3320, %v3799
    %v3865 = vmul.bf16 %v61, %v3359
    %v3866 = vmul.bf16 %v62, %v3366
    %v3867 = vmul.bf16 %v63, %v3373
    %v3868 = vmul.bf16 %v64, %v3380
    %v3869 = vmul.bf16 %v65, %v3387
    %v3870 = vmul.bf16 %v66, %v3394
    %v3871 = vmul.bf16 %v67, %v3401
    %v3872 = vmul.bf16 %v68, %v3408
    %v3873 = vmul.bf16 %v69, %v3415
    %v3874 = vmul.bf16 %v70, %v3422
    %v3875 = vmul.bf16 %v71, %v3429
    %v3876 = vmul.bf16 %v72, %v3436
    %v3877 = vmul.bf16 %v73, %v3443
    %v3878 = vmul.bf16 %v74, %v3450
    %v3879 = vmul.bf16 %v75, %v3457
    %v3880 = vmul.bf16 %v76, %v3464
    %v3881 = vmul.bf16 %v77, %v3471
    %v3882 = vmul.bf16 %v78, %v3478
    %v3883 = vmul.bf16 %v79, %v3485
    %v3884 = vmul.bf16 %v80, %v3492
    %v3885 = vmul.bf16 %v81, %v3499
    %v3886 = vmul.bf16 %v82, %v3506
    %v3887 = vmul.bf16 %v83, %v3513
    %v3888 = vmul.bf16 %v84, %v3520
    %v3889 = vmul.bf16 %v85, %v3527
    %v3890 = vmul.bf16 %v86, %v3534
    %v3891 = vmul.bf16 %v87, %v3541
    %v3892 = vmul.bf16 %v88, %v3548
    %v3893 = vmul.bf16 %v89, %v3555
    %v3894 = vmul.bf16 %v90, %v3562
    %v3895 = vmul.bf16 %v91, %v3569
    %v3896 = vmul.bf16 %v92, %v3576
    %v3897 = vmul.bf16 %v93, %v3583
    %v3898 = vmul.bf16 %v94, %v3590
    %v3899 = vmul.bf16 %v95, %v3597
    %v3900 = vmul.bf16 %v96, %v3604
    %v3901 = vmul.bf16 %v97, %v3611
    %v3902 = vmul.bf16 %v98, %v3618
    %v3903 = vmul.bf16 %v99, %v3625
    %v3904 = vmul.bf16 %v100, %v3632
    %v3905 = vmul.bf16 %v101, %v3639
    %v3906 = vmul.bf16 %v102, %v3646
    %v3907 = vmul.bf16 %v103, %v3653
    %v3908 = vmul.bf16 %v104, %v3660
    %v3909 = vmul.bf16 %v105, %v3667
    %v3910 = vmul.bf16 %v106, %v3674
    %v3911 = vmul.bf16 %v107, %v3681
    %v3912 = vmul.bf16 %v108, %v3688
    %v3913 = vmul.bf16 %v109, %v3695
    %v3914 = vmul.bf16 %v110, %v3702
    %v3915 = vmul.bf16 %v111, %v3709
    %v3916 = vmul.bf16 %v112, %v3716
    %v3917 = vmul.bf16 %v113, %v3723
    %v3918 = vmul.bf16 %v114, %v3730
    %v3919 = vmul.bf16 %v115, %v3737
    %v3920 = vmul.bf16 %v116, %v3744
    %v3921 = vmul.bf16 %v117, %v3751
    %v3922 = vmul.bf16 %v118, %v3758
    %v3923 = vmul.bf16 %v119, %v3765
    %v3924 = vmul.bf16 %v120, %v3772
    %v3925 = vmul.bf16 %v121, %v3779
    %v3926 = vmul.bf16 %v122, %v3786
    %v3927 = vmul.bf16 %v123, %v3793
    %v3928 = vmul.bf16 %v124, %v3800
    %v3993 = vunpack.c.l.b16 %v3865
    %v3994 = vunpack.c.l.b16 %v3866
    %v3995 = vunpack.c.l.b16 %v3867
    %v3996 = vunpack.c.l.b16 %v3868
    %v3997 = vunpack.c.l.b16 %v3869
    %v3998 = vunpack.c.l.b16 %v3870
    %v3999 = vunpack.c.l.b16 %v3871
    %v4000 = vunpack.c.l.b16 %v3872
    %v4001 = vunpack.c.l.b16 %v3873
    %v4002 = vunpack.c.l.b16 %v3874
    %v4003 = vunpack.c.l.b16 %v3875
    %v4004 = vunpack.c.l.b16 %v3876
    %v4005 = vunpack.c.l.b16 %v3877
    %v4006 = vunpack.c.l.b16 %v3878
    %v4007 = vunpack.c.l.b16 %v3879
    %v4008 = vunpack.c.l.b16 %v3880
    %v4009 = vunpack.c.l.b16 %v3881
    %v4010 = vunpack.c.l.b16 %v3882
    %v4011 = vunpack.c.l.b16 %v3883
    %v4012 = vunpack.c.l.b16 %v3884
    %v4013 = vunpack.c.l.b16 %v3885
    %v4014 = vunpack.c.l.b16 %v3886
    %v4015 = vunpack.c.l.b16 %v3887
    %v4016 = vunpack.c.l.b16 %v3888
    %v4017 = vunpack.c.l.b16 %v3889
    %v4018 = vunpack.c.l.b16 %v3890
    %v4019 = vunpack.c.l.b16 %v3891
    %v4020 = vunpack.c.l.b16 %v3892
    %v4021 = vunpack.c.l.b16 %v3893
    %v4022 = vunpack.c.l.b16 %v3894
    %v4023 = vunpack.c.l.b16 %v3895
    %v4024 = vunpack.c.l.b16 %v3896
    %v4025 = vunpack.c.l.b16 %v3897
    %v4026 = vunpack.c.l.b16 %v3898
    %v4027 = vunpack.c.l.b16 %v3899
    %v4028 = vunpack.c.l.b16 %v3900
    %v4029 = vunpack.c.l.b16 %v3901
    %v4030 = vunpack.c.l.b16 %v3902
    %v4031 = vunpack.c.l.b16 %v3903
    %v4032 = vunpack.c.l.b16 %v3904
    %v4033 = vunpack.c.l.b16 %v3905
    %v4034 = vunpack.c.l.b16 %v3906
    %v4035 = vunpack.c.l.b16 %v3907
    %v4036 = vunpack.c.l.b16 %v3908
    %v4037 = vunpack.c.l.b16 %v3909
    %v4038 = vunpack.c.l.b16 %v3910
    %v4039 = vunpack.c.l.b16 %v3911
    %v4040 = vunpack.c.l.b16 %v3912
    %v4041 = vunpack.c.l.b16 %v3913
    %v4042 = vunpack.c.l.b16 %v3914
    %v4043 = vunpack.c.l.b16 %v3915
    %v4044 = vunpack.c.l.b16 %v3916
    %v4045 = vunpack.c.l.b16 %v3917
    %v4046 = vunpack.c.l.b16 %v3918
    %v4047 = vunpack.c.l.b16 %v3919
    %v4048 = vunpack.c.l.b16 %v3920
    %v4049 = vunpack.c.l.b16 %v3921
    %v4050 = vunpack.c.l.b16 %v3922
    %v4051 = vunpack.c.l.b16 %v3923
    %v4052 = vunpack.c.l.b16 %v3924
    %v4053 = vunpack.c.l.b16 %v3925
    %v4054 = vunpack.c.l.b16 %v3926
    %v4055 = vunpack.c.l.b16 %v3927
    %v4056 = vunpack.c.l.b16 %v3928
    %v4057 = vpack.c.b16 %v3994, %v3993
    %v4058 = vpack.c.b16 %v3996, %v3995
    %v4059 = vpack.c.b16 %v3998, %v3997
    %v4060 = vpack.c.b16 %v4000, %v3999
    %v4061 = vpack.c.b16 %v4002, %v4001
    %v4062 = vpack.c.b16 %v4004, %v4003
    %v4063 = vpack.c.b16 %v4006, %v4005
    %v4064 = vpack.c.b16 %v4008, %v4007
    %v4065 = vpack.c.b16 %v4010, %v4009
    %v4066 = vpack.c.b16 %v4012, %v4011
    %v4067 = vpack.c.b16 %v4014, %v4013
    %v4068 = vpack.c.b16 %v4016, %v4015
    %v4069 = vpack.c.b16 %v4018, %v4017
    %v4070 = vpack.c.b16 %v4020, %v4019
    %v4071 = vpack.c.b16 %v4022, %v4021
    %v4072 = vpack.c.b16 %v4024, %v4023
    %v4073 = vpack.c.b16 %v4026, %v4025
    %v4074 = vpack.c.b16 %v4028, %v4027
    %v4075 = vpack.c.b16 %v4030, %v4029
    %v4076 = vpack.c.b16 %v4032, %v4031
    %v4077 = vpack.c.b16 %v4034, %v4033
    %v4078 = vpack.c.b16 %v4036, %v4035
    %v4079 = vpack.c.b16 %v4038, %v4037
    %v4080 = vpack.c.b16 %v4040, %v4039
    %v4081 = vpack.c.b16 %v4042, %v4041
    %v4082 = vpack.c.b16 %v4044, %v4043
    %v4083 = vpack.c.b16 %v4046, %v4045
    %v4084 = vpack.c.b16 %v4048, %v4047
    %v4085 = vpack.c.b16 %v4050, %v4049
    %v4086 = vpack.c.b16 %v4052, %v4051
    %v4087 = vpack.c.b16 %v4054, %v4053
    %v4088 = vpack.c.b16 %v4056, %v4055
    %v4090 = vsel %vm317, %v4057, 4286644096
    %v4093 = vsel %vm317, %v4058, 4286644096
    %v4095 = vmax.bf16 %v4090, %v4093
    %v4097 = vsel %vm317, %v4059, 4286644096
    %v4099 = vmax.bf16 %v4095, %v4097
    %v4101 = vsel %vm317, %v4060, 4286644096
    %v4103 = vmax.bf16 %v4099, %v4101
    %v4104 = vunpack.i.l.bf16 %v4103
    %v4105 = vunpack.i.h.bf16 %v4103
    %v4106 = vmax.f32 %v4104, %v4105
    %v4107 = vrot.slane %v4106, 4
    %v4108 = vmax.f32 %v4106, %v4107
    %v4109 = vrot.slane %v4108, 2
    %v4110 = vmax.f32 %v4108, %v4109
    %v4111 = vrot.slane %v4110, 1
    %v4112 = vmax.f32 %v4110, %v4111
    %v4113 = vpack.i.bf16 %v4112, %v4112
    %v4115 = vsel %vm317, %v4061, 4286644096
    %v4118 = vsel %vm317, %v4062, 4286644096
    %v4120 = vmax.bf16 %v4115, %v4118
    %v4122 = vsel %vm317, %v4063, 4286644096
    %v4124 = vmax.bf16 %v4120, %v4122
    %v4126 = vsel %vm317, %v4064, 4286644096
    %v4128 = vmax.bf16 %v4124, %v4126
    %v4129 = vunpack.i.l.bf16 %v4128
    %v4130 = vunpack.i.h.bf16 %v4128
    %v4131 = vmax.f32 %v4129, %v4130
    %v4132 = vrot.slane %v4131, 4
    %v4133 = vmax.f32 %v4131, %v4132
    %v4134 = vrot.slane %v4133, 2
    %v4135 = vmax.f32 %v4133, %v4134
    %v4136 = vrot.slane %v4135, 1
    %v4137 = vmax.f32 %v4135, %v4136
    %v4138 = vpack.i.bf16 %v4137, %v4137
    %v4140 = vsel %vm317, %v4065, 4286644096
    %v4143 = vsel %vm317, %v4066, 4286644096
    %v4145 = vmax.bf16 %v4140, %v4143
    %v4147 = vsel %vm317, %v4067, 4286644096
    %v4149 = vmax.bf16 %v4145, %v4147
    %v4151 = vsel %vm317, %v4068, 4286644096
    %v4153 = vmax.bf16 %v4149, %v4151
    %v4154 = vunpack.i.l.bf16 %v4153
    %v4155 = vunpack.i.h.bf16 %v4153
    %v4156 = vmax.f32 %v4154, %v4155
    %v4157 = vrot.slane %v4156, 4
    %v4158 = vmax.f32 %v4156, %v4157
    %v4159 = vrot.slane %v4158, 2
    %v4160 = vmax.f32 %v4158, %v4159
    %v4161 = vrot.slane %v4160, 1
    %v4162 = vmax.f32 %v4160, %v4161
    %v4163 = vpack.i.bf16 %v4162, %v4162
    %v4165 = vsel %vm317, %v4069, 4286644096
    %v4168 = vsel %vm317, %v4070, 4286644096
    %v4170 = vmax.bf16 %v4165, %v4168
    %v4172 = vsel %vm317, %v4071, 4286644096
    %v4174 = vmax.bf16 %v4170, %v4172
    %v4176 = vsel %vm317, %v4072, 4286644096
    %v4178 = vmax.bf16 %v4174, %v4176
    %v4179 = vunpack.i.l.bf16 %v4178
    %v4180 = vunpack.i.h.bf16 %v4178
    %v4181 = vmax.f32 %v4179, %v4180
    %v4182 = vrot.slane %v4181, 4
    %v4183 = vmax.f32 %v4181, %v4182
    %v4184 = vrot.slane %v4183, 2
    %v4185 = vmax.f32 %v4183, %v4184
    %v4186 = vrot.slane %v4185, 1
    %v4187 = vmax.f32 %v4185, %v4186
    %v4188 = vpack.i.bf16 %v4187, %v4187
    %v4190 = vsel %vm317, %v4073, 4286644096
    %v4193 = vsel %vm317, %v4074, 4286644096
    %v4195 = vmax.bf16 %v4190, %v4193
    %v4197 = vsel %vm317, %v4075, 4286644096
    %v4199 = vmax.bf16 %v4195, %v4197
    %v4201 = vsel %vm317, %v4076, 4286644096
    %v4203 = vmax.bf16 %v4199, %v4201
    %v4204 = vunpack.i.l.bf16 %v4203
    %v4205 = vunpack.i.h.bf16 %v4203
    %v4206 = vmax.f32 %v4204, %v4205
    %v4207 = vrot.slane %v4206, 4
    %v4208 = vmax.f32 %v4206, %v4207
    %v4209 = vrot.slane %v4208, 2
    %v4210 = vmax.f32 %v4208, %v4209
    %v4211 = vrot.slane %v4210, 1
    %v4212 = vmax.f32 %v4210, %v4211
    %v4213 = vpack.i.bf16 %v4212, %v4212
    %v4215 = vsel %vm317, %v4077, 4286644096
    %v4218 = vsel %vm317, %v4078, 4286644096
    %v4220 = vmax.bf16 %v4215, %v4218
    %v4222 = vsel %vm317, %v4079, 4286644096
    %v4224 = vmax.bf16 %v4220, %v4222
    %v4226 = vsel %vm317, %v4080, 4286644096
    %v4228 = vmax.bf16 %v4224, %v4226
    %v4229 = vunpack.i.l.bf16 %v4228
    %v4230 = vunpack.i.h.bf16 %v4228
    %v4231 = vmax.f32 %v4229, %v4230
    %v4232 = vrot.slane %v4231, 4
    %v4233 = vmax.f32 %v4231, %v4232
    %v4234 = vrot.slane %v4233, 2
    %v4235 = vmax.f32 %v4233, %v4234
    %v4236 = vrot.slane %v4235, 1
    %v4237 = vmax.f32 %v4235, %v4236
    %v4238 = vpack.i.bf16 %v4237, %v4237
    %v4240 = vsel %vm317, %v4081, 4286644096
    %v4243 = vsel %vm317, %v4082, 4286644096
    %v4245 = vmax.bf16 %v4240, %v4243
    %v4247 = vsel %vm317, %v4083, 4286644096
    %v4249 = vmax.bf16 %v4245, %v4247
    %v4251 = vsel %vm317, %v4084, 4286644096
    %v4253 = vmax.bf16 %v4249, %v4251
    %v4254 = vunpack.i.l.bf16 %v4253
    %v4255 = vunpack.i.h.bf16 %v4253
    %v4256 = vmax.f32 %v4254, %v4255
    %v4257 = vrot.slane %v4256, 4
    %v4258 = vmax.f32 %v4256, %v4257
    %v4259 = vrot.slane %v4258, 2
    %v4260 = vmax.f32 %v4258, %v4259
    %v4261 = vrot.slane %v4260, 1
    %v4262 = vmax.f32 %v4260, %v4261
    %v4263 = vpack.i.bf16 %v4262, %v4262
    %v4265 = vsel %vm317, %v4085, 4286644096
    %v4268 = vsel %vm317, %v4086, 4286644096
    %v4270 = vmax.bf16 %v4265, %v4268
    %v4272 = vsel %vm317, %v4087, 4286644096
    %v4274 = vmax.bf16 %v4270, %v4272
    %v4276 = vsel %vm317, %v4088, 4286644096
    %v4278 = vmax.bf16 %v4274, %v4276
    %v4279 = vunpack.i.l.bf16 %v4278
    %v4280 = vunpack.i.h.bf16 %v4278
    %v4281 = vmax.f32 %v4279, %v4280
    %v4282 = vrot.slane %v4281, 4
    %v4283 = vmax.f32 %v4281, %v4282
    %v4284 = vrot.slane %v4283, 2
    %v4285 = vmax.f32 %v4283, %v4284
    %v4286 = vrot.slane %v4285, 1
    %v4287 = vmax.f32 %v4285, %v4286
    %v4288 = vpack.i.bf16 %v4287, %v4287
    %v4289 = vunpack.c.l.bf16 %v4113
    %v4290 = vunpack.c.l.bf16 %v4138
    %v4291 = vunpack.c.l.bf16 %v4163
    %v4292 = vunpack.c.l.bf16 %v4188
    %v4293 = vunpack.c.l.bf16 %v4213
    %v4294 = vunpack.c.l.bf16 %v4238
    %v4295 = vunpack.c.l.bf16 %v4263
    %v4296 = vunpack.c.l.bf16 %v4288
    %4297 = vset.pattern.permute.xlu0 1
    %4298 = vperm.xlu0 %4297, %v1988
    %v4299 = vpop.permute.xlu0 %4298
    %v4300 = vrot.slane %v4299, 1
    %v4301 = vrot.slane %v4299, 2
    %v4302 = vrot.slane %v4299, 3
    %v4303 = vrot.slane %v4299, 4
    %v4304 = vrot.slane %v4299, 5
    %v4305 = vrot.slane %v4299, 6
    %v4306 = vrot.slane %v4299, 7
    %v4315 = vmul.f32 %v4289, %v4299
    %v4316 = vmul.f32 %v4290, %v4300
    %v4317 = vmul.f32 %v4291, %v4301
    %v4318 = vmul.f32 %v4292, %v4302
    %v4319 = vmul.f32 %v4293, %v4303
    %v4320 = vmul.f32 %v4294, %v4304
    %v4321 = vmul.f32 %v4295, %v4305
    %v4322 = vmul.f32 %v4296, %v4306
    %v4323 = vpack.c.bf16 %v4315, %v4315
    %v4324 = vpack.c.bf16 %v4316, %v4316
    %v4325 = vpack.c.bf16 %v4317, %v4317
    %v4326 = vpack.c.bf16 %v4318, %v4318
    %v4327 = vpack.c.bf16 %v4319, %v4319
    %v4328 = vpack.c.bf16 %v4320, %v4320
    %v4329 = vpack.c.bf16 %v4321, %v4321
    %v4330 = vpack.c.bf16 %v4322, %v4322
    %v4339 = vunpack.c.l.b16 %v3153
    %v4340 = vunpack.c.l.b16 %v3154
    %v4341 = vunpack.c.l.b16 %v3155
    %v4342 = vunpack.c.l.b16 %v3156
    %v4343 = vunpack.c.l.b16 %v3157
    %v4344 = vunpack.c.l.b16 %v3158
    %v4345 = vunpack.c.l.b16 %v3159
    %v4346 = vunpack.c.l.b16 %v3160
    %v4347 = vrot.slane %v4340, 7
    %v4348 = vsel %vm1949, %v4347, %v4339
    %v4349 = vrot.slane %v4341, 6
    %v4350 = vsel %vm1951, %v4349, %v4348
    %v4351 = vrot.slane %v4342, 5
    %v4352 = vsel %vm1953, %v4351, %v4350
    %v4353 = vrot.slane %v4343, 4
    %v4354 = vsel %vm1955, %v4353, %v4352
    %v4355 = vrot.slane %v4344, 3
    %v4356 = vsel %vm1957, %v4355, %v4354
    %v4357 = vrot.slane %v4345, 2
    %v4358 = vsel %vm1959, %v4357, %v4356
    %v4359 = vrot.slane %v4346, 1
    %v4360 = vsel %vm1961, %v4359, %v4358
    %v4361 = vpack.c.b16 %v4360, %v4360
    %v4370 = vunpack.c.l.b16 %v4323
    %v4371 = vunpack.c.l.b16 %v4324
    %v4372 = vunpack.c.l.b16 %v4325
    %v4373 = vunpack.c.l.b16 %v4326
    %v4374 = vunpack.c.l.b16 %v4327
    %v4375 = vunpack.c.l.b16 %v4328
    %v4376 = vunpack.c.l.b16 %v4329
    %v4377 = vunpack.c.l.b16 %v4330
    %v4378 = vrot.slane %v4371, 7
    %v4379 = vsel %vm1949, %v4378, %v4370
    %v4380 = vrot.slane %v4372, 6
    %v4381 = vsel %vm1951, %v4380, %v4379
    %v4382 = vrot.slane %v4373, 5
    %v4383 = vsel %vm1953, %v4382, %v4381
    %v4384 = vrot.slane %v4374, 4
    %v4385 = vsel %vm1955, %v4384, %v4383
    %v4386 = vrot.slane %v4375, 3
    %v4387 = vsel %vm1957, %v4386, %v4385
    %v4388 = vrot.slane %v4376, 2
    %v4389 = vsel %vm1959, %v4388, %v4387
    %v4390 = vrot.slane %v4377, 1
    %v4391 = vsel %vm1961, %v4390, %v4389
    %v4392 = vpack.c.b16 %v4391, %v4391
    %4393 = vrot.lane.b32.xlu0 %v4392, 64
    %v4394 = vpop.permute.xlu0 %4393
    %v4397 = vsel %vm317, %v4361, %v4394
    %v4399 = vld [vmem:[#allocation7] sm:$0xf]
    %v4400 = vld [vmem:[#allocation7 + $0x4] sm:$0xf]
    %v4401 = vld [vmem:[#allocation7 + $0x8] sm:$0xf]
    %v4402 = vld [vmem:[#allocation7 + $0xc] sm:$0xf]
    %v4403 = vld [vmem:[#allocation7 + $0x10] sm:$0xf]
    %v4404 = vld [vmem:[#allocation7 + $0x14] sm:$0xf]
    %v4405 = vld [vmem:[#allocation7 + $0x18] sm:$0xf]
    %v4406 = vld [vmem:[#allocation7 + $0x1c] sm:$0xf]
    %v4407 = vld [vmem:[#allocation7 + $0x20] sm:$0xf]
    %v4408 = vld [vmem:[#allocation7 + $0x24] sm:$0xf]
    %v4409 = vld [vmem:[#allocation7 + $0x28] sm:$0xf]
    %v4410 = vld [vmem:[#allocation7 + $0x2c] sm:$0xf]
    %v4411 = vld [vmem:[#allocation7 + $0x30] sm:$0xf]
    %v4412 = vld [vmem:[#allocation7 + $0x34] sm:$0xf]
    %v4413 = vld [vmem:[#allocation7 + $0x38] sm:$0xf]
    %v4414 = vld [vmem:[#allocation7 + $0x3c] sm:$0xf]
    %v4431 = vunpack.c.l.b16 %v4399
    %v4432 = vunpack.c.l.b16 %v4400
    %v4433 = vunpack.c.l.b16 %v4401
    %v4434 = vunpack.c.l.b16 %v4402
    %v4435 = vunpack.c.l.b16 %v4403
    %v4436 = vunpack.c.l.b16 %v4404
    %v4437 = vunpack.c.l.b16 %v4405
    %v4438 = vunpack.c.l.b16 %v4406
    %v4439 = vunpack.c.l.b16 %v4407
    %v4440 = vunpack.c.l.b16 %v4408
    %v4441 = vunpack.c.l.b16 %v4409
    %v4442 = vunpack.c.l.b16 %v4410
    %v4443 = vunpack.c.l.b16 %v4411
    %v4444 = vunpack.c.l.b16 %v4412
    %v4445 = vunpack.c.l.b16 %v4413
    %v4446 = vunpack.c.l.b16 %v4414
    %v4447 = vpack.c.b16 %v4432, %v4431
    %v4448 = vpack.c.b16 %v4434, %v4433
    %v4449 = vpack.c.b16 %v4436, %v4435
    %v4450 = vpack.c.b16 %v4438, %v4437
    %v4451 = vpack.c.b16 %v4440, %v4439
    %v4452 = vpack.c.b16 %v4442, %v4441
    %v4453 = vpack.c.b16 %v4444, %v4443
    %v4454 = vpack.c.b16 %v4446, %v4445
    %4463 = vmatprep.subr.bf16.mxu0 0
    %4464 = vmatpush1.bf16.msra.mxu0 %v4454
    %4465 = vmatprep.subr.bf16.mxu0 0
    %4466 = vmatpush1.bf16.msra.mxu0 %v4453
    %4467 = vmatprep.subr.bf16.mxu0 0
    %4468 = vmatpush1.bf16.msra.mxu0 %v4452
    %4469 = vmatprep.subr.bf16.mxu0 0
    %4470 = vmatpush1.bf16.msra.mxu0 %v4451
    %4471 = vmatprep.subr.bf16.mxu0 0
    %4472 = vmatpush1.bf16.msra.mxu0 %v4450
    %4473 = vmatprep.subr.bf16.mxu0 0
    %4474 = vmatpush1.bf16.msra.mxu0 %v4449
    %4475 = vmatprep.subr.bf16.mxu0 0
    %4476 = vmatpush1.bf16.msra.mxu0 %v4448
    %4477 = vmatprep.subr.bf16.mxu0 0
    %4478 = vmatpush1.bf16.msra.mxu0 %v4447
    %4479 = vmatprep.subr.bf16.mxu0 0
    %4480 = vmatpush2.bf16.msra.mxu0 0
    %4481 = vmatprep.subr.bf16.mxu0 0
    %4482 = vmatpush2.bf16.msra.mxu0 0
    %4483 = vmatprep.subr.bf16.mxu0 0
    %4484 = vmatpush2.bf16.msra.mxu0 0
    %4485 = vmatprep.subr.bf16.mxu0 0
    %4486 = vmatpush2.bf16.msra.mxu0 0
    %4487 = vmatprep.subr.bf16.mxu0 0
    %4488 = vmatpush2.bf16.msra.mxu0 0
    %4489 = vmatprep.subr.bf16.mxu0 0
    %4490 = vmatpush2.bf16.msra.mxu0 0
    %4491 = vmatprep.subr.bf16.mxu0 0
    %4492 = vmatpush2.bf16.msra.mxu0 0
    %4493 = vmatprep.subr.bf16.mxu0 0
    %4494 = vmatpush2.bf16.msra.mxu0 0
    %4495 = vmatprep.mubr.bf16.mxu0 0
    %4496 = vmatmul.mubr.bf16.gmra.mxu0 %v4397
    %v4497 = vpop.f32.mrf.mxu0
    %v4498 = vadd.f32 0.0, %v4497
    %v4499 = vpop.f32.mrf.mxu0
    %v4500 = vpop.f32.mrf.mxu0
    %v4501 = vpop.f32.mrf.mxu0
    %4502 = vdwg.mxu0
    %4503 = vst [vmem:[#allocation9] sm:$0xff] %v4498
    // Predicated region
    $region30: #{tpu_custom_call.1} parent=1 // pred_check
      _
    $region31: #{tpu_custom_call.1} parent=1 // pred_check_branch
      %4505 = sbr.rel (0) target = $region33
    $region32: #{tpu_custom_call.1} parent=1 // pred_region
      %s4507 = ssub.s32 128, 128
      %4508 = vsyncadd [#allocation4], %s4507
      %s4510 = sshll.u32 [#allocation9], 4
      %s4511 = int_to_ptr.vmem [resolvable:$true] %s4510
      %4513 = dma.vmem_to_hbm [thread:$0]  %s4511, 128, %s4, [#allocation4]
    $region33: #{tpu_custom_call.1} parent=1 // pred_fallthru
      _
    // Predicated region
    $region34: #{tpu_custom_call.1} parent=1 // pred_check
      _
    $region35: #{tpu_custom_call.1} parent=1 // pred_check_branch
      %4515 = sbr.rel (0) target = $region37
    $region36: #{tpu_custom_call.1} parent=1 // pred_region
      %4516 = dma.done [#allocation4], 128
    $region37: #{tpu_custom_call.1} parent=1 // pred_fallthru
      _
    %4517 = vsyncpa [#allocation3], 1
    %4518 = vsyncpa [#allocation8], 1
    %4519 = vsyncpa [#allocation4], 1
    %4520 = vsyncpa [#allocation5], 1

// kernel: tpu_custom_call.1
$region0: #{tpu_custom_call.1}
  #allocation0 [shape = 'u32[]', space=smem, size = 0x4, offset = 0x4, fixed_abs, tag = 'smem constant byte address 0x4 - core index']
  #allocation1 [shape = 'u32[144,128]{1,0:T(1,128)}', space=vmem, size = 0x12000, scoped, tag = 'internal scratch']
  %s0 = inlined_call_operand.vmem [shape: f32[2], index: 0, kind: input, shape index: {}]
  %s1 = inlined_call_operand.hbm [shape: bf16[8,64,64], index: 1, kind: input, shape index: {}]
  %s2 = inlined_call_operand.vmem [shape: bf16[64,2], index: 2, kind: input, shape index: {}]
  %s3 = inlined_call_operand.hbm [shape: bf16[128,128], index: 3, kind: input, shape index: {}]
  %s4 = inlined_call_operand.hbm [shape: f32[8,128], index: 4, kind: output, shape index: {}]
  %s5 = sld [smem:[#allocation0]]
  $region38: #{tpu_custom_call.1} parent=0
    _
  %s7 = ssub.s32 1, %s5
  %s8 = scalar_select 0, %s7, %s5
  $region1: #{tpu_custom_call.1} parent=0
    #allocation2 [shape = 'u8[512]{0}', space=smem, size = 0x200, scoped, tag = 'input window, operand 0, single buffered']
    #allocation3 [shape = 's32[1]{0}', space=sflag, size = 0x4, scoped, tag = 'scoped memory for tpu_custom_call.1']
    #allocation4 [shape = 's32[1]{0}', space=sflag, size = 0x4, scoped, tag = 'scoped memory for tpu_custom_call.1']
    #allocation5 [shape = 's32[1]{0}', space=sflag, size = 0x4, scoped, tag = 'scoped memory for tpu_custom_call.1']
    #allocation6 [shape = 'u8[131072]{0}', space=vmem, size = 0x20000, scoped, tag = 'input window, operand 1, single buffered']
    #allocation7 [shape = 'u8[32768]{0}', space=vmem, size = 0x8000, scoped, tag = 'input window, operand 3, single buffered']
    #allocation8 [shape = 's32[1]{0}', space=sflag, size = 0x4, scoped, tag = 'scoped memory for tpu_custom_call.1']
    #allocation9 [shape = 'u8[4096]{0}', space=vmem, size = 0x1000, scoped, tag = 'output window, operand 0, single buffered']
    %9 = vsyncpa [#allocation5], 0
    %10 = vsyncpa [#allocation3], 0
    %11 = vsyncpa [#allocation8], 0
    %12 = vsyncpa [#allocation4], 0
    // Predicated region
    $region2: #{tpu_custom_call.1} parent=1 // pred_check
      _
    $region3: #{tpu_custom_call.1} parent=1 // pred_check_branch
      %14 = sbr.rel (0) target = $region5
    $region4: #{tpu_custom_call.1} parent=1 // pred_region
      %s16 = ssub.s32 16, 16
      %17 = vsyncadd [#allocation5], %s16
      %s19 = sshll.u32 %s0, 4
      %s20 = int_to_ptr.vmem [resolvable:$true] %s19
      %22 = dma.vmem_to_smem %s20, 16, [#allocation2], [#allocation5]
    $region5: #{tpu_custom_call.1} parent=1 // pred_fallthru
      _
    // Predicated region
    $region6: #{tpu_custom_call.1} parent=1 // pred_check
      _
    $region7: #{tpu_custom_call.1} parent=1 // pred_check_branch
      %24 = sbr.rel (0) target = $region9
    $region8: #{tpu_custom_call.1} parent=1 // pred_region
      %s26 = ssub.s32 4096, 4096
      %27 = vsyncadd [#allocation3], %s26
      %s28 = sshll.u32 [#allocation6], 4
      %s29 = int_to_ptr.vmem [resolvable:$true] %s28
      %34 = dma.hbm_to_vmem [thread:$0]  %s1, 4096, %s29, [#allocation3], 64, 64, 4
    $region9: #{tpu_custom_call.1} parent=1 // pred_fallthru
      _
    // Predicated region
    $region10: #{tpu_custom_call.1} parent=1 // pred_check
      _
    $region11: #{tpu_custom_call.1} parent=1 // pred_check_branch
      %36 = sbr.rel (0) target = $region13
    $region12: #{tpu_custom_call.1} parent=1 // pred_region
      _
    $region13: #{tpu_custom_call.1} parent=1 // pred_fallthru
      _
    // Predicated region
    $region14: #{tpu_custom_call.1} parent=1 // pred_check
      _
    $region15: #{tpu_custom_call.1} parent=1 // pred_check_branch
      %38 = sbr.rel (0) target = $region17
    $region16: #{tpu_custom_call.1} parent=1 // pred_region
      %s40 = ssub.s32 1024, 1024
      %41 = vsyncadd [#allocation8], %s40
      %s42 = sshll.u32 [#allocation7], 4
      %s43 = int_to_ptr.vmem [resolvable:$true] %s42
      %48 = dma.hbm_to_vmem [thread:$0]  %s3, 1024, %s43, [#allocation8], 64, 64, 4
    $region17: #{tpu_custom_call.1} parent=1 // pred_fallthru
      _
    // Predicated region
    $region18: #{tpu_custom_call.1} parent=1 // pred_check
      _
    $region19: #{tpu_custom_call.1} parent=1 // pred_check_branch
      %50 = sbr.rel (0) target = $region21
    $region20: #{tpu_custom_call.1} parent=1 // pred_region
      %51 = dma.done [#allocation5], 16
    $region21: #{tpu_custom_call.1} parent=1 // pred_fallthru
      _
    // Predicated region
    $region22: #{tpu_custom_call.1} parent=1 // pred_check
      _
    $region23: #{tpu_custom_call.1} parent=1 // pred_check_branch
      %53 = sbr.rel (0) target = $region25
    $region24: #{tpu_custom_call.1} parent=1 // pred_region
      %54 = dma.done [#allocation3], 4096
    $region25: #{tpu_custom_call.1} parent=1 // pred_fallthru
      _
    // Predicated region
    $region26: #{tpu_custom_call.1} parent=1 // pred_check
      _
    $region27: #{tpu_custom_call.1} parent=1 // pred_check_branch
      %56 = sbr.rel (0) target = $region29
    $region28: #{tpu_custom_call.1} parent=1 // pred_region
      %57 = dma.done [#allocation8], 1024
    $region29: #{tpu_custom_call.1} parent=1 // pred_fallthru
      _
    %58 = sfence
    %v61 = vld [vmem:[#allocation6] sm:$0xf]
    %v62 = vld [vmem:[#allocation6 + $0x4] sm:$0xf]
    %v63 = vld [vmem:[#allocation6 + $0x8] sm:$0xf]
    %v64 = vld [vmem:[#allocation6 + $0xc] sm:$0xf]
    %v65 = vld [vmem:[#allocation6 + $0x10] sm:$0xf]
    %v66 = vld [vmem:[#allocation6 + $0x14] sm:$0xf]
    %v67 = vld [vmem:[#allocation6 + $0x18] sm:$0xf]
    %v68 = vld [vmem:[#allocation6 + $0x1c] sm:$0xf]
    %v69 = vld [vmem:[#allocation6 + $0x20] sm:$0xf]
    %v70 = vld [vmem:[#allocation6 + $0x24] sm:$0xf]
    %v71 = vld [vmem:[#allocation6 + $0x28] sm:$0xf]
    %v72 = vld [vmem:[#allocation6 + $0x2c] sm:$0xf]
    %v73 = vld [vmem:[#allocation6 + $0x30] sm:$0xf]
    %v74 = vld [vmem:[#allocation6 + $0x34] sm:$0xf]
    %v75 = vld [vmem:[#allocation6 + $0x38] sm:$0xf]
    %v76 = vld [vmem:[#allocation6 + $0x3c] sm:$0xf]
    %v77 = vld [vmem:[#allocation6 + $0x40] sm:$0xf]
    %v78 = vld [vmem:[#allocation6 + $0x44] sm:$0xf]
    %v79 = vld [vmem:[#allocation6 + $0x48] sm:$0xf]
    %v80 = vld [vmem:[#allocation6 + $0x4c] sm:$0xf]
    %v81 = vld [vmem:[#allocation6 + $0x50] sm:$0xf]
    %v82 = vld [vmem:[#allocation6 + $0x54] sm:$0xf]
    %v83 = vld [vmem:[#allocation6 + $0x58] sm:$0xf]
    %v84 = vld [vmem:[#allocation6 + $0x5c] sm:$0xf]
    %v85 = vld [vmem:[#allocation6 + $0x60] sm:$0xf]
    %v86 = vld [vmem:[#allocation6 + $0x64] sm:$0xf]
    %v87 = vld [vmem:[#allocation6 + $0x68] sm:$0xf]
    %v88 = vld [vmem:[#allocation6 + $0x6c] sm:$0xf]
    %v89 = vld [vmem:[#allocation6 + $0x70] sm:$0xf]
    %v90 = vld [vmem:[#allocation6 + $0x74] sm:$0xf]
    %v91 = vld [vmem:[#allocation6 + $0x78] sm:$0xf]
    %v92 = vld [vmem:[#allocation6 + $0x7c] sm:$0xf]
    %v93 = vld [vmem:[#allocation6 + $0x80] sm:$0xf]
    %v94 = vld [vmem:[#allocation6 + $0x84] sm:$0xf]
    %v95 = vld [vmem:[#allocation6 + $0x88] sm:$0xf]
    %v96 = vld [vmem:[#allocation6 + $0x8c] sm:$0xf]
    %v97 = vld [vmem:[#allocation6 + $0x90] sm:$0xf]
    %v98 = vld [vmem:[#allocation6 + $0x94] sm:$0xf]
    %v99 = vld [vmem:[#allocation6 + $0x98] sm:$0xf]
    %v100 = vld [vmem:[#allocation6 + $0x9c] sm:$0xf]
    %v101 = vld [vmem:[#allocation6 + $0xa0] sm:$0xf]
    %v102 = vld [vmem:[#allocation6 + $0xa4] sm:$0xf]
    %v103 = vld [vmem:[#allocation6 + $0xa8] sm:$0xf]
    %v104 = vld [vmem:[#allocation6 + $0xac] sm:$0xf]
    %v105 = vld [vmem:[#allocation6 + $0xb0] sm:$0xf]
    %v106 = vld [vmem:[#allocation6 + $0xb4] sm:$0xf]
    %v107 = vld [vmem:[#allocation6 + $0xb8] sm:$0xf]
    %v108 = vld [vmem:[#allocation6 + $0xbc] sm:$0xf]
    %v109 = vld [vmem:[#allocation6 + $0xc0] sm:$0xf]
    %v110 = vld [vmem:[#allocation6 + $0xc4] sm:$0xf]
    %v111 = vld [vmem:[#allocation6 + $0xc8] sm:$0xf]
    %v112 = vld [vmem:[#allocation6 + $0xcc] sm:$0xf]
    %v113 = vld [vmem:[#allocation6 + $0xd0] sm:$0xf]
    %v114 = vld [vmem:[#allocation6 + $0xd4] sm:$0xf]
    %v115 = vld [vmem:[#allocation6 + $0xd8] sm:$0xf]
    %v116 = vld [vmem:[#allocation6 + $0xdc] sm:$0xf]
    %v117 = vld [vmem:[#allocation6 + $0xe0] sm:$0xf]
    %v118 = vld [vmem:[#allocation6 + $0xe4] sm:$0xf]
    %v119 = vld [vmem:[#allocation6 + $0xe8] sm:$0xf]
    %v120 = vld [vmem:[#allocation6 + $0xec] sm:$0xf]
    %v121 = vld [vmem:[#allocation6 + $0xf0] sm:$0xf]
    %v122 = vld [vmem:[#allocation6 + $0xf4] sm:$0xf]
    %v123 = vld [vmem:[#allocation6 + $0xf8] sm:$0xf]
    %v124 = vld [vmem:[#allocation6 + $0xfc] sm:$0xf]
    %v125 = vld [vmem:[%s2] sm:$0xf]
    %v126 = vld [vmem:[%s2 + $0x4] sm:$0xf]
    %v127 = vld [vmem:[%s2 + $0x8] sm:$0xf]
    %v128 = vld [vmem:[%s2 + $0xc] sm:$0xf]
    %v129 = vld [vmem:[%s2 + $0x10] sm:$0xf]
    %v130 = vld [vmem:[%s2 + $0x14] sm:$0xf]
    %v131 = vld [vmem:[%s2 + $0x18] sm:$0xf]
    %v132 = vld [vmem:[%s2 + $0x1c] sm:$0xf]
    %v197 = vunpack.c.l.b16 %v61
    %v198 = vunpack.c.l.b16 %v62
    %v199 = vunpack.c.l.b16 %v63
    %v200 = vunpack.c.l.b16 %v64
    %v201 = vunpack.c.l.b16 %v65
    %v202 = vunpack.c.l.b16 %v66
    %v203 = vunpack.c.l.b16 %v67
    %v204 = vunpack.c.l.b16 %v68
    %v205 = vunpack.c.l.b16 %v69
    %v206 = vunpack.c.l.b16 %v70
    %v207 = vunpack.c.l.b16 %v71
    %v208 = vunpack.c.l.b16 %v72
    %v209 = vunpack.c.l.b16 %v73
    %v210 = vunpack.c.l.b16 %v74
    %v211 = vunpack.c.l.b16 %v75
    %v212 = vunpack.c.l.b16 %v76
    %v213 = vunpack.c.l.b16 %v77
    %v214 = vunpack.c.l.b16 %v78
    %v215 = vunpack.c.l.b16 %v79
    %v216 = vunpack.c.l.b16 %v80
    %v217 = vunpack.c.l.b16 %v81
    %v218 = vunpack.c.l.b16 %v82
    %v219 = vunpack.c.l.b16 %v83
    %v220 = vunpack.c.l.b16 %v84
    %v221 = vunpack.c.l.b16 %v85
    %v222 = vunpack.c.l.b16 %v86
    %v223 = vunpack.c.l.b16 %v87
    %v224 = vunpack.c.l.b16 %v88
    %v225 = vunpack.c.l.b16 %v89
    %v226 = vunpack.c.l.b16 %v90
    %v227 = vunpack.c.l.b16 %v91
    %v228 = vunpack.c.l.b16 %v92
    %v229 = vunpack.c.l.b16 %v93
    %v230 = vunpack.c.l.b16 %v94
    %v231 = vunpack.c.l.b16 %v95
    %v232 = vunpack.c.l.b16 %v96
    %v233 = vunpack.c.l.b16 %v97
    %v234 = vunpack.c.l.b16 %v98
    %v235 = vunpack.c.l.b16 %v99
    %v236 = vunpack.c.l.b16 %v100
    %v237 = vunpack.c.l.b16 %v101
    %v238 = vunpack.c.l.b16 %v102
    %v239 = vunpack.c.l.b16 %v103
    %v240 = vunpack.c.l.b16 %v104
    %v241 = vunpack.c.l.b16 %v105
    %v242 = vunpack.c.l.b16 %v106
    %v243 = vunpack.c.l.b16 %v107
    %v244 = vunpack.c.l.b16 %v108
    %v245 = vunpack.c.l.b16 %v109
    %v246 = vunpack.c.l.b16 %v110
    %v247 = vunpack.c.l.b16 %v111
    %v248 = vunpack.c.l.b16 %v112
    %v249 = vunpack.c.l.b16 %v113
    %v250 = vunpack.c.l.b16 %v114
    %v251 = vunpack.c.l.b16 %v115
    %v252 = vunpack.c.l.b16 %v116
    %v253 = vunpack.c.l.b16 %v117
    %v254 = vunpack.c.l.b16 %v118
    %v255 = vunpack.c.l.b16 %v119
    %v256 = vunpack.c.l.b16 %v120
    %v257 = vunpack.c.l.b16 %v121
    %v258 = vunpack.c.l.b16 %v122
    %v259 = vunpack.c.l.b16 %v123
    %v260 = vunpack.c.l.b16 %v124
    %v261 = vpack.c.b16 %v198, %v197
    %v262 = vpack.c.b16 %v200, %v199
    %v263 = vpack.c.b16 %v202, %v201
    %v264 = vpack.c.b16 %v204, %v203
    %v265 = vpack.c.b16 %v206, %v205
    %v266 = vpack.c.b16 %v208, %v207
    %v267 = vpack.c.b16 %v210, %v209
    %v268 = vpack.c.b16 %v212, %v211
    %v269 = vpack.c.b16 %v214, %v213
    %v270 = vpack.c.b16 %v216, %v215
    %v271 = vpack.c.b16 %v218, %v217
    %v272 = vpack.c.b16 %v220, %v219
    %v273 = vpack.c.b16 %v222, %v221
    %v274 = vpack.c.b16 %v224, %v223
    %v275 = vpack.c.b16 %v226, %v225
    %v276 = vpack.c.b16 %v228, %v227
    %v277 = vpack.c.b16 %v230, %v229
    %v278 = vpack.c.b16 %v232, %v231
    %v279 = vpack.c.b16 %v234, %v233
    %v280 = vpack.c.b16 %v236, %v235
    %v281 = vpack.c.b16 %v238, %v237
    %v282 = vpack.c.b16 %v240, %v239
    %v283 = vpack.c.b16 %v242, %v241
    %v284 = vpack.c.b16 %v244, %v243
    %v285 = vpack.c.b16 %v246, %v245
    %v286 = vpack.c.b16 %v248, %v247
    %v287 = vpack.c.b16 %v250, %v249
    %v288 = vpack.c.b16 %v252, %v251
    %v289 = vpack.c.b16 %v254, %v253
    %v290 = vpack.c.b16 %v256, %v255
    %v291 = vpack.c.b16 %v258, %v257
    %v292 = vpack.c.b16 %v260, %v259
    %v301 = vunpack.c.l.b16 %v125
    %v302 = vunpack.c.l.b16 %v126
    %v303 = vunpack.c.l.b16 %v127
    %v304 = vunpack.c.l.b16 %v128
    %v305 = vunpack.c.l.b16 %v129
    %v306 = vunpack.c.l.b16 %v130
    %v307 = vunpack.c.l.b16 %v131
    %v308 = vunpack.c.l.b16 %v132
    %v309 = vpack.c.b16 %v302, %v301
    %v310 = vpack.c.b16 %v304, %v303
    %v311 = vpack.c.b16 %v306, %v305
    %v312 = vpack.c.b16 %v308, %v307
    %vm317 = vcmask 523264
    %v319 = vsel %vm317, %v261, 0
    %v322 = vsel %vm317, %v262, 0
    %v325 = vsel %vm317, %v263, 0
    %v328 = vsel %vm317, %v264, 0
    %v331 = vsel %vm317, %v265, 0
    %v334 = vsel %vm317, %v266, 0
    %v337 = vsel %vm317, %v267, 0
    %v340 = vsel %vm317, %v268, 0
    %v343 = vsel %vm317, %v269, 0
    %v346 = vsel %vm317, %v270, 0
    %v349 = vsel %vm317, %v271, 0
    %v352 = vsel %vm317, %v272, 0
    %v355 = vsel %vm317, %v273, 0
    %v358 = vsel %vm317, %v274, 0
    %v361 = vsel %vm317, %v275, 0
    %v364 = vsel %vm317, %v276, 0
    %v367 = vsel %vm317, %v277, 0
    %v370 = vsel %vm317, %v278, 0
    %v373 = vsel %vm317, %v279, 0
    %v376 = vsel %vm317, %v280, 0
    %v379 = vsel %vm317, %v281, 0
    %v382 = vsel %vm317, %v282, 0
    %v385 = vsel %vm317, %v283, 0
    %v388 = vsel %vm317, %v284, 0
    %v391 = vsel %vm317, %v285, 0
    %v394 = vsel %vm317, %v286, 0
    %v397 = vsel %vm317, %v287, 0
    %v400 = vsel %vm317, %v288, 0
    %v403 = vsel %vm317, %v289, 0
    %v406 = vsel %vm317, %v290, 0
    %v409 = vsel %vm317, %v291, 0
    %v412 = vsel %vm317, %v292, 0
    %414 = vmatprep.subr.bf16.mxu0 0
    %415 = vmatpush1.bf16.msra.mxu0 0
    %416 = vmatprep.subr.bf16.mxu0 0
    %417 = vmatpush1.bf16.msra.mxu0 0
    %418 = vmatprep.subr.bf16.mxu0 0
    %419 = vmatpush1.bf16.msra.mxu0 0
    %420 = vmatprep.subr.bf16.mxu0 0
    %421 = vmatpush1.bf16.msra.mxu0 0
    %422 = vmatprep.subr.bf16.mxu0 0
    %423 = vmatpush1.bf16.msra.mxu0 %v312
    %424 = vmatprep.subr.bf16.mxu0 0
    %425 = vmatpush1.bf16.msra.mxu0 %v311
    %426 = vmatprep.subr.bf16.mxu0 0
    %427 = vmatpush1.bf16.msra.mxu0 %v310
    %428 = vmatprep.subr.bf16.mxu0 0
    %429 = vmatpush1.bf16.msra.mxu0 %v309
    %430 = vmatprep.subr.bf16.mxu0 0
    %431 = vmatpush2.bf16.msra.mxu0 0
    %432 = vmatprep.subr.bf16.mxu0 0
    %433 = vmatpush2.bf16.msra.mxu0 0
    %434 = vmatprep.subr.bf16.mxu0 0
    %435 = vmatpush2.bf16.msra.mxu0 0
    %436 = vmatprep.subr.bf16.mxu0 0
    %437 = vmatpush2.bf16.msra.mxu0 0
    %438 = vmatprep.subr.bf16.mxu0 0
    %439 = vmatpush2.bf16.msra.mxu0 0
    %440 = vmatprep.subr.bf16.mxu0 0
    %441 = vmatpush2.bf16.msra.mxu0 0
    %442 = vmatprep.subr.bf16.mxu0 0
    %443 = vmatpush2.bf16.msra.mxu0 0
    %444 = vmatprep.subr.bf16.mxu0 0
    %445 = vmatpush2.bf16.msra.mxu0 0
    %446 = vmatprep.mubr.bf16.mxu0 0
    %447 = vmatmul.mubr.bf16.gmra.mxu0 %v319
    %v448 = vpop.f32.mrf.mxu0
    %v449 = vadd.f32 0.0, %v448
    %v450 = vpop.f32.mrf.mxu0
    %v451 = vpop.f32.mrf.mxu0
    %v452 = vadd.f32 0.0, %v451
    %v453 = vpop.f32.mrf.mxu0
    %454 = vmatprep.mubr.bf16.mxu0 0
    %455 = vmatmul.mubr.bf16.gmra.mxu0 %v322
    %v456 = vpop.f32.mrf.mxu0
    %v457 = vadd.f32 0.0, %v456
    %v458 = vpop.f32.mrf.mxu0
    %v459 = vpop.f32.mrf.mxu0
    %v460 = vadd.f32 0.0, %v459
    %v461 = vpop.f32.mrf.mxu0
    %462 = vmatprep.mubr.bf16.mxu0 0
    %463 = vmatmul.mubr.bf16.gmra.mxu0 %v325
    %v464 = vpop.f32.mrf.mxu0
    %v465 = vadd.f32 0.0, %v464
    %v466 = vpop.f32.mrf.mxu0
    %v467 = vpop.f32.mrf.mxu0
    %v468 = vadd.f32 0.0, %v467
    %v469 = vpop.f32.mrf.mxu0
    %470 = vmatprep.mubr.bf16.mxu0 0
    %471 = vmatmul.mubr.bf16.gmra.mxu0 %v328
    %v472 = vpop.f32.mrf.mxu0
    %v473 = vadd.f32 0.0, %v472
    %v474 = vpop.f32.mrf.mxu0
    %v475 = vpop.f32.mrf.mxu0
    %v476 = vadd.f32 0.0, %v475
    %v477 = vpop.f32.mrf.mxu0
    %478 = vmatprep.mubr.bf16.mxu0 0
    %479 = vmatmul.mubr.bf16.gmra.mxu0 %v331
    %v480 = vpop.f32.mrf.mxu0
    %v481 = vadd.f32 0.0, %v480
    %v482 = vpop.f32.mrf.mxu0
    %v483 = vpop.f32.mrf.mxu0
    %v484 = vadd.f32 0.0, %v483
    %v485 = vpop.f32.mrf.mxu0
    %486 = vmatprep.mubr.bf16.mxu0 0
    %487 = vmatmul.mubr.bf16.gmra.mxu0 %v334
    %v488 = vpop.f32.mrf.mxu0
    %v489 = vadd.f32 0.0, %v488
    %v490 = vpop.f32.mrf.mxu0
    %v491 = vpop.f32.mrf.mxu0
    %v492 = vadd.f32 0.0, %v491
    %v493 = vpop.f32.mrf.mxu0
    %494 = vmatprep.mubr.bf16.mxu0 0
    %495 = vmatmul.mubr.bf16.gmra.mxu0 %v337
    %v496 = vpop.f32.mrf.mxu0
    %v497 = vadd.f32 0.0, %v496
    %v498 = vpop.f32.mrf.mxu0
    %v499 = vpop.f32.mrf.mxu0
    %v500 = vadd.f32 0.0, %v499
    %v501 = vpop.f32.mrf.mxu0
    %502 = vmatprep.mubr.bf16.mxu0 0
    %503 = vmatmul.mubr.bf16.gmra.mxu0 %v340
    %v504 = vpop.f32.mrf.mxu0
    %v505 = vadd.f32 0.0, %v504
    %v506 = vpop.f32.mrf.mxu0
    %v507 = vpop.f32.mrf.mxu0
    %v508 = vadd.f32 0.0, %v507
    %v509 = vpop.f32.mrf.mxu0
    %510 = vmatprep.mubr.bf16.mxu0 0
    %511 = vmatmul.mubr.bf16.gmra.mxu0 %v343
    %v512 = vpop.f32.mrf.mxu0
    %v513 = vadd.f32 0.0, %v512
    %v514 = vpop.f32.mrf.mxu0
    %v515 = vpop.f32.mrf.mxu0
    %v516 = vadd.f32 0.0, %v515
    %v517 = vpop.f32.mrf.mxu0
    %518 = vmatprep.mubr.bf16.mxu0 0
    %519 = vmatmul.mubr.bf16.gmra.mxu0 %v346
    %v520 = vpop.f32.mrf.mxu0
    %v521 = vadd.f32 0.0, %v520
    %v522 = vpop.f32.mrf.mxu0
    %v523 = vpop.f32.mrf.mxu0
    %v524 = vadd.f32 0.0, %v523
    %v525 = vpop.f32.mrf.mxu0
    %526 = vmatprep.mubr.bf16.mxu0 0
    %527 = vmatmul.mubr.bf16.gmra.mxu0 %v349
    %v528 = vpop.f32.mrf.mxu0
    %v529 = vadd.f32 0.0, %v528
    %v530 = vpop.f32.mrf.mxu0
    %v531 = vpop.f32.mrf.mxu0
    %v532 = vadd.f32 0.0, %v531
    %v533 = vpop.f32.mrf.mxu0
    %534 = vmatprep.mubr.bf16.mxu0 0
    %535 = vmatmul.mubr.bf16.gmra.mxu0 %v352
    %v536 = vpop.f32.mrf.mxu0
    %v537 = vadd.f32 0.0, %v536
    %v538 = vpop.f32.mrf.mxu0
    %v539 = vpop.f32.mrf.mxu0
    %v540 = vadd.f32 0.0, %v539
    %v541 = vpop.f32.mrf.mxu0
    %542 = vmatprep.mubr.bf16.mxu0 0
    %543 = vmatmul.mubr.bf16.gmra.mxu0 %v355
    %v544 = vpop.f32.mrf.mxu0
    %v545 = vadd.f32 0.0, %v544
    %v546 = vpop.f32.mrf.mxu0
    %v547 = vpop.f32.mrf.mxu0
    %v548 = vadd.f32 0.0, %v547
    %v549 = vpop.f32.mrf.mxu0
    %550 = vmatprep.mubr.bf16.mxu0 0
    %551 = vmatmul.mubr.bf16.gmra.mxu0 %v358
    %v552 = vpop.f32.mrf.mxu0
    %v553 = vadd.f32 0.0, %v552
    %v554 = vpop.f32.mrf.mxu0
    %v555 = vpop.f32.mrf.mxu0
    %v556 = vadd.f32 0.0, %v555
    %v557 = vpop.f32.mrf.mxu0
    %558 = vmatprep.mubr.bf16.mxu0 0
    %559 = vmatmul.mubr.bf16.gmra.mxu0 %v361
    %v560 = vpop.f32.mrf.mxu0
    %v561 = vadd.f32 0.0, %v560
    %v562 = vpop.f32.mrf.mxu0
    %v563 = vpop.f32.mrf.mxu0
    %v564 = vadd.f32 0.0, %v563
    %v565 = vpop.f32.mrf.mxu0
    %566 = vmatprep.mubr.bf16.mxu0 0
    %567 = vmatmul.mubr.bf16.gmra.mxu0 %v364
    %v568 = vpop.f32.mrf.mxu0
    %v569 = vadd.f32 0.0, %v568
    %v570 = vpop.f32.mrf.mxu0
    %v571 = vpop.f32.mrf.mxu0
    %v572 = vadd.f32 0.0, %v571
    %v573 = vpop.f32.mrf.mxu0
    %574 = vmatprep.mubr.bf16.mxu0 0
    %575 = vmatmul.mubr.bf16.gmra.mxu0 %v367
    %v576 = vpop.f32.mrf.mxu0
    %v577 = vadd.f32 0.0, %v576
    %v578 = vpop.f32.mrf.mxu0
    %v579 = vpop.f32.mrf.mxu0
    %v580 = vadd.f32 0.0, %v579
    %v581 = vpop.f32.mrf.mxu0
    %582 = vmatprep.mubr.bf16.mxu0 0
    %583 = vmatmul.mubr.bf16.gmra.mxu0 %v370
    %v584 = vpop.f32.mrf.mxu0
    %v585 = vadd.f32 0.0, %v584
    %v586 = vpop.f32.mrf.mxu0
    %v587 = vpop.f32.mrf.mxu0
    %v588 = vadd.f32 0.0, %v587
    %v589 = vpop.f32.mrf.mxu0
    %590 = vmatprep.mubr.bf16.mxu0 0
    %591 = vmatmul.mubr.bf16.gmra.mxu0 %v373
    %v592 = vpop.f32.mrf.mxu0
    %v593 = vadd.f32 0.0, %v592
    %v594 = vpop.f32.mrf.mxu0
    %v595 = vpop.f32.mrf.mxu0
    %v596 = vadd.f32 0.0, %v595
    %v597 = vpop.f32.mrf.mxu0
    %598 = vmatprep.mubr.bf16.mxu0 0
    %599 = vmatmul.mubr.bf16.gmra.mxu0 %v376
    %v600 = vpop.f32.mrf.mxu0
    %v601 = vadd.f32 0.0, %v600
    %v602 = vpop.f32.mrf.mxu0
    %v603 = vpop.f32.mrf.mxu0
    %v604 = vadd.f32 0.0, %v603
    %v605 = vpop.f32.mrf.mxu0
    %606 = vmatprep.mubr.bf16.mxu0 0
    %607 = vmatmul.mubr.bf16.gmra.mxu0 %v379
    %v608 = vpop.f32.mrf.mxu0
    %v609 = vadd.f32 0.0, %v608
    %v610 = vpop.f32.mrf.mxu0
    %v611 = vpop.f32.mrf.mxu0
    %v612 = vadd.f32 0.0, %v611
    %v613 = vpop.f32.mrf.mxu0
    %614 = vmatprep.mubr.bf16.mxu0 0
    %615 = vmatmul.mubr.bf16.gmra.mxu0 %v382
    %v616 = vpop.f32.mrf.mxu0
    %v617 = vadd.f32 0.0, %v616
    %v618 = vpop.f32.mrf.mxu0
    %v619 = vpop.f32.mrf.mxu0
    %v620 = vadd.f32 0.0, %v619
    %v621 = vpop.f32.mrf.mxu0
    %622 = vmatprep.mubr.bf16.mxu0 0
    %623 = vmatmul.mubr.bf16.gmra.mxu0 %v385
    %v624 = vpop.f32.mrf.mxu0
    %v625 = vadd.f32 0.0, %v624
    %v626 = vpop.f32.mrf.mxu0
    %v627 = vpop.f32.mrf.mxu0
    %v628 = vadd.f32 0.0, %v627
    %v629 = vpop.f32.mrf.mxu0
    %630 = vmatprep.mubr.bf16.mxu0 0
    %631 = vmatmul.mubr.bf16.gmra.mxu0 %v388
    %v632 = vpop.f32.mrf.mxu0
    %v633 = vadd.f32 0.0, %v632
    %v634 = vpop.f32.mrf.mxu0
    %v635 = vpop.f32.mrf.mxu0
    %v636 = vadd.f32 0.0, %v635
    %v637 = vpop.f32.mrf.mxu0
    %638 = vmatprep.mubr.bf16.mxu0 0
    %639 = vmatmul.mubr.bf16.gmra.mxu0 %v391
    %v640 = vpop.f32.mrf.mxu0
    %v641 = vadd.f32 0.0, %v640
    %v642 = vpop.f32.mrf.mxu0
    %v643 = vpop.f32.mrf.mxu0
    %v644 = vadd.f32 0.0, %v643
    %v645 = vpop.f32.mrf.mxu0
    %646 = vmatprep.mubr.bf16.mxu0 0
    %647 = vmatmul.mubr.bf16.gmra.mxu0 %v394
    %v648 = vpop.f32.mrf.mxu0
    %v649 = vadd.f32 0.0, %v648
    %v650 = vpop.f32.mrf.mxu0
    %v651 = vpop.f32.mrf.mxu0
    %v652 = vadd.f32 0.0, %v651
    %v653 = vpop.f32.mrf.mxu0
    %654 = vmatprep.mubr.bf16.mxu0 0
    %655 = vmatmul.mubr.bf16.gmra.mxu0 %v397
    %v656 = vpop.f32.mrf.mxu0
    %v657 = vadd.f32 0.0, %v656
    %v658 = vpop.f32.mrf.mxu0
    %v659 = vpop.f32.mrf.mxu0
    %v660 = vadd.f32 0.0, %v659
    %v661 = vpop.f32.mrf.mxu0
    %662 = vmatprep.mubr.bf16.mxu0 0
    %663 = vmatmul.mubr.bf16.gmra.mxu0 %v400
    %v664 = vpop.f32.mrf.mxu0
    %v665 = vadd.f32 0.0, %v664
    %v666 = vpop.f32.mrf.mxu0
    %v667 = vpop.f32.mrf.mxu0
    %v668 = vadd.f32 0.0, %v667
    %v669 = vpop.f32.mrf.mxu0
    %670 = vmatprep.mubr.bf16.mxu0 0
    %671 = vmatmul.mubr.bf16.gmra.mxu0 %v403
    %v672 = vpop.f32.mrf.mxu0
    %v673 = vadd.f32 0.0, %v672
    %v674 = vpop.f32.mrf.mxu0
    %v675 = vpop.f32.mrf.mxu0
    %v676 = vadd.f32 0.0, %v675
    %v677 = vpop.f32.mrf.mxu0
    %678 = vmatprep.mubr.bf16.mxu0 0
    %679 = vmatmul.mubr.bf16.gmra.mxu0 %v406
    %v680 = vpop.f32.mrf.mxu0
    %v681 = vadd.f32 0.0, %v680
    %v682 = vpop.f32.mrf.mxu0
    %v683 = vpop.f32.mrf.mxu0
    %v684 = vadd.f32 0.0, %v683
    %v685 = vpop.f32.mrf.mxu0
    %686 = vmatprep.mubr.bf16.mxu0 0
    %687 = vmatmul.mubr.bf16.gmra.mxu0 %v409
    %v688 = vpop.f32.mrf.mxu0
    %v689 = vadd.f32 0.0, %v688
    %v690 = vpop.f32.mrf.mxu0
    %v691 = vpop.f32.mrf.mxu0
    %v692 = vadd.f32 0.0, %v691
    %v693 = vpop.f32.mrf.mxu0
    %694 = vmatprep.mubr.bf16.mxu0 0
    %695 = vmatmul.mubr.bf16.gmra.mxu0 %v412
    %v696 = vpop.f32.mrf.mxu0
    %v697 = vadd.f32 0.0, %v696
    %v698 = vpop.f32.mrf.mxu0
    %v699 = vpop.f32.mrf.mxu0
    %v700 = vadd.f32 0.0, %v699
    %v701 = vpop.f32.mrf.mxu0
    %702 = vdwg.mxu0
    %s703 = sld [smem:[#allocation2]]
    %v704 = vstv %s703
    %v705 = vadd.f32 %v449, %v704
    %v706 = vadd.f32 %v452, %v704
    %v707 = vadd.f32 %v457, %v704
    %v708 = vadd.f32 %v460, %v704
    %v709 = vadd.f32 %v465, %v704
    %v710 = vadd.f32 %v468, %v704
    %v711 = vadd.f32 %v473, %v704
    %v712 = vadd.f32 %v476, %v704
    %v713 = vadd.f32 %v481, %v704
    %v714 = vadd.f32 %v484, %v704
    %v715 = vadd.f32 %v489, %v704
    %v716 = vadd.f32 %v492, %v704
    %v717 = vadd.f32 %v497, %v704
    %v718 = vadd.f32 %v500, %v704
    %v719 = vadd.f32 %v505, %v704
    %v720 = vadd.f32 %v508, %v704
    %v721 = vadd.f32 %v513, %v704
    %v722 = vadd.f32 %v516, %v704
    %v723 = vadd.f32 %v521, %v704
    %v724 = vadd.f32 %v524, %v704
    %v725 = vadd.f32 %v529, %v704
    %v726 = vadd.f32 %v532, %v704
    %v727 = vadd.f32 %v537, %v704
    %v728 = vadd.f32 %v540, %v704
    %v729 = vadd.f32 %v545, %v704
    %v730 = vadd.f32 %v548, %v704
    %v731 = vadd.f32 %v553, %v704
    %v732 = vadd.f32 %v556, %v704
    %v733 = vadd.f32 %v561, %v704
    %v734 = vadd.f32 %v564, %v704
    %v735 = vadd.f32 %v569, %v704
    %v736 = vadd.f32 %v572, %v704
    %v737 = vadd.f32 %v577, %v704
    %v738 = vadd.f32 %v580, %v704
    %v739 = vadd.f32 %v585, %v704
    %v740 = vadd.f32 %v588, %v704
    %v741 = vadd.f32 %v593, %v704
    %v742 = vadd.f32 %v596, %v704
    %v743 = vadd.f32 %v601, %v704
    %v744 = vadd.f32 %v604, %v704
    %v745 = vadd.f32 %v609, %v704
    %v746 = vadd.f32 %v612, %v704
    %v747 = vadd.f32 %v617, %v704
    %v748 = vadd.f32 %v620, %v704
    %v749 = vadd.f32 %v625, %v704
    %v750 = vadd.f32 %v628, %v704
    %v751 = vadd.f32 %v633, %v704
    %v752 = vadd.f32 %v636, %v704
    %v753 = vadd.f32 %v641, %v704
    %v754 = vadd.f32 %v644, %v704
    %v755 = vadd.f32 %v649, %v704
    %v756 = vadd.f32 %v652, %v704
    %v757 = vadd.f32 %v657, %v704
    %v758 = vadd.f32 %v660, %v704
    %v759 = vadd.f32 %v665, %v704
    %v760 = vadd.f32 %v668, %v704
    %v761 = vadd.f32 %v673, %v704
    %v762 = vadd.f32 %v676, %v704
    %v763 = vadd.f32 %v681, %v704
    %v764 = vadd.f32 %v684, %v704
    %v765 = vadd.f32 %v689, %v704
    %v766 = vadd.f32 %v692, %v704
    %v767 = vadd.f32 %v697, %v704
    %v768 = vadd.f32 %v700, %v704
    %v769 = vxor.u32 %v705, 2147483648
    %v770 = vxor.u32 %v706, 2147483648
    %v771 = vxor.u32 %v707, 2147483648
    %v772 = vxor.u32 %v708, 2147483648
    %v773 = vxor.u32 %v709, 2147483648
    %v774 = vxor.u32 %v710, 2147483648
    %v775 = vxor.u32 %v711, 2147483648
    %v776 = vxor.u32 %v712, 2147483648
    %v777 = vxor.u32 %v713, 2147483648
    %v778 = vxor.u32 %v714, 2147483648
    %v779 = vxor.u32 %v715, 2147483648
    %v780 = vxor.u32 %v716, 2147483648
    %v781 = vxor.u32 %v717, 2147483648
    %v782 = vxor.u32 %v718, 2147483648
    %v783 = vxor.u32 %v719, 2147483648
    %v784 = vxor.u32 %v720, 2147483648
    %v785 = vxor.u32 %v721, 2147483648
    %v786 = vxor.u32 %v722, 2147483648
    %v787 = vxor.u32 %v723, 2147483648
    %v788 = vxor.u32 %v724, 2147483648
    %v789 = vxor.u32 %v725, 2147483648
    %v790 = vxor.u32 %v726, 2147483648
    %v791 = vxor.u32 %v727, 2147483648
    %v792 = vxor.u32 %v728, 2147483648
    %v793 = vxor.u32 %v729, 2147483648
    %v794 = vxor.u32 %v730, 2147483648
    %v795 = vxor.u32 %v731, 2147483648
    %v796 = vxor.u32 %v732, 2147483648
    %v797 = vxor.u32 %v733, 2147483648
    %v798 = vxor.u32 %v734, 2147483648
    %v799 = vxor.u32 %v735, 2147483648
    %v800 = vxor.u32 %v736, 2147483648
    %v801 = vxor.u32 %v737, 2147483648
    %v802 = vxor.u32 %v738, 2147483648
    %v803 = vxor.u32 %v739, 2147483648
    %v804 = vxor.u32 %v740, 2147483648
    %v805 = vxor.u32 %v741, 2147483648
    %v806 = vxor.u32 %v742, 2147483648
    %v807 = vxor.u32 %v743, 2147483648
    %v808 = vxor.u32 %v744, 2147483648
    %v809 = vxor.u32 %v745, 2147483648
    %v810 = vxor.u32 %v746, 2147483648
    %v811 = vxor.u32 %v747, 2147483648
    %v812 = vxor.u32 %v748, 2147483648
    %v813 = vxor.u32 %v749, 2147483648
    %v814 = vxor.u32 %v750, 2147483648
    %v815 = vxor.u32 %v751, 2147483648
    %v816 = vxor.u32 %v752, 2147483648
    %v817 = vxor.u32 %v753, 2147483648
    %v818 = vxor.u32 %v754, 2147483648
    %v819 = vxor.u32 %v755, 2147483648
    %v820 = vxor.u32 %v756, 2147483648
    %v821 = vxor.u32 %v757, 2147483648
    %v822 = vxor.u32 %v758, 2147483648
    %v823 = vxor.u32 %v759, 2147483648
    %v824 = vxor.u32 %v760, 2147483648
    %v825 = vxor.u32 %v761, 2147483648
    %v826 = vxor.u32 %v762, 2147483648
    %v827 = vxor.u32 %v763, 2147483648
    %v828 = vxor.u32 %v764, 2147483648
    %v829 = vxor.u32 %v765, 2147483648
    %v830 = vxor.u32 %v766, 2147483648
    %v831 = vxor.u32 %v767, 2147483648
    %v832 = vxor.u32 %v768, 2147483648
    %v833 = vmul.f32 %v769, 1.442695
    %v834 = vpow.pop %v833
    %v835 = vmul.f32 %v770, 1.442695
    %v836 = vpow.pop %v835
    %v837 = vmul.f32 %v771, 1.442695
    %v838 = vpow.pop %v837
    %v839 = vmul.f32 %v772, 1.442695
    %v840 = vpow.pop %v839
    %v841 = vmul.f32 %v773, 1.442695
    %v842 = vpow.pop %v841
    %v843 = vmul.f32 %v774, 1.442695
    %v844 = vpow.pop %v843
    %v845 = vmul.f32 %v775, 1.442695
    %v846 = vpow.pop %v845
    %v847 = vmul.f32 %v776, 1.442695
    %v848 = vpow.pop %v847
    %v849 = vmul.f32 %v777, 1.442695
    %v850 = vpow.pop %v849
    %v851 = vmul.f32 %v778, 1.442695
    %v852 = vpow.pop %v851
    %v853 = vmul.f32 %v779, 1.442695
    %v854 = vpow.pop %v853
    %v855 = vmul.f32 %v780, 1.442695
    %v856 = vpow.pop %v855
    %v857 = vmul.f32 %v781, 1.442695
    %v858 = vpow.pop %v857
    %v859 = vmul.f32 %v782, 1.442695
    %v860 = vpow.pop %v859
    %v861 = vmul.f32 %v783, 1.442695
    %v862 = vpow.pop %v861
    %v863 = vmul.f32 %v784, 1.442695
    %v864 = vpow.pop %v863
    %v865 = vmul.f32 %v785, 1.442695
    %v866 = vpow.pop %v865
    %v867 = vmul.f32 %v786, 1.442695
    %v868 = vpow.pop %v867
    %v869 = vmul.f32 %v787, 1.442695
    %v870 = vpow.pop %v869
    %v871 = vmul.f32 %v788, 1.442695
    %v872 = vpow.pop %v871
    %v873 = vmul.f32 %v789, 1.442695
    %v874 = vpow.pop %v873
    %v875 = vmul.f32 %v790, 1.442695
    %v876 = vpow.pop %v875
    %v877 = vmul.f32 %v791, 1.442695
    %v878 = vpow.pop %v877
    %v879 = vmul.f32 %v792, 1.442695
    %v880 = vpow.pop %v879
    %v881 = vmul.f32 %v793, 1.442695
    %v882 = vpow.pop %v881
    %v883 = vmul.f32 %v794, 1.442695
    %v884 = vpow.pop %v883
    %v885 = vmul.f32 %v795, 1.442695
    %v886 = vpow.pop %v885
    %v887 = vmul.f32 %v796, 1.442695
    %v888 = vpow.pop %v887
    %v889 = vmul.f32 %v797, 1.442695
    %v890 = vpow.pop %v889
    %v891 = vmul.f32 %v798, 1.442695
    %v892 = vpow.pop %v891
    %v893 = vmul.f32 %v799, 1.442695
    %v894 = vpow.pop %v893
    %v895 = vmul.f32 %v800, 1.442695
    %v896 = vpow.pop %v895
    %v897 = vmul.f32 %v801, 1.442695
    %v898 = vpow.pop %v897
    %v899 = vmul.f32 %v802, 1.442695
    %v900 = vpow.pop %v899
    %v901 = vmul.f32 %v803, 1.442695
    %v902 = vpow.pop %v901
    %v903 = vmul.f32 %v804, 1.442695
    %v904 = vpow.pop %v903
    %v905 = vmul.f32 %v805, 1.442695
    %v906 = vpow.pop %v905
    %v907 = vmul.f32 %v806, 1.442695
    %v908 = vpow.pop %v907
    %v909 = vmul.f32 %v807, 1.442695
    %v910 = vpow.pop %v909
    %v911 = vmul.f32 %v808, 1.442695
    %v912 = vpow.pop %v911
    %v913 = vmul.f32 %v809, 1.442695
    %v914 = vpow.pop %v913
    %v915 = vmul.f32 %v810, 1.442695
    %v916 = vpow.pop %v915
    %v917 = vmul.f32 %v811, 1.442695
    %v918 = vpow.pop %v917
    %v919 = vmul.f32 %v812, 1.442695
    %v920 = vpow.pop %v919
    %v921 = vmul.f32 %v813, 1.442695
    %v922 = vpow.pop %v921
    %v923 = vmul.f32 %v814, 1.442695
    %v924 = vpow.pop %v923
    %v925 = vmul.f32 %v815, 1.442695
    %v926 = vpow.pop %v925
    %v927 = vmul.f32 %v816, 1.442695
    %v928 = vpow.pop %v927
    %v929 = vmul.f32 %v817, 1.442695
    %v930 = vpow.pop %v929
    %v931 = vmul.f32 %v818, 1.442695
    %v932 = vpow.pop %v931
    %v933 = vmul.f32 %v819, 1.442695
    %v934 = vpow.pop %v933
    %v935 = vmul.f32 %v820, 1.442695
    %v936 = vpow.pop %v935
    %v937 = vmul.f32 %v821, 1.442695
    %v938 = vpow.pop %v937
    %v939 = vmul.f32 %v822, 1.442695
    %v940 = vpow.pop %v939
    %v941 = vmul.f32 %v823, 1.442695
    %v942 = vpow.pop %v941
    %v943 = vmul.f32 %v824, 1.442695
    %v944 = vpow.pop %v943
    %v945 = vmul.f32 %v825, 1.442695
    %v946 = vpow.pop %v945
    %v947 = vmul.f32 %v826, 1.442695
    %v948 = vpow.pop %v947
    %v949 = vmul.f32 %v827, 1.442695
    %v950 = vpow.pop %v949
    %v951 = vmul.f32 %v828, 1.442695
    %v952 = vpow.pop %v951
    %v953 = vmul.f32 %v829, 1.442695
    %v954 = vpow.pop %v953
    %v955 = vmul.f32 %v830, 1.442695
    %v956 = vpow.pop %v955
    %v957 = vmul.f32 %v831, 1.442695
    %v958 = vpow.pop %v957
    %v959 = vmul.f32 %v832, 1.442695
    %v960 = vpow.pop %v959
    %v961 = vadd.f32 %v834, 1.0
    %v962 = vadd.f32 %v836, 1.0
    %v963 = vadd.f32 %v838, 1.0
    %v964 = vadd.f32 %v840, 1.0
    %v965 = vadd.f32 %v842, 1.0
    %v966 = vadd.f32 %v844, 1.0
    %v967 = vadd.f32 %v846, 1.0
    %v968 = vadd.f32 %v848, 1.0
    %v969 = vadd.f32 %v850, 1.0
    %v970 = vadd.f32 %v852, 1.0
    %v971 = vadd.f32 %v854, 1.0
    %v972 = vadd.f32 %v856, 1.0
    %v973 = vadd.f32 %v858, 1.0
    %v974 = vadd.f32 %v860, 1.0
    %v975 = vadd.f32 %v862, 1.0
    %v976 = vadd.f32 %v864, 1.0
    %v977 = vadd.f32 %v866, 1.0
    %v978 = vadd.f32 %v868, 1.0
    %v979 = vadd.f32 %v870, 1.0
    %v980 = vadd.f32 %v872, 1.0
    %v981 = vadd.f32 %v874, 1.0
    %v982 = vadd.f32 %v876, 1.0
    %v983 = vadd.f32 %v878, 1.0
    %v984 = vadd.f32 %v880, 1.0
    %v985 = vadd.f32 %v882, 1.0
    %v986 = vadd.f32 %v884, 1.0
    %v987 = vadd.f32 %v886, 1.0
    %v988 = vadd.f32 %v888, 1.0
    %v989 = vadd.f32 %v890, 1.0
    %v990 = vadd.f32 %v892, 1.0
    %v991 = vadd.f32 %v894, 1.0
    %v992 = vadd.f32 %v896, 1.0
    %v993 = vadd.f32 %v898, 1.0
    %v994 = vadd.f32 %v900, 1.0
    %v995 = vadd.f32 %v902, 1.0
    %v996 = vadd.f32 %v904, 1.0
    %v997 = vadd.f32 %v906, 1.0
    %v998 = vadd.f32 %v908, 1.0
    %v999 = vadd.f32 %v910, 1.0
    %v1000 = vadd.f32 %v912, 1.0
    %v1001 = vadd.f32 %v914, 1.0
    %v1002 = vadd.f32 %v916, 1.0
    %v1003 = vadd.f32 %v918, 1.0
    %v1004 = vadd.f32 %v920, 1.0
    %v1005 = vadd.f32 %v922, 1.0
    %v1006 = vadd.f32 %v924, 1.0
    %v1007 = vadd.f32 %v926, 1.0
    %v1008 = vadd.f32 %v928, 1.0
    %v1009 = vadd.f32 %v930, 1.0
    %v1010 = vadd.f32 %v932, 1.0
    %v1011 = vadd.f32 %v934, 1.0
    %v1012 = vadd.f32 %v936, 1.0
    %v1013 = vadd.f32 %v938, 1.0
    %v1014 = vadd.f32 %v940, 1.0
    %v1015 = vadd.f32 %v942, 1.0
    %v1016 = vadd.f32 %v944, 1.0
    %v1017 = vadd.f32 %v946, 1.0
    %v1018 = vadd.f32 %v948, 1.0
    %v1019 = vadd.f32 %v950, 1.0
    %v1020 = vadd.f32 %v952, 1.0
    %v1021 = vadd.f32 %v954, 1.0
    %v1022 = vadd.f32 %v956, 1.0
    %v1023 = vadd.f32 %v958, 1.0
    %v1024 = vadd.f32 %v960, 1.0
    %v1025 = vrcp.pop %v961
    %v1026 = vmul.f32 1.0, %v1025
    %v1027 = vrcp.pop %v962
    %v1028 = vmul.f32 1.0, %v1027
    %v1029 = vrcp.pop %v963
    %v1030 = vmul.f32 1.0, %v1029
    %v1031 = vrcp.pop %v964
    %v1032 = vmul.f32 1.0, %v1031
    %v1033 = vrcp.pop %v965
    %v1034 = vmul.f32 1.0, %v1033
    %v1035 = vrcp.pop %v966
    %v1036 = vmul.f32 1.0, %v1035
    %v1037 = vrcp.pop %v967
    %v1038 = vmul.f32 1.0, %v1037
    %v1039 = vrcp.pop %v968
    %v1040 = vmul.f32 1.0, %v1039
    %v1041 = vrcp.pop %v969
    %v1042 = vmul.f32 1.0, %v1041
    %v1043 = vrcp.pop %v970
    %v1044 = vmul.f32 1.0, %v1043
    %v1045 = vrcp.pop %v971
    %v1046 = vmul.f32 1.0, %v1045
    %v1047 = vrcp.pop %v972
    %v1048 = vmul.f32 1.0, %v1047
    %v1049 = vrcp.pop %v973
    %v1050 = vmul.f32 1.0, %v1049
    %v1051 = vrcp.pop %v974
    %v1052 = vmul.f32 1.0, %v1051
    %v1053 = vrcp.pop %v975
    %v1054 = vmul.f32 1.0, %v1053
    %v1055 = vrcp.pop %v976
    %v1056 = vmul.f32 1.0, %v1055
    %v1057 = vrcp.pop %v977
    %v1058 = vmul.f32 1.0, %v1057
    %v1059 = vrcp.pop %v978
    %v1060 = vmul.f32 1.0, %v1059
    %v1061 = vrcp.pop %v979
    %v1062 = vmul.f32 1.0, %v1061
    %v1063 = vrcp.pop %v980
    %v1064 = vmul.f32 1.0, %v1063
    %v1065 = vrcp.pop %v981
    %v1066 = vmul.f32 1.0, %v1065
    %v1067 = vrcp.pop %v982
    %v1068 = vmul.f32 1.0, %v1067
    %v1069 = vrcp.pop %v983
    %v1070 = vmul.f32 1.0, %v1069
    %v1071 = vrcp.pop %v984
    %v1072 = vmul.f32 1.0, %v1071
    %v1073 = vrcp.pop %v985
    %v1074 = vmul.f32 1.0, %v1073
    %v1075 = vrcp.pop %v986
    %v1076 = vmul.f32 1.0, %v1075
    %v1077 = vrcp.pop %v987
    %v1078 = vmul.f32 1.0, %v1077
    %v1079 = vrcp.pop %v988
    %v1080 = vmul.f32 1.0, %v1079
    %v1081 = vrcp.pop %v989
    %v1082 = vmul.f32 1.0, %v1081
    %v1083 = vrcp.pop %v990
    %v1084 = vmul.f32 1.0, %v1083
    %v1085 = vrcp.pop %v991
    %v1086 = vmul.f32 1.0, %v1085
    %v1087 = vrcp.pop %v992
    %v1088 = vmul.f32 1.0, %v1087
    %v1089 = vrcp.pop %v993
    %v1090 = vmul.f32 1.0, %v1089
    %v1091 = vrcp.pop %v994
    %v1092 = vmul.f32 1.0, %v1091
    %v1093 = vrcp.pop %v995
    %v1094 = vmul.f32 1.0, %v1093
    %v1095 = vrcp.pop %v996
    %v1096 = vmul.f32 1.0, %v1095
    %v1097 = vrcp.pop %v997
    %v1098 = vmul.f32 1.0, %v1097
    %v1099 = vrcp.pop %v998
    %v1100 = vmul.f32 1.0, %v1099
    %v1101 = vrcp.pop %v999
    %v1102 = vmul.f32 1.0, %v1101
    %v1103 = vrcp.pop %v1000
    %v1104 = vmul.f32 1.0, %v1103
    %v1105 = vrcp.pop %v1001
    %v1106 = vmul.f32 1.0, %v1105
    %v1107 = vrcp.pop %v1002
    %v1108 = vmul.f32 1.0, %v1107
    %v1109 = vrcp.pop %v1003
    %v1110 = vmul.f32 1.0, %v1109
    %v1111 = vrcp.pop %v1004
    %v1112 = vmul.f32 1.0, %v1111
    %v1113 = vrcp.pop %v1005
    %v1114 = vmul.f32 1.0, %v1113
    %v1115 = vrcp.pop %v1006
    %v1116 = vmul.f32 1.0, %v1115
    %v1117 = vrcp.pop %v1007
    %v1118 = vmul.f32 1.0, %v1117
    %v1119 = vrcp.pop %v1008
    %v1120 = vmul.f32 1.0, %v1119
    %v1121 = vrcp.pop %v1009
    %v1122 = vmul.f32 1.0, %v1121
    %v1123 = vrcp.pop %v1010
    %v1124 = vmul.f32 1.0, %v1123
    %v1125 = vrcp.pop %v1011
    %v1126 = vmul.f32 1.0, %v1125
    %v1127 = vrcp.pop %v1012
    %v1128 = vmul.f32 1.0, %v1127
    %v1129 = vrcp.pop %v1013
    %v1130 = vmul.f32 1.0, %v1129
    %v1131 = vrcp.pop %v1014
    %v1132 = vmul.f32 1.0, %v1131
    %v1133 = vrcp.pop %v1015
    %v1134 = vmul.f32 1.0, %v1133
    %v1135 = vrcp.pop %v1016
    %v1136 = vmul.f32 1.0, %v1135
    %v1137 = vrcp.pop %v1017
    %v1138 = vmul.f32 1.0, %v1137
    %v1139 = vrcp.pop %v1018
    %v1140 = vmul.f32 1.0, %v1139
    %v1141 = vrcp.pop %v1019
    %v1142 = vmul.f32 1.0, %v1141
    %v1143 = vrcp.pop %v1020
    %v1144 = vmul.f32 1.0, %v1143
    %v1145 = vrcp.pop %v1021
    %v1146 = vmul.f32 1.0, %v1145
    %v1147 = vrcp.pop %v1022
    %v1148 = vmul.f32 1.0, %v1147
    %v1149 = vrcp.pop %v1023
    %v1150 = vmul.f32 1.0, %v1149
    %v1151 = vrcp.pop %v1024
    %v1152 = vmul.f32 1.0, %v1151
    %vm1153 = vcmask 7168
    %v1154 = vsel %vm1153, %v1026, -inf
    %v1155 = vsel %vm1153, %v1028, -inf
    %v1156 = vmax.f32 %v1154, %v1155
    %v1157 = vsel %vm1153, %v1030, -inf
    %v1158 = vmax.f32 %v1156, %v1157
    %v1159 = vsel %vm1153, %v1032, -inf
    %v1160 = vmax.f32 %v1158, %v1159
    %v1161 = vsel %vm1153, %v1034, -inf
    %v1162 = vmax.f32 %v1160, %v1161
    %v1163 = vsel %vm1153, %v1036, -inf
    %v1164 = vmax.f32 %v1162, %v1163
    %v1165 = vsel %vm1153, %v1038, -inf
    %v1166 = vmax.f32 %v1164, %v1165
    %v1167 = vsel %vm1153, %v1040, -inf
    %v1168 = vmax.f32 %v1166, %v1167
    %v1169 = vrot.slane %v1168, 4
    %v1170 = vmax.f32 %v1168, %v1169
    %v1171 = vrot.slane %v1170, 2
    %v1172 = vmax.f32 %v1170, %v1171
    %v1173 = vrot.slane %v1172, 1
    %v1174 = vmax.f32 %v1172, %v1173
    %v1175 = vsel %vm1153, %v1042, -inf
    %v1176 = vsel %vm1153, %v1044, -inf
    %v1177 = vmax.f32 %v1175, %v1176
    %v1178 = vsel %vm1153, %v1046, -inf
    %v1179 = vmax.f32 %v1177, %v1178
    %v1180 = vsel %vm1153, %v1048, -inf
    %v1181 = vmax.f32 %v1179, %v1180
    %v1182 = vsel %vm1153, %v1050, -inf
    %v1183 = vmax.f32 %v1181, %v1182
    %v1184 = vsel %vm1153, %v1052, -inf
    %v1185 = vmax.f32 %v1183, %v1184
    %v1186 = vsel %vm1153, %v1054, -inf
    %v1187 = vmax.f32 %v1185, %v1186
    %v1188 = vsel %vm1153, %v1056, -inf
    %v1189 = vmax.f32 %v1187, %v1188
    %v1190 = vrot.slane %v1189, 4
    %v1191 = vmax.f32 %v1189, %v1190
    %v1192 = vrot.slane %v1191, 2
    %v1193 = vmax.f32 %v1191, %v1192
    %v1194 = vrot.slane %v1193, 1
    %v1195 = vmax.f32 %v1193, %v1194
    %v1196 = vsel %vm1153, %v1058, -inf
    %v1197 = vsel %vm1153, %v1060, -inf
    %v1198 = vmax.f32 %v1196, %v1197
    %v1199 = vsel %vm1153, %v1062, -inf
    %v1200 = vmax.f32 %v1198, %v1199
    %v1201 = vsel %vm1153, %v1064, -inf
    %v1202 = vmax.f32 %v1200, %v1201
    %v1203 = vsel %vm1153, %v1066, -inf
    %v1204 = vmax.f32 %v1202, %v1203
    %v1205 = vsel %vm1153, %v1068, -inf
    %v1206 = vmax.f32 %v1204, %v1205
    %v1207 = vsel %vm1153, %v1070, -inf
    %v1208 = vmax.f32 %v1206, %v1207
    %v1209 = vsel %vm1153, %v1072, -inf
    %v1210 = vmax.f32 %v1208, %v1209
    %v1211 = vrot.slane %v1210, 4
    %v1212 = vmax.f32 %v1210, %v1211
    %v1213 = vrot.slane %v1212, 2
    %v1214 = vmax.f32 %v1212, %v1213
    %v1215 = vrot.slane %v1214, 1
    %v1216 = vmax.f32 %v1214, %v1215
    %v1217 = vsel %vm1153, %v1074, -inf
    %v1218 = vsel %vm1153, %v1076, -inf
    %v1219 = vmax.f32 %v1217, %v1218
    %v1220 = vsel %vm1153, %v1078, -inf
    %v1221 = vmax.f32 %v1219, %v1220
    %v1222 = vsel %vm1153, %v1080, -inf
    %v1223 = vmax.f32 %v1221, %v1222
    %v1224 = vsel %vm1153, %v1082, -inf
    %v1225 = vmax.f32 %v1223, %v1224
    %v1226 = vsel %vm1153, %v1084, -inf
    %v1227 = vmax.f32 %v1225, %v1226
    %v1228 = vsel %vm1153, %v1086, -inf
    %v1229 = vmax.f32 %v1227, %v1228
    %v1230 = vsel %vm1153, %v1088, -inf
    %v1231 = vmax.f32 %v1229, %v1230
    %v1232 = vrot.slane %v1231, 4
    %v1233 = vmax.f32 %v1231, %v1232
    %v1234 = vrot.slane %v1233, 2
    %v1235 = vmax.f32 %v1233, %v1234
    %v1236 = vrot.slane %v1235, 1
    %v1237 = vmax.f32 %v1235, %v1236
    %v1238 = vsel %vm1153, %v1090, -inf
    %v1239 = vsel %vm1153, %v1092, -inf
    %v1240 = vmax.f32 %v1238, %v1239
    %v1241 = vsel %vm1153, %v1094, -inf
    %v1242 = vmax.f32 %v1240, %v1241
    %v1243 = vsel %vm1153, %v1096, -inf
    %v1244 = vmax.f32 %v1242, %v1243
    %v1245 = vsel %vm1153, %v1098, -inf
    %v1246 = vmax.f32 %v1244, %v1245
    %v1247 = vsel %vm1153, %v1100, -inf
    %v1248 = vmax.f32 %v1246, %v1247
    %v1249 = vsel %vm1153, %v1102, -inf
    %v1250 = vmax.f32 %v1248, %v1249
    %v1251 = vsel %vm1153, %v1104, -inf
    %v1252 = vmax.f32 %v1250, %v1251
    %v1253 = vrot.slane %v1252, 4
    %v1254 = vmax.f32 %v1252, %v1253
    %v1255 = vrot.slane %v1254, 2
    %v1256 = vmax.f32 %v1254, %v1255
    %v1257 = vrot.slane %v1256, 1
    %v1258 = vmax.f32 %v1256, %v1257
    %v1259 = vsel %vm1153, %v1106, -inf
    %v1260 = vsel %vm1153, %v1108, -inf
    %v1261 = vmax.f32 %v1259, %v1260
    %v1262 = vsel %vm1153, %v1110, -inf
    %v1263 = vmax.f32 %v1261, %v1262
    %v1264 = vsel %vm1153, %v1112, -inf
    %v1265 = vmax.f32 %v1263, %v1264
    %v1266 = vsel %vm1153, %v1114, -inf
    %v1267 = vmax.f32 %v1265, %v1266
    %v1268 = vsel %vm1153, %v1116, -inf
    %v1269 = vmax.f32 %v1267, %v1268
    %v1270 = vsel %vm1153, %v1118, -inf
    %v1271 = vmax.f32 %v1269, %v1270
    %v1272 = vsel %vm1153, %v1120, -inf
    %v1273 = vmax.f32 %v1271, %v1272
    %v1274 = vrot.slane %v1273, 4
    %v1275 = vmax.f32 %v1273, %v1274
    %v1276 = vrot.slane %v1275, 2
    %v1277 = vmax.f32 %v1275, %v1276
    %v1278 = vrot.slane %v1277, 1
    %v1279 = vmax.f32 %v1277, %v1278
    %v1280 = vsel %vm1153, %v1122, -inf
    %v1281 = vsel %vm1153, %v1124, -inf
    %v1282 = vmax.f32 %v1280, %v1281
    %v1283 = vsel %vm1153, %v1126, -inf
    %v1284 = vmax.f32 %v1282, %v1283
    %v1285 = vsel %vm1153, %v1128, -inf
    %v1286 = vmax.f32 %v1284, %v1285
    %v1287 = vsel %vm1153, %v1130, -inf
    %v1288 = vmax.f32 %v1286, %v1287
    %v1289 = vsel %vm1153, %v1132, -inf
    %v1290 = vmax.f32 %v1288, %v1289
    %v1291 = vsel %vm1153, %v1134, -inf
    %v1292 = vmax.f32 %v1290, %v1291
    %v1293 = vsel %vm1153, %v1136, -inf
    %v1294 = vmax.f32 %v1292, %v1293
    %v1295 = vrot.slane %v1294, 4
    %v1296 = vmax.f32 %v1294, %v1295
    %v1297 = vrot.slane %v1296, 2
    %v1298 = vmax.f32 %v1296, %v1297
    %v1299 = vrot.slane %v1298, 1
    %v1300 = vmax.f32 %v1298, %v1299
    %v1301 = vsel %vm1153, %v1138, -inf
    %v1302 = vsel %vm1153, %v1140, -inf
    %v1303 = vmax.f32 %v1301, %v1302
    %v1304 = vsel %vm1153, %v1142, -inf
    %v1305 = vmax.f32 %v1303, %v1304
    %v1306 = vsel %vm1153, %v1144, -inf
    %v1307 = vmax.f32 %v1305, %v1306
    %v1308 = vsel %vm1153, %v1146, -inf
    %v1309 = vmax.f32 %v1307, %v1308
    %v1310 = vsel %vm1153, %v1148, -inf
    %v1311 = vmax.f32 %v1309, %v1310
    %v1312 = vsel %vm1153, %v1150, -inf
    %v1313 = vmax.f32 %v1311, %v1312
    %v1314 = vsel %vm1153, %v1152, -inf
    %v1315 = vmax.f32 %v1313, %v1314
    %v1316 = vrot.slane %v1315, 4
    %v1317 = vmax.f32 %v1315, %v1316
    %v1318 = vrot.slane %v1317, 2
    %v1319 = vmax.f32 %v1317, %v1318
    %v1320 = vrot.slane %v1319, 1
    %v1321 = vmax.f32 %v1319, %v1320
    %s1322 = sld [smem:[#allocation2 + $0x1]]
    %v1323 = vstv %s1322
    %v1324 = vadd.f32 %v449, %v1323
    %v1325 = vadd.f32 %v452, %v1323
    %v1326 = vadd.f32 %v457, %v1323
    %v1327 = vadd.f32 %v460, %v1323
    %v1328 = vadd.f32 %v465, %v1323
    %v1329 = vadd.f32 %v468, %v1323
    %v1330 = vadd.f32 %v473, %v1323
    %v1331 = vadd.f32 %v476, %v1323
    %v1332 = vadd.f32 %v481, %v1323
    %v1333 = vadd.f32 %v484, %v1323
    %v1334 = vadd.f32 %v489, %v1323
    %v1335 = vadd.f32 %v492, %v1323
    %v1336 = vadd.f32 %v497, %v1323
    %v1337 = vadd.f32 %v500, %v1323
    %v1338 = vadd.f32 %v505, %v1323
    %v1339 = vadd.f32 %v508, %v1323
    %v1340 = vadd.f32 %v513, %v1323
    %v1341 = vadd.f32 %v516, %v1323
    %v1342 = vadd.f32 %v521, %v1323
    %v1343 = vadd.f32 %v524, %v1323
    %v1344 = vadd.f32 %v529, %v1323
    %v1345 = vadd.f32 %v532, %v1323
    %v1346 = vadd.f32 %v537, %v1323
    %v1347 = vadd.f32 %v540, %v1323
    %v1348 = vadd.f32 %v545, %v1323
    %v1349 = vadd.f32 %v548, %v1323
    %v1350 = vadd.f32 %v553, %v1323
    %v1351 = vadd.f32 %v556, %v1323
    %v1352 = vadd.f32 %v561, %v1323
    %v1353 = vadd.f32 %v564, %v1323
    %v1354 = vadd.f32 %v569, %v1323
    %v1355 = vadd.f32 %v572, %v1323
    %v1356 = vadd.f32 %v577, %v1323
    %v1357 = vadd.f32 %v580, %v1323
    %v1358 = vadd.f32 %v585, %v1323
    %v1359 = vadd.f32 %v588, %v1323
    %v1360 = vadd.f32 %v593, %v1323
    %v1361 = vadd.f32 %v596, %v1323
    %v1362 = vadd.f32 %v601, %v1323
    %v1363 = vadd.f32 %v604, %v1323
    %v1364 = vadd.f32 %v609, %v1323
    %v1365 = vadd.f32 %v612, %v1323
    %v1366 = vadd.f32 %v617, %v1323
    %v1367 = vadd.f32 %v620, %v1323
    %v1368 = vadd.f32 %v625, %v1323
    %v1369 = vadd.f32 %v628, %v1323
    %v1370 = vadd.f32 %v633, %v1323
    %v1371 = vadd.f32 %v636, %v1323
    %v1372 = vadd.f32 %v641, %v1323
    %v1373 = vadd.f32 %v644, %v1323
    %v1374 = vadd.f32 %v649, %v1323
    %v1375 = vadd.f32 %v652, %v1323
    %v1376 = vadd.f32 %v657, %v1323
    %v1377 = vadd.f32 %v660, %v1323
    %v1378 = vadd.f32 %v665, %v1323
    %v1379 = vadd.f32 %v668, %v1323
    %v1380 = vadd.f32 %v673, %v1323
    %v1381 = vadd.f32 %v676, %v1323
    %v1382 = vadd.f32 %v681, %v1323
    %v1383 = vadd.f32 %v684, %v1323
    %v1384 = vadd.f32 %v689, %v1323
    %v1385 = vadd.f32 %v692, %v1323
    %v1386 = vadd.f32 %v697, %v1323
    %v1387 = vadd.f32 %v700, %v1323
    %v1388 = vxor.u32 %v1324, 2147483648
    %v1389 = vxor.u32 %v1325, 2147483648
    %v1390 = vxor.u32 %v1326, 2147483648
    %v1391 = vxor.u32 %v1327, 2147483648
    %v1392 = vxor.u32 %v1328, 2147483648
    %v1393 = vxor.u32 %v1329, 2147483648
    %v1394 = vxor.u32 %v1330, 2147483648
    %v1395 = vxor.u32 %v1331, 2147483648
    %v1396 = vxor.u32 %v1332, 2147483648
    %v1397 = vxor.u32 %v1333, 2147483648
    %v1398 = vxor.u32 %v1334, 2147483648
    %v1399 = vxor.u32 %v1335, 2147483648
    %v1400 = vxor.u32 %v1336, 2147483648
    %v1401 = vxor.u32 %v1337, 2147483648
    %v1402 = vxor.u32 %v1338, 2147483648
    %v1403 = vxor.u32 %v1339, 2147483648
    %v1404 = vxor.u32 %v1340, 2147483648
    %v1405 = vxor.u32 %v1341, 2147483648
    %v1406 = vxor.u32 %v1342, 2147483648
    %v1407 = vxor.u32 %v1343, 2147483648
    %v1408 = vxor.u32 %v1344, 2147483648
    %v1409 = vxor.u32 %v1345, 2147483648
    %v1410 = vxor.u32 %v1346, 2147483648
    %v1411 = vxor.u32 %v1347, 2147483648
    %v1412 = vxor.u32 %v1348, 2147483648
    %v1413 = vxor.u32 %v1349, 2147483648
    %v1414 = vxor.u32 %v1350, 2147483648
    %v1415 = vxor.u32 %v1351, 2147483648
    %v1416 = vxor.u32 %v1352, 2147483648
    %v1417 = vxor.u32 %v1353, 2147483648
    %v1418 = vxor.u32 %v1354, 2147483648
    %v1419 = vxor.u32 %v1355, 2147483648
    %v1420 = vxor.u32 %v1356, 2147483648
    %v1421 = vxor.u32 %v1357, 2147483648
    %v1422 = vxor.u32 %v1358, 2147483648
    %v1423 = vxor.u32 %v1359, 2147483648
    %v1424 = vxor.u32 %v1360, 2147483648
    %v1425 = vxor.u32 %v1361, 2147483648
    %v1426 = vxor.u32 %v1362, 2147483648
    %v1427 = vxor.u32 %v1363, 2147483648
    %v1428 = vxor.u32 %v1364, 2147483648
    %v1429 = vxor.u32 %v1365, 2147483648
    %v1430 = vxor.u32 %v1366, 2147483648
    %v1431 = vxor.u32 %v1367, 2147483648
    %v1432 = vxor.u32 %v1368, 2147483648
    %v1433 = vxor.u32 %v1369, 2147483648
    %v1434 = vxor.u32 %v1370, 2147483648
    %v1435 = vxor.u32 %v1371, 2147483648
    %v1436 = vxor.u32 %v1372, 2147483648
    %v1437 = vxor.u32 %v1373, 2147483648
    %v1438 = vxor.u32 %v1374, 2147483648
    %v1439 = vxor.u32 %v1375, 2147483648
    %v1440 = vxor.u32 %v1376, 2147483648
    %v1441 = vxor.u32 %v1377, 2147483648
    %v1442 = vxor.u32 %v1378, 2147483648
    %v1443 = vxor.u32 %v1379, 2147483648
    %v1444 = vxor.u32 %v1380, 2147483648
    %v1445 = vxor.u32 %v1381, 2147483648
    %v1446 = vxor.u32 %v1382, 2147483648
    %v1447 = vxor.u32 %v1383, 2147483648
    %v1448 = vxor.u32 %v1384, 2147483648
    %v1449 = vxor.u32 %v1385, 2147483648
    %v1450 = vxor.u32 %v1386, 2147483648
    %v1451 = vxor.u32 %v1387, 2147483648
    %v1452 = vmul.f32 %v1388, 1.442695
    %v1453 = vpow.pop %v1452
    %v1454 = vmul.f32 %v1389, 1.442695
    %v1455 = vpow.pop %v1454
    %v1456 = vmul.f32 %v1390, 1.442695
    %v1457 = vpow.pop %v1456
    %v1458 = vmul.f32 %v1391, 1.442695
    %v1459 = vpow.pop %v1458
    %v1460 = vmul.f32 %v1392, 1.442695
    %v1461 = vpow.pop %v1460
    %v1462 = vmul.f32 %v1393, 1.442695
    %v1463 = vpow.pop %v1462
    %v1464 = vmul.f32 %v1394, 1.442695
    %v1465 = vpow.pop %v1464
    %v1466 = vmul.f32 %v1395, 1.442695
    %v1467 = vpow.pop %v1466
    %v1468 = vmul.f32 %v1396, 1.442695
    %v1469 = vpow.pop %v1468
    %v1470 = vmul.f32 %v1397, 1.442695
    %v1471 = vpow.pop %v1470
    %v1472 = vmul.f32 %v1398, 1.442695
    %v1473 = vpow.pop %v1472
    %v1474 = vmul.f32 %v1399, 1.442695
    %v1475 = vpow.pop %v1474
    %v1476 = vmul.f32 %v1400, 1.442695
    %v1477 = vpow.pop %v1476
    %v1478 = vmul.f32 %v1401, 1.442695
    %v1479 = vpow.pop %v1478
    %v1480 = vmul.f32 %v1402, 1.442695
    %v1481 = vpow.pop %v1480
    %v1482 = vmul.f32 %v1403, 1.442695
    %v1483 = vpow.pop %v1482
    %v1484 = vmul.f32 %v1404, 1.442695
    %v1485 = vpow.pop %v1484
    %v1486 = vmul.f32 %v1405, 1.442695
    %v1487 = vpow.pop %v1486
    %v1488 = vmul.f32 %v1406, 1.442695
    %v1489 = vpow.pop %v1488
    %v1490 = vmul.f32 %v1407, 1.442695
    %v1491 = vpow.pop %v1490
    %v1492 = vmul.f32 %v1408, 1.442695
    %v1493 = vpow.pop %v1492
    %v1494 = vmul.f32 %v1409, 1.442695
    %v1495 = vpow.pop %v1494
    %v1496 = vmul.f32 %v1410, 1.442695
    %v1497 = vpow.pop %v1496
    %v1498 = vmul.f32 %v1411, 1.442695
    %v1499 = vpow.pop %v1498
    %v1500 = vmul.f32 %v1412, 1.442695
    %v1501 = vpow.pop %v1500
    %v1502 = vmul.f32 %v1413, 1.442695
    %v1503 = vpow.pop %v1502
    %v1504 = vmul.f32 %v1414, 1.442695
    %v1505 = vpow.pop %v1504
    %v1506 = vmul.f32 %v1415, 1.442695
    %v1507 = vpow.pop %v1506
    %v1508 = vmul.f32 %v1416, 1.442695
    %v1509 = vpow.pop %v1508
    %v1510 = vmul.f32 %v1417, 1.442695
    %v1511 = vpow.pop %v1510
    %v1512 = vmul.f32 %v1418, 1.442695
    %v1513 = vpow.pop %v1512
    %v1514 = vmul.f32 %v1419, 1.442695
    %v1515 = vpow.pop %v1514
    %v1516 = vmul.f32 %v1420, 1.442695
    %v1517 = vpow.pop %v1516
    %v1518 = vmul.f32 %v1421, 1.442695
    %v1519 = vpow.pop %v1518
    %v1520 = vmul.f32 %v1422, 1.442695
    %v1521 = vpow.pop %v1520
    %v1522 = vmul.f32 %v1423, 1.442695
    %v1523 = vpow.pop %v1522
    %v1524 = vmul.f32 %v1424, 1.442695
    %v1525 = vpow.pop %v1524
    %v1526 = vmul.f32 %v1425, 1.442695
    %v1527 = vpow.pop %v1526
    %v1528 = vmul.f32 %v1426, 1.442695
    %v1529 = vpow.pop %v1528
    %v1530 = vmul.f32 %v1427, 1.442695
    %v1531 = vpow.pop %v1530
    %v1532 = vmul.f32 %v1428, 1.442695
    %v1533 = vpow.pop %v1532
    %v1534 = vmul.f32 %v1429, 1.442695
    %v1535 = vpow.pop %v1534
    %v1536 = vmul.f32 %v1430, 1.442695
    %v1537 = vpow.pop %v1536
    %v1538 = vmul.f32 %v1431, 1.442695
    %v1539 = vpow.pop %v1538
    %v1540 = vmul.f32 %v1432, 1.442695
    %v1541 = vpow.pop %v1540
    %v1542 = vmul.f32 %v1433, 1.442695
    %v1543 = vpow.pop %v1542
    %v1544 = vmul.f32 %v1434, 1.442695
    %v1545 = vpow.pop %v1544
    %v1546 = vmul.f32 %v1435, 1.442695
    %v1547 = vpow.pop %v1546
    %v1548 = vmul.f32 %v1436, 1.442695
    %v1549 = vpow.pop %v1548
    %v1550 = vmul.f32 %v1437, 1.442695
    %v1551 = vpow.pop %v1550
    %v1552 = vmul.f32 %v1438, 1.442695
    %v1553 = vpow.pop %v1552
    %v1554 = vmul.f32 %v1439, 1.442695
    %v1555 = vpow.pop %v1554
    %v1556 = vmul.f32 %v1440, 1.442695
    %v1557 = vpow.pop %v1556
    %v1558 = vmul.f32 %v1441, 1.442695
    %v1559 = vpow.pop %v1558
    %v1560 = vmul.f32 %v1442, 1.442695
    %v1561 = vpow.pop %v1560
    %v1562 = vmul.f32 %v1443, 1.442695
    %v1563 = vpow.pop %v1562
    %v1564 = vmul.f32 %v1444, 1.442695
    %v1565 = vpow.pop %v1564
    %v1566 = vmul.f32 %v1445, 1.442695
    %v1567 = vpow.pop %v1566
    %v1568 = vmul.f32 %v1446, 1.442695
    %v1569 = vpow.pop %v1568
    %v1570 = vmul.f32 %v1447, 1.442695
    %v1571 = vpow.pop %v1570
    %v1572 = vmul.f32 %v1448, 1.442695
    %v1573 = vpow.pop %v1572
    %v1574 = vmul.f32 %v1449, 1.442695
    %v1575 = vpow.pop %v1574
    %v1576 = vmul.f32 %v1450, 1.442695
    %v1577 = vpow.pop %v1576
    %v1578 = vmul.f32 %v1451, 1.442695
    %v1579 = vpow.pop %v1578
    %v1580 = vadd.f32 %v1453, 1.0
    %v1581 = vadd.f32 %v1455, 1.0
    %v1582 = vadd.f32 %v1457, 1.0
    %v1583 = vadd.f32 %v1459, 1.0
    %v1584 = vadd.f32 %v1461, 1.0
    %v1585 = vadd.f32 %v1463, 1.0
    %v1586 = vadd.f32 %v1465, 1.0
    %v1587 = vadd.f32 %v1467, 1.0
    %v1588 = vadd.f32 %v1469, 1.0
    %v1589 = vadd.f32 %v1471, 1.0
    %v1590 = vadd.f32 %v1473, 1.0
    %v1591 = vadd.f32 %v1475, 1.0
    %v1592 = vadd.f32 %v1477, 1.0
    %v1593 = vadd.f32 %v1479, 1.0
    %v1594 = vadd.f32 %v1481, 1.0
    %v1595 = vadd.f32 %v1483, 1.0
    %v1596 = vadd.f32 %v1485, 1.0
    %v1597 = vadd.f32 %v1487, 1.0
    %v1598 = vadd.f32 %v1489, 1.0
    %v1599 = vadd.f32 %v1491, 1.0
    %v1600 = vadd.f32 %v1493, 1.0
    %v1601 = vadd.f32 %v1495, 1.0
    %v1602 = vadd.f32 %v1497, 1.0
    %v1603 = vadd.f32 %v1499, 1.0
    %v1604 = vadd.f32 %v1501, 1.0
    %v1605 = vadd.f32 %v1503, 1.0
    %v1606 = vadd.f32 %v1505, 1.0
    %v1607 = vadd.f32 %v1507, 1.0
    %v1608 = vadd.f32 %v1509, 1.0
    %v1609 = vadd.f32 %v1511, 1.0
    %v1610 = vadd.f32 %v1513, 1.0
    %v1611 = vadd.f32 %v1515, 1.0
    %v1612 = vadd.f32 %v1517, 1.0
    %v1613 = vadd.f32 %v1519, 1.0
    %v1614 = vadd.f32 %v1521, 1.0
    %v1615 = vadd.f32 %v1523, 1.0
    %v1616 = vadd.f32 %v1525, 1.0
    %v1617 = vadd.f32 %v1527, 1.0
    %v1618 = vadd.f32 %v1529, 1.0
    %v1619 = vadd.f32 %v1531, 1.0
    %v1620 = vadd.f32 %v1533, 1.0
    %v1621 = vadd.f32 %v1535, 1.0
    %v1622 = vadd.f32 %v1537, 1.0
    %v1623 = vadd.f32 %v1539, 1.0
    %v1624 = vadd.f32 %v1541, 1.0
    %v1625 = vadd.f32 %v1543, 1.0
    %v1626 = vadd.f32 %v1545, 1.0
    %v1627 = vadd.f32 %v1547, 1.0
    %v1628 = vadd.f32 %v1549, 1.0
    %v1629 = vadd.f32 %v1551, 1.0
    %v1630 = vadd.f32 %v1553, 1.0
    %v1631 = vadd.f32 %v1555, 1.0
    %v1632 = vadd.f32 %v1557, 1.0
    %v1633 = vadd.f32 %v1559, 1.0
    %v1634 = vadd.f32 %v1561, 1.0
    %v1635 = vadd.f32 %v1563, 1.0
    %v1636 = vadd.f32 %v1565, 1.0
    %v1637 = vadd.f32 %v1567, 1.0
    %v1638 = vadd.f32 %v1569, 1.0
    %v1639 = vadd.f32 %v1571, 1.0
    %v1640 = vadd.f32 %v1573, 1.0
    %v1641 = vadd.f32 %v1575, 1.0
    %v1642 = vadd.f32 %v1577, 1.0
    %v1643 = vadd.f32 %v1579, 1.0
    %v1644 = vrcp.pop %v1580
    %v1645 = vmul.f32 1.0, %v1644
    %v1646 = vrcp.pop %v1581
    %v1647 = vmul.f32 1.0, %v1646
    %v1648 = vrcp.pop %v1582
    %v1649 = vmul.f32 1.0, %v1648
    %v1650 = vrcp.pop %v1583
    %v1651 = vmul.f32 1.0, %v1650
    %v1652 = vrcp.pop %v1584
    %v1653 = vmul.f32 1.0, %v1652
    %v1654 = vrcp.pop %v1585
    %v1655 = vmul.f32 1.0, %v1654
    %v1656 = vrcp.pop %v1586
    %v1657 = vmul.f32 1.0, %v1656
    %v1658 = vrcp.pop %v1587
    %v1659 = vmul.f32 1.0, %v1658
    %v1660 = vrcp.pop %v1588
    %v1661 = vmul.f32 1.0, %v1660
    %v1662 = vrcp.pop %v1589
    %v1663 = vmul.f32 1.0, %v1662
    %v1664 = vrcp.pop %v1590
    %v1665 = vmul.f32 1.0, %v1664
    %v1666 = vrcp.pop %v1591
    %v1667 = vmul.f32 1.0, %v1666
    %v1668 = vrcp.pop %v1592
    %v1669 = vmul.f32 1.0, %v1668
    %v1670 = vrcp.pop %v1593
    %v1671 = vmul.f32 1.0, %v1670
    %v1672 = vrcp.pop %v1594
    %v1673 = vmul.f32 1.0, %v1672
    %v1674 = vrcp.pop %v1595
    %v1675 = vmul.f32 1.0, %v1674
    %v1676 = vrcp.pop %v1596
    %v1677 = vmul.f32 1.0, %v1676
    %v1678 = vrcp.pop %v1597
    %v1679 = vmul.f32 1.0, %v1678
    %v1680 = vrcp.pop %v1598
    %v1681 = vmul.f32 1.0, %v1680
    %v1682 = vrcp.pop %v1599
    %v1683 = vmul.f32 1.0, %v1682
    %v1684 = vrcp.pop %v1600
    %v1685 = vmul.f32 1.0, %v1684
    %v1686 = vrcp.pop %v1601
    %v1687 = vmul.f32 1.0, %v1686
    %v1688 = vrcp.pop %v1602
    %v1689 = vmul.f32 1.0, %v1688
    %v1690 = vrcp.pop %v1603
    %v1691 = vmul.f32 1.0, %v1690
    %v1692 = vrcp.pop %v1604
    %v1693 = vmul.f32 1.0, %v1692
    %v1694 = vrcp.pop %v1605
    %v1695 = vmul.f32 1.0, %v1694
    %v1696 = vrcp.pop %v1606
    %v1697 = vmul.f32 1.0, %v1696
    %v1698 = vrcp.pop %v1607
    %v1699 = vmul.f32 1.0, %v1698
    %v1700 = vrcp.pop %v1608
    %v1701 = vmul.f32 1.0, %v1700
    %v1702 = vrcp.pop %v1609
    %v1703 = vmul.f32 1.0, %v1702
    %v1704 = vrcp.pop %v1610
    %v1705 = vmul.f32 1.0, %v1704
    %v1706 = vrcp.pop %v1611
    %v1707 = vmul.f32 1.0, %v1706
    %v1708 = vrcp.pop %v1612
    %v1709 = vmul.f32 1.0, %v1708
    %v1710 = vrcp.pop %v1613
    %v1711 = vmul.f32 1.0, %v1710
    %v1712 = vrcp.pop %v1614
    %v1713 = vmul.f32 1.0, %v1712
    %v1714 = vrcp.pop %v1615
    %v1715 = vmul.f32 1.0, %v1714
    %v1716 = vrcp.pop %v1616
    %v1717 = vmul.f32 1.0, %v1716
    %v1718 = vrcp.pop %v1617
    %v1719 = vmul.f32 1.0, %v1718
    %v1720 = vrcp.pop %v1618
    %v1721 = vmul.f32 1.0, %v1720
    %v1722 = vrcp.pop %v1619
    %v1723 = vmul.f32 1.0, %v1722
    %v1724 = vrcp.pop %v1620
    %v1725 = vmul.f32 1.0, %v1724
    %v1726 = vrcp.pop %v1621
    %v1727 = vmul.f32 1.0, %v1726
    %v1728 = vrcp.pop %v1622
    %v1729 = vmul.f32 1.0, %v1728
    %v1730 = vrcp.pop %v1623
    %v1731 = vmul.f32 1.0, %v1730
    %v1732 = vrcp.pop %v1624
    %v1733 = vmul.f32 1.0, %v1732
    %v1734 = vrcp.pop %v1625
    %v1735 = vmul.f32 1.0, %v1734
    %v1736 = vrcp.pop %v1626
    %v1737 = vmul.f32 1.0, %v1736
    %v1738 = vrcp.pop %v1627
    %v1739 = vmul.f32 1.0, %v1738
    %v1740 = vrcp.pop %v1628
    %v1741 = vmul.f32 1.0, %v1740
    %v1742 = vrcp.pop %v1629
    %v1743 = vmul.f32 1.0, %v1742
    %v1744 = vrcp.pop %v1630
    %v1745 = vmul.f32 1.0, %v1744
    %v1746 = vrcp.pop %v1631
    %v1747 = vmul.f32 1.0, %v1746
    %v1748 = vrcp.pop %v1632
    %v1749 = vmul.f32 1.0, %v1748
    %v1750 = vrcp.pop %v1633
    %v1751 = vmul.f32 1.0, %v1750
    %v1752 = vrcp.pop %v1634
    %v1753 = vmul.f32 1.0, %v1752
    %v1754 = vrcp.pop %v1635
    %v1755 = vmul.f32 1.0, %v1754
    %v1756 = vrcp.pop %v1636
    %v1757 = vmul.f32 1.0, %v1756
    %v1758 = vrcp.pop %v1637
    %v1759 = vmul.f32 1.0, %v1758
    %v1760 = vrcp.pop %v1638
    %v1761 = vmul.f32 1.0, %v1760
    %v1762 = vrcp.pop %v1639
    %v1763 = vmul.f32 1.0, %v1762
    %v1764 = vrcp.pop %v1640
    %v1765 = vmul.f32 1.0, %v1764
    %v1766 = vrcp.pop %v1641
    %v1767 = vmul.f32 1.0, %v1766
    %v1768 = vrcp.pop %v1642
    %v1769 = vmul.f32 1.0, %v1768
    %v1770 = vrcp.pop %v1643
    %v1771 = vmul.f32 1.0, %v1770
    %vm1772 = vcmask 15368
    %v1773 = vsel %vm1772, %v1645, -inf
    %v1774 = vsel %vm1772, %v1647, -inf
    %v1775 = vmax.f32 %v1773, %v1774
    %v1776 = vsel %vm1772, %v1649, -inf
    %v1777 = vmax.f32 %v1775, %v1776
    %v1778 = vsel %vm1772, %v1651, -inf
    %v1779 = vmax.f32 %v1777, %v1778
    %v1780 = vsel %vm1772, %v1653, -inf
    %v1781 = vmax.f32 %v1779, %v1780
    %v1782 = vsel %vm1772, %v1655, -inf
    %v1783 = vmax.f32 %v1781, %v1782
    %v1784 = vsel %vm1772, %v1657, -inf
    %v1785 = vmax.f32 %v1783, %v1784
    %v1786 = vsel %vm1772, %v1659, -inf
    %v1787 = vmax.f32 %v1785, %v1786
    %v1788 = vrot.slane %v1787, 4
    %v1789 = vmax.f32 %v1787, %v1788
    %v1790 = vrot.slane %v1789, 2
    %v1791 = vmax.f32 %v1789, %v1790
    %v1792 = vrot.slane %v1791, 1
    %v1793 = vmax.f32 %v1791, %v1792
    %v1794 = vsel %vm1772, %v1661, -inf
    %v1795 = vsel %vm1772, %v1663, -inf
    %v1796 = vmax.f32 %v1794, %v1795
    %v1797 = vsel %vm1772, %v1665, -inf
    %v1798 = vmax.f32 %v1796, %v1797
    %v1799 = vsel %vm1772, %v1667, -inf
    %v1800 = vmax.f32 %v1798, %v1799
    %v1801 = vsel %vm1772, %v1669, -inf
    %v1802 = vmax.f32 %v1800, %v1801
    %v1803 = vsel %vm1772, %v1671, -inf
    %v1804 = vmax.f32 %v1802, %v1803
    %v1805 = vsel %vm1772, %v1673, -inf
    %v1806 = vmax.f32 %v1804, %v1805
    %v1807 = vsel %vm1772, %v1675, -inf
    %v1808 = vmax.f32 %v1806, %v1807
    %v1809 = vrot.slane %v1808, 4
    %v1810 = vmax.f32 %v1808, %v1809
    %v1811 = vrot.slane %v1810, 2
    %v1812 = vmax.f32 %v1810, %v1811
    %v1813 = vrot.slane %v1812, 1
    %v1814 = vmax.f32 %v1812, %v1813
    %v1815 = vsel %vm1772, %v1677, -inf
    %v1816 = vsel %vm1772, %v1679, -inf
    %v1817 = vmax.f32 %v1815, %v1816
    %v1818 = vsel %vm1772, %v1681, -inf
    %v1819 = vmax.f32 %v1817, %v1818
    %v1820 = vsel %vm1772, %v1683, -inf
    %v1821 = vmax.f32 %v1819, %v1820
    %v1822 = vsel %vm1772, %v1685, -inf
    %v1823 = vmax.f32 %v1821, %v1822
    %v1824 = vsel %vm1772, %v1687, -inf
    %v1825 = vmax.f32 %v1823, %v1824
    %v1826 = vsel %vm1772, %v1689, -inf
    %v1827 = vmax.f32 %v1825, %v1826
    %v1828 = vsel %vm1772, %v1691, -inf
    %v1829 = vmax.f32 %v1827, %v1828
    %v1830 = vrot.slane %v1829, 4
    %v1831 = vmax.f32 %v1829, %v1830
    %v1832 = vrot.slane %v1831, 2
    %v1833 = vmax.f32 %v1831, %v1832
    %v1834 = vrot.slane %v1833, 1
    %v1835 = vmax.f32 %v1833, %v1834
    %v1836 = vsel %vm1772, %v1693, -inf
    %v1837 = vsel %vm1772, %v1695, -inf
    %v1838 = vmax.f32 %v1836, %v1837
    %v1839 = vsel %vm1772, %v1697, -inf
    %v1840 = vmax.f32 %v1838, %v1839
    %v1841 = vsel %vm1772, %v1699, -inf
    %v1842 = vmax.f32 %v1840, %v1841
    %v1843 = vsel %vm1772, %v1701, -inf
    %v1844 = vmax.f32 %v1842, %v1843
    %v1845 = vsel %vm1772, %v1703, -inf
    %v1846 = vmax.f32 %v1844, %v1845
    %v1847 = vsel %vm1772, %v1705, -inf
    %v1848 = vmax.f32 %v1846, %v1847
    %v1849 = vsel %vm1772, %v1707, -inf
    %v1850 = vmax.f32 %v1848, %v1849
    %v1851 = vrot.slane %v1850, 4
    %v1852 = vmax.f32 %v1850, %v1851
    %v1853 = vrot.slane %v1852, 2
    %v1854 = vmax.f32 %v1852, %v1853
    %v1855 = vrot.slane %v1854, 1
    %v1856 = vmax.f32 %v1854, %v1855
    %v1857 = vsel %vm1772, %v1709, -inf
    %v1858 = vsel %vm1772, %v1711, -inf
    %v1859 = vmax.f32 %v1857, %v1858
    %v1860 = vsel %vm1772, %v1713, -inf
    %v1861 = vmax.f32 %v1859, %v1860
    %v1862 = vsel %vm1772, %v1715, -inf
    %v1863 = vmax.f32 %v1861, %v1862
    %v1864 = vsel %vm1772, %v1717, -inf
    %v1865 = vmax.f32 %v1863, %v1864
    %v1866 = vsel %vm1772, %v1719, -inf
    %v1867 = vmax.f32 %v1865, %v1866
    %v1868 = vsel %vm1772, %v1721, -inf
    %v1869 = vmax.f32 %v1867, %v1868
    %v1870 = vsel %vm1772, %v1723, -inf
    %v1871 = vmax.f32 %v1869, %v1870
    %v1872 = vrot.slane %v1871, 4
    %v1873 = vmax.f32 %v1871, %v1872
    %v1874 = vrot.slane %v1873, 2
    %v1875 = vmax.f32 %v1873, %v1874
    %v1876 = vrot.slane %v1875, 1
    %v1877 = vmax.f32 %v1875, %v1876
    %v1878 = vsel %vm1772, %v1725, -inf
    %v1879 = vsel %vm1772, %v1727, -inf
    %v1880 = vmax.f32 %v1878, %v1879
    %v1881 = vsel %vm1772, %v1729, -inf
    %v1882 = vmax.f32 %v1880, %v1881
    %v1883 = vsel %vm1772, %v1731, -inf
    %v1884 = vmax.f32 %v1882, %v1883
    %v1885 = vsel %vm1772, %v1733, -inf
    %v1886 = vmax.f32 %v1884, %v1885
    %v1887 = vsel %vm1772, %v1735, -inf
    %v1888 = vmax.f32 %v1886, %v1887
    %v1889 = vsel %vm1772, %v1737, -inf
    %v1890 = vmax.f32 %v1888, %v1889
    %v1891 = vsel %vm1772, %v1739, -inf
    %v1892 = vmax.f32 %v1890, %v1891
    %v1893 = vrot.slane %v1892, 4
    %v1894 = vmax.f32 %v1892, %v1893
    %v1895 = vrot.slane %v1894, 2
    %v1896 = vmax.f32 %v1894, %v1895
    %v1897 = vrot.slane %v1896, 1
    %v1898 = vmax.f32 %v1896, %v1897
    %v1899 = vsel %vm1772, %v1741, -inf
    %v1900 = vsel %vm1772, %v1743, -inf
    %v1901 = vmax.f32 %v1899, %v1900
    %v1902 = vsel %vm1772, %v1745, -inf
    %v1903 = vmax.f32 %v1901, %v1902
    %v1904 = vsel %vm1772, %v1747, -inf
    %v1905 = vmax.f32 %v1903, %v1904
    %v1906 = vsel %vm1772, %v1749, -inf
    %v1907 = vmax.f32 %v1905, %v1906
    %v1908 = vsel %vm1772, %v1751, -inf
    %v1909 = vmax.f32 %v1907, %v1908
    %v1910 = vsel %vm1772, %v1753, -inf
    %v1911 = vmax.f32 %v1909, %v1910
    %v1912 = vsel %vm1772, %v1755, -inf
    %v1913 = vmax.f32 %v1911, %v1912
    %v1914 = vrot.slane %v1913, 4
    %v1915 = vmax.f32 %v1913, %v1914
    %v1916 = vrot.slane %v1915, 2
    %v1917 = vmax.f32 %v1915, %v1916
    %v1918 = vrot.slane %v1917, 1
    %v1919 = vmax.f32 %v1917, %v1918
    %v1920 = vsel %vm1772, %v1757, -inf
    %v1921 = vsel %vm1772, %v1759, -inf
    %v1922 = vmax.f32 %v1920, %v1921
    %v1923 = vsel %vm1772, %v1761, -inf
    %v1924 = vmax.f32 %v1922, %v1923
    %v1925 = vsel %vm1772, %v1763, -inf
    %v1926 = vmax.f32 %v1924, %v1925
    %v1927 = vsel %vm1772, %v1765, -inf
    %v1928 = vmax.f32 %v1926, %v1927
    %v1929 = vsel %vm1772, %v1767, -inf
    %v1930 = vmax.f32 %v1928, %v1929
    %v1931 = vsel %vm1772, %v1769, -inf
    %v1932 = vmax.f32 %v1930, %v1931
    %v1933 = vsel %vm1772, %v1771, -inf
    %v1934 = vmax.f32 %v1932, %v1933
    %v1935 = vrot.slane %v1934, 4
    %v1936 = vmax.f32 %v1934, %v1935
    %v1937 = vrot.slane %v1936, 2
    %v1938 = vmax.f32 %v1936, %v1937
    %v1939 = vrot.slane %v1938, 1
    %v1940 = vmax.f32 %v1938, %v1939
    %vm1949 = vcmask 1041409
    %v1950 = vsel %vm1949, %v1195, %v1174
    %vm1951 = vcmask 1042434
    %v1952 = vsel %vm1951, %v1216, %v1950
    %vm1953 = vcmask 1043459
    %v1954 = vsel %vm1953, %v1237, %v1952
    %vm1955 = vcmask 1044484
    %v1956 = vsel %vm1955, %v1258, %v1954
    %vm1957 = vcmask 1045509
    %v1958 = vsel %vm1957, %v1279, %v1956
    %vm1959 = vcmask 1046534
    %v1960 = vsel %vm1959, %v1300, %v1958
    %vm1961 = vcmask 1047559
    %v1962 = vsel %vm1961, %v1321, %v1960
    %v1972 = vsel %vm1949, %v1814, %v1793
    %v1973 = vsel %vm1951, %v1835, %v1972
    %v1974 = vsel %vm1953, %v1856, %v1973
    %v1975 = vsel %vm1955, %v1877, %v1974
    %v1976 = vsel %vm1957, %v1898, %v1975
    %v1977 = vsel %vm1959, %v1919, %v1976
    %v1978 = vsel %vm1961, %v1940, %v1977
    %v1980 = vsel %vm1153, %v1962, %v1978
    %vm1981 = vcmask 15360
    %v1982 = vsel %vm1981, %v1980, -inf
    %1983 = vmax.xlane.f32.xlu0 %v1982
    %v1984 = vpop.xlane.xlu0 %1983
    %v1985 = vmul.f32 %v1984, 0.5
    %vm1986 = vcmp.ge.f32.partialorder %v1980, %v1985
    %v1987 = vsel %vm1986, 1, 0
    %v1988 = vcvt.s32.f32 %v1987
    %v1989 = vpack.c.bf16 %v1028, %v1026
    %v1990 = vpack.c.bf16 %v1032, %v1030
    %v1991 = vpack.c.bf16 %v1036, %v1034
    %v1992 = vpack.c.bf16 %v1040, %v1038
    %v1993 = vpack.c.bf16 %v1044, %v1042
    %v1994 = vpack.c.bf16 %v1048, %v1046
    %v1995 = vpack.c.bf16 %v1052, %v1050
    %v1996 = vpack.c.bf16 %v1056, %v1054
    %v1997 = vpack.c.bf16 %v1060, %v1058
    %v1998 = vpack.c.bf16 %v1064, %v1062
    %v1999 = vpack.c.bf16 %v1068, %v1066
    %v2000 = vpack.c.bf16 %v1072, %v1070
    %v2001 = vpack.c.bf16 %v1076, %v1074
    %v2002 = vpack.c.bf16 %v1080, %v1078
    %v2003 = vpack.c.bf16 %v1084, %v1082
    %v2004 = vpack.c.bf16 %v1088, %v1086
    %v2005 = vpack.c.bf16 %v1092, %v1090
    %v2006 = vpack.c.bf16 %v1096, %v1094
    %v2007 = vpack.c.bf16 %v1100, %v1098
    %v2008 = vpack.c.bf16 %v1104, %v1102
    %v2009 = vpack.c.bf16 %v1108, %v1106
    %v2010 = vpack.c.bf16 %v1112, %v1110
    %v2011 = vpack.c.bf16 %v1116, %v1114
    %v2012 = vpack.c.bf16 %v1120, %v1118
    %v2013 = vpack.c.bf16 %v1124, %v1122
    %v2014 = vpack.c.bf16 %v1128, %v1126
    %v2015 = vpack.c.bf16 %v1132, %v1130
    %v2016 = vpack.c.bf16 %v1136, %v1134
    %v2017 = vpack.c.bf16 %v1140, %v1138
    %v2018 = vpack.c.bf16 %v1144, %v1142
    %v2019 = vpack.c.bf16 %v1148, %v1146
    %v2020 = vpack.c.bf16 %v1152, %v1150
    %2022 = vset.pattern.permute.xlu0 0
    %2023 = vperm.xlu0 %2022, %v1989
    %v2024 = vpop.permute.xlu0 %2023
    %2026 = vset.pattern.permute.xlu0 0
    %2027 = vperm.xlu0 %2026, %v1990
    %v2028 = vpop.permute.xlu0 %2027
    %2030 = vset.pattern.permute.xlu0 0
    %2031 = vperm.xlu0 %2030, %v1991
    %v2032 = vpop.permute.xlu0 %2031
    %2034 = vset.pattern.permute.xlu0 0
    %2035 = vperm.xlu0 %2034, %v1992
    %v2036 = vpop.permute.xlu0 %2035
    %2038 = vset.pattern.permute.xlu0 0
    %2039 = vperm.xlu0 %2038, %v1993
    %v2040 = vpop.permute.xlu0 %2039
    %2042 = vset.pattern.permute.xlu0 0
    %2043 = vperm.xlu0 %2042, %v1994
    %v2044 = vpop.permute.xlu0 %2043
    %2046 = vset.pattern.permute.xlu0 0
    %2047 = vperm.xlu0 %2046, %v1995
    %v2048 = vpop.permute.xlu0 %2047
    %2050 = vset.pattern.permute.xlu0 0
    %2051 = vperm.xlu0 %2050, %v1996
    %v2052 = vpop.permute.xlu0 %2051
    %2054 = vset.pattern.permute.xlu0 0
    %2055 = vperm.xlu0 %2054, %v1997
    %v2056 = vpop.permute.xlu0 %2055
    %2058 = vset.pattern.permute.xlu0 0
    %2059 = vperm.xlu0 %2058, %v1998
    %v2060 = vpop.permute.xlu0 %2059
    %2062 = vset.pattern.permute.xlu0 0
    %2063 = vperm.xlu0 %2062, %v1999
    %v2064 = vpop.permute.xlu0 %2063
    %2066 = vset.pattern.permute.xlu0 0
    %2067 = vperm.xlu0 %2066, %v2000
    %v2068 = vpop.permute.xlu0 %2067
    %2070 = vset.pattern.permute.xlu0 0
    %2071 = vperm.xlu0 %2070, %v2001
    %v2072 = vpop.permute.xlu0 %2071
    %2074 = vset.pattern.permute.xlu0 0
    %2075 = vperm.xlu0 %2074, %v2002
    %v2076 = vpop.permute.xlu0 %2075
    %2078 = vset.pattern.permute.xlu0 0
    %2079 = vperm.xlu0 %2078, %v2003
    %v2080 = vpop.permute.xlu0 %2079
    %2082 = vset.pattern.permute.xlu0 0
    %2083 = vperm.xlu0 %2082, %v2004
    %v2084 = vpop.permute.xlu0 %2083
    %2086 = vset.pattern.permute.xlu0 0
    %2087 = vperm.xlu0 %2086, %v2005
    %v2088 = vpop.permute.xlu0 %2087
    %2090 = vset.pattern.permute.xlu0 0
    %2091 = vperm.xlu0 %2090, %v2006
    %v2092 = vpop.permute.xlu0 %2091
    %2094 = vset.pattern.permute.xlu0 0
    %2095 = vperm.xlu0 %2094, %v2007
    %v2096 = vpop.permute.xlu0 %2095
    %2098 = vset.pattern.permute.xlu0 0
    %2099 = vperm.xlu0 %2098, %v2008
    %v2100 = vpop.permute.xlu0 %2099
    %2102 = vset.pattern.permute.xlu0 0
    %2103 = vperm.xlu0 %2102, %v2009
    %v2104 = vpop.permute.xlu0 %2103
    %2106 = vset.pattern.permute.xlu0 0
    %2107 = vperm.xlu0 %2106, %v2010
    %v2108 = vpop.permute.xlu0 %2107
    %2110 = vset.pattern.permute.xlu0 0
    %2111 = vperm.xlu0 %2110, %v2011
    %v2112 = vpop.permute.xlu0 %2111
    %2114 = vset.pattern.permute.xlu0 0
    %2115 = vperm.xlu0 %2114, %v2012
    %v2116 = vpop.permute.xlu0 %2115
    %2118 = vset.pattern.permute.xlu0 0
    %2119 = vperm.xlu0 %2118, %v2013
    %v2120 = vpop.permute.xlu0 %2119
    %2122 = vset.pattern.permute.xlu0 0
    %2123 = vperm.xlu0 %2122, %v2014
    %v2124 = vpop.permute.xlu0 %2123
    %2126 = vset.pattern.permute.xlu0 0
    %2127 = vperm.xlu0 %2126, %v2015
    %v2128 = vpop.permute.xlu0 %2127
    %2130 = vset.pattern.permute.xlu0 0
    %2131 = vperm.xlu0 %2130, %v2016
    %v2132 = vpop.permute.xlu0 %2131
    %2134 = vset.pattern.permute.xlu0 0
    %2135 = vperm.xlu0 %2134, %v2017
    %v2136 = vpop.permute.xlu0 %2135
    %2138 = vset.pattern.permute.xlu0 0
    %2139 = vperm.xlu0 %2138, %v2018
    %v2140 = vpop.permute.xlu0 %2139
    %2142 = vset.pattern.permute.xlu0 0
    %2143 = vperm.xlu0 %2142, %v2019
    %v2144 = vpop.permute.xlu0 %2143
    %2146 = vset.pattern.permute.xlu0 0
    %2147 = vperm.xlu0 %2146, %v2020
    %v2148 = vpop.permute.xlu0 %2147
    %v2182 = vunpack.c.l.s4 839922192
    %v2183 = vunpack.c.0.s8 %v2182
    %v2184 = vlaneseq
    %v2185 = vshrl.u32 %v2184, 7
    %v2186 = vsub.s32 %v2183, %v2185
    %v2187 = vrot.slane %v2024, %v2186
    %v2189 = vunpack.c.l.s4 1985246804
    %v2190 = vunpack.c.0.s8 %v2189
    %v2191 = vlaneseq
    %v2192 = vshrl.u32 %v2191, 7
    %v2193 = vsub.s32 %v2190, %v2192
    %v2194 = vrot.slane %v2024, %v2193
    %v2196 = vunpack.c.l.s4 839922192
    %v2197 = vunpack.c.0.s8 %v2196
    %v2198 = vlaneseq
    %v2199 = vshrl.u32 %v2198, 7
    %v2200 = vsub.s32 %v2197, %v2199
    %v2201 = vrot.slane %v2028, %v2200
    %v2203 = vunpack.c.l.s4 1985246804
    %v2204 = vunpack.c.0.s8 %v2203
    %v2205 = vlaneseq
    %v2206 = vshrl.u32 %v2205, 7
    %v2207 = vsub.s32 %v2204, %v2206
    %v2208 = vrot.slane %v2028, %v2207
    %v2210 = vunpack.c.l.s4 839922192
    %v2211 = vunpack.c.0.s8 %v2210
    %v2212 = vlaneseq
    %v2213 = vshrl.u32 %v2212, 7
    %v2214 = vsub.s32 %v2211, %v2213
    %v2215 = vrot.slane %v2032, %v2214
    %v2217 = vunpack.c.l.s4 1985246804
    %v2218 = vunpack.c.0.s8 %v2217
    %v2219 = vlaneseq
    %v2220 = vshrl.u32 %v2219, 7
    %v2221 = vsub.s32 %v2218, %v2220
    %v2222 = vrot.slane %v2032, %v2221
    %v2224 = vunpack.c.l.s4 839922192
    %v2225 = vunpack.c.0.s8 %v2224
    %v2226 = vlaneseq
    %v2227 = vshrl.u32 %v2226, 7
    %v2228 = vsub.s32 %v2225, %v2227
    %v2229 = vrot.slane %v2036, %v2228
    %v2231 = vunpack.c.l.s4 1985246804
    %v2232 = vunpack.c.0.s8 %v2231
    %v2233 = vlaneseq
    %v2234 = vshrl.u32 %v2233, 7
    %v2235 = vsub.s32 %v2232, %v2234
    %v2236 = vrot.slane %v2036, %v2235
    %v2238 = vunpack.c.l.s4 839922192
    %v2239 = vunpack.c.0.s8 %v2238
    %v2240 = vlaneseq
    %v2241 = vshrl.u32 %v2240, 7
    %v2242 = vsub.s32 %v2239, %v2241
    %v2243 = vrot.slane %v2040, %v2242
    %v2245 = vunpack.c.l.s4 1985246804
    %v2246 = vunpack.c.0.s8 %v2245
    %v2247 = vlaneseq
    %v2248 = vshrl.u32 %v2247, 7
    %v2249 = vsub.s32 %v2246, %v2248
    %v2250 = vrot.slane %v2040, %v2249
    %v2252 = vunpack.c.l.s4 839922192
    %v2253 = vunpack.c.0.s8 %v2252
    %v2254 = vlaneseq
    %v2255 = vshrl.u32 %v2254, 7
    %v2256 = vsub.s32 %v2253, %v2255
    %v2257 = vrot.slane %v2044, %v2256
    %v2259 = vunpack.c.l.s4 1985246804
    %v2260 = vunpack.c.0.s8 %v2259
    %v2261 = vlaneseq
    %v2262 = vshrl.u32 %v2261, 7
    %v2263 = vsub.s32 %v2260, %v2262
    %v2264 = vrot.slane %v2044, %v2263
    %v2266 = vunpack.c.l.s4 839922192
    %v2267 = vunpack.c.0.s8 %v2266
    %v2268 = vlaneseq
    %v2269 = vshrl.u32 %v2268, 7
    %v2270 = vsub.s32 %v2267, %v2269
    %v2271 = vrot.slane %v2048, %v2270
    %v2273 = vunpack.c.l.s4 1985246804
    %v2274 = vunpack.c.0.s8 %v2273
    %v2275 = vlaneseq
    %v2276 = vshrl.u32 %v2275, 7
    %v2277 = vsub.s32 %v2274, %v2276
    %v2278 = vrot.slane %v2048, %v2277
    %v2280 = vunpack.c.l.s4 839922192
    %v2281 = vunpack.c.0.s8 %v2280
    %v2282 = vlaneseq
    %v2283 = vshrl.u32 %v2282, 7
    %v2284 = vsub.s32 %v2281, %v2283
    %v2285 = vrot.slane %v2052, %v2284
    %v2287 = vunpack.c.l.s4 1985246804
    %v2288 = vunpack.c.0.s8 %v2287
    %v2289 = vlaneseq
    %v2290 = vshrl.u32 %v2289, 7
    %v2291 = vsub.s32 %v2288, %v2290
    %v2292 = vrot.slane %v2052, %v2291
    %v2294 = vunpack.c.l.s4 839922192
    %v2295 = vunpack.c.0.s8 %v2294
    %v2296 = vlaneseq
    %v2297 = vshrl.u32 %v2296, 7
    %v2298 = vsub.s32 %v2295, %v2297
    %v2299 = vrot.slane %v2056, %v2298
    %v2301 = vunpack.c.l.s4 1985246804
    %v2302 = vunpack.c.0.s8 %v2301
    %v2303 = vlaneseq
    %v2304 = vshrl.u32 %v2303, 7
    %v2305 = vsub.s32 %v2302, %v2304
    %v2306 = vrot.slane %v2056, %v2305
    %v2308 = vunpack.c.l.s4 839922192
    %v2309 = vunpack.c.0.s8 %v2308
    %v2310 = vlaneseq
    %v2311 = vshrl.u32 %v2310, 7
    %v2312 = vsub.s32 %v2309, %v2311
    %v2313 = vrot.slane %v2060, %v2312
    %v2315 = vunpack.c.l.s4 1985246804
    %v2316 = vunpack.c.0.s8 %v2315
    %v2317 = vlaneseq
    %v2318 = vshrl.u32 %v2317, 7
    %v2319 = vsub.s32 %v2316, %v2318
    %v2320 = vrot.slane %v2060, %v2319
    %v2322 = vunpack.c.l.s4 839922192
    %v2323 = vunpack.c.0.s8 %v2322
    %v2324 = vlaneseq
    %v2325 = vshrl.u32 %v2324, 7
    %v2326 = vsub.s32 %v2323, %v2325
    %v2327 = vrot.slane %v2064, %v2326
    %v2329 = vunpack.c.l.s4 1985246804
    %v2330 = vunpack.c.0.s8 %v2329
    %v2331 = vlaneseq
    %v2332 = vshrl.u32 %v2331, 7
    %v2333 = vsub.s32 %v2330, %v2332
    %v2334 = vrot.slane %v2064, %v2333
    %v2336 = vunpack.c.l.s4 839922192
    %v2337 = vunpack.c.0.s8 %v2336
    %v2338 = vlaneseq
    %v2339 = vshrl.u32 %v2338, 7
    %v2340 = vsub.s32 %v2337, %v2339
    %v2341 = vrot.slane %v2068, %v2340
    %v2343 = vunpack.c.l.s4 1985246804
    %v2344 = vunpack.c.0.s8 %v2343
    %v2345 = vlaneseq
    %v2346 = vshrl.u32 %v2345, 7
    %v2347 = vsub.s32 %v2344, %v2346
    %v2348 = vrot.slane %v2068, %v2347
    %v2350 = vunpack.c.l.s4 839922192
    %v2351 = vunpack.c.0.s8 %v2350
    %v2352 = vlaneseq
    %v2353 = vshrl.u32 %v2352, 7
    %v2354 = vsub.s32 %v2351, %v2353
    %v2355 = vrot.slane %v2072, %v2354
    %v2357 = vunpack.c.l.s4 1985246804
    %v2358 = vunpack.c.0.s8 %v2357
    %v2359 = vlaneseq
    %v2360 = vshrl.u32 %v2359, 7
    %v2361 = vsub.s32 %v2358, %v2360
    %v2362 = vrot.slane %v2072, %v2361
    %v2364 = vunpack.c.l.s4 839922192
    %v2365 = vunpack.c.0.s8 %v2364
    %v2366 = vlaneseq
    %v2367 = vshrl.u32 %v2366, 7
    %v2368 = vsub.s32 %v2365, %v2367
    %v2369 = vrot.slane %v2076, %v2368
    %v2371 = vunpack.c.l.s4 1985246804
    %v2372 = vunpack.c.0.s8 %v2371
    %v2373 = vlaneseq
    %v2374 = vshrl.u32 %v2373, 7
    %v2375 = vsub.s32 %v2372, %v2374
    %v2376 = vrot.slane %v2076, %v2375
    %v2378 = vunpack.c.l.s4 839922192
    %v2379 = vunpack.c.0.s8 %v2378
    %v2380 = vlaneseq
    %v2381 = vshrl.u32 %v2380, 7
    %v2382 = vsub.s32 %v2379, %v2381
    %v2383 = vrot.slane %v2080, %v2382
    %v2385 = vunpack.c.l.s4 1985246804
    %v2386 = vunpack.c.0.s8 %v2385
    %v2387 = vlaneseq
    %v2388 = vshrl.u32 %v2387, 7
    %v2389 = vsub.s32 %v2386, %v2388
    %v2390 = vrot.slane %v2080, %v2389
    %v2392 = vunpack.c.l.s4 839922192
    %v2393 = vunpack.c.0.s8 %v2392
    %v2394 = vlaneseq
    %v2395 = vshrl.u32 %v2394, 7
    %v2396 = vsub.s32 %v2393, %v2395
    %v2397 = vrot.slane %v2084, %v2396
    %v2399 = vunpack.c.l.s4 1985246804
    %v2400 = vunpack.c.0.s8 %v2399
    %v2401 = vlaneseq
    %v2402 = vshrl.u32 %v2401, 7
    %v2403 = vsub.s32 %v2400, %v2402
    %v2404 = vrot.slane %v2084, %v2403
    %v2406 = vunpack.c.l.s4 839922192
    %v2407 = vunpack.c.0.s8 %v2406
    %v2408 = vlaneseq
    %v2409 = vshrl.u32 %v2408, 7
    %v2410 = vsub.s32 %v2407, %v2409
    %v2411 = vrot.slane %v2088, %v2410
    %v2413 = vunpack.c.l.s4 1985246804
    %v2414 = vunpack.c.0.s8 %v2413
    %v2415 = vlaneseq
    %v2416 = vshrl.u32 %v2415, 7
    %v2417 = vsub.s32 %v2414, %v2416
    %v2418 = vrot.slane %v2088, %v2417
    %v2420 = vunpack.c.l.s4 839922192
    %v2421 = vunpack.c.0.s8 %v2420
    %v2422 = vlaneseq
    %v2423 = vshrl.u32 %v2422, 7
    %v2424 = vsub.s32 %v2421, %v2423
    %v2425 = vrot.slane %v2092, %v2424
    %v2427 = vunpack.c.l.s4 1985246804
    %v2428 = vunpack.c.0.s8 %v2427
    %v2429 = vlaneseq
    %v2430 = vshrl.u32 %v2429, 7
    %v2431 = vsub.s32 %v2428, %v2430
    %v2432 = vrot.slane %v2092, %v2431
    %v2434 = vunpack.c.l.s4 839922192
    %v2435 = vunpack.c.0.s8 %v2434
    %v2436 = vlaneseq
    %v2437 = vshrl.u32 %v2436, 7
    %v2438 = vsub.s32 %v2435, %v2437
    %v2439 = vrot.slane %v2096, %v2438
    %v2441 = vunpack.c.l.s4 1985246804
    %v2442 = vunpack.c.0.s8 %v2441
    %v2443 = vlaneseq
    %v2444 = vshrl.u32 %v2443, 7
    %v2445 = vsub.s32 %v2442, %v2444
    %v2446 = vrot.slane %v2096, %v2445
    %v2448 = vunpack.c.l.s4 839922192
    %v2449 = vunpack.c.0.s8 %v2448
    %v2450 = vlaneseq
    %v2451 = vshrl.u32 %v2450, 7
    %v2452 = vsub.s32 %v2449, %v2451
    %v2453 = vrot.slane %v2100, %v2452
    %v2455 = vunpack.c.l.s4 1985246804
    %v2456 = vunpack.c.0.s8 %v2455
    %v2457 = vlaneseq
    %v2458 = vshrl.u32 %v2457, 7
    %v2459 = vsub.s32 %v2456, %v2458
    %v2460 = vrot.slane %v2100, %v2459
    %v2462 = vunpack.c.l.s4 839922192
    %v2463 = vunpack.c.0.s8 %v2462
    %v2464 = vlaneseq
    %v2465 = vshrl.u32 %v2464, 7
    %v2466 = vsub.s32 %v2463, %v2465
    %v2467 = vrot.slane %v2104, %v2466
    %v2469 = vunpack.c.l.s4 1985246804
    %v2470 = vunpack.c.0.s8 %v2469
    %v2471 = vlaneseq
    %v2472 = vshrl.u32 %v2471, 7
    %v2473 = vsub.s32 %v2470, %v2472
    %v2474 = vrot.slane %v2104, %v2473
    %v2476 = vunpack.c.l.s4 839922192
    %v2477 = vunpack.c.0.s8 %v2476
    %v2478 = vlaneseq
    %v2479 = vshrl.u32 %v2478, 7
    %v2480 = vsub.s32 %v2477, %v2479
    %v2481 = vrot.slane %v2108, %v2480
    %v2483 = vunpack.c.l.s4 1985246804
    %v2484 = vunpack.c.0.s8 %v2483
    %v2485 = vlaneseq
    %v2486 = vshrl.u32 %v2485, 7
    %v2487 = vsub.s32 %v2484, %v2486
    %v2488 = vrot.slane %v2108, %v2487
    %v2490 = vunpack.c.l.s4 839922192
    %v2491 = vunpack.c.0.s8 %v2490
    %v2492 = vlaneseq
    %v2493 = vshrl.u32 %v2492, 7
    %v2494 = vsub.s32 %v2491, %v2493
    %v2495 = vrot.slane %v2112, %v2494
    %v2497 = vunpack.c.l.s4 1985246804
    %v2498 = vunpack.c.0.s8 %v2497
    %v2499 = vlaneseq
    %v2500 = vshrl.u32 %v2499, 7
    %v2501 = vsub.s32 %v2498, %v2500
    %v2502 = vrot.slane %v2112, %v2501
    %v2504 = vunpack.c.l.s4 839922192
    %v2505 = vunpack.c.0.s8 %v2504
    %v2506 = vlaneseq
    %v2507 = vshrl.u32 %v2506, 7
    %v2508 = vsub.s32 %v2505, %v2507
    %v2509 = vrot.slane %v2116, %v2508
    %v2511 = vunpack.c.l.s4 1985246804
    %v2512 = vunpack.c.0.s8 %v2511
    %v2513 = vlaneseq
    %v2514 = vshrl.u32 %v2513, 7
    %v2515 = vsub.s32 %v2512, %v2514
    %v2516 = vrot.slane %v2116, %v2515
    %v2518 = vunpack.c.l.s4 839922192
    %v2519 = vunpack.c.0.s8 %v2518
    %v2520 = vlaneseq
    %v2521 = vshrl.u32 %v2520, 7
    %v2522 = vsub.s32 %v2519, %v2521
    %v2523 = vrot.slane %v2120, %v2522
    %v2525 = vunpack.c.l.s4 1985246804
    %v2526 = vunpack.c.0.s8 %v2525
    %v2527 = vlaneseq
    %v2528 = vshrl.u32 %v2527, 7
    %v2529 = vsub.s32 %v2526, %v2528
    %v2530 = vrot.slane %v2120, %v2529
    %v2532 = vunpack.c.l.s4 839922192
    %v2533 = vunpack.c.0.s8 %v2532
    %v2534 = vlaneseq
    %v2535 = vshrl.u32 %v2534, 7
    %v2536 = vsub.s32 %v2533, %v2535
    %v2537 = vrot.slane %v2124, %v2536
    %v2539 = vunpack.c.l.s4 1985246804
    %v2540 = vunpack.c.0.s8 %v2539
    %v2541 = vlaneseq
    %v2542 = vshrl.u32 %v2541, 7
    %v2543 = vsub.s32 %v2540, %v2542
    %v2544 = vrot.slane %v2124, %v2543
    %v2546 = vunpack.c.l.s4 839922192
    %v2547 = vunpack.c.0.s8 %v2546
    %v2548 = vlaneseq
    %v2549 = vshrl.u32 %v2548, 7
    %v2550 = vsub.s32 %v2547, %v2549
    %v2551 = vrot.slane %v2128, %v2550
    %v2553 = vunpack.c.l.s4 1985246804
    %v2554 = vunpack.c.0.s8 %v2553
    %v2555 = vlaneseq
    %v2556 = vshrl.u32 %v2555, 7
    %v2557 = vsub.s32 %v2554, %v2556
    %v2558 = vrot.slane %v2128, %v2557
    %v2560 = vunpack.c.l.s4 839922192
    %v2561 = vunpack.c.0.s8 %v2560
    %v2562 = vlaneseq
    %v2563 = vshrl.u32 %v2562, 7
    %v2564 = vsub.s32 %v2561, %v2563
    %v2565 = vrot.slane %v2132, %v2564
    %v2567 = vunpack.c.l.s4 1985246804
    %v2568 = vunpack.c.0.s8 %v2567
    %v2569 = vlaneseq
    %v2570 = vshrl.u32 %v2569, 7
    %v2571 = vsub.s32 %v2568, %v2570
    %v2572 = vrot.slane %v2132, %v2571
    %v2574 = vunpack.c.l.s4 839922192
    %v2575 = vunpack.c.0.s8 %v2574
    %v2576 = vlaneseq
    %v2577 = vshrl.u32 %v2576, 7
    %v2578 = vsub.s32 %v2575, %v2577
    %v2579 = vrot.slane %v2136, %v2578
    %v2581 = vunpack.c.l.s4 1985246804
    %v2582 = vunpack.c.0.s8 %v2581
    %v2583 = vlaneseq
    %v2584 = vshrl.u32 %v2583, 7
    %v2585 = vsub.s32 %v2582, %v2584
    %v2586 = vrot.slane %v2136, %v2585
    %v2588 = vunpack.c.l.s4 839922192
    %v2589 = vunpack.c.0.s8 %v2588
    %v2590 = vlaneseq
    %v2591 = vshrl.u32 %v2590, 7
    %v2592 = vsub.s32 %v2589, %v2591
    %v2593 = vrot.slane %v2140, %v2592
    %v2595 = vunpack.c.l.s4 1985246804
    %v2596 = vunpack.c.0.s8 %v2595
    %v2597 = vlaneseq
    %v2598 = vshrl.u32 %v2597, 7
    %v2599 = vsub.s32 %v2596, %v2598
    %v2600 = vrot.slane %v2140, %v2599
    %v2602 = vunpack.c.l.s4 839922192
    %v2603 = vunpack.c.0.s8 %v2602
    %v2604 = vlaneseq
    %v2605 = vshrl.u32 %v2604, 7
    %v2606 = vsub.s32 %v2603, %v2605
    %v2607 = vrot.slane %v2144, %v2606
    %v2609 = vunpack.c.l.s4 1985246804
    %v2610 = vunpack.c.0.s8 %v2609
    %v2611 = vlaneseq
    %v2612 = vshrl.u32 %v2611, 7
    %v2613 = vsub.s32 %v2610, %v2612
    %v2614 = vrot.slane %v2144, %v2613
    %v2616 = vunpack.c.l.s4 839922192
    %v2617 = vunpack.c.0.s8 %v2616
    %v2618 = vlaneseq
    %v2619 = vshrl.u32 %v2618, 7
    %v2620 = vsub.s32 %v2617, %v2619
    %v2621 = vrot.slane %v2148, %v2620
    %v2623 = vunpack.c.l.s4 1985246804
    %v2624 = vunpack.c.0.s8 %v2623
    %v2625 = vlaneseq
    %v2626 = vshrl.u32 %v2625, 7
    %v2627 = vsub.s32 %v2624, %v2626
    %v2628 = vrot.slane %v2148, %v2627
    %v2693 = vmul.bf16 %v61, %v2187
    %v2694 = vmul.bf16 %v62, %v2194
    %v2695 = vmul.bf16 %v63, %v2201
    %v2696 = vmul.bf16 %v64, %v2208
    %v2697 = vmul.bf16 %v65, %v2215
    %v2698 = vmul.bf16 %v66, %v2222
    %v2699 = vmul.bf16 %v67, %v2229
    %v2700 = vmul.bf16 %v68, %v2236
    %v2701 = vmul.bf16 %v69, %v2243
    %v2702 = vmul.bf16 %v70, %v2250
    %v2703 = vmul.bf16 %v71, %v2257
    %v2704 = vmul.bf16 %v72, %v2264
    %v2705 = vmul.bf16 %v73, %v2271
    %v2706 = vmul.bf16 %v74, %v2278
    %v2707 = vmul.bf16 %v75, %v2285
    %v2708 = vmul.bf16 %v76, %v2292
    %v2709 = vmul.bf16 %v77, %v2299
    %v2710 = vmul.bf16 %v78, %v2306
    %v2711 = vmul.bf16 %v79, %v2313
    %v2712 = vmul.bf16 %v80, %v2320
    %v2713 = vmul.bf16 %v81, %v2327
    %v2714 = vmul.bf16 %v82, %v2334
    %v2715 = vmul.bf16 %v83, %v2341
    %v2716 = vmul.bf16 %v84, %v2348
    %v2717 = vmul.bf16 %v85, %v2355
    %v2718 = vmul.bf16 %v86, %v2362
    %v2719 = vmul.bf16 %v87, %v2369
    %v2720 = vmul.bf16 %v88, %v2376
    %v2721 = vmul.bf16 %v89, %v2383
    %v2722 = vmul.bf16 %v90, %v2390
    %v2723 = vmul.bf16 %v91, %v2397
    %v2724 = vmul.bf16 %v92, %v2404
    %v2725 = vmul.bf16 %v93, %v2411
    %v2726 = vmul.bf16 %v94, %v2418
    %v2727 = vmul.bf16 %v95, %v2425
    %v2728 = vmul.bf16 %v96, %v2432
    %v2729 = vmul.bf16 %v97, %v2439
    %v2730 = vmul.bf16 %v98, %v2446
    %v2731 = vmul.bf16 %v99, %v2453
    %v2732 = vmul.bf16 %v100, %v2460
    %v2733 = vmul.bf16 %v101, %v2467
    %v2734 = vmul.bf16 %v102, %v2474
    %v2735 = vmul.bf16 %v103, %v2481
    %v2736 = vmul.bf16 %v104, %v2488
    %v2737 = vmul.bf16 %v105, %v2495
    %v2738 = vmul.bf16 %v106, %v2502
    %v2739 = vmul.bf16 %v107, %v2509
    %v2740 = vmul.bf16 %v108, %v2516
    %v2741 = vmul.bf16 %v109, %v2523
    %v2742 = vmul.bf16 %v110, %v2530
    %v2743 = vmul.bf16 %v111, %v2537
    %v2744 = vmul.bf16 %v112, %v2544
    %v2745 = vmul.bf16 %v113, %v2551
    %v2746 = vmul.bf16 %v114, %v2558
    %v2747 = vmul.bf16 %v115, %v2565
    %v2748 = vmul.bf16 %v116, %v2572
    %v2749 = vmul.bf16 %v117, %v2579
    %v2750 = vmul.bf16 %v118, %v2586
    %v2751 = vmul.bf16 %v119, %v2593
    %v2752 = vmul.bf16 %v120, %v2600
    %v2753 = vmul.bf16 %v121, %v2607
    %v2754 = vmul.bf16 %v122, %v2614
    %v2755 = vmul.bf16 %v123, %v2621
    %v2756 = vmul.bf16 %v124, %v2628
    %v2821 = vunpack.c.l.b16 %v2693
    %v2822 = vunpack.c.l.b16 %v2694
    %v2823 = vunpack.c.l.b16 %v2695
    %v2824 = vunpack.c.l.b16 %v2696
    %v2825 = vunpack.c.l.b16 %v2697
    %v2826 = vunpack.c.l.b16 %v2698
    %v2827 = vunpack.c.l.b16 %v2699
    %v2828 = vunpack.c.l.b16 %v2700
    %v2829 = vunpack.c.l.b16 %v2701
    %v2830 = vunpack.c.l.b16 %v2702
    %v2831 = vunpack.c.l.b16 %v2703
    %v2832 = vunpack.c.l.b16 %v2704
    %v2833 = vunpack.c.l.b16 %v2705
    %v2834 = vunpack.c.l.b16 %v2706
    %v2835 = vunpack.c.l.b16 %v2707
    %v2836 = vunpack.c.l.b16 %v2708
    %v2837 = vunpack.c.l.b16 %v2709
    %v2838 = vunpack.c.l.b16 %v2710
    %v2839 = vunpack.c.l.b16 %v2711
    %v2840 = vunpack.c.l.b16 %v2712
    %v2841 = vunpack.c.l.b16 %v2713
    %v2842 = vunpack.c.l.b16 %v2714
    %v2843 = vunpack.c.l.b16 %v2715
    %v2844 = vunpack.c.l.b16 %v2716
    %v2845 = vunpack.c.l.b16 %v2717
    %v2846 = vunpack.c.l.b16 %v2718
    %v2847 = vunpack.c.l.b16 %v2719
    %v2848 = vunpack.c.l.b16 %v2720
    %v2849 = vunpack.c.l.b16 %v2721
    %v2850 = vunpack.c.l.b16 %v2722
    %v2851 = vunpack.c.l.b16 %v2723
    %v2852 = vunpack.c.l.b16 %v2724
    %v2853 = vunpack.c.l.b16 %v2725
    %v2854 = vunpack.c.l.b16 %v2726
    %v2855 = vunpack.c.l.b16 %v2727
    %v2856 = vunpack.c.l.b16 %v2728
    %v2857 = vunpack.c.l.b16 %v2729
    %v2858 = vunpack.c.l.b16 %v2730
    %v2859 = vunpack.c.l.b16 %v2731
    %v2860 = vunpack.c.l.b16 %v2732
    %v2861 = vunpack.c.l.b16 %v2733
    %v2862 = vunpack.c.l.b16 %v2734
    %v2863 = vunpack.c.l.b16 %v2735
    %v2864 = vunpack.c.l.b16 %v2736
    %v2865 = vunpack.c.l.b16 %v2737
    %v2866 = vunpack.c.l.b16 %v2738
    %v2867 = vunpack.c.l.b16 %v2739
    %v2868 = vunpack.c.l.b16 %v2740
    %v2869 = vunpack.c.l.b16 %v2741
    %v2870 = vunpack.c.l.b16 %v2742
    %v2871 = vunpack.c.l.b16 %v2743
    %v2872 = vunpack.c.l.b16 %v2744
    %v2873 = vunpack.c.l.b16 %v2745
    %v2874 = vunpack.c.l.b16 %v2746
    %v2875 = vunpack.c.l.b16 %v2747
    %v2876 = vunpack.c.l.b16 %v2748
    %v2877 = vunpack.c.l.b16 %v2749
    %v2878 = vunpack.c.l.b16 %v2750
    %v2879 = vunpack.c.l.b16 %v2751
    %v2880 = vunpack.c.l.b16 %v2752
    %v2881 = vunpack.c.l.b16 %v2753
    %v2882 = vunpack.c.l.b16 %v2754
    %v2883 = vunpack.c.l.b16 %v2755
    %v2884 = vunpack.c.l.b16 %v2756
    %v2885 = vpack.c.b16 %v2822, %v2821
    %v2886 = vpack.c.b16 %v2824, %v2823
    %v2887 = vpack.c.b16 %v2826, %v2825
    %v2888 = vpack.c.b16 %v2828, %v2827
    %v2889 = vpack.c.b16 %v2830, %v2829
    %v2890 = vpack.c.b16 %v2832, %v2831
    %v2891 = vpack.c.b16 %v2834, %v2833
    %v2892 = vpack.c.b16 %v2836, %v2835
    %v2893 = vpack.c.b16 %v2838, %v2837
    %v2894 = vpack.c.b16 %v2840, %v2839
    %v2895 = vpack.c.b16 %v2842, %v2841
    %v2896 = vpack.c.b16 %v2844, %v2843
    %v2897 = vpack.c.b16 %v2846, %v2845
    %v2898 = vpack.c.b16 %v2848, %v2847
    %v2899 = vpack.c.b16 %v2850, %v2849
    %v2900 = vpack.c.b16 %v2852, %v2851
    %v2901 = vpack.c.b16 %v2854, %v2853
    %v2902 = vpack.c.b16 %v2856, %v2855
    %v2903 = vpack.c.b16 %v2858, %v2857
    %v2904 = vpack.c.b16 %v2860, %v2859
    %v2905 = vpack.c.b16 %v2862, %v2861
    %v2906 = vpack.c.b16 %v2864, %v2863
    %v2907 = vpack.c.b16 %v2866, %v2865
    %v2908 = vpack.c.b16 %v2868, %v2867
    %v2909 = vpack.c.b16 %v2870, %v2869
    %v2910 = vpack.c.b16 %v2872, %v2871
    %v2911 = vpack.c.b16 %v2874, %v2873
    %v2912 = vpack.c.b16 %v2876, %v2875
    %v2913 = vpack.c.b16 %v2878, %v2877
    %v2914 = vpack.c.b16 %v2880, %v2879
    %v2915 = vpack.c.b16 %v2882, %v2881
    %v2916 = vpack.c.b16 %v2884, %v2883
    %v2919 = vsel %vm317, %v2885, 4286644096
    %v2922 = vsel %vm317, %v2886, 4286644096
    %v2924 = vmax.bf16 %v2919, %v2922
    %v2926 = vsel %vm317, %v2887, 4286644096
    %v2928 = vmax.bf16 %v2924, %v2926
    %v2930 = vsel %vm317, %v2888, 4286644096
    %v2932 = vmax.bf16 %v2928, %v2930
    %v2933 = vunpack.i.l.bf16 %v2932
    %v2934 = vunpack.i.h.bf16 %v2932
    %v2935 = vmax.f32 %v2933, %v2934
    %v2936 = vrot.slane %v2935, 4
    %v2937 = vmax.f32 %v2935, %v2936
    %v2938 = vrot.slane %v2937, 2
    %v2939 = vmax.f32 %v2937, %v2938
    %v2940 = vrot.slane %v2939, 1
    %v2941 = vmax.f32 %v2939, %v2940
    %v2942 = vpack.i.bf16 %v2941, %v2941
    %v2944 = vsel %vm317, %v2889, 4286644096
    %v2947 = vsel %vm317, %v2890, 4286644096
    %v2949 = vmax.bf16 %v2944, %v2947
    %v2951 = vsel %vm317, %v2891, 4286644096
    %v2953 = vmax.bf16 %v2949, %v2951
    %v2955 = vsel %vm317, %v2892, 4286644096
    %v2957 = vmax.bf16 %v2953, %v2955
    %v2958 = vunpack.i.l.bf16 %v2957
    %v2959 = vunpack.i.h.bf16 %v2957
    %v2960 = vmax.f32 %v2958, %v2959
    %v2961 = vrot.slane %v2960, 4
    %v2962 = vmax.f32 %v2960, %v2961
    %v2963 = vrot.slane %v2962, 2
    %v2964 = vmax.f32 %v2962, %v2963
    %v2965 = vrot.slane %v2964, 1
    %v2966 = vmax.f32 %v2964, %v2965
    %v2967 = vpack.i.bf16 %v2966, %v2966
    %v2969 = vsel %vm317, %v2893, 4286644096
    %v2972 = vsel %vm317, %v2894, 4286644096
    %v2974 = vmax.bf16 %v2969, %v2972
    %v2976 = vsel %vm317, %v2895, 4286644096
    %v2978 = vmax.bf16 %v2974, %v2976
    %v2980 = vsel %vm317, %v2896, 4286644096
    %v2982 = vmax.bf16 %v2978, %v2980
    %v2983 = vunpack.i.l.bf16 %v2982
    %v2984 = vunpack.i.h.bf16 %v2982
    %v2985 = vmax.f32 %v2983, %v2984
    %v2986 = vrot.slane %v2985, 4
    %v2987 = vmax.f32 %v2985, %v2986
    %v2988 = vrot.slane %v2987, 2
    %v2989 = vmax.f32 %v2987, %v2988
    %v2990 = vrot.slane %v2989, 1
    %v2991 = vmax.f32 %v2989, %v2990
    %v2992 = vpack.i.bf16 %v2991, %v2991
    %v2994 = vsel %vm317, %v2897, 4286644096
    %v2997 = vsel %vm317, %v2898, 4286644096
    %v2999 = vmax.bf16 %v2994, %v2997
    %v3001 = vsel %vm317, %v2899, 4286644096
    %v3003 = vmax.bf16 %v2999, %v3001
    %v3005 = vsel %vm317, %v2900, 4286644096
    %v3007 = vmax.bf16 %v3003, %v3005
    %v3008 = vunpack.i.l.bf16 %v3007
    %v3009 = vunpack.i.h.bf16 %v3007
    %v3010 = vmax.f32 %v3008, %v3009
    %v3011 = vrot.slane %v3010, 4
    %v3012 = vmax.f32 %v3010, %v3011
    %v3013 = vrot.slane %v3012, 2
    %v3014 = vmax.f32 %v3012, %v3013
    %v3015 = vrot.slane %v3014, 1
    %v3016 = vmax.f32 %v3014, %v3015
    %v3017 = vpack.i.bf16 %v3016, %v3016
    %v3019 = vsel %vm317, %v2901, 4286644096
    %v3022 = vsel %vm317, %v2902, 4286644096
    %v3024 = vmax.bf16 %v3019, %v3022
    %v3026 = vsel %vm317, %v2903, 4286644096
    %v3028 = vmax.bf16 %v3024, %v3026
    %v3030 = vsel %vm317, %v2904, 4286644096
    %v3032 = vmax.bf16 %v3028, %v3030
    %v3033 = vunpack.i.l.bf16 %v3032
    %v3034 = vunpack.i.h.bf16 %v3032
    %v3035 = vmax.f32 %v3033, %v3034
    %v3036 = vrot.slane %v3035, 4
    %v3037 = vmax.f32 %v3035, %v3036
    %v3038 = vrot.slane %v3037, 2
    %v3039 = vmax.f32 %v3037, %v3038
    %v3040 = vrot.slane %v3039, 1
    %v3041 = vmax.f32 %v3039, %v3040
    %v3042 = vpack.i.bf16 %v3041, %v3041
    %v3044 = vsel %vm317, %v2905, 4286644096
    %v3047 = vsel %vm317, %v2906, 4286644096
    %v3049 = vmax.bf16 %v3044, %v3047
    %v3051 = vsel %vm317, %v2907, 4286644096
    %v3053 = vmax.bf16 %v3049, %v3051
    %v3055 = vsel %vm317, %v2908, 4286644096
    %v3057 = vmax.bf16 %v3053, %v3055
    %v3058 = vunpack.i.l.bf16 %v3057
    %v3059 = vunpack.i.h.bf16 %v3057
    %v3060 = vmax.f32 %v3058, %v3059
    %v3061 = vrot.slane %v3060, 4
    %v3062 = vmax.f32 %v3060, %v3061
    %v3063 = vrot.slane %v3062, 2
    %v3064 = vmax.f32 %v3062, %v3063
    %v3065 = vrot.slane %v3064, 1
    %v3066 = vmax.f32 %v3064, %v3065
    %v3067 = vpack.i.bf16 %v3066, %v3066
    %v3069 = vsel %vm317, %v2909, 4286644096
    %v3072 = vsel %vm317, %v2910, 4286644096
    %v3074 = vmax.bf16 %v3069, %v3072
    %v3076 = vsel %vm317, %v2911, 4286644096
    %v3078 = vmax.bf16 %v3074, %v3076
    %v3080 = vsel %vm317, %v2912, 4286644096
    %v3082 = vmax.bf16 %v3078, %v3080
    %v3083 = vunpack.i.l.bf16 %v3082
    %v3084 = vunpack.i.h.bf16 %v3082
    %v3085 = vmax.f32 %v3083, %v3084
    %v3086 = vrot.slane %v3085, 4
    %v3087 = vmax.f32 %v3085, %v3086
    %v3088 = vrot.slane %v3087, 2
    %v3089 = vmax.f32 %v3087, %v3088
    %v3090 = vrot.slane %v3089, 1
    %v3091 = vmax.f32 %v3089, %v3090
    %v3092 = vpack.i.bf16 %v3091, %v3091
    %v3094 = vsel %vm317, %v2913, 4286644096
    %v3097 = vsel %vm317, %v2914, 4286644096
    %v3099 = vmax.bf16 %v3094, %v3097
    %v3101 = vsel %vm317, %v2915, 4286644096
    %v3103 = vmax.bf16 %v3099, %v3101
    %v3105 = vsel %vm317, %v2916, 4286644096
    %v3107 = vmax.bf16 %v3103, %v3105
    %v3108 = vunpack.i.l.bf16 %v3107
    %v3109 = vunpack.i.h.bf16 %v3107
    %v3110 = vmax.f32 %v3108, %v3109
    %v3111 = vrot.slane %v3110, 4
    %v3112 = vmax.f32 %v3110, %v3111
    %v3113 = vrot.slane %v3112, 2
    %v3114 = vmax.f32 %v3112, %v3113
    %v3115 = vrot.slane %v3114, 1
    %v3116 = vmax.f32 %v3114, %v3115
    %v3117 = vpack.i.bf16 %v3116, %v3116
    %v3118 = vunpack.c.l.bf16 %v2942
    %v3119 = vunpack.c.l.bf16 %v2967
    %v3120 = vunpack.c.l.bf16 %v2992
    %v3121 = vunpack.c.l.bf16 %v3017
    %v3122 = vunpack.c.l.bf16 %v3042
    %v3123 = vunpack.c.l.bf16 %v3067
    %v3124 = vunpack.c.l.bf16 %v3092
    %v3125 = vunpack.c.l.bf16 %v3117
    %3127 = vset.pattern.permute.xlu0 0
    %3128 = vperm.xlu0 %3127, %v1988
    %v3129 = vpop.permute.xlu0 %3128
    %v3130 = vrot.slane %v3129, 1
    %v3131 = vrot.slane %v3129, 2
    %v3132 = vrot.slane %v3129, 3
    %v3133 = vrot.slane %v3129, 4
    %v3134 = vrot.slane %v3129, 5
    %v3135 = vrot.slane %v3129, 6
    %v3136 = vrot.slane %v3129, 7
    %v3145 = vmul.f32 %v3118, %v3129
    %v3146 = vmul.f32 %v3119, %v3130
    %v3147 = vmul.f32 %v3120, %v3131
    %v3148 = vmul.f32 %v3121, %v3132
    %v3149 = vmul.f32 %v3122, %v3133
    %v3150 = vmul.f32 %v3123, %v3134
    %v3151 = vmul.f32 %v3124, %v3135
    %v3152 = vmul.f32 %v3125, %v3136
    %v3153 = vpack.c.bf16 %v3145, %v3145
    %v3154 = vpack.c.bf16 %v3146, %v3146
    %v3155 = vpack.c.bf16 %v3147, %v3147
    %v3156 = vpack.c.bf16 %v3148, %v3148
    %v3157 = vpack.c.bf16 %v3149, %v3149
    %v3158 = vpack.c.bf16 %v3150, %v3150
    %v3159 = vpack.c.bf16 %v3151, %v3151
    %v3160 = vpack.c.bf16 %v3152, %v3152
    %v3161 = vpack.c.bf16 %v1647, %v1645
    %v3162 = vpack.c.bf16 %v1651, %v1649
    %v3163 = vpack.c.bf16 %v1655, %v1653
    %v3164 = vpack.c.bf16 %v1659, %v1657
    %v3165 = vpack.c.bf16 %v1663, %v1661
    %v3166 = vpack.c.bf16 %v1667, %v1665
    %v3167 = vpack.c.bf16 %v1671, %v1669
    %v3168 = vpack.c.bf16 %v1675, %v1673
    %v3169 = vpack.c.bf16 %v1679, %v1677
    %v3170 = vpack.c.bf16 %v1683, %v1681
    %v3171 = vpack.c.bf16 %v1687, %v1685
    %v3172 = vpack.c.bf16 %v1691, %v1689
    %v3173 = vpack.c.bf16 %v1695, %v1693
    %v3174 = vpack.c.bf16 %v1699, %v1697
    %v3175 = vpack.c.bf16 %v1703, %v1701
    %v3176 = vpack.c.bf16 %v1707, %v1705
    %v3177 = vpack.c.bf16 %v1711, %v1709
    %v3178 = vpack.c.bf16 %v1715, %v1713
    %v3179 = vpack.c.bf16 %v1719, %v1717
    %v3180 = vpack.c.bf16 %v1723, %v1721
    %v3181 = vpack.c.bf16 %v1727, %v1725
    %v3182 = vpack.c.bf16 %v1731, %v1729
    %v3183 = vpack.c.bf16 %v1735, %v1733
    %v3184 = vpack.c.bf16 %v1739, %v1737
    %v3185 = vpack.c.bf16 %v1743, %v1741
    %v3186 = vpack.c.bf16 %v1747, %v1745
    %v3187 = vpack.c.bf16 %v1751, %v1749
    %v3188 = vpack.c.bf16 %v1755, %v1753
    %v3189 = vpack.c.bf16 %v1759, %v1757
    %v3190 = vpack.c.bf16 %v1763, %v1761
    %v3191 = vpack.c.bf16 %v1767, %v1765
    %v3192 = vpack.c.bf16 %v1771, %v1769
    %3194 = vset.pattern.permute.xlu0 1
    %3195 = vperm.xlu0 %3194, %v3161
    %v3196 = vpop.permute.xlu0 %3195
    %3198 = vset.pattern.permute.xlu0 1
    %3199 = vperm.xlu0 %3198, %v3162
    %v3200 = vpop.permute.xlu0 %3199
    %3202 = vset.pattern.permute.xlu0 1
    %3203 = vperm.xlu0 %3202, %v3163
    %v3204 = vpop.permute.xlu0 %3203
    %3206 = vset.pattern.permute.xlu0 1
    %3207 = vperm.xlu0 %3206, %v3164
    %v3208 = vpop.permute.xlu0 %3207
    %3210 = vset.pattern.permute.xlu0 1
    %3211 = vperm.xlu0 %3210, %v3165
    %v3212 = vpop.permute.xlu0 %3211
    %3214 = vset.pattern.permute.xlu0 1
    %3215 = vperm.xlu0 %3214, %v3166
    %v3216 = vpop.permute.xlu0 %3215
    %3218 = vset.pattern.permute.xlu0 1
    %3219 = vperm.xlu0 %3218, %v3167
    %v3220 = vpop.permute.xlu0 %3219
    %3222 = vset.pattern.permute.xlu0 1
    %3223 = vperm.xlu0 %3222, %v3168
    %v3224 = vpop.permute.xlu0 %3223
    %3226 = vset.pattern.permute.xlu0 1
    %3227 = vperm.xlu0 %3226, %v3169
    %v3228 = vpop.permute.xlu0 %3227
    %3230 = vset.pattern.permute.xlu0 1
    %3231 = vperm.xlu0 %3230, %v3170
    %v3232 = vpop.permute.xlu0 %3231
    %3234 = vset.pattern.permute.xlu0 1
    %3235 = vperm.xlu0 %3234, %v3171
    %v3236 = vpop.permute.xlu0 %3235
    %3238 = vset.pattern.permute.xlu0 1
    %3239 = vperm.xlu0 %3238, %v3172
    %v3240 = vpop.permute.xlu0 %3239
    %3242 = vset.pattern.permute.xlu0 1
    %3243 = vperm.xlu0 %3242, %v3173
    %v3244 = vpop.permute.xlu0 %3243
    %3246 = vset.pattern.permute.xlu0 1
    %3247 = vperm.xlu0 %3246, %v3174
    %v3248 = vpop.permute.xlu0 %3247
    %3250 = vset.pattern.permute.xlu0 1
    %3251 = vperm.xlu0 %3250, %v3175
    %v3252 = vpop.permute.xlu0 %3251
    %3254 = vset.pattern.permute.xlu0 1
    %3255 = vperm.xlu0 %3254, %v3176
    %v3256 = vpop.permute.xlu0 %3255
    %3258 = vset.pattern.permute.xlu0 1
    %3259 = vperm.xlu0 %3258, %v3177
    %v3260 = vpop.permute.xlu0 %3259
    %3262 = vset.pattern.permute.xlu0 1
    %3263 = vperm.xlu0 %3262, %v3178
    %v3264 = vpop.permute.xlu0 %3263
    %3266 = vset.pattern.permute.xlu0 1
    %3267 = vperm.xlu0 %3266, %v3179
    %v3268 = vpop.permute.xlu0 %3267
    %3270 = vset.pattern.permute.xlu0 1
    %3271 = vperm.xlu0 %3270, %v3180
    %v3272 = vpop.permute.xlu0 %3271
    %3274 = vset.pattern.permute.xlu0 1
    %3275 = vperm.xlu0 %3274, %v3181
    %v3276 = vpop.permute.xlu0 %3275
    %3278 = vset.pattern.permute.xlu0 1
    %3279 = vperm.xlu0 %3278, %v3182
    %v3280 = vpop.permute.xlu0 %3279
    %3282 = vset.pattern.permute.xlu0 1
    %3283 = vperm.xlu0 %3282, %v3183
    %v3284 = vpop.permute.xlu0 %3283
    %3286 = vset.pattern.permute.xlu0 1
    %3287 = vperm.xlu0 %3286, %v3184
    %v3288 = vpop.permute.xlu0 %3287
    %3290 = vset.pattern.permute.xlu0 1
    %3291 = vperm.xlu0 %3290, %v3185
    %v3292 = vpop.permute.xlu0 %3291
    %3294 = vset.pattern.permute.xlu0 1
    %3295 = vperm.xlu0 %3294, %v3186
    %v3296 = vpop.permute.xlu0 %3295
    %3298 = vset.pattern.permute.xlu0 1
    %3299 = vperm.xlu0 %3298, %v3187
    %v3300 = vpop.permute.xlu0 %3299
    %3302 = vset.pattern.permute.xlu0 1
    %3303 = vperm.xlu0 %3302, %v3188
    %v3304 = vpop.permute.xlu0 %3303
    %3306 = vset.pattern.permute.xlu0 1
    %3307 = vperm.xlu0 %3306, %v3189
    %v3308 = vpop.permute.xlu0 %3307
    %3310 = vset.pattern.permute.xlu0 1
    %3311 = vperm.xlu0 %3310, %v3190
    %v3312 = vpop.permute.xlu0 %3311
    %3314 = vset.pattern.permute.xlu0 1
    %3315 = vperm.xlu0 %3314, %v3191
    %v3316 = vpop.permute.xlu0 %3315
    %3318 = vset.pattern.permute.xlu0 1
    %3319 = vperm.xlu0 %3318, %v3192
    %v3320 = vpop.permute.xlu0 %3319
    %v3354 = vunpack.c.l.s4 839922192
    %v3355 = vunpack.c.0.s8 %v3354
    %v3356 = vlaneseq
    %v3357 = vshrl.u32 %v3356, 7
    %v3358 = vsub.s32 %v3355, %v3357
    %v3359 = vrot.slane %v3196, %v3358
    %v3361 = vunpack.c.l.s4 1985246804
    %v3362 = vunpack.c.0.s8 %v3361
    %v3363 = vlaneseq
    %v3364 = vshrl.u32 %v3363, 7
    %v3365 = vsub.s32 %v3362, %v3364
    %v3366 = vrot.slane %v3196, %v3365
    %v3368 = vunpack.c.l.s4 839922192
    %v3369 = vunpack.c.0.s8 %v3368
    %v3370 = vlaneseq
    %v3371 = vshrl.u32 %v3370, 7
    %v3372 = vsub.s32 %v3369, %v3371
    %v3373 = vrot.slane %v3200, %v3372
    %v3375 = vunpack.c.l.s4 1985246804
    %v3376 = vunpack.c.0.s8 %v3375
    %v3377 = vlaneseq
    %v3378 = vshrl.u32 %v3377, 7
    %v3379 = vsub.s32 %v3376, %v3378
    %v3380 = vrot.slane %v3200, %v3379
    %v3382 = vunpack.c.l.s4 839922192
    %v3383 = vunpack.c.0.s8 %v3382
    %v3384 = vlaneseq
    %v3385 = vshrl.u32 %v3384, 7
    %v3386 = vsub.s32 %v3383, %v3385
    %v3387 = vrot.slane %v3204, %v3386
    %v3389 = vunpack.c.l.s4 1985246804
    %v3390 = vunpack.c.0.s8 %v3389
    %v3391 = vlaneseq
    %v3392 = vshrl.u32 %v3391, 7
    %v3393 = vsub.s32 %v3390, %v3392
    %v3394 = vrot.slane %v3204, %v3393
    %v3396 = vunpack.c.l.s4 839922192
    %v3397 = vunpack.c.0.s8 %v3396
    %v3398 = vlaneseq
    %v3399 = vshrl.u32 %v3398, 7
    %v3400 = vsub.s32 %v3397, %v3399
    %v3401 = vrot.slane %v3208, %v3400
    %v3403 = vunpack.c.l.s4 1985246804
    %v3404 = vunpack.c.0.s8 %v3403
    %v3405 = vlaneseq
    %v3406 = vshrl.u32 %v3405, 7
    %v3407 = vsub.s32 %v3404, %v3406
    %v3408 = vrot.slane %v3208, %v3407
    %v3410 = vunpack.c.l.s4 839922192
    %v3411 = vunpack.c.0.s8 %v3410
    %v3412 = vlaneseq
    %v3413 = vshrl.u32 %v3412, 7
    %v3414 = vsub.s32 %v3411, %v3413
    %v3415 = vrot.slane %v3212, %v3414
    %v3417 = vunpack.c.l.s4 1985246804
    %v3418 = vunpack.c.0.s8 %v3417
    %v3419 = vlaneseq
    %v3420 = vshrl.u32 %v3419, 7
    %v3421 = vsub.s32 %v3418, %v3420
    %v3422 = vrot.slane %v3212, %v3421
    %v3424 = vunpack.c.l.s4 839922192
    %v3425 = vunpack.c.0.s8 %v3424
    %v3426 = vlaneseq
    %v3427 = vshrl.u32 %v3426, 7
    %v3428 = vsub.s32 %v3425, %v3427
    %v3429 = vrot.slane %v3216, %v3428
    %v3431 = vunpack.c.l.s4 1985246804
    %v3432 = vunpack.c.0.s8 %v3431
    %v3433 = vlaneseq
    %v3434 = vshrl.u32 %v3433, 7
    %v3435 = vsub.s32 %v3432, %v3434
    %v3436 = vrot.slane %v3216, %v3435
    %v3438 = vunpack.c.l.s4 839922192
    %v3439 = vunpack.c.0.s8 %v3438
    %v3440 = vlaneseq
    %v3441 = vshrl.u32 %v3440, 7
    %v3442 = vsub.s32 %v3439, %v3441
    %v3443 = vrot.slane %v3220, %v3442
    %v3445 = vunpack.c.l.s4 1985246804
    %v3446 = vunpack.c.0.s8 %v3445
    %v3447 = vlaneseq
    %v3448 = vshrl.u32 %v3447, 7
    %v3449 = vsub.s32 %v3446, %v3448
    %v3450 = vrot.slane %v3220, %v3449
    %v3452 = vunpack.c.l.s4 839922192
    %v3453 = vunpack.c.0.s8 %v3452
    %v3454 = vlaneseq
    %v3455 = vshrl.u32 %v3454, 7
    %v3456 = vsub.s32 %v3453, %v3455
    %v3457 = vrot.slane %v3224, %v3456
    %v3459 = vunpack.c.l.s4 1985246804
    %v3460 = vunpack.c.0.s8 %v3459
    %v3461 = vlaneseq
    %v3462 = vshrl.u32 %v3461, 7
    %v3463 = vsub.s32 %v3460, %v3462
    %v3464 = vrot.slane %v3224, %v3463
    %v3466 = vunpack.c.l.s4 839922192
    %v3467 = vunpack.c.0.s8 %v3466
    %v3468 = vlaneseq
    %v3469 = vshrl.u32 %v3468, 7
    %v3470 = vsub.s32 %v3467, %v3469
    %v3471 = vrot.slane %v3228, %v3470
    %v3473 = vunpack.c.l.s4 1985246804
    %v3474 = vunpack.c.0.s8 %v3473
    %v3475 = vlaneseq
    %v3476 = vshrl.u32 %v3475, 7
    %v3477 = vsub.s32 %v3474, %v3476
    %v3478 = vrot.slane %v3228, %v3477
    %v3480 = vunpack.c.l.s4 839922192
    %v3481 = vunpack.c.0.s8 %v3480
    %v3482 = vlaneseq
    %v3483 = vshrl.u32 %v3482, 7
    %v3484 = vsub.s32 %v3481, %v3483
    %v3485 = vrot.slane %v3232, %v3484
    %v3487 = vunpack.c.l.s4 1985246804
    %v3488 = vunpack.c.0.s8 %v3487
    %v3489 = vlaneseq
    %v3490 = vshrl.u32 %v3489, 7
    %v3491 = vsub.s32 %v3488, %v3490
    %v3492 = vrot.slane %v3232, %v3491
    %v3494 = vunpack.c.l.s4 839922192
    %v3495 = vunpack.c.0.s8 %v3494
    %v3496 = vlaneseq
    %v3497 = vshrl.u32 %v3496, 7
    %v3498 = vsub.s32 %v3495, %v3497
    %v3499 = vrot.slane %v3236, %v3498
    %v3501 = vunpack.c.l.s4 1985246804
    %v3502 = vunpack.c.0.s8 %v3501
    %v3503 = vlaneseq
    %v3504 = vshrl.u32 %v3503, 7
    %v3505 = vsub.s32 %v3502, %v3504
    %v3506 = vrot.slane %v3236, %v3505
    %v3508 = vunpack.c.l.s4 839922192
    %v3509 = vunpack.c.0.s8 %v3508
    %v3510 = vlaneseq
    %v3511 = vshrl.u32 %v3510, 7
    %v3512 = vsub.s32 %v3509, %v3511
    %v3513 = vrot.slane %v3240, %v3512
    %v3515 = vunpack.c.l.s4 1985246804
    %v3516 = vunpack.c.0.s8 %v3515
    %v3517 = vlaneseq
    %v3518 = vshrl.u32 %v3517, 7
    %v3519 = vsub.s32 %v3516, %v3518
    %v3520 = vrot.slane %v3240, %v3519
    %v3522 = vunpack.c.l.s4 839922192
    %v3523 = vunpack.c.0.s8 %v3522
    %v3524 = vlaneseq
    %v3525 = vshrl.u32 %v3524, 7
    %v3526 = vsub.s32 %v3523, %v3525
    %v3527 = vrot.slane %v3244, %v3526
    %v3529 = vunpack.c.l.s4 1985246804
    %v3530 = vunpack.c.0.s8 %v3529
    %v3531 = vlaneseq
    %v3532 = vshrl.u32 %v3531, 7
    %v3533 = vsub.s32 %v3530, %v3532
    %v3534 = vrot.slane %v3244, %v3533
    %v3536 = vunpack.c.l.s4 839922192
    %v3537 = vunpack.c.0.s8 %v3536
    %v3538 = vlaneseq
    %v3539 = vshrl.u32 %v3538, 7
    %v3540 = vsub.s32 %v3537, %v3539
    %v3541 = vrot.slane %v3248, %v3540
    %v3543 = vunpack.c.l.s4 1985246804
    %v3544 = vunpack.c.0.s8 %v3543
    %v3545 = vlaneseq
    %v3546 = vshrl.u32 %v3545, 7
    %v3547 = vsub.s32 %v3544, %v3546
    %v3548 = vrot.slane %v3248, %v3547
    %v3550 = vunpack.c.l.s4 839922192
    %v3551 = vunpack.c.0.s8 %v3550
    %v3552 = vlaneseq
    %v3553 = vshrl.u32 %v3552, 7
    %v3554 = vsub.s32 %v3551, %v3553
    %v3555 = vrot.slane %v3252, %v3554
    %v3557 = vunpack.c.l.s4 1985246804
    %v3558 = vunpack.c.0.s8 %v3557
    %v3559 = vlaneseq
    %v3560 = vshrl.u32 %v3559, 7
    %v3561 = vsub.s32 %v3558, %v3560
    %v3562 = vrot.slane %v3252, %v3561
    %v3564 = vunpack.c.l.s4 839922192
    %v3565 = vunpack.c.0.s8 %v3564
    %v3566 = vlaneseq
    %v3567 = vshrl.u32 %v3566, 7
    %v3568 = vsub.s32 %v3565, %v3567
    %v3569 = vrot.slane %v3256, %v3568
    %v3571 = vunpack.c.l.s4 1985246804
    %v3572 = vunpack.c.0.s8 %v3571
    %v3573 = vlaneseq
    %v3574 = vshrl.u32 %v3573, 7
    %v3575 = vsub.s32 %v3572, %v3574
    %v3576 = vrot.slane %v3256, %v3575
    %v3578 = vunpack.c.l.s4 839922192
    %v3579 = vunpack.c.0.s8 %v3578
    %v3580 = vlaneseq
    %v3581 = vshrl.u32 %v3580, 7
    %v3582 = vsub.s32 %v3579, %v3581
    %v3583 = vrot.slane %v3260, %v3582
    %v3585 = vunpack.c.l.s4 1985246804
    %v3586 = vunpack.c.0.s8 %v3585
    %v3587 = vlaneseq
    %v3588 = vshrl.u32 %v3587, 7
    %v3589 = vsub.s32 %v3586, %v3588
    %v3590 = vrot.slane %v3260, %v3589
    %v3592 = vunpack.c.l.s4 839922192
    %v3593 = vunpack.c.0.s8 %v3592
    %v3594 = vlaneseq
    %v3595 = vshrl.u32 %v3594, 7
    %v3596 = vsub.s32 %v3593, %v3595
    %v3597 = vrot.slane %v3264, %v3596
    %v3599 = vunpack.c.l.s4 1985246804
    %v3600 = vunpack.c.0.s8 %v3599
    %v3601 = vlaneseq
    %v3602 = vshrl.u32 %v3601, 7
    %v3603 = vsub.s32 %v3600, %v3602
    %v3604 = vrot.slane %v3264, %v3603
    %v3606 = vunpack.c.l.s4 839922192
    %v3607 = vunpack.c.0.s8 %v3606
    %v3608 = vlaneseq
    %v3609 = vshrl.u32 %v3608, 7
    %v3610 = vsub.s32 %v3607, %v3609
    %v3611 = vrot.slane %v3268, %v3610
    %v3613 = vunpack.c.l.s4 1985246804
    %v3614 = vunpack.c.0.s8 %v3613
    %v3615 = vlaneseq
    %v3616 = vshrl.u32 %v3615, 7
    %v3617 = vsub.s32 %v3614, %v3616
    %v3618 = vrot.slane %v3268, %v3617
    %v3620 = vunpack.c.l.s4 839922192
    %v3621 = vunpack.c.0.s8 %v3620
    %v3622 = vlaneseq
    %v3623 = vshrl.u32 %v3622, 7
    %v3624 = vsub.s32 %v3621, %v3623
    %v3625 = vrot.slane %v3272, %v3624
    %v3627 = vunpack.c.l.s4 1985246804
    %v3628 = vunpack.c.0.s8 %v3627
    %v3629 = vlaneseq
    %v3630 = vshrl.u32 %v3629, 7
    %v3631 = vsub.s32 %v3628, %v3630
    %v3632 = vrot.slane %v3272, %v3631
    %v3634 = vunpack.c.l.s4 839922192
    %v3635 = vunpack.c.0.s8 %v3634
    %v3636 = vlaneseq
    %v3637 = vshrl.u32 %v3636, 7
    %v3638 = vsub.s32 %v3635, %v3637
    %v3639 = vrot.slane %v3276, %v3638
    %v3641 = vunpack.c.l.s4 1985246804
    %v3642 = vunpack.c.0.s8 %v3641
    %v3643 = vlaneseq
    %v3644 = vshrl.u32 %v3643, 7
    %v3645 = vsub.s32 %v3642, %v3644
    %v3646 = vrot.slane %v3276, %v3645
    %v3648 = vunpack.c.l.s4 839922192
    %v3649 = vunpack.c.0.s8 %v3648
    %v3650 = vlaneseq
    %v3651 = vshrl.u32 %v3650, 7
    %v3652 = vsub.s32 %v3649, %v3651
    %v3653 = vrot.slane %v3280, %v3652
    %v3655 = vunpack.c.l.s4 1985246804
    %v3656 = vunpack.c.0.s8 %v3655
    %v3657 = vlaneseq
    %v3658 = vshrl.u32 %v3657, 7
    %v3659 = vsub.s32 %v3656, %v3658
    %v3660 = vrot.slane %v3280, %v3659
    %v3662 = vunpack.c.l.s4 839922192
    %v3663 = vunpack.c.0.s8 %v3662
    %v3664 = vlaneseq
    %v3665 = vshrl.u32 %v3664, 7
    %v3666 = vsub.s32 %v3663, %v3665
    %v3667 = vrot.slane %v3284, %v3666
    %v3669 = vunpack.c.l.s4 1985246804
    %v3670 = vunpack.c.0.s8 %v3669
    %v3671 = vlaneseq
    %v3672 = vshrl.u32 %v3671, 7
    %v3673 = vsub.s32 %v3670, %v3672
    %v3674 = vrot.slane %v3284, %v3673
    %v3676 = vunpack.c.l.s4 839922192
    %v3677 = vunpack.c.0.s8 %v3676
    %v3678 = vlaneseq
    %v3679 = vshrl.u32 %v3678, 7
    %v3680 = vsub.s32 %v3677, %v3679
    %v3681 = vrot.slane %v3288, %v3680
    %v3683 = vunpack.c.l.s4 1985246804
    %v3684 = vunpack.c.0.s8 %v3683
    %v3685 = vlaneseq
    %v3686 = vshrl.u32 %v3685, 7
    %v3687 = vsub.s32 %v3684, %v3686
    %v3688 = vrot.slane %v3288, %v3687
    %v3690 = vunpack.c.l.s4 839922192
    %v3691 = vunpack.c.0.s8 %v3690
    %v3692 = vlaneseq
    %v3693 = vshrl.u32 %v3692, 7
    %v3694 = vsub.s32 %v3691, %v3693
    %v3695 = vrot.slane %v3292, %v3694
    %v3697 = vunpack.c.l.s4 1985246804
    %v3698 = vunpack.c.0.s8 %v3697
    %v3699 = vlaneseq
    %v3700 = vshrl.u32 %v3699, 7
    %v3701 = vsub.s32 %v3698, %v3700
    %v3702 = vrot.slane %v3292, %v3701
    %v3704 = vunpack.c.l.s4 839922192
    %v3705 = vunpack.c.0.s8 %v3704
    %v3706 = vlaneseq
    %v3707 = vshrl.u32 %v3706, 7
    %v3708 = vsub.s32 %v3705, %v3707
    %v3709 = vrot.slane %v3296, %v3708
    %v3711 = vunpack.c.l.s4 1985246804
    %v3712 = vunpack.c.0.s8 %v3711
    %v3713 = vlaneseq
    %v3714 = vshrl.u32 %v3713, 7
    %v3715 = vsub.s32 %v3712, %v3714
    %v3716 = vrot.slane %v3296, %v3715
    %v3718 = vunpack.c.l.s4 839922192
    %v3719 = vunpack.c.0.s8 %v3718
    %v3720 = vlaneseq
    %v3721 = vshrl.u32 %v3720, 7
    %v3722 = vsub.s32 %v3719, %v3721
    %v3723 = vrot.slane %v3300, %v3722
    %v3725 = vunpack.c.l.s4 1985246804
    %v3726 = vunpack.c.0.s8 %v3725
    %v3727 = vlaneseq
    %v3728 = vshrl.u32 %v3727, 7
    %v3729 = vsub.s32 %v3726, %v3728
    %v3730 = vrot.slane %v3300, %v3729
    %v3732 = vunpack.c.l.s4 839922192
    %v3733 = vunpack.c.0.s8 %v3732
    %v3734 = vlaneseq
    %v3735 = vshrl.u32 %v3734, 7
    %v3736 = vsub.s32 %v3733, %v3735
    %v3737 = vrot.slane %v3304, %v3736
    %v3739 = vunpack.c.l.s4 1985246804
    %v3740 = vunpack.c.0.s8 %v3739
    %v3741 = vlaneseq
    %v3742 = vshrl.u32 %v3741, 7
    %v3743 = vsub.s32 %v3740, %v3742
    %v3744 = vrot.slane %v3304, %v3743
    %v3746 = vunpack.c.l.s4 839922192
    %v3747 = vunpack.c.0.s8 %v3746
    %v3748 = vlaneseq
    %v3749 = vshrl.u32 %v3748, 7
    %v3750 = vsub.s32 %v3747, %v3749
    %v3751 = vrot.slane %v3308, %v3750
    %v3753 = vunpack.c.l.s4 1985246804
    %v3754 = vunpack.c.0.s8 %v3753
    %v3755 = vlaneseq
    %v3756 = vshrl.u32 %v3755, 7
    %v3757 = vsub.s32 %v3754, %v3756
    %v3758 = vrot.slane %v3308, %v3757
    %v3760 = vunpack.c.l.s4 839922192
    %v3761 = vunpack.c.0.s8 %v3760
    %v3762 = vlaneseq
    %v3763 = vshrl.u32 %v3762, 7
    %v3764 = vsub.s32 %v3761, %v3763
    %v3765 = vrot.slane %v3312, %v3764
    %v3767 = vunpack.c.l.s4 1985246804
    %v3768 = vunpack.c.0.s8 %v3767
    %v3769 = vlaneseq
    %v3770 = vshrl.u32 %v3769, 7
    %v3771 = vsub.s32 %v3768, %v3770
    %v3772 = vrot.slane %v3312, %v3771
    %v3774 = vunpack.c.l.s4 839922192
    %v3775 = vunpack.c.0.s8 %v3774
    %v3776 = vlaneseq
    %v3777 = vshrl.u32 %v3776, 7
    %v3778 = vsub.s32 %v3775, %v3777
    %v3779 = vrot.slane %v3316, %v3778
    %v3781 = vunpack.c.l.s4 1985246804
    %v3782 = vunpack.c.0.s8 %v3781
    %v3783 = vlaneseq
    %v3784 = vshrl.u32 %v3783, 7
    %v3785 = vsub.s32 %v3782, %v3784
    %v3786 = vrot.slane %v3316, %v3785
    %v3788 = vunpack.c.l.s4 839922192
    %v3789 = vunpack.c.0.s8 %v3788
    %v3790 = vlaneseq
    %v3791 = vshrl.u32 %v3790, 7
    %v3792 = vsub.s32 %v3789, %v3791
    %v3793 = vrot.slane %v3320, %v3792
    %v3795 = vunpack.c.l.s4 1985246804
    %v3796 = vunpack.c.0.s8 %v3795
    %v3797 = vlaneseq
    %v3798 = vshrl.u32 %v3797, 7
    %v3799 = vsub.s32 %v3796, %v3798
    %v3800 = vrot.slane %v3320, %v3799
    %v3865 = vmul.bf16 %v61, %v3359
    %v3866 = vmul.bf16 %v62, %v3366
    %v3867 = vmul.bf16 %v63, %v3373
    %v3868 = vmul.bf16 %v64, %v3380
    %v3869 = vmul.bf16 %v65, %v3387
    %v3870 = vmul.bf16 %v66, %v3394
    %v3871 = vmul.bf16 %v67, %v3401
    %v3872 = vmul.bf16 %v68, %v3408
    %v3873 = vmul.bf16 %v69, %v3415
    %v3874 = vmul.bf16 %v70, %v3422
    %v3875 = vmul.bf16 %v71, %v3429
    %v3876 = vmul.bf16 %v72, %v3436
    %v3877 = vmul.bf16 %v73, %v3443
    %v3878 = vmul.bf16 %v74, %v3450
    %v3879 = vmul.bf16 %v75, %v3457
    %v3880 = vmul.bf16 %v76, %v3464
    %v3881 = vmul.bf16 %v77, %v3471
    %v3882 = vmul.bf16 %v78, %v3478
    %v3883 = vmul.bf16 %v79, %v3485
    %v3884 = vmul.bf16 %v80, %v3492
    %v3885 = vmul.bf16 %v81, %v3499
    %v3886 = vmul.bf16 %v82, %v3506
    %v3887 = vmul.bf16 %v83, %v3513
    %v3888 = vmul.bf16 %v84, %v3520
    %v3889 = vmul.bf16 %v85, %v3527
    %v3890 = vmul.bf16 %v86, %v3534
    %v3891 = vmul.bf16 %v87, %v3541
    %v3892 = vmul.bf16 %v88, %v3548
    %v3893 = vmul.bf16 %v89, %v3555
    %v3894 = vmul.bf16 %v90, %v3562
    %v3895 = vmul.bf16 %v91, %v3569
    %v3896 = vmul.bf16 %v92, %v3576
    %v3897 = vmul.bf16 %v93, %v3583
    %v3898 = vmul.bf16 %v94, %v3590
    %v3899 = vmul.bf16 %v95, %v3597
    %v3900 = vmul.bf16 %v96, %v3604
    %v3901 = vmul.bf16 %v97, %v3611
    %v3902 = vmul.bf16 %v98, %v3618
    %v3903 = vmul.bf16 %v99, %v3625
    %v3904 = vmul.bf16 %v100, %v3632
    %v3905 = vmul.bf16 %v101, %v3639
    %v3906 = vmul.bf16 %v102, %v3646
    %v3907 = vmul.bf16 %v103, %v3653
    %v3908 = vmul.bf16 %v104, %v3660
    %v3909 = vmul.bf16 %v105, %v3667
    %v3910 = vmul.bf16 %v106, %v3674
    %v3911 = vmul.bf16 %v107, %v3681
    %v3912 = vmul.bf16 %v108, %v3688
    %v3913 = vmul.bf16 %v109, %v3695
    %v3914 = vmul.bf16 %v110, %v3702
    %v3915 = vmul.bf16 %v111, %v3709
    %v3916 = vmul.bf16 %v112, %v3716
    %v3917 = vmul.bf16 %v113, %v3723
    %v3918 = vmul.bf16 %v114, %v3730
    %v3919 = vmul.bf16 %v115, %v3737
    %v3920 = vmul.bf16 %v116, %v3744
    %v3921 = vmul.bf16 %v117, %v3751
    %v3922 = vmul.bf16 %v118, %v3758
    %v3923 = vmul.bf16 %v119, %v3765
    %v3924 = vmul.bf16 %v120, %v3772
    %v3925 = vmul.bf16 %v121, %v3779
    %v3926 = vmul.bf16 %v122, %v3786
    %v3927 = vmul.bf16 %v123, %v3793
    %v3928 = vmul.bf16 %v124, %v3800
    %v3993 = vunpack.c.l.b16 %v3865
    %v3994 = vunpack.c.l.b16 %v3866
    %v3995 = vunpack.c.l.b16 %v3867
    %v3996 = vunpack.c.l.b16 %v3868
    %v3997 = vunpack.c.l.b16 %v3869
    %v3998 = vunpack.c.l.b16 %v3870
    %v3999 = vunpack.c.l.b16 %v3871
    %v4000 = vunpack.c.l.b16 %v3872
    %v4001 = vunpack.c.l.b16 %v3873
    %v4002 = vunpack.c.l.b16 %v3874
    %v4003 = vunpack.c.l.b16 %v3875
    %v4004 = vunpack.c.l.b16 %v3876
    %v4005 = vunpack.c.l.b16 %v3877
    %v4006 = vunpack.c.l.b16 %v3878
    %v4007 = vunpack.c.l.b16 %v3879
    %v4008 = vunpack.c.l.b16 %v3880
    %v4009 = vunpack.c.l.b16 %v3881
    %v4010 = vunpack.c.l.b16 %v3882
    %v4011 = vunpack.c.l.b16 %v3883
    %v4012 = vunpack.c.l.b16 %v3884
    %v4013 = vunpack.c.l.b16 %v3885
    %v4014 = vunpack.c.l.b16 %v3886
    %v4015 = vunpack.c.l.b16 %v3887
    %v4016 = vunpack.c.l.b16 %v3888
    %v4017 = vunpack.c.l.b16 %v3889
    %v4018 = vunpack.c.l.b16 %v3890
    %v4019 = vunpack.c.l.b16 %v3891
    %v4020 = vunpack.c.l.b16 %v3892
    %v4021 = vunpack.c.l.b16 %v3893
    %v4022 = vunpack.c.l.b16 %v3894
    %v4023 = vunpack.c.l.b16 %v3895
    %v4024 = vunpack.c.l.b16 %v3896
    %v4025 = vunpack.c.l.b16 %v3897
    %v4026 = vunpack.c.l.b16 %v3898
    %v4027 = vunpack.c.l.b16 %v3899
    %v4028 = vunpack.c.l.b16 %v3900
    %v4029 = vunpack.c.l.b16 %v3901
    %v4030 = vunpack.c.l.b16 %v3902
    %v4031 = vunpack.c.l.b16 %v3903
    %v4032 = vunpack.c.l.b16 %v3904
    %v4033 = vunpack.c.l.b16 %v3905
    %v4034 = vunpack.c.l.b16 %v3906
    %v4035 = vunpack.c.l.b16 %v3907
    %v4036 = vunpack.c.l.b16 %v3908
    %v4037 = vunpack.c.l.b16 %v3909
    %v4038 = vunpack.c.l.b16 %v3910
    %v4039 = vunpack.c.l.b16 %v3911
    %v4040 = vunpack.c.l.b16 %v3912
    %v4041 = vunpack.c.l.b16 %v3913
    %v4042 = vunpack.c.l.b16 %v3914
    %v4043 = vunpack.c.l.b16 %v3915
    %v4044 = vunpack.c.l.b16 %v3916
    %v4045 = vunpack.c.l.b16 %v3917
    %v4046 = vunpack.c.l.b16 %v3918
    %v4047 = vunpack.c.l.b16 %v3919
    %v4048 = vunpack.c.l.b16 %v3920
    %v4049 = vunpack.c.l.b16 %v3921
    %v4050 = vunpack.c.l.b16 %v3922
    %v4051 = vunpack.c.l.b16 %v3923
    %v4052 = vunpack.c.l.b16 %v3924
    %v4053 = vunpack.c.l.b16 %v3925
    %v4054 = vunpack.c.l.b16 %v3926
    %v4055 = vunpack.c.l.b16 %v3927
    %v4056 = vunpack.c.l.b16 %v3928
    %v4057 = vpack.c.b16 %v3994, %v3993
    %v4058 = vpack.c.b16 %v3996, %v3995
    %v4059 = vpack.c.b16 %v3998, %v3997
    %v4060 = vpack.c.b16 %v4000, %v3999
    %v4061 = vpack.c.b16 %v4002, %v4001
    %v4062 = vpack.c.b16 %v4004, %v4003
    %v4063 = vpack.c.b16 %v4006, %v4005
    %v4064 = vpack.c.b16 %v4008, %v4007
    %v4065 = vpack.c.b16 %v4010, %v4009
    %v4066 = vpack.c.b16 %v4012, %v4011
    %v4067 = vpack.c.b16 %v4014, %v4013
    %v4068 = vpack.c.b16 %v4016, %v4015
    %v4069 = vpack.c.b16 %v4018, %v4017
    %v4070 = vpack.c.b16 %v4020, %v4019
    %v4071 = vpack.c.b16 %v4022, %v4021
    %v4072 = vpack.c.b16 %v4024, %v4023
    %v4073 = vpack.c.b16 %v4026, %v4025
    %v4074 = vpack.c.b16 %v4028, %v4027
    %v4075 = vpack.c.b16 %v4030, %v4029
    %v4076 = vpack.c.b16 %v4032, %v4031
    %v4077 = vpack.c.b16 %v4034, %v4033
    %v4078 = vpack.c.b16 %v4036, %v4035
    %v4079 = vpack.c.b16 %v4038, %v4037
    %v4080 = vpack.c.b16 %v4040, %v4039
    %v4081 = vpack.c.b16 %v4042, %v4041
    %v4082 = vpack.c.b16 %v4044, %v4043
    %v4083 = vpack.c.b16 %v4046, %v4045
    %v4084 = vpack.c.b16 %v4048, %v4047
    %v4085 = vpack.c.b16 %v4050, %v4049
    %v4086 = vpack.c.b16 %v4052, %v4051
    %v4087 = vpack.c.b16 %v4054, %v4053
    %v4088 = vpack.c.b16 %v4056, %v4055
    %v4090 = vsel %vm317, %v4057, 4286644096
    %v4093 = vsel %vm317, %v4058, 4286644096
    %v4095 = vmax.bf16 %v4090, %v4093
    %v4097 = vsel %vm317, %v4059, 4286644096
    %v4099 = vmax.bf16 %v4095, %v4097
    %v4101 = vsel %vm317, %v4060, 4286644096
    %v4103 = vmax.bf16 %v4099, %v4101
    %v4104 = vunpack.i.l.bf16 %v4103
    %v4105 = vunpack.i.h.bf16 %v4103
    %v4106 = vmax.f32 %v4104, %v4105
    %v4107 = vrot.slane %v4106, 4
    %v4108 = vmax.f32 %v4106, %v4107
    %v4109 = vrot.slane %v4108, 2
    %v4110 = vmax.f32 %v4108, %v4109
    %v4111 = vrot.slane %v4110, 1
    %v4112 = vmax.f32 %v4110, %v4111
    %v4113 = vpack.i.bf16 %v4112, %v4112
    %v4115 = vsel %vm317, %v4061, 4286644096
    %v4118 = vsel %vm317, %v4062, 4286644096
    %v4120 = vmax.bf16 %v4115, %v4118
    %v4122 = vsel %vm317, %v4063, 4286644096
    %v4124 = vmax.bf16 %v4120, %v4122
    %v4126 = vsel %vm317, %v4064, 4286644096
    %v4128 = vmax.bf16 %v4124, %v4126
    %v4129 = vunpack.i.l.bf16 %v4128
    %v4130 = vunpack.i.h.bf16 %v4128
    %v4131 = vmax.f32 %v4129, %v4130
    %v4132 = vrot.slane %v4131, 4
    %v4133 = vmax.f32 %v4131, %v4132
    %v4134 = vrot.slane %v4133, 2
    %v4135 = vmax.f32 %v4133, %v4134
    %v4136 = vrot.slane %v4135, 1
    %v4137 = vmax.f32 %v4135, %v4136
    %v4138 = vpack.i.bf16 %v4137, %v4137
    %v4140 = vsel %vm317, %v4065, 4286644096
    %v4143 = vsel %vm317, %v4066, 4286644096
    %v4145 = vmax.bf16 %v4140, %v4143
    %v4147 = vsel %vm317, %v4067, 4286644096
    %v4149 = vmax.bf16 %v4145, %v4147
    %v4151 = vsel %vm317, %v4068, 4286644096
    %v4153 = vmax.bf16 %v4149, %v4151
    %v4154 = vunpack.i.l.bf16 %v4153
    %v4155 = vunpack.i.h.bf16 %v4153
    %v4156 = vmax.f32 %v4154, %v4155
    %v4157 = vrot.slane %v4156, 4
    %v4158 = vmax.f32 %v4156, %v4157
    %v4159 = vrot.slane %v4158, 2
    %v4160 = vmax.f32 %v4158, %v4159
    %v4161 = vrot.slane %v4160, 1
    %v4162 = vmax.f32 %v4160, %v4161
    %v4163 = vpack.i.bf16 %v4162, %v4162
    %v4165 = vsel %vm317, %v4069, 4286644096
    %v4168 = vsel %vm317, %v4070, 4286644096
    %v4170 = vmax.bf16 %v4165, %v4168
    %v4172 = vsel %vm317, %v4071, 4286644096
    %v4174 = vmax.bf16 %v4170, %v4172
    %v4176 = vsel %vm317, %v4072, 4286644096
    %v4178 = vmax.bf16 %v4174, %v4176
    %v4179 = vunpack.i.l.bf16 %v4178
    %v4180 = vunpack.i.h.bf16 %v4178
    %v4181 = vmax.f32 %v4179, %v4180
    %v4182 = vrot.slane %v4181, 4
    %v4183 = vmax.f32 %v4181, %v4182
    %v4184 = vrot.slane %v4183, 2
    %v4185 = vmax.f32 %v4183, %v4184
    %v4186 = vrot.slane %v4185, 1
    %v4187 = vmax.f32 %v4185, %v4186
    %v4188 = vpack.i.bf16 %v4187, %v4187
    %v4190 = vsel %vm317, %v4073, 4286644096
    %v4193 = vsel %vm317, %v4074, 4286644096
    %v4195 = vmax.bf16 %v4190, %v4193
    %v4197 = vsel %vm317, %v4075, 4286644096
    %v4199 = vmax.bf16 %v4195, %v4197
    %v4201 = vsel %vm317, %v4076, 4286644096
    %v4203 = vmax.bf16 %v4199, %v4201
    %v4204 = vunpack.i.l.bf16 %v4203
    %v4205 = vunpack.i.h.bf16 %v4203
    %v4206 = vmax.f32 %v4204, %v4205
    %v4207 = vrot.slane %v4206, 4
    %v4208 = vmax.f32 %v4206, %v4207
    %v4209 = vrot.slane %v4208, 2
    %v4210 = vmax.f32 %v4208, %v4209
    %v4211 = vrot.slane %v4210, 1
    %v4212 = vmax.f32 %v4210, %v4211
    %v4213 = vpack.i.bf16 %v4212, %v4212
    %v4215 = vsel %vm317, %v4077, 4286644096
    %v4218 = vsel %vm317, %v4078, 4286644096
    %v4220 = vmax.bf16 %v4215, %v4218
    %v4222 = vsel %vm317, %v4079, 4286644096
    %v4224 = vmax.bf16 %v4220, %v4222
    %v4226 = vsel %vm317, %v4080, 4286644096
    %v4228 = vmax.bf16 %v4224, %v4226
    %v4229 = vunpack.i.l.bf16 %v4228
    %v4230 = vunpack.i.h.bf16 %v4228
    %v4231 = vmax.f32 %v4229, %v4230
    %v4232 = vrot.slane %v4231, 4
    %v4233 = vmax.f32 %v4231, %v4232
    %v4234 = vrot.slane %v4233, 2
    %v4235 = vmax.f32 %v4233, %v4234
    %v4236 = vrot.slane %v4235, 1
    %v4237 = vmax.f32 %v4235, %v4236
    %v4238 = vpack.i.bf16 %v4237, %v4237
    %v4240 = vsel %vm317, %v4081, 4286644096
    %v4243 = vsel %vm317, %v4082, 4286644096
    %v4245 = vmax.bf16 %v4240, %v4243
    %v4247 = vsel %vm317, %v4083, 4286644096
    %v4249 = vmax.bf16 %v4245, %v4247
    %v4251 = vsel %vm317, %v4084, 4286644096
    %v4253 = vmax.bf16 %v4249, %v4251
    %v4254 = vunpack.i.l.bf16 %v4253
    %v4255 = vunpack.i.h.bf16 %v4253
    %v4256 = vmax.f32 %v4254, %v4255
    %v4257 = vrot.slane %v4256, 4
    %v4258 = vmax.f32 %v4256, %v4257
    %v4259 = vrot.slane %v4258, 2
    %v4260 = vmax.f32 %v4258, %v4259
    %v4261 = vrot.slane %v4260, 1
    %v4262 = vmax.f32 %v4260, %v4261
    %v4263 = vpack.i.bf16 %v4262, %v4262
    %v4265 = vsel %vm317, %v4085, 4286644096
    %v4268 = vsel %vm317, %v4086, 4286644096
    %v4270 = vmax.bf16 %v4265, %v4268
    %v4272 = vsel %vm317, %v4087, 4286644096
    %v4274 = vmax.bf16 %v4270, %v4272
    %v4276 = vsel %vm317, %v4088, 4286644096
    %v4278 = vmax.bf16 %v4274, %v4276
    %v4279 = vunpack.i.l.bf16 %v4278
    %v4280 = vunpack.i.h.bf16 %v4278
    %v4281 = vmax.f32 %v4279, %v4280
    %v4282 = vrot.slane %v4281, 4
    %v4283 = vmax.f32 %v4281, %v4282
    %v4284 = vrot.slane %v4283, 2
    %v4285 = vmax.f32 %v4283, %v4284
    %v4286 = vrot.slane %v4285, 1
    %v4287 = vmax.f32 %v4285, %v4286
    %v4288 = vpack.i.bf16 %v4287, %v4287
    %v4289 = vunpack.c.l.bf16 %v4113
    %v4290 = vunpack.c.l.bf16 %v4138
    %v4291 = vunpack.c.l.bf16 %v4163
    %v4292 = vunpack.c.l.bf16 %v4188
    %v4293 = vunpack.c.l.bf16 %v4213
    %v4294 = vunpack.c.l.bf16 %v4238
    %v4295 = vunpack.c.l.bf16 %v4263
    %v4296 = vunpack.c.l.bf16 %v4288
    %4297 = vset.pattern.permute.xlu0 1
    %4298 = vperm.xlu0 %4297, %v1988
    %v4299 = vpop.permute.xlu0 %4298
    %v4300 = vrot.slane %v4299, 1
    %v4301 = vrot.slane %v4299, 2
    %v4302 = vrot.slane %v4299, 3
    %v4303 = vrot.slane %v4299, 4
    %v4304 = vrot.slane %v4299, 5
    %v4305 = vrot.slane %v4299, 6
    %v4306 = vrot.slane %v4299, 7
    %v4315 = vmul.f32 %v4289, %v4299
    %v4316 = vmul.f32 %v4290, %v4300
    %v4317 = vmul.f32 %v4291, %v4301
    %v4318 = vmul.f32 %v4292, %v4302
    %v4319 = vmul.f32 %v4293, %v4303
    %v4320 = vmul.f32 %v4294, %v4304
    %v4321 = vmul.f32 %v4295, %v4305
    %v4322 = vmul.f32 %v4296, %v4306
    %v4323 = vpack.c.bf16 %v4315, %v4315
    %v4324 = vpack.c.bf16 %v4316, %v4316
    %v4325 = vpack.c.bf16 %v4317, %v4317
    %v4326 = vpack.c.bf16 %v4318, %v4318
    %v4327 = vpack.c.bf16 %v4319, %v4319
    %v4328 = vpack.c.bf16 %v4320, %v4320
    %v4329 = vpack.c.bf16 %v4321, %v4321
    %v4330 = vpack.c.bf16 %v4322, %v4322
    %v4339 = vunpack.c.l.b16 %v3153
    %v4340 = vunpack.c.l.b16 %v3154
    %v4341 = vunpack.c.l.b16 %v3155
    %v4342 = vunpack.c.l.b16 %v3156
    %v4343 = vunpack.c.l.b16 %v3157
    %v4344 = vunpack.c.l.b16 %v3158
    %v4345 = vunpack.c.l.b16 %v3159
    %v4346 = vunpack.c.l.b16 %v3160
    %v4347 = vrot.slane %v4340, 7
    %v4348 = vsel %vm1949, %v4347, %v4339
    %v4349 = vrot.slane %v4341, 6
    %v4350 = vsel %vm1951, %v4349, %v4348
    %v4351 = vrot.slane %v4342, 5
    %v4352 = vsel %vm1953, %v4351, %v4350
    %v4353 = vrot.slane %v4343, 4
    %v4354 = vsel %vm1955, %v4353, %v4352
    %v4355 = vrot.slane %v4344, 3
    %v4356 = vsel %vm1957, %v4355, %v4354
    %v4357 = vrot.slane %v4345, 2
    %v4358 = vsel %vm1959, %v4357, %v4356
    %v4359 = vrot.slane %v4346, 1
    %v4360 = vsel %vm1961, %v4359, %v4358
    %v4361 = vpack.c.b16 %v4360, %v4360
    %v4370 = vunpack.c.l.b16 %v4323
    %v4371 = vunpack.c.l.b16 %v4324
    %v4372 = vunpack.c.l.b16 %v4325
    %v4373 = vunpack.c.l.b16 %v4326
    %v4374 = vunpack.c.l.b16 %v4327
    %v4375 = vunpack.c.l.b16 %v4328
    %v4376 = vunpack.c.l.b16 %v4329
    %v4377 = vunpack.c.l.b16 %v4330
    %v4378 = vrot.slane %v4371, 7
    %v4379 = vsel %vm1949, %v4378, %v4370
    %v4380 = vrot.slane %v4372, 6
    %v4381 = vsel %vm1951, %v4380, %v4379
    %v4382 = vrot.slane %v4373, 5
    %v4383 = vsel %vm1953, %v4382, %v4381
    %v4384 = vrot.slane %v4374, 4
    %v4385 = vsel %vm1955, %v4384, %v4383
    %v4386 = vrot.slane %v4375, 3
    %v4387 = vsel %vm1957, %v4386, %v4385
    %v4388 = vrot.slane %v4376, 2
    %v4389 = vsel %vm1959, %v4388, %v4387
    %v4390 = vrot.slane %v4377, 1
    %v4391 = vsel %vm1961, %v4390, %v4389
    %v4392 = vpack.c.b16 %v4391, %v4391
    %4393 = vrot.lane.b32.xlu0 %v4392, 64
    %v4394 = vpop.permute.xlu0 %4393
    %v4397 = vsel %vm317, %v4361, %v4394
    %v4399 = vld [vmem:[#allocation7] sm:$0xf]
    %v4400 = vld [vmem:[#allocation7 + $0x4] sm:$0xf]
    %v4401 = vld [vmem:[#allocation7 + $0x8] sm:$0xf]
    %v4402 = vld [vmem:[#allocation7 + $0xc] sm:$0xf]
    %v4403 = vld [vmem:[#allocation7 + $0x10] sm:$0xf]
    %v4404 = vld [vmem:[#allocation7 + $0x14] sm:$0xf]
    %v4405 = vld [vmem:[#allocation7 + $0x18] sm:$0xf]
    %v4406 = vld [vmem:[#allocation7 + $0x1c] sm:$0xf]
    %v4407 = vld [vmem:[#allocation7 + $0x20] sm:$0xf]
    %v4408 = vld [vmem:[#allocation7 + $0x24] sm:$0xf]
    %v4409 = vld [vmem:[#allocation7 + $0x28] sm:$0xf]
    %v4410 = vld [vmem:[#allocation7 + $0x2c] sm:$0xf]
    %v4411 = vld [vmem:[#allocation7 + $0x30] sm:$0xf]
    %v4412 = vld [vmem:[#allocation7 + $0x34] sm:$0xf]
    %v4413 = vld [vmem:[#allocation7 + $0x38] sm:$0xf]
    %v4414 = vld [vmem:[#allocation7 + $0x3c] sm:$0xf]
    %v4431 = vunpack.c.l.b16 %v4399
    %v4432 = vunpack.c.l.b16 %v4400
    %v4433 = vunpack.c.l.b16 %v4401
    %v4434 = vunpack.c.l.b16 %v4402
    %v4435 = vunpack.c.l.b16 %v4403
    %v4436 = vunpack.c.l.b16 %v4404
    %v4437 = vunpack.c.l.b16 %v4405
    %v4438 = vunpack.c.l.b16 %v4406
    %v4439 = vunpack.c.l.b16 %v4407
    %v4440 = vunpack.c.l.b16 %v4408
    %v4441 = vunpack.c.l.b16 %v4409
    %v4442 = vunpack.c.l.b16 %v4410
    %v4443 = vunpack.c.l.b16 %v4411
    %v4444 = vunpack.c.l.b16 %v4412
    %v4445 = vunpack.c.l.b16 %v4413
    %v4446 = vunpack.c.l.b16 %v4414
    %v4447 = vpack.c.b16 %v4432, %v4431
    %v4448 = vpack.c.b16 %v4434, %v4433
    %v4449 = vpack.c.b16 %v4436, %v4435
    %v4450 = vpack.c.b16 %v4438, %v4437
    %v4451 = vpack.c.b16 %v4440, %v4439
    %v4452 = vpack.c.b16 %v4442, %v4441
    %v4453 = vpack.c.b16 %v4444, %v4443
    %v4454 = vpack.c.b16 %v4446, %v4445
    %4463 = vmatprep.subr.bf16.mxu0 0
    %4464 = vmatpush1.bf16.msra.mxu0 %v4454
    %4465 = vmatprep.subr.bf16.mxu0 0
    %4466 = vmatpush1.bf16.msra.mxu0 %v4453
    %4467 = vmatprep.subr.bf16.mxu0 0
    %4468 = vmatpush1.bf16.msra.mxu0 %v4452
    %4469 = vmatprep.subr.bf16.mxu0 0
    %4470 = vmatpush1.bf16.msra.mxu0 %v4451
    %4471 = vmatprep.subr.bf16.mxu0 0
    %4472 = vmatpush1.bf16.msra.mxu0 %v4450
    %4473 = vmatprep.subr.bf16.mxu0 0
    %4474 = vmatpush1.bf16.msra.mxu0 %v4449
    %4475 = vmatprep.subr.bf16.mxu0 0
    %4476 = vmatpush1.bf16.msra.mxu0 %v4448
    %4477 = vmatprep.subr.bf16.mxu0 0
    %4478 = vmatpush1.bf16.msra.mxu0 %v4447
    %4479 = vmatprep.subr.bf16.mxu0 0
    %4480 = vmatpush2.bf16.msra.mxu0 0
    %4481 = vmatprep.subr.bf16.mxu0 0
    %4482 = vmatpush2.bf16.msra.mxu0 0
    %4483 = vmatprep.subr.bf16.mxu0 0
    %4484 = vmatpush2.bf16.msra.mxu0 0
    %4485 = vmatprep.subr.bf16.mxu0 0
    %4486 = vmatpush2.bf16.msra.mxu0 0
    %4487 = vmatprep.subr.bf16.mxu0 0
    %4488 = vmatpush2.bf16.msra.mxu0 0
    %4489 = vmatprep.subr.bf16.mxu0 0
    %4490 = vmatpush2.bf16.msra.mxu0 0
    %4491 = vmatprep.subr.bf16.mxu0 0
    %4492 = vmatpush2.bf16.msra.mxu0 0
    %4493 = vmatprep.subr.bf16.mxu0 0
    %4494 = vmatpush2.bf16.msra.mxu0 0
    %4495 = vmatprep.mubr.bf16.mxu0 0
    %4496 = vmatmul.mubr.bf16.gmra.mxu0 %v4397
    %v4497 = vpop.f32.mrf.mxu0
    %v4498 = vadd.f32 0.0, %v4497
    %v4499 = vpop.f32.mrf.mxu0
    %v4500 = vpop.f32.mrf.mxu0
    %v4501 = vpop.f32.mrf.mxu0
    %4502 = vdwg.mxu0
    %4503 = vst [vmem:[#allocation9] sm:$0xff] %v4498
    // Predicated region
    $region30: #{tpu_custom_call.1} parent=1 // pred_check
      _
    $region31: #{tpu_custom_call.1} parent=1 // pred_check_branch
      %4505 = sbr.rel (0) target = $region33
    $region32: #{tpu_custom_call.1} parent=1 // pred_region
      %s4507 = ssub.s32 128, 128
      %4508 = vsyncadd [#allocation4], %s4507
      %s4510 = sshll.u32 [#allocation9], 4
      %s4511 = int_to_ptr.vmem [resolvable:$true] %s4510
      %4513 = dma.vmem_to_hbm [thread:$0]  %s4511, 128, %s4, [#allocation4]
    $region33: #{tpu_custom_call.1} parent=1 // pred_fallthru
      _
    // Predicated region
    $region34: #{tpu_custom_call.1} parent=1 // pred_check
      _
    $region35: #{tpu_custom_call.1} parent=1 // pred_check_branch
      %4515 = sbr.rel (0) target = $region37
    $region36: #{tpu_custom_call.1} parent=1 // pred_region
      %4516 = dma.done [#allocation4], 128
    $region37: #{tpu_custom_call.1} parent=1 // pred_fallthru
      _
    %4517 = vsyncpa [#allocation3], 1
    %4518 = vsyncpa [#allocation8], 1
    %4519 = vsyncpa [#allocation4], 1
    %4520 = vsyncpa [#allocation5], 1

</llo_original>
